<compile_context>
chip_gen: v7x
topology: tpu7x:2x2x1
jax: 0.10.0
libtpu: 0.0.40
codegen_flags: <defaults>
</compile_context>

<pallas_src>
import functools

import jax
import jax.numpy as jnp
from jax.experimental import pallas as pl
from jax.experimental.pallas import tpu as pltpu


def _round_up(v, m):
    return (v + m - 1) // m * m


# ----------------------------------------------------------------------------
# Kernel 1: backbone stand-in.  One grid step per block of timesteps.
# ----------------------------------------------------------------------------
def backbone_kernel(p_ref, pt_ref, cw_ref, cb_ref, pw_ref, pb_ref, o_ref, *, B, hw):
    # p_ref : (9C, nf*hw) bf16   im2col patches, nf = tb*B frames (time-major)
    # pt_ref: (nf, nf*hw) bf16   per-frame averaging matrix (block-of-ones)
    # cw_ref: (Cs, 9C)    bf16   3x3 stem conv weight (tap-major columns)
    # cb_ref: (Cs, 1)     f32    conv bias
    # pw_ref: (Cs, F)     bf16   GAP -> feature projection
    # pb_ref: (1, F)      f32    projection bias
    # o_ref : (tb, Bp, F) bf16   per-(timestep, batch) feature rows (batch padded)
    f32, bf16 = jnp.float32, jnp.bfloat16
    tb, Bp, F = o_ref.shape

    # 3x3 stem conv for the whole frame block: one MXU matmul (K = 9C, N = nf*hw).
    conv = jnp.dot(cw_ref[...], p_ref[...], preferred_element_type=f32) + cb_ref[...]
    act = (conv * jax.nn.sigmoid(conv)).astype(bf16)              # SiLU, (Cs, nf*hw)

    # Per-frame global average pool as ONE MXU matmul: contract the pixel/lane
    # axis of both operands (A @ B^T form) -> (nf, Cs); no XLU reductions.
    pooled = jax.lax.dot_general(pt_ref[...], act,
                                 dimension_numbers=(((1,), (1,)), ((), ())),
                                 preferred_element_type=f32)
    pooled = (pooled * (1.0 / hw)).astype(bf16)                   # (nf, Cs)

    # Feature projection; rows come out in (t*B + b) time-major order.
    feat = jnp.dot(pooled, pw_ref[...], preferred_element_type=f32) + pb_ref[...]

    # Dense (Bp, F) store per timestep; batch rows padded to the 8-sublane tile.
    zpad = jnp.zeros((Bp - B, F), f32) if B < Bp else None
    for t in range(tb):                                           # static, small
        rows = feat[t * B:(t + 1) * B]
        if B < Bp:
            rows = jnp.concatenate([rows, zpad], axis=0)
        o_ref[t] = rows.astype(o_ref.dtype)


def im2col_3x3(frames):
    """(N, C, H, W) -> (9*C, N*H*W) patches for a 3x3 'same' convolution.

    Row order is tap-major then channel (row = tap*C + c); a real PyTorch
    Conv2d weight flattened channel-major would need a permutation first.
    """
    N, C, H, W = frames.shape
    xp = jnp.pad(frames, ((0, 0), (0, 0), (1, 1), (1, 1)))
    taps = [xp[:, :, dy:dy + H, dx:dx + W].reshape(N, C, H * W)
            for dy in range(3) for dx in range(3)]
    pat = jnp.stack(taps, axis=0)              # (9, N, C, HW)
    pat = jnp.transpose(pat, (0, 2, 1, 3))     # (9, C, N, HW)
    return pat.reshape(9 * C, N * H * W)


def make_pool_matrix(nf, hw, dtype=jnp.bfloat16):
    """(nf, nf*hw) block-of-ones matrix: row f is 1 on the pixels of frame f."""
    frm = jnp.arange(nf, dtype=jnp.int32)[:, None]
    pix = jnp.arange(nf * hw, dtype=jnp.int32)[None, :] // hw
    return (frm == pix).astype(dtype)


def run_backbone(frames, params, *, T, B, Bp, timesteps_per_block=None):
    # frames: (T*B, C, H, W) time-major.  Output: (T, Bp, F) bf16, batch padded.
    N, C, H, W = frames.shape
    hw = H * W
    Cs, F = params["proj_w"].shape

    # At toy sizes one block covers the whole clip; at real sizes pick tb so one
    # block moves ~1-4 MB of patches (halve it for v7x's 64 MiB VMEM).
    tb = T if timesteps_per_block is None else max(1, min(timesteps_per_block, T))
    while T % tb:
        tb -= 1
    nf = tb * B

    patches = im2col_3x3(frames.astype(jnp.bfloat16))      # lane-dense bf16 slab
    pool_t = make_pool_matrix(nf, hw)

    return pl.pallas_call(
        functools.partial(backbone_kernel, B=B, hw=hw),
        out_shape=jax.ShapeDtypeStruct((T, Bp, F), jnp.bfloat16),
        grid=(T // tb,),
        in_specs=[
            pl.BlockSpec((9 * C, nf * hw), lambda i: (0, i)),
            pl.BlockSpec((nf, nf * hw), lambda i: (0, 0)),
            pl.BlockSpec((Cs, 9 * C), lambda i: (0, 0)),
            pl.BlockSpec((Cs, 1), lambda i: (0, 0)),
            pl.BlockSpec((Cs, F), lambda i: (0, 0)),
            pl.BlockSpec((1, F), lambda i: (0, 0)),
        ],
        out_specs=pl.BlockSpec((tb, Bp, F), lambda i: (i, 0, 0)),
        compiler_params=pltpu.CompilerParams(
            # timestep blocks are independent -> v7x can shard across its 2 TCs.
            dimension_semantics=("parallel",)),
    )(patches, pool_t, params["conv_w"], params["conv_b"],
      params["proj_w"], params["proj_b"])


# ----------------------------------------------------------------------------
# Kernel 2: full 2-layer bidirectional GRU stack + classifier, one pallas_call.
# PyTorch GRU gate semantics (gate order r, z, n):
#   r = sigmoid(x W_ir + b_ir + h W_hr + b_hr)
#   z = sigmoid(x W_iz + b_iz + h W_hz + b_hz)
#   n = tanh  (x W_in + b_in + r * (h W_hn + b_hn))
#   h' = (1 - z) * n + z * h
# All hidden/gate tensors use 128-lane-padded slots (Hs); padded weight rows /
# columns are zero so padded lanes never contaminate real outputs.
# ----------------------------------------------------------------------------
def gru_stack_kernel(B,
                     seq_ref,
                     wih0_ref, whh0_ref, bx0_ref, bhn0_ref,
                     wih1f_ref, wih1b_ref, whh1_ref, bx1_ref, bhn1_ref,
                     w1_ref, b1_ref, w2_ref, b2_ref,
                     logits_ref,
                     gx0f_ref, gx0b_ref, gx1f_ref, y0f_ref, y0b_ref):
    f32, bf16 = jnp.float32, jnp.bfloat16
    T, Bp, F = seq_ref.shape
    Hs = whh0_ref.shape[1]          # 128-lane-padded hidden slot
    G = 3 * Hs                      # [r | z | n] lane-concatenated gate slots

    def slot(a, g):                 # gate slot g: 128-lane-aligned static slice
        return a[:, g * Hs:(g + 1) * Hs]

    def make_step(whh, bhn_row):
        bhn = jnp.broadcast_to(bhn_row, (Bp, Hs))     # hoisted broadcast
        def step(h, gx):
            # ONE recurrent MXU matmul per step: all 3 gates lane-concatenated.
            gh = jnp.dot(h.astype(bf16), whh, preferred_element_type=f32)
            r = jax.nn.sigmoid(slot(gx, 0) + slot(gh, 0))
            z = jax.nn.sigmoid(slot(gx, 1) + slot(gh, 1))
            n = jnp.tanh(slot(gx, 2) + r * (slot(gh, 2) + bhn))
            return (1.0 - z) * n + z * h
        return step

    h0 = jnp.zeros((Bp, Hs), f32)

    # ---- layer 0: hoisted input projection, both directions + all gates fused -
    x = seq_ref[...].reshape(T * Bp, F)                               # bf16, free
    gxa = jnp.dot(x, wih0_ref[...], preferred_element_type=f32)       # (T*Bp, 2G)
    gx0f_ref[...] = (gxa[:, :G] + bx0_ref[0]).reshape(T, Bp, G)
    gx0b_ref[...] = (gxa[:, G:] + bx0_ref[1]).reshape(T, Bp, G)

    step0f = make_step(whh0_ref[0], bhn0_ref[0])
    step0b = make_step(whh0_ref[1], bhn0_ref[1])

    def body0(t, carry):
        hf, hb = carry
        tr = T - 1 - t
        hf = step0f(hf, gx0f_ref[t])
        hb = step0b(hb, gx0b_ref[tr])
        y0f_ref[t] = hf                     # dense (Bp, Hs) = full-tile stores
        y0b_ref[tr] = hb
        return hf, hb

    _ = jax.lax.fori_loop(0, T, body0, (h0, h0), unroll=True)

    # ---- layer 1 (inter-layer dropout = identity in eval) ---------------------
    ycat = jnp.concatenate([y0f_ref[...].reshape(T * Bp, Hs),
                            y0b_ref[...].reshape(T * Bp, Hs)], axis=1).astype(bf16)
    gx1 = jnp.dot(ycat, wih1f_ref[...], preferred_element_type=f32) + bx1_ref[0]
    gx1f_ref[...] = gx1.reshape(T, Bp, G)

    step1f = make_step(whh1_ref[0], bhn1_ref[0])
    h1f = jax.lax.fori_loop(0, T, lambda t, h: step1f(h, gx1f_ref[t]), h0,
                            unroll=True)

    # Backward direction: the classifier consumes gru_out[:, -1, Hn:], i.e. the
    # backward hidden after its FIRST step (input t = T-1, h0 = 0) -> one step,
    # and its input projection is computed only for the last-timestep rows.
    ylast = jnp.concatenate([y0f_ref[T - 1], y0b_ref[T - 1]], axis=1).astype(bf16)
    gx1b = jnp.dot(ylast, wih1b_ref[...], preferred_element_type=f32) + bx1_ref[1]
    step1b = make_step(whh1_ref[1], bhn1_ref[1])
    h1b = step1b(h0, gx1b)

    # ---- classifier (fused; Dropout = identity in eval) -----------------------
    hcat = jnp.concatenate([h1f, h1b], axis=1)                        # (Bp, 2*Hs)
    hid = jnp.maximum(
        jnp.dot(hcat, w1_ref[...], preferred_element_type=f32) + b1_ref[...], 0.0)
    logits = jnp.dot(hid, w2_ref[...], preferred_element_type=f32) + b2_ref[...]
    logits_ref[...] = logits[:B]


def run_gru_stack(seq, params, *, batch):
    T, Bp, _F = seq.shape
    Hs = params["whh0"].shape[1]
    G = params["whh0"].shape[2]
    vmem = lambda: pl.BlockSpec(memory_space=pltpu.MemorySpace.VMEM)
    args = (seq,
            params["wih0"], params["whh0"], params["bx0"], params["bhn0"],
            params["wih1f"], params["wih1b"], params["whh1"],
            params["bx1"], params["bhn1"],
            params["cls_w1"], params["cls_b1"], params["cls_w2"], params["cls_b2"])
    return pl.pallas_call(
        functools.partial(gru_stack_kernel, batch),
        out_shape=jax.ShapeDtypeStruct((batch, 2), jnp.float32),
        in_specs=[vmem() for _ in args],
        out_specs=vmem(),
        scratch_shapes=[
            pltpu.VMEM((T, Bp, G), jnp.float32),    # layer-0 fwd hoisted gates
            pltpu.VMEM((T, Bp, G), jnp.float32),    # layer-0 bwd hoisted gates
            pltpu.VMEM((T, Bp, G), jnp.float32),    # layer-1 fwd hoisted gates
            pltpu.VMEM((T, Bp, Hs), jnp.float32),   # layer-0 fwd outputs
            pltpu.VMEM((T, Bp, Hs), jnp.float32),   # layer-0 bwd outputs
        ],
    )(*args)


# ----------------------------------------------------------------------------
# Parameter construction (deterministic, synthetic).  Weights are built directly
# in the padded kernel layout; padded rows/columns are zero.
# ----------------------------------------------------------------------------
def _pad_gates(w, Hn, Hs):
    """(K, 3*Hn) -> (K, 3*Hs): gate g goes to lanes [g*Hs, g*Hs+Hn)."""
    out = jnp.zeros((w.shape[0], 3 * Hs), w.dtype)
    for g in range(3):
        out = out.at[:, g * Hs:g * Hs + Hn].set(w[:, g * Hn:(g + 1) * Hn])
    return out


def _pad_slots_rows(w, Hn, Hs, nslots):
    """(nslots*Hn, N) -> (nslots*Hs, N): slot s goes to rows [s*Hs, s*Hs+Hn)."""
    out = jnp.zeros((nslots * Hs, w.shape[1]), w.dtype)
    for s in range(nslots):
        out = out.at[s * Hs:s * Hs + Hn, :].set(w[s * Hn:(s + 1) * Hn, :])
    return out


def make_params(key, *, in_ch=3, stem_ch=8, feature_size=128, hidden_size=32):
    f32, bf16 = jnp.float32, jnp.bfloat16
    F, Hn = feature_size, hidden_size
    Hs = _round_up(Hn, 128)

    ks = iter(jax.random.split(key, 32))

    def u(k, shape, scale=0.1):
        return jax.random.uniform(k, shape, f32, -scale, scale)

    def gru_layer(in_dim, in_slots):
        wih, whh, bx, bhn = [], [], [], []
        for _d in range(2):                                    # fwd, bwd
            w_i = u(next(ks), (in_dim, 3 * Hn))
            w_h = u(next(ks), (Hn, 3 * Hn))
            b_i = u(next(ks), (1, 3 * Hn))
            b_h = u(next(ks), (1, 3 * Hn))
            w_ip = _pad_gates(w_i, Hn, Hs)
            if in_slots > 1:
                w_ip = _pad_slots_rows(w_ip, in_dim // in_slots, Hs, in_slots)
            wih.append(w_ip.astype(bf16))
            whh.append(_pad_slots_rows(_pad_gates(w_h, Hn, Hs), Hn, Hs, 1)
                       .astype(bf16))
            # r/z: b_ih + b_hh fold into the hoisted projection; n: b_ih only.
            fold = jnp.concatenate([b_i[:, :2 * Hn] + b_h[:, :2 * Hn],
                                    b_i[:, 2 * Hn:]], axis=1)
            bx.append(_pad_gates(fold, Hn, Hs))
            bhn.append(jnp.zeros((1, Hs), f32).at[:, :Hn].set(b_h[:, 2 * Hn:]))
        return wih, jnp.stack(whh), jnp.stack(bx), jnp.stack(bhn)

    params = {
        # synthetic backbone (EfficientNet-B0 stand-in); MXU operands in bf16
        "conv_w": u(next(ks), (stem_ch, 9 * in_ch)).astype(bf16),
        "conv_b": u(next(ks), (stem_ch, 1)),
        "proj_w": u(next(ks), (stem_ch, F)).astype(bf16),
        "proj_b": u(next(ks), (1, F)),
    }

    ih0, whh0, bx0, bhn0 = gru_layer(F, 1)
    ih1, whh1, bx1, bhn1 = gru_layer(2 * Hn, 2)
    params.update({
        "wih0": jnp.concatenate(ih0, axis=1),   # (F, 2*3*Hs): [fwd | bwd] gates
        "whh0": whh0, "bx0": bx0, "bhn0": bhn0,
        "wih1f": ih1[0], "wih1b": ih1[1],
        "whh1": whh1, "bx1": bx1, "bhn1": bhn1,
        # classifier: Linear(2*Hn, 128) -> ReLU -> Linear(128, 2)
        "cls_w1": _pad_slots_rows(u(next(ks), (2 * Hn, 128)), Hn, Hs, 2),
        "cls_b1": u(next(ks), (1, 128)),
        "cls_w2": u(next(ks), (128, 2)),
        "cls_b2": u(next(ks), (1, 2)),
    })
    return params


# ----------------------------------------------------------------------------
# Full forward pass (glue in plain JAX, hot paths in Pallas)
# ----------------------------------------------------------------------------
@jax.jit
def efficient_gru_forward(x, params):
    # x: (B, T, C, H, W) -- NCHW per frame, like the PyTorch module.
    B, T, C, H, W = x.shape
    Bp = _round_up(B, 8)
    # Reorder frames time-major up front so the backbone writes features in the
    # exact (t, b) layout the GRU kernel consumes (no inter-kernel transpose).
    frames = jnp.transpose(x, (1, 0, 2, 3, 4)).reshape(T * B, C, H, W)
    feats = run_backbone(frames, params, T=T, B=B, Bp=Bp)   # (T, Bp, F) bf16
    return run_gru_stack(feats, params, batch=B)            # (B, 2) f32


if __name__ == "__main__":
    B, T, C, HW = 2, 8, 3, 16
    key = jax.random.PRNGKey(0)
    k_x, k_p = jax.random.split(key)

    x = jax.random.normal(k_x, (B, T, C, HW, HW), jnp.float32)
    params = make_params(k_p, in_ch=C, stem_ch=8, feature_size=128, hidden_size=32)

    out = efficient_gru_forward(x, params)
    out = jax.block_until_ready(out)
    assert out.shape == (B, 2), out.shape
    assert bool(jnp.all(jnp.isfinite(out)))
    print("KERNEL_OK")
</pallas_src>

<mosaic_0001>
module attributes {stable_mosaic.version = 11 : i64} {
  func.func @backbone_kernel(%arg0: i32, %arg1: memref<27x4096xbf16, #tpu.memory_space<vmem>>, %arg2: memref<16x4096xbf16, #tpu.memory_space<vmem>>, %arg3: memref<8x27xbf16, #tpu.memory_space<vmem>>, %arg4: memref<8x1xf32, #tpu.memory_space<vmem>>, %arg5: memref<8x128xbf16, #tpu.memory_space<vmem>>, %arg6: memref<1x128xf32, #tpu.memory_space<vmem>>, %arg7: memref<8x8x128xbf16, #tpu.memory_space<vmem>>) attributes {dimension_semantics = [#tpu.dimension_semantics<parallel>], iteration_bounds = array<i64: 1>, scalar_prefetch = 0 : i64, scratch_operands = 0 : i64, tpu.core_type = #tpu.core_type<tc>, window_params = [{transform_indices = @transform_0, window_bounds = array<i64: 27, 4096>}, {pipeline_mode = #tpu.pipeline_mode<synchronous>, transform_indices = @transform_1, window_bounds = array<i64: 16, 4096>}, {pipeline_mode = #tpu.pipeline_mode<synchronous>, transform_indices = @transform_2, window_bounds = array<i64: 8, 27>}, {pipeline_mode = #tpu.pipeline_mode<synchronous>, transform_indices = @transform_3, window_bounds = array<i64: 8, 1>}, {pipeline_mode = #tpu.pipeline_mode<synchronous>, transform_indices = @transform_4, window_bounds = array<i64: 8, 128>}, {pipeline_mode = #tpu.pipeline_mode<synchronous>, transform_indices = @transform_5, window_bounds = array<i64: 1, 128>}, {transform_indices = @transform_6, window_bounds = array<i64: 8, 8, 128>}]} {
    %c0 = arith.constant 0 : index
    %c0_0 = arith.constant 0 : index
    %0 = vector.load %arg3[%c0, %c0_0] : memref<8x27xbf16, #tpu.memory_space<vmem>>, vector<8x27xbf16>
    %c0_1 = arith.constant 0 : index
    %c0_2 = arith.constant 0 : index
    %1 = vector.load %arg1[%c0_1, %c0_2] : memref<27x4096xbf16, #tpu.memory_space<vmem>>, vector<27x4096xbf16>
    %cst = arith.constant dense<0.000000e+00> : vector<8x4096xf32>
    %2 = tpu.matmul %0, %1, %cst {dimension_numbers = #tpu.dot_dimension_numbers<[1], [0], [0], [1], [0, 0, 1, 1], [], []>} : vector<8x27xbf16>, vector<27x4096xbf16>, vector<8x4096xf32> -> vector<8x4096xf32>
    %c0_3 = arith.constant 0 : index
    %c0_4 = arith.constant 0 : index
    %3 = vector.load %arg4[%c0_3, %c0_4] : memref<8x1xf32, #tpu.memory_space<vmem>>, vector<8x1xf32>
    %4 = vector.broadcast %3 : vector<8x1xf32> to vector<8x4096xf32>
    %5 = arith.addf %2, %4 : vector<8x4096xf32>
    %6 = arith.negf %5 : vector<8x4096xf32>
    %7 = math.exp %6 : vector<8x4096xf32>
    %cst_5 = arith.constant 1.000000e+00 : f32
    %8 = vector.broadcast %cst_5 : f32 to vector<8x4096xf32>
    %9 = arith.addf %8, %7 : vector<8x4096xf32>
    %10 = arith.divf %8, %9 : vector<8x4096xf32>
    %11 = arith.mulf %5, %10 : vector<8x4096xf32>
    %12 = arith.truncf %11 : vector<8x4096xf32> to vector<8x4096xbf16>
    %c0_6 = arith.constant 0 : index
    %c0_7 = arith.constant 0 : index
    %13 = vector.load %arg2[%c0_6, %c0_7] : memref<16x4096xbf16, #tpu.memory_space<vmem>>, vector<16x4096xbf16>
    %cst_8 = arith.constant dense<0.000000e+00> : vector<16x8xf32>
    %14 = tpu.matmul %13, %12, %cst_8 {dimension_numbers = #tpu.dot_dimension_numbers<[1], [1], [0], [0], [0, 0, 1, 0], [], []>} : vector<16x4096xbf16>, vector<8x4096xbf16>, vector<16x8xf32> -> vector<16x8xf32>
    %cst_9 = arith.constant 3.906250e-03 : f32
    %15 = vector.broadcast %cst_9 : f32 to vector<16x8xf32>
    %16 = arith.mulf %14, %15 : vector<16x8xf32>
    %17 = arith.truncf %16 : vector<16x8xf32> to vector<16x8xbf16>
    %c0_10 = arith.constant 0 : index
    %c0_11 = arith.constant 0 : index
    %18 = vector.load %arg5[%c0_10, %c0_11] : memref<8x128xbf16, #tpu.memory_space<vmem>>, vector<8x128xbf16>
    %cst_12 = arith.constant dense<0.000000e+00> : vector<16x128xf32>
    %19 = tpu.matmul %17, %18, %cst_12 {dimension_numbers = #tpu.dot_dimension_numbers<[1], [0], [0], [1], [0, 0, 1, 1], [], []>} : vector<16x8xbf16>, vector<8x128xbf16>, vector<16x128xf32> -> vector<16x128xf32>
    %c0_13 = arith.constant 0 : index
    %c0_14 = arith.constant 0 : index
    %20 = vector.load %arg6[%c0_13, %c0_14] : memref<1x128xf32, #tpu.memory_space<vmem>>, vector<1x128xf32>
    %21 = vector.broadcast %20 : vector<1x128xf32> to vector<16x128xf32>
    %22 = arith.addf %19, %21 : vector<16x128xf32>
    %cst_15 = arith.constant 0.000000e+00 : f32
    %23 = vector.broadcast %cst_15 : f32 to vector<6x128xf32>
    %24 = vector.extract_strided_slice %22 {offsets = [0, 0], sizes = [2, 128], strides = [1, 1]} : vector<16x128xf32> to vector<2x128xf32>
    %25 = tpu.concatenate %24, %23 in 0 : vector<2x128xf32>, vector<6x128xf32> -> vector<8x128xf32>
    %26 = arith.truncf %25 : vector<8x128xf32> to vector<8x128xbf16>
    %c0_16 = arith.constant 0 : index
    %c0_17 = arith.constant 0 : index
    %c0_18 = arith.constant 0 : index
    %27 = vector.load %arg7[%c0_16, %c0_17, %c0_18] : memref<8x8x128xbf16, #tpu.memory_space<vmem>>, vector<1x8x128xbf16>
    %28 = vector.shape_cast %27 : vector<1x8x128xbf16> to vector<8x128xbf16>
    %29 = vector.shape_cast %26 : vector<8x128xbf16> to vector<1x8x128xbf16>
    tpu.vector_store %arg7[%c0_16, %c0_17, %c0_18], %29 {strides = array<i32>} : memref<8x8x128xbf16, #tpu.memory_space<vmem>>, vector<1x8x128xbf16>,
    %30 = vector.extract_strided_slice %22 {offsets = [2, 0], sizes = [2, 128], strides = [1, 1]} : vector<16x128xf32> to vector<2x128xf32>
    %31 = tpu.concatenate %30, %23 in 0 : vector<2x128xf32>, vector<6x128xf32> -> vector<8x128xf32>
    %32 = arith.truncf %31 : vector<8x128xf32> to vector<8x128xbf16>
    %c1 = arith.constant 1 : index
    %c0_19 = arith.constant 0 : index
    %c0_20 = arith.constant 0 : index
    %33 = vector.load %arg7[%c1, %c0_19, %c0_20] : memref<8x8x128xbf16, #tpu.memory_space<vmem>>, vector<1x8x128xbf16>
    %34 = vector.shape_cast %33 : vector<1x8x128xbf16> to vector<8x128xbf16>
    %35 = vector.shape_cast %32 : vector<8x128xbf16> to vector<1x8x128xbf16>
    tpu.vector_store %arg7[%c1, %c0_19, %c0_20], %35 {strides = array<i32>} : memref<8x8x128xbf16, #tpu.memory_space<vmem>>, vector<1x8x128xbf16>,
    %36 = vector.extract_strided_slice %22 {offsets = [4, 0], sizes = [2, 128], strides = [1, 1]} : vector<16x128xf32> to vector<2x128xf32>
    %37 = tpu.concatenate %36, %23 in 0 : vector<2x128xf32>, vector<6x128xf32> -> vector<8x128xf32>
    %38 = arith.truncf %37 : vector<8x128xf32> to vector<8x128xbf16>
    %c2 = arith.constant 2 : index
    %c0_21 = arith.constant 0 : index
    %c0_22 = arith.constant 0 : index
    %39 = vector.load %arg7[%c2, %c0_21, %c0_22] : memref<8x8x128xbf16, #tpu.memory_space<vmem>>, vector<1x8x128xbf16>
    %40 = vector.shape_cast %39 : vector<1x8x128xbf16> to vector<8x128xbf16>
    %41 = vector.shape_cast %38 : vector<8x128xbf16> to vector<1x8x128xbf16>
    tpu.vector_store %arg7[%c2, %c0_21, %c0_22], %41 {strides = array<i32>} : memref<8x8x128xbf16, #tpu.memory_space<vmem>>, vector<1x8x128xbf16>,
    %42 = vector.extract_strided_slice %22 {offsets = [6, 0], sizes = [2, 128], strides = [1, 1]} : vector<16x128xf32> to vector<2x128xf32>
    %43 = tpu.concatenate %42, %23 in 0 : vector<2x128xf32>, vector<6x128xf32> -> vector<8x128xf32>
    %44 = arith.truncf %43 : vector<8x128xf32> to vector<8x128xbf16>
    %c3 = arith.constant 3 : index
    %c0_23 = arith.constant 0 : index
    %c0_24 = arith.constant 0 : index
    %45 = vector.load %arg7[%c3, %c0_23, %c0_24] : memref<8x8x128xbf16, #tpu.memory_space<vmem>>, vector<1x8x128xbf16>
    %46 = vector.shape_cast %45 : vector<1x8x128xbf16> to vector<8x128xbf16>
    %47 = vector.shape_cast %44 : vector<8x128xbf16> to vector<1x8x128xbf16>
    tpu.vector_store %arg7[%c3, %c0_23, %c0_24], %47 {strides = array<i32>} : memref<8x8x128xbf16, #tpu.memory_space<vmem>>, vector<1x8x128xbf16>,
    %48 = vector.extract_strided_slice %22 {offsets = [8, 0], sizes = [2, 128], strides = [1, 1]} : vector<16x128xf32> to vector<2x128xf32>
    %49 = tpu.concatenate %48, %23 in 0 : vector<2x128xf32>, vector<6x128xf32> -> vector<8x128xf32>
    %50 = arith.truncf %49 : vector<8x128xf32> to vector<8x128xbf16>
    %c4 = arith.constant 4 : index
    %c0_25 = arith.constant 0 : index
    %c0_26 = arith.constant 0 : index
    %51 = vector.load %arg7[%c4, %c0_25, %c0_26] : memref<8x8x128xbf16, #tpu.memory_space<vmem>>, vector<1x8x128xbf16>
    %52 = vector.shape_cast %51 : vector<1x8x128xbf16> to vector<8x128xbf16>
    %53 = vector.shape_cast %50 : vector<8x128xbf16> to vector<1x8x128xbf16>
    tpu.vector_store %arg7[%c4, %c0_25, %c0_26], %53 {strides = array<i32>} : memref<8x8x128xbf16, #tpu.memory_space<vmem>>, vector<1x8x128xbf16>,
    %54 = vector.extract_strided_slice %22 {offsets = [10, 0], sizes = [2, 128], strides = [1, 1]} : vector<16x128xf32> to vector<2x128xf32>
    %55 = tpu.concatenate %54, %23 in 0 : vector<2x128xf32>, vector<6x128xf32> -> vector<8x128xf32>
    %56 = arith.truncf %55 : vector<8x128xf32> to vector<8x128xbf16>
    %c5 = arith.constant 5 : index
    %c0_27 = arith.constant 0 : index
    %c0_28 = arith.constant 0 : index
    %57 = vector.load %arg7[%c5, %c0_27, %c0_28] : memref<8x8x128xbf16, #tpu.memory_space<vmem>>, vector<1x8x128xbf16>
    %58 = vector.shape_cast %57 : vector<1x8x128xbf16> to vector<8x128xbf16>
    %59 = vector.shape_cast %56 : vector<8x128xbf16> to vector<1x8x128xbf16>
    tpu.vector_store %arg7[%c5, %c0_27, %c0_28], %59 {strides = array<i32>} : memref<8x8x128xbf16, #tpu.memory_space<vmem>>, vector<1x8x128xbf16>,
    %60 = vector.extract_strided_slice %22 {offsets = [12, 0], sizes = [2, 128], strides = [1, 1]} : vector<16x128xf32> to vector<2x128xf32>
    %61 = tpu.concatenate %60, %23 in 0 : vector<2x128xf32>, vector<6x128xf32> -> vector<8x128xf32>
    %62 = arith.truncf %61 : vector<8x128xf32> to vector<8x128xbf16>
    %c6 = arith.constant 6 : index
    %c0_29 = arith.constant 0 : index
    %c0_30 = arith.constant 0 : index
    %63 = vector.load %arg7[%c6, %c0_29, %c0_30] : memref<8x8x128xbf16, #tpu.memory_space<vmem>>, vector<1x8x128xbf16>
    %64 = vector.shape_cast %63 : vector<1x8x128xbf16> to vector<8x128xbf16>
    %65 = vector.shape_cast %62 : vector<8x128xbf16> to vector<1x8x128xbf16>
    tpu.vector_store %arg7[%c6, %c0_29, %c0_30], %65 {strides = array<i32>} : memref<8x8x128xbf16, #tpu.memory_space<vmem>>, vector<1x8x128xbf16>,
    %66 = vector.extract_strided_slice %22 {offsets = [14, 0], sizes = [2, 128], strides = [1, 1]} : vector<16x128xf32> to vector<2x128xf32>
    %67 = tpu.concatenate %66, %23 in 0 : vector<2x128xf32>, vector<6x128xf32> -> vector<8x128xf32>
    %68 = arith.truncf %67 : vector<8x128xf32> to vector<8x128xbf16>
    %c7 = arith.constant 7 : index
    %c0_31 = arith.constant 0 : index
    %c0_32 = arith.constant 0 : index
    %69 = vector.load %arg7[%c7, %c0_31, %c0_32] : memref<8x8x128xbf16, #tpu.memory_space<vmem>>, vector<1x8x128xbf16>
    %70 = vector.shape_cast %69 : vector<1x8x128xbf16> to vector<8x128xbf16>
    %71 = vector.shape_cast %68 : vector<8x128xbf16> to vector<1x8x128xbf16>
    tpu.vector_store %arg7[%c7, %c0_31, %c0_32], %71 {strides = array<i32>} : memref<8x8x128xbf16, #tpu.memory_space<vmem>>, vector<1x8x128xbf16>,
    return
  }
  func.func @transform_0(%arg0: i32) -> (i32, i32) {
    %c0_i32 = arith.constant 0 : i32
    %c0_i32_0 = arith.constant 0 : i32
    return %c0_i32, %arg0 : i32, i32
  }
  func.func @transform_1(%arg0: i32) -> (i32, i32) {
    %c0_i32 = arith.constant 0 : i32
    %c0_i32_0 = arith.constant 0 : i32
    %c0_i32_1 = arith.constant 0 : i32
    return %c0_i32, %c0_i32_0 : i32, i32
  }
  func.func @transform_2(%arg0: i32) -> (i32, i32) {
    %c0_i32 = arith.constant 0 : i32
    %c0_i32_0 = arith.constant 0 : i32
    %c0_i32_1 = arith.constant 0 : i32
    return %c0_i32, %c0_i32_0 : i32, i32
  }
  func.func @transform_3(%arg0: i32) -> (i32, i32) {
    %c0_i32 = arith.constant 0 : i32
    %c0_i32_0 = arith.constant 0 : i32
    %c0_i32_1 = arith.constant 0 : i32
    return %c0_i32, %c0_i32_0 : i32, i32
  }
  func.func @transform_4(%arg0: i32) -> (i32, i32) {
    %c0_i32 = arith.constant 0 : i32
    %c0_i32_0 = arith.constant 0 : i32
    %c0_i32_1 = arith.constant 0 : i32
    return %c0_i32, %c0_i32_0 : i32, i32
  }
  func.func @transform_5(%arg0: i32) -> (i32, i32) {
    %c0_i32 = arith.constant 0 : i32
    %c0_i32_0 = arith.constant 0 : i32
    %c0_i32_1 = arith.constant 0 : i32
    return %c0_i32, %c0_i32_0 : i32, i32
  }
  func.func @transform_6(%arg0: i32) -> (i32, i32, i32) {
    %c0_i32 = arith.constant 0 : i32
    %c0_i32_0 = arith.constant 0 : i32
    %c0_i32_1 = arith.constant 0 : i32
    return %arg0, %c0_i32, %c0_i32_0 : i32, i32, i32
  }
}

module attributes {stable_mosaic.version = 11 : i64} {
  func.func @gru_stack_kernel(%arg0: memref<8x8x128xbf16, #tpu.memory_space<vmem>>, %arg1: memref<128x768xbf16, #tpu.memory_space<vmem>>, %arg2: memref<2x128x384xbf16, #tpu.memory_space<vmem>>, %arg3: memref<2x1x384xf32, #tpu.memory_space<vmem>>, %arg4: memref<2x1x128xf32, #tpu.memory_space<vmem>>, %arg5: memref<256x384xbf16, #tpu.memory_space<vmem>>, %arg6: memref<256x384xbf16, #tpu.memory_space<vmem>>, %arg7: memref<2x128x384xbf16, #tpu.memory_space<vmem>>, %arg8: memref<2x1x384xf32, #tpu.memory_space<vmem>>, %arg9: memref<2x1x128xf32, #tpu.memory_space<vmem>>, %arg10: memref<256x128xf32, #tpu.memory_space<vmem>>, %arg11: memref<1x128xf32, #tpu.memory_space<vmem>>, %arg12: memref<128x2xf32, #tpu.memory_space<vmem>>, %arg13: memref<1x2xf32, #tpu.memory_space<vmem>>, %arg14: memref<2x2xf32, #tpu.memory_space<vmem>>, %arg15: memref<8x8x384xf32, #tpu.memory_space<vmem>>, %arg16: memref<8x8x384xf32, #tpu.memory_space<vmem>>, %arg17: memref<8x8x384xf32, #tpu.memory_space<vmem>>, %arg18: memref<8x8x128xf32, #tpu.memory_space<vmem>>, %arg19: memref<8x8x128xf32, #tpu.memory_space<vmem>>) attributes {dimension_semantics = [], scalar_prefetch = 0 : i64, scratch_operands = 5 : i64, tpu.core_type = #tpu.core_type<tc>} {
    %cst = arith.constant 0.000000e+00 : f32
    %0 = vector.broadcast %cst : f32 to vector<8x128xf32>
    %c0 = arith.constant 0 : index
    %c0_0 = arith.constant 0 : index
    %c0_1 = arith.constant 0 : index
    %1 = vector.load %arg0[%c0, %c0_0, %c0_1] : memref<8x8x128xbf16, #tpu.memory_space<vmem>>, vector<8x8x128xbf16>
    %2 = vector.shape_cast %1 : vector<8x8x128xbf16> to vector<64x128xbf16>
    %c0_2 = arith.constant 0 : index
    %c0_3 = arith.constant 0 : index
    %3 = vector.load %arg1[%c0_2, %c0_3] : memref<128x768xbf16, #tpu.memory_space<vmem>>, vector<128x768xbf16>
    %cst_4 = arith.constant dense<0.000000e+00> : vector<64x768xf32>
    %4 = tpu.matmul %2, %3, %cst_4 {dimension_numbers = #tpu.dot_dimension_numbers<[1], [0], [0], [1], [0, 0, 1, 1], [], []>} : vector<64x128xbf16>, vector<128x768xbf16>, vector<64x768xf32> -> vector<64x768xf32>
    %5 = vector.extract_strided_slice %4 {offsets = [0, 0], sizes = [64, 384], strides = [1, 1]} : vector<64x768xf32> to vector<64x384xf32>
    %c0_5 = arith.constant 0 : index
    %c0_6 = arith.constant 0 : index
    %c0_7 = arith.constant 0 : index
    %6 = vector.load %arg3[%c0_5, %c0_6, %c0_7] : memref<2x1x384xf32, #tpu.memory_space<vmem>>, vector<1x1x384xf32>
    %7 = vector.shape_cast %6 : vector<1x1x384xf32> to vector<1x384xf32>
    %8 = vector.broadcast %7 : vector<1x384xf32> to vector<64x384xf32>
    %9 = arith.addf %5, %8 : vector<64x384xf32>
    %10 = vector.shape_cast %9 : vector<64x384xf32> to vector<8x8x384xf32>
    %c0_8 = arith.constant 0 : index
    %c0_9 = arith.constant 0 : index
    %c0_10 = arith.constant 0 : index
    %11 = vector.load %arg15[%c0_8, %c0_9, %c0_10] : memref<8x8x384xf32, #tpu.memory_space<vmem>>, vector<8x8x384xf32>
    tpu.vector_store %arg15[%c0_8, %c0_9, %c0_10], %10 {strides = array<i32>} : memref<8x8x384xf32, #tpu.memory_space<vmem>>, vector<8x8x384xf32>,
    %12 = vector.extract_strided_slice %4 {offsets = [0, 384], sizes = [64, 384], strides = [1, 1]} : vector<64x768xf32> to vector<64x384xf32>
    %c1 = arith.constant 1 : index
    %c0_11 = arith.constant 0 : index
    %c0_12 = arith.constant 0 : index
    %13 = vector.load %arg3[%c1, %c0_11, %c0_12] : memref<2x1x384xf32, #tpu.memory_space<vmem>>, vector<1x1x384xf32>
    %14 = vector.shape_cast %13 : vector<1x1x384xf32> to vector<1x384xf32>
    %15 = vector.broadcast %14 : vector<1x384xf32> to vector<64x384xf32>
    %16 = arith.addf %12, %15 : vector<64x384xf32>
    %17 = vector.shape_cast %16 : vector<64x384xf32> to vector<8x8x384xf32>
    %c0_13 = arith.constant 0 : index
    %c0_14 = arith.constant 0 : index
    %c0_15 = arith.constant 0 : index
    %18 = vector.load %arg16[%c0_13, %c0_14, %c0_15] : memref<8x8x384xf32, #tpu.memory_space<vmem>>, vector<8x8x384xf32>
    tpu.vector_store %arg16[%c0_13, %c0_14, %c0_15], %17 {strides = array<i32>} : memref<8x8x384xf32, #tpu.memory_space<vmem>>, vector<8x8x384xf32>,
    %c0_16 = arith.constant 0 : index
    %c0_17 = arith.constant 0 : index
    %c0_18 = arith.constant 0 : index
    %19 = vector.load %arg2[%c0_16, %c0_17, %c0_18] : memref<2x128x384xbf16, #tpu.memory_space<vmem>>, vector<1x128x384xbf16>
    %20 = vector.shape_cast %19 : vector<1x128x384xbf16> to vector<128x384xbf16>
    %c0_19 = arith.constant 0 : index
    %c0_20 = arith.constant 0 : index
    %c0_21 = arith.constant 0 : index
    %21 = vector.load %arg4[%c0_19, %c0_20, %c0_21] : memref<2x1x128xf32, #tpu.memory_space<vmem>>, vector<1x1x128xf32>
    %22 = vector.shape_cast %21 : vector<1x1x128xf32> to vector<1x128xf32>
    %23 = vector.shape_cast %22 : vector<1x128xf32> to vector<1x128xf32>
    %24 = vector.broadcast %23 : vector<1x128xf32> to vector<8x128xf32>
    %c1_22 = arith.constant 1 : index
    %c0_23 = arith.constant 0 : index
    %c0_24 = arith.constant 0 : index
    %25 = vector.load %arg2[%c1_22, %c0_23, %c0_24] : memref<2x128x384xbf16, #tpu.memory_space<vmem>>, vector<1x128x384xbf16>
    %26 = vector.shape_cast %25 : vector<1x128x384xbf16> to vector<128x384xbf16>
    %c1_25 = arith.constant 1 : index
    %c0_26 = arith.constant 0 : index
    %c0_27 = arith.constant 0 : index
    %27 = vector.load %arg4[%c1_25, %c0_26, %c0_27] : memref<2x1x128xf32, #tpu.memory_space<vmem>>, vector<1x1x128xf32>
    %28 = vector.shape_cast %27 : vector<1x1x128xf32> to vector<1x128xf32>
    %29 = vector.shape_cast %28 : vector<1x128xf32> to vector<1x128xf32>
    %30 = vector.broadcast %29 : vector<1x128xf32> to vector<8x128xf32>
    %c0_i32 = arith.constant 0 : i32
    %c7_i32 = arith.constant 7 : i32
    %31 = arith.subi %c7_i32, %c0_i32 : i32
    %32 = arith.index_cast %c0_i32 : i32 to index
    %c0_28 = arith.constant 0 : index
    %c0_29 = arith.constant 0 : index
    %33 = vector.load %arg15[%32, %c0_28, %c0_29] : memref<8x8x384xf32, #tpu.memory_space<vmem>>, vector<1x8x384xf32>
    %34 = vector.shape_cast %33 : vector<1x8x384xf32> to vector<8x384xf32>
    %35 = arith.truncf %0 : vector<8x128xf32> to vector<8x128xbf16>
    %cst_30 = arith.constant dense<0.000000e+00> : vector<8x384xf32>
    %36 = tpu.matmul %35, %20, %cst_30 {dimension_numbers = #tpu.dot_dimension_numbers<[1], [0], [0], [1], [0, 0, 1, 1], [], []>} : vector<8x128xbf16>, vector<128x384xbf16>, vector<8x384xf32> -> vector<8x384xf32>
    %37 = vector.extract_strided_slice %34 {offsets = [0, 0], sizes = [8, 128], strides = [1, 1]} : vector<8x384xf32> to vector<8x128xf32>
    %38 = vector.extract_strided_slice %36 {offsets = [0, 0], sizes = [8, 128], strides = [1, 1]} : vector<8x384xf32> to vector<8x128xf32>
    %39 = arith.addf %37, %38 : vector<8x128xf32>
    %40 = arith.negf %39 : vector<8x128xf32>
    %41 = math.exp %40 : vector<8x128xf32>
    %cst_31 = arith.constant 1.000000e+00 : f32
    %42 = vector.broadcast %cst_31 : f32 to vector<8x128xf32>
    %43 = arith.addf %42, %41 : vector<8x128xf32>
    %44 = arith.divf %42, %43 : vector<8x128xf32>
    %45 = vector.extract_strided_slice %34 {offsets = [0, 128], sizes = [8, 128], strides = [1, 1]} : vector<8x384xf32> to vector<8x128xf32>
    %46 = vector.extract_strided_slice %36 {offsets = [0, 128], sizes = [8, 128], strides = [1, 1]} : vector<8x384xf32> to vector<8x128xf32>
    %47 = arith.addf %45, %46 : vector<8x128xf32>
    %48 = arith.negf %47 : vector<8x128xf32>
    %49 = math.exp %48 : vector<8x128xf32>
    %cst_32 = arith.constant 1.000000e+00 : f32
    %50 = vector.broadcast %cst_32 : f32 to vector<8x128xf32>
    %51 = arith.addf %50, %49 : vector<8x128xf32>
    %52 = arith.divf %50, %51 : vector<8x128xf32>
    %53 = vector.extract_strided_slice %34 {offsets = [0, 256], sizes = [8, 128], strides = [1, 1]} : vector<8x384xf32> to vector<8x128xf32>
    %54 = vector.extract_strided_slice %36 {offsets = [0, 256], sizes = [8, 128], strides = [1, 1]} : vector<8x384xf32> to vector<8x128xf32>
    %55 = arith.addf %54, %24 : vector<8x128xf32>
    %56 = arith.mulf %44, %55 : vector<8x128xf32>
    %57 = arith.addf %53, %56 : vector<8x128xf32>
    %58 = math.tanh %57 : vector<8x128xf32>
    %cst_33 = arith.constant 1.000000e+00 : f32
    %59 = vector.broadcast %cst_33 : f32 to vector<8x128xf32>
    %60 = arith.subf %59, %52 : vector<8x128xf32>
    %61 = arith.mulf %60, %58 : vector<8x128xf32>
    %62 = arith.mulf %52, %0 : vector<8x128xf32>
    %63 = arith.addf %61, %62 : vector<8x128xf32>
    %64 = arith.index_cast %31 : i32 to index
    %c0_34 = arith.constant 0 : index
    %c0_35 = arith.constant 0 : index
    %65 = vector.load %arg16[%64, %c0_34, %c0_35] : memref<8x8x384xf32, #tpu.memory_space<vmem>>, vector<1x8x384xf32>
    %66 = vector.shape_cast %65 : vector<1x8x384xf32> to vector<8x384xf32>
    %67 = arith.truncf %0 : vector<8x128xf32> to vector<8x128xbf16>
    %cst_36 = arith.constant dense<0.000000e+00> : vector<8x384xf32>
    %68 = tpu.matmul %67, %26, %cst_36 {dimension_numbers = #tpu.dot_dimension_numbers<[1], [0], [0], [1], [0, 0, 1, 1], [], []>} : vector<8x128xbf16>, vector<128x384xbf16>, vector<8x384xf32> -> vector<8x384xf32>
    %69 = vector.extract_strided_slice %66 {offsets = [0, 0], sizes = [8, 128], strides = [1, 1]} : vector<8x384xf32> to vector<8x128xf32>
    %70 = vector.extract_strided_slice %68 {offsets = [0, 0], sizes = [8, 128], strides = [1, 1]} : vector<8x384xf32> to vector<8x128xf32>
    %71 = arith.addf %69, %70 : vector<8x128xf32>
    %72 = arith.negf %71 : vector<8x128xf32>
    %73 = math.exp %72 : vector<8x128xf32>
    %cst_37 = arith.constant 1.000000e+00 : f32
    %74 = vector.broadcast %cst_37 : f32 to vector<8x128xf32>
    %75 = arith.addf %74, %73 : vector<8x128xf32>
    %76 = arith.divf %74, %75 : vector<8x128xf32>
    %77 = vector.extract_strided_slice %66 {offsets = [0, 128], sizes = [8, 128], strides = [1, 1]} : vector<8x384xf32> to vector<8x128xf32>
    %78 = vector.extract_strided_slice %68 {offsets = [0, 128], sizes = [8, 128], strides = [1, 1]} : vector<8x384xf32> to vector<8x128xf32>
    %79 = arith.addf %77, %78 : vector<8x128xf32>
    %80 = arith.negf %79 : vector<8x128xf32>
    %81 = math.exp %80 : vector<8x128xf32>
    %cst_38 = arith.constant 1.000000e+00 : f32
    %82 = vector.broadcast %cst_38 : f32 to vector<8x128xf32>
    %83 = arith.addf %82, %81 : vector<8x128xf32>
    %84 = arith.divf %82, %83 : vector<8x128xf32>
    %85 = vector.extract_strided_slice %66 {offsets = [0, 256], sizes = [8, 128], strides = [1, 1]} : vector<8x384xf32> to vector<8x128xf32>
    %86 = vector.extract_strided_slice %68 {offsets = [0, 256], sizes = [8, 128], strides = [1, 1]} : vector<8x384xf32> to vector<8x128xf32>
    %87 = arith.addf %86, %30 : vector<8x128xf32>
    %88 = arith.mulf %76, %87 : vector<8x128xf32>
    %89 = arith.addf %85, %88 : vector<8x128xf32>
    %90 = math.tanh %89 : vector<8x128xf32>
    %cst_39 = arith.constant 1.000000e+00 : f32
    %91 = vector.broadcast %cst_39 : f32 to vector<8x128xf32>
    %92 = arith.subf %91, %84 : vector<8x128xf32>
    %93 = arith.mulf %92, %90 : vector<8x128xf32>
    %94 = arith.mulf %84, %0 : vector<8x128xf32>
    %95 = arith.addf %93, %94 : vector<8x128xf32>
    %96 = arith.index_cast %c0_i32 : i32 to index
    %c0_40 = arith.constant 0 : index
    %c0_41 = arith.constant 0 : index
    %97 = vector.load %arg18[%96, %c0_40, %c0_41] : memref<8x8x128xf32, #tpu.memory_space<vmem>>, vector<1x8x128xf32>
    %98 = vector.shape_cast %97 : vector<1x8x128xf32> to vector<8x128xf32>
    %99 = vector.shape_cast %63 : vector<8x128xf32> to vector<1x8x128xf32>
    tpu.vector_store %arg18[%96, %c0_40, %c0_41], %99 {strides = array<i32>} : memref<8x8x128xf32, #tpu.memory_space<vmem>>, vector<1x8x128xf32>,
    %100 = arith.index_cast %31 : i32 to index
    %c0_42 = arith.constant 0 : index
    %c0_43 = arith.constant 0 : index
    %101 = vector.load %arg19[%100, %c0_42, %c0_43] : memref<8x8x128xf32, #tpu.memory_space<vmem>>, vector<1x8x128xf32>
    %102 = vector.shape_cast %101 : vector<1x8x128xf32> to vector<8x128xf32>
    %103 = vector.shape_cast %95 : vector<8x128xf32> to vector<1x8x128xf32>
    tpu.vector_store %arg19[%100, %c0_42, %c0_43], %103 {strides = array<i32>} : memref<8x8x128xf32, #tpu.memory_space<vmem>>, vector<1x8x128xf32>,
    %c1_i32 = arith.constant 1 : i32
    %c7_i32_44 = arith.constant 7 : i32
    %104 = arith.subi %c7_i32_44, %c1_i32 : i32
    %105 = arith.index_cast %c1_i32 : i32 to index
    %c0_45 = arith.constant 0 : index
    %c0_46 = arith.constant 0 : index
    %106 = vector.load %arg15[%105, %c0_45, %c0_46] : memref<8x8x384xf32, #tpu.memory_space<vmem>>, vector<1x8x384xf32>
    %107 = vector.shape_cast %106 : vector<1x8x384xf32> to vector<8x384xf32>
    %108 = arith.truncf %63 : vector<8x128xf32> to vector<8x128xbf16>
    %cst_47 = arith.constant dense<0.000000e+00> : vector<8x384xf32>
    %109 = tpu.matmul %108, %20, %cst_47 {dimension_numbers = #tpu.dot_dimension_numbers<[1], [0], [0], [1], [0, 0, 1, 1], [], []>} : vector<8x128xbf16>, vector<128x384xbf16>, vector<8x384xf32> -> vector<8x384xf32>
    %110 = vector.extract_strided_slice %107 {offsets = [0, 0], sizes = [8, 128], strides = [1, 1]} : vector<8x384xf32> to vector<8x128xf32>
    %111 = vector.extract_strided_slice %109 {offsets = [0, 0], sizes = [8, 128], strides = [1, 1]} : vector<8x384xf32> to vector<8x128xf32>
    %112 = arith.addf %110, %111 : vector<8x128xf32>
    %113 = arith.negf %112 : vector<8x128xf32>
    %114 = math.exp %113 : vector<8x128xf32>
    %cst_48 = arith.constant 1.000000e+00 : f32
    %115 = vector.broadcast %cst_48 : f32 to vector<8x128xf32>
    %116 = arith.addf %115, %114 : vector<8x128xf32>
    %117 = arith.divf %115, %116 : vector<8x128xf32>
    %118 = vector.extract_strided_slice %107 {offsets = [0, 128], sizes = [8, 128], strides = [1, 1]} : vector<8x384xf32> to vector<8x128xf32>
    %119 = vector.extract_strided_slice %109 {offsets = [0, 128], sizes = [8, 128], strides = [1, 1]} : vector<8x384xf32> to vector<8x128xf32>
    %120 = arith.addf %118, %119 : vector<8x128xf32>
    %121 = arith.negf %120 : vector<8x128xf32>
    %122 = math.exp %121 : vector<8x128xf32>
    %cst_49 = arith.constant 1.000000e+00 : f32
    %123 = vector.broadcast %cst_49 : f32 to vector<8x128xf32>
    %124 = arith.addf %123, %122 : vector<8x128xf32>
    %125 = arith.divf %123, %124 : vector<8x128xf32>
    %126 = vector.extract_strided_slice %107 {offsets = [0, 256], sizes = [8, 128], strides = [1, 1]} : vector<8x384xf32> to vector<8x128xf32>
    %127 = vector.extract_strided_slice %109 {offsets = [0, 256], sizes = [8, 128], strides = [1, 1]} : vector<8x384xf32> to vector<8x128xf32>
    %128 = arith.addf %127, %24 : vector<8x128xf32>
    %129 = arith.mulf %117, %128 : vector<8x128xf32>
    %130 = arith.addf %126, %129 : vector<8x128xf32>
    %131 = math.tanh %130 : vector<8x128xf32>
    %cst_50 = arith.constant 1.000000e+00 : f32
    %132 = vector.broadcast %cst_50 : f32 to vector<8x128xf32>
    %133 = arith.subf %132, %125 : vector<8x128xf32>
    %134 = arith.mulf %133, %131 : vector<8x128xf32>
    %135 = arith.mulf %125, %63 : vector<8x128xf32>
    %136 = arith.addf %134, %135 : vector<8x128xf32>
    %137 = arith.index_cast %104 : i32 to index
    %c0_51 = arith.constant 0 : index
    %c0_52 = arith.constant 0 : index
    %138 = vector.load %arg16[%137, %c0_51, %c0_52] : memref<8x8x384xf32, #tpu.memory_space<vmem>>, vector<1x8x384xf32>
    %139 = vector.shape_cast %138 : vector<1x8x384xf32> to vector<8x384xf32>
    %140 = arith.truncf %95 : vector<8x128xf32> to vector<8x128xbf16>
    %cst_53 = arith.constant dense<0.000000e+00> : vector<8x384xf32>
    %141 = tpu.matmul %140, %26, %cst_53 {dimension_numbers = #tpu.dot_dimension_numbers<[1], [0], [0], [1], [0, 0, 1, 1], [], []>} : vector<8x128xbf16>, vector<128x384xbf16>, vector<8x384xf32> -> vector<8x384xf32>
    %142 = vector.extract_strided_slice %139 {offsets = [0, 0], sizes = [8, 128], strides = [1, 1]} : vector<8x384xf32> to vector<8x128xf32>
    %143 = vector.extract_strided_slice %141 {offsets = [0, 0], sizes = [8, 128], strides = [1, 1]} : vector<8x384xf32> to vector<8x128xf32>
    %144 = arith.addf %142, %143 : vector<8x128xf32>
    %145 = arith.negf %144 : vector<8x128xf32>
    %146 = math.exp %145 : vector<8x128xf32>
    %cst_54 = arith.constant 1.000000e+00 : f32
    %147 = vector.broadcast %cst_54 : f32 to vector<8x128xf32>
    %148 = arith.addf %147, %146 : vector<8x128xf32>
    %149 = arith.divf %147, %148 : vector<8x128xf32>
    %150 = vector.extract_strided_slice %139 {offsets = [0, 128], sizes = [8, 128], strides = [1, 1]} : vector<8x384xf32> to vector<8x128xf32>
    %151 = vector.extract_strided_slice %141 {offsets = [0, 128], sizes = [8, 128], strides = [1, 1]} : vector<8x384xf32> to vector<8x128xf32>
    %152 = arith.addf %150, %151 : vector<8x128xf32>
    %153 = arith.negf %152 : vector<8x128xf32>
    %154 = math.exp %153 : vector<8x128xf32>
    %cst_55 = arith.constant 1.000000e+00 : f32
    %155 = vector.broadcast %cst_55 : f32 to vector<8x128xf32>
    %156 = arith.addf %155, %154 : vector<8x128xf32>
    %157 = arith.divf %155, %156 : vector<8x128xf32>
    %158 = vector.extract_strided_slice %139 {offsets = [0, 256], sizes = [8, 128], strides = [1, 1]} : vector<8x384xf32> to vector<8x128xf32>
    %159 = vector.extract_strided_slice %141 {offsets = [0, 256], sizes = [8, 128], strides = [1, 1]} : vector<8x384xf32> to vector<8x128xf32>
    %160 = arith.addf %159, %30 : vector<8x128xf32>
    %161 = arith.mulf %149, %160 : vector<8x128xf32>
    %162 = arith.addf %158, %161 : vector<8x128xf32>
    %163 = math.tanh %162 : vector<8x128xf32>
    %cst_56 = arith.constant 1.000000e+00 : f32
    %164 = vector.broadcast %cst_56 : f32 to vector<8x128xf32>
    %165 = arith.subf %164, %157 : vector<8x128xf32>
    %166 = arith.mulf %165, %163 : vector<8x128xf32>
    %167 = arith.mulf %157, %95 : vector<8x128xf32>
    %168 = arith.addf %166, %167 : vector<8x128xf32>
    %169 = arith.index_cast %c1_i32 : i32 to index
    %c0_57 = arith.constant 0 : index
    %c0_58 = arith.constant 0 : index
    %170 = vector.load %arg18[%169, %c0_57, %c0_58] : memref<8x8x128xf32, #tpu.memory_space<vmem>>, vector<1x8x128xf32>
    %171 = vector.shape_cast %170 : vector<1x8x128xf32> to vector<8x128xf32>
    %172 = vector.shape_cast %136 : vector<8x128xf32> to vector<1x8x128xf32>
    tpu.vector_store %arg18[%169, %c0_57, %c0_58], %172 {strides = array<i32>} : memref<8x8x128xf32, #tpu.memory_space<vmem>>, vector<1x8x128xf32>,
    %173 = arith.index_cast %104 : i32 to index
    %c0_59 = arith.constant 0 : index
    %c0_60 = arith.constant 0 : index
    %174 = vector.load %arg19[%173, %c0_59, %c0_60] : memref<8x8x128xf32, #tpu.memory_space<vmem>>, vector<1x8x128xf32>
    %175 = vector.shape_cast %174 : vector<1x8x128xf32> to vector<8x128xf32>
    %176 = vector.shape_cast %168 : vector<8x128xf32> to vector<1x8x128xf32>
    tpu.vector_store %arg19[%173, %c0_59, %c0_60], %176 {strides = array<i32>} : memref<8x8x128xf32, #tpu.memory_space<vmem>>, vector<1x8x128xf32>,
    %c2_i32 = arith.constant 2 : i32
    %c7_i32_61 = arith.constant 7 : i32
    %177 = arith.subi %c7_i32_61, %c2_i32 : i32
    %178 = arith.index_cast %c2_i32 : i32 to index
    %c0_62 = arith.constant 0 : index
    %c0_63 = arith.constant 0 : index
    %179 = vector.load %arg15[%178, %c0_62, %c0_63] : memref<8x8x384xf32, #tpu.memory_space<vmem>>, vector<1x8x384xf32>
    %180 = vector.shape_cast %179 : vector<1x8x384xf32> to vector<8x384xf32>
    %181 = arith.truncf %136 : vector<8x128xf32> to vector<8x128xbf16>
    %cst_64 = arith.constant dense<0.000000e+00> : vector<8x384xf32>
    %182 = tpu.matmul %181, %20, %cst_64 {dimension_numbers = #tpu.dot_dimension_numbers<[1], [0], [0], [1], [0, 0, 1, 1], [], []>} : vector<8x128xbf16>, vector<128x384xbf16>, vector<8x384xf32> -> vector<8x384xf32>
    %183 = vector.extract_strided_slice %180 {offsets = [0, 0], sizes = [8, 128], strides = [1, 1]} : vector<8x384xf32> to vector<8x128xf32>
    %184 = vector.extract_strided_slice %182 {offsets = [0, 0], sizes = [8, 128], strides = [1, 1]} : vector<8x384xf32> to vector<8x128xf32>
    %185 = arith.addf %183, %184 : vector<8x128xf32>
    %186 = arith.negf %185 : vector<8x128xf32>
    %187 = math.exp %186 : vector<8x128xf32>
    %cst_65 = arith.constant 1.000000e+00 : f32
    %188 = vector.broadcast %cst_65 : f32 to vector<8x128xf32>
    %189 = arith.addf %188, %187 : vector<8x128xf32>
    %190 = arith.divf %188, %189 : vector<8x128xf32>
    %191 = vector.extract_strided_slice %180 {offsets = [0, 128], sizes = [8, 128], strides = [1, 1]} : vector<8x384xf32> to vector<8x128xf32>
    %192 = vector.extract_strided_slice %182 {offsets = [0, 128], sizes = [8, 128], strides = [1, 1]} : vector<8x384xf32> to vector<8x128xf32>
    %193 = arith.addf %191, %192 : vector<8x128xf32>
    %194 = arith.negf %193 : vector<8x128xf32>
    %195 = math.exp %194 : vector<8x128xf32>
    %cst_66 = arith.constant 1.000000e+00 : f32
    %196 = vector.broadcast %cst_66 : f32 to vector<8x128xf32>
    %197 = arith.addf %196, %195 : vector<8x128xf32>
    %198 = arith.divf %196, %197 : vector<8x128xf32>
    %199 = vector.extract_strided_slice %180 {offsets = [0, 256], sizes = [8, 128], strides = [1, 1]} : vector<8x384xf32> to vector<8x128xf32>
    %200 = vector.extract_strided_slice %182 {offsets = [0, 256], sizes = [8, 128], strides = [1, 1]} : vector<8x384xf32> to vector<8x128xf32>
    %201 = arith.addf %200, %24 : vector<8x128xf32>
    %202 = arith.mulf %190, %201 : vector<8x128xf32>
    %203 = arith.addf %199, %202 : vector<8x128xf32>
    %204 = math.tanh %203 : vector<8x128xf32>
    %cst_67 = arith.constant 1.000000e+00 : f32
    %205 = vector.broadcast %cst_67 : f32 to vector<8x128xf32>
    %206 = arith.subf %205, %198 : vector<8x128xf32>
    %207 = arith.mulf %206, %204 : vector<8x128xf32>
    %208 = arith.mulf %198, %136 : vector<8x128xf32>
    %209 = arith.addf %207, %208 : vector<8x128xf32>
    %210 = arith.index_cast %177 : i32 to index
    %c0_68 = arith.constant 0 : index
    %c0_69 = arith.constant 0 : index
    %211 = vector.load %arg16[%210, %c0_68, %c0_69] : memref<8x8x384xf32, #tpu.memory_space<vmem>>, vector<1x8x384xf32>
    %212 = vector.shape_cast %211 : vector<1x8x384xf32> to vector<8x384xf32>
    %213 = arith.truncf %168 : vector<8x128xf32> to vector<8x128xbf16>
    %cst_70 = arith.constant dense<0.000000e+00> : vector<8x384xf32>
    %214 = tpu.matmul %213, %26, %cst_70 {dimension_numbers = #tpu.dot_dimension_numbers<[1], [0], [0], [1], [0, 0, 1, 1], [], []>} : vector<8x128xbf16>, vector<128x384xbf16>, vector<8x384xf32> -> vector<8x384xf32>
    %215 = vector.extract_strided_slice %212 {offsets = [0, 0], sizes = [8, 128], strides = [1, 1]} : vector<8x384xf32> to vector<8x128xf32>
    %216 = vector.extract_strided_slice %214 {offsets = [0, 0], sizes = [8, 128], strides = [1, 1]} : vector<8x384xf32> to vector<8x128xf32>
    %217 = arith.addf %215, %216 : vector<8x128xf32>
    %218 = arith.negf %217 : vector<8x128xf32>
    %219 = math.exp %218 : vector<8x128xf32>
    %cst_71 = arith.constant 1.000000e+00 : f32
    %220 = vector.broadcast %cst_71 : f32 to vector<8x128xf32>
    %221 = arith.addf %220, %219 : vector<8x128xf32>
    %222 = arith.divf %220, %221 : vector<8x128xf32>
    %223 = vector.extract_strided_slice %212 {offsets = [0, 128], sizes = [8, 128], strides = [1, 1]} : vector<8x384xf32> to vector<8x128xf32>
    %224 = vector.extract_strided_slice %214 {offsets = [0, 128], sizes = [8, 128], strides = [1, 1]} : vector<8x384xf32> to vector<8x128xf32>
    %225 = arith.addf %223, %224 : vector<8x128xf32>
    %226 = arith.negf %225 : vector<8x128xf32>
    %227 = math.exp %226 : vector<8x128xf32>
    %cst_72 = arith.constant 1.000000e+00 : f32
    %228 = vector.broadcast %cst_72 : f32 to vector<8x128xf32>
    %229 = arith.addf %228, %227 : vector<8x128xf32>
    %230 = arith.divf %228, %229 : vector<8x128xf32>
    %231 = vector.extract_strided_slice %212 {offsets = [0, 256], sizes = [8, 128], strides = [1, 1]} : vector<8x384xf32> to vector<8x128xf32>
    %232 = vector.extract_strided_slice %214 {offsets = [0, 256], sizes = [8, 128], strides = [1, 1]} : vector<8x384xf32> to vector<8x128xf32>
    %233 = arith.addf %232, %30 : vector<8x128xf32>
    %234 = arith.mulf %222, %233 : vector<8x128xf32>
    %235 = arith.addf %231, %234 : vector<8x128xf32>
    %236 = math.tanh %235 : vector<8x128xf32>
    %cst_73 = arith.constant 1.000000e+00 : f32
    %237 = vector.broadcast %cst_73 : f32 to vector<8x128xf32>
    %238 = arith.subf %237, %230 : vector<8x128xf32>
    %239 = arith.mulf %238, %236 : vector<8x128xf32>
    %240 = arith.mulf %230, %168 : vector<8x128xf32>
    %241 = arith.addf %239, %240 : vector<8x128xf32>
    %242 = arith.index_cast %c2_i32 : i32 to index
    %c0_74 = arith.constant 0 : index
    %c0_75 = arith.constant 0 : index
    %243 = vector.load %arg18[%242, %c0_74, %c0_75] : memref<8x8x128xf32, #tpu.memory_space<vmem>>, vector<1x8x128xf32>
    %244 = vector.shape_cast %243 : vector<1x8x128xf32> to vector<8x128xf32>
    %245 = vector.shape_cast %209 : vector<8x128xf32> to vector<1x8x128xf32>
    tpu.vector_store %arg18[%242, %c0_74, %c0_75], %245 {strides = array<i32>} : memref<8x8x128xf32, #tpu.memory_space<vmem>>, vector<1x8x128xf32>,
    %246 = arith.index_cast %177 : i32 to index
    %c0_76 = arith.constant 0 : index
    %c0_77 = arith.constant 0 : index
    %247 = vector.load %arg19[%246, %c0_76, %c0_77] : memref<8x8x128xf32, #tpu.memory_space<vmem>>, vector<1x8x128xf32>
    %248 = vector.shape_cast %247 : vector<1x8x128xf32> to vector<8x128xf32>
    %249 = vector.shape_cast %241 : vector<8x128xf32> to vector<1x8x128xf32>
    tpu.vector_store %arg19[%246, %c0_76, %c0_77], %249 {strides = array<i32>} : memref<8x8x128xf32, #tpu.memory_space<vmem>>, vector<1x8x128xf32>,
    %c3_i32 = arith.constant 3 : i32
    %c7_i32_78 = arith.constant 7 : i32
    %250 = arith.subi %c7_i32_78, %c3_i32 : i32
    %251 = arith.index_cast %c3_i32 : i32 to index
    %c0_79 = arith.constant 0 : index
    %c0_80 = arith.constant 0 : index
    %252 = vector.load %arg15[%251, %c0_79, %c0_80] : memref<8x8x384xf32, #tpu.memory_space<vmem>>, vector<1x8x384xf32>
    %253 = vector.shape_cast %252 : vector<1x8x384xf32> to vector<8x384xf32>
    %254 = arith.truncf %209 : vector<8x128xf32> to vector<8x128xbf16>
    %cst_81 = arith.constant dense<0.000000e+00> : vector<8x384xf32>
    %255 = tpu.matmul %254, %20, %cst_81 {dimension_numbers = #tpu.dot_dimension_numbers<[1], [0], [0], [1], [0, 0, 1, 1], [], []>} : vector<8x128xbf16>, vector<128x384xbf16>, vector<8x384xf32> -> vector<8x384xf32>
    %256 = vector.extract_strided_slice %253 {offsets = [0, 0], sizes = [8, 128], strides = [1, 1]} : vector<8x384xf32> to vector<8x128xf32>
    %257 = vector.extract_strided_slice %255 {offsets = [0, 0], sizes = [8, 128], strides = [1, 1]} : vector<8x384xf32> to vector<8x128xf32>
    %258 = arith.addf %256, %257 : vector<8x128xf32>
    %259 = arith.negf %258 : vector<8x128xf32>
    %260 = math.exp %259 : vector<8x128xf32>
    %cst_82 = arith.constant 1.000000e+00 : f32
    %261 = vector.broadcast %cst_82 : f32 to vector<8x128xf32>
    %262 = arith.addf %261, %260 : vector<8x128xf32>
    %263 = arith.divf %261, %262 : vector<8x128xf32>
    %264 = vector.extract_strided_slice %253 {offsets = [0, 128], sizes = [8, 128], strides = [1, 1]} : vector<8x384xf32> to vector<8x128xf32>
    %265 = vector.extract_strided_slice %255 {offsets = [0, 128], sizes = [8, 128], strides = [1, 1]} : vector<8x384xf32> to vector<8x128xf32>
    %266 = arith.addf %264, %265 : vector<8x128xf32>
    %267 = arith.negf %266 : vector<8x128xf32>
    %268 = math.exp %267 : vector<8x128xf32>
    %cst_83 = arith.constant 1.000000e+00 : f32
    %269 = vector.broadcast %cst_83 : f32 to vector<8x128xf32>
    %270 = arith.addf %269, %268 : vector<8x128xf32>
    %271 = arith.divf %269, %270 : vector<8x128xf32>
    %272 = vector.extract_strided_slice %253 {offsets = [0, 256], sizes = [8, 128], strides = [1, 1]} : vector<8x384xf32> to vector<8x128xf32>
    %273 = vector.extract_strided_slice %255 {offsets = [0, 256], sizes = [8, 128], strides = [1, 1]} : vector<8x384xf32> to vector<8x128xf32>
    %274 = arith.addf %273, %24 : vector<8x128xf32>
    %275 = arith.mulf %263, %274 : vector<8x128xf32>
    %276 = arith.addf %272, %275 : vector<8x128xf32>
    %277 = math.tanh %276 : vector<8x128xf32>
    %cst_84 = arith.constant 1.000000e+00 : f32
    %278 = vector.broadcast %cst_84 : f32 to vector<8x128xf32>
    %279 = arith.subf %278, %271 : vector<8x128xf32>
    %280 = arith.mulf %279, %277 : vector<8x128xf32>
    %281 = arith.mulf %271, %209 : vector<8x128xf32>
    %282 = arith.addf %280, %281 : vector<8x128xf32>
    %283 = arith.index_cast %250 : i32 to index
    %c0_85 = arith.constant 0 : index
    %c0_86 = arith.constant 0 : index
    %284 = vector.load %arg16[%283, %c0_85, %c0_86] : memref<8x8x384xf32, #tpu.memory_space<vmem>>, vector<1x8x384xf32>
    %285 = vector.shape_cast %284 : vector<1x8x384xf32> to vector<8x384xf32>
    %286 = arith.truncf %241 : vector<8x128xf32> to vector<8x128xbf16>
    %cst_87 = arith.constant dense<0.000000e+00> : vector<8x384xf32>
    %287 = tpu.matmul %286, %26, %cst_87 {dimension_numbers = #tpu.dot_dimension_numbers<[1], [0], [0], [1], [0, 0, 1, 1], [], []>} : vector<8x128xbf16>, vector<128x384xbf16>, vector<8x384xf32> -> vector<8x384xf32>
    %288 = vector.extract_strided_slice %285 {offsets = [0, 0], sizes = [8, 128], strides = [1, 1]} : vector<8x384xf32> to vector<8x128xf32>
    %289 = vector.extract_strided_slice %287 {offsets = [0, 0], sizes = [8, 128], strides = [1, 1]} : vector<8x384xf32> to vector<8x128xf32>
    %290 = arith.addf %288, %289 : vector<8x128xf32>
    %291 = arith.negf %290 : vector<8x128xf32>
    %292 = math.exp %291 : vector<8x128xf32>
    %cst_88 = arith.constant 1.000000e+00 : f32
    %293 = vector.broadcast %cst_88 : f32 to vector<8x128xf32>
    %294 = arith.addf %293, %292 : vector<8x128xf32>
    %295 = arith.divf %293, %294 : vector<8x128xf32>
    %296 = vector.extract_strided_slice %285 {offsets = [0, 128], sizes = [8, 128], strides = [1, 1]} : vector<8x384xf32> to vector<8x128xf32>
    %297 = vector.extract_strided_slice %287 {offsets = [0, 128], sizes = [8, 128], strides = [1, 1]} : vector<8x384xf32> to vector<8x128xf32>
    %298 = arith.addf %296, %297 : vector<8x128xf32>
    %299 = arith.negf %298 : vector<8x128xf32>
    %300 = math.exp %299 : vector<8x128xf32>
    %cst_89 = arith.constant 1.000000e+00 : f32
    %301 = vector.broadcast %cst_89 : f32 to vector<8x128xf32>
    %302 = arith.addf %301, %300 : vector<8x128xf32>
    %303 = arith.divf %301, %302 : vector<8x128xf32>
    %304 = vector.extract_strided_slice %285 {offsets = [0, 256], sizes = [8, 128], strides = [1, 1]} : vector<8x384xf32> to vector<8x128xf32>
    %305 = vector.extract_strided_slice %287 {offsets = [0, 256], sizes = [8, 128], strides = [1, 1]} : vector<8x384xf32> to vector<8x128xf32>
    %306 = arith.addf %305, %30 : vector<8x128xf32>
    %307 = arith.mulf %295, %306 : vector<8x128xf32>
    %308 = arith.addf %304, %307 : vector<8x128xf32>
    %309 = math.tanh %308 : vector<8x128xf32>
    %cst_90 = arith.constant 1.000000e+00 : f32
    %310 = vector.broadcast %cst_90 : f32 to vector<8x128xf32>
    %311 = arith.subf %310, %303 : vector<8x128xf32>
    %312 = arith.mulf %311, %309 : vector<8x128xf32>
    %313 = arith.mulf %303, %241 : vector<8x128xf32>
    %314 = arith.addf %312, %313 : vector<8x128xf32>
    %315 = arith.index_cast %c3_i32 : i32 to index
    %c0_91 = arith.constant 0 : index
    %c0_92 = arith.constant 0 : index
    %316 = vector.load %arg18[%315, %c0_91, %c0_92] : memref<8x8x128xf32, #tpu.memory_space<vmem>>, vector<1x8x128xf32>
    %317 = vector.shape_cast %316 : vector<1x8x128xf32> to vector<8x128xf32>
    %318 = vector.shape_cast %282 : vector<8x128xf32> to vector<1x8x128xf32>
    tpu.vector_store %arg18[%315, %c0_91, %c0_92], %318 {strides = array<i32>} : memref<8x8x128xf32, #tpu.memory_space<vmem>>, vector<1x8x128xf32>,
    %319 = arith.index_cast %250 : i32 to index
    %c0_93 = arith.constant 0 : index
    %c0_94 = arith.constant 0 : index
    %320 = vector.load %arg19[%319, %c0_93, %c0_94] : memref<8x8x128xf32, #tpu.memory_space<vmem>>, vector<1x8x128xf32>
    %321 = vector.shape_cast %320 : vector<1x8x128xf32> to vector<8x128xf32>
    %322 = vector.shape_cast %314 : vector<8x128xf32> to vector<1x8x128xf32>
    tpu.vector_store %arg19[%319, %c0_93, %c0_94], %322 {strides = array<i32>} : memref<8x8x128xf32, #tpu.memory_space<vmem>>, vector<1x8x128xf32>,
    %c4_i32 = arith.constant 4 : i32
    %c7_i32_95 = arith.constant 7 : i32
    %323 = arith.subi %c7_i32_95, %c4_i32 : i32
    %324 = arith.index_cast %c4_i32 : i32 to index
    %c0_96 = arith.constant 0 : index
    %c0_97 = arith.constant 0 : index
    %325 = vector.load %arg15[%324, %c0_96, %c0_97] : memref<8x8x384xf32, #tpu.memory_space<vmem>>, vector<1x8x384xf32>
    %326 = vector.shape_cast %325 : vector<1x8x384xf32> to vector<8x384xf32>
    %327 = arith.truncf %282 : vector<8x128xf32> to vector<8x128xbf16>
    %cst_98 = arith.constant dense<0.000000e+00> : vector<8x384xf32>
    %328 = tpu.matmul %327, %20, %cst_98 {dimension_numbers = #tpu.dot_dimension_numbers<[1], [0], [0], [1], [0, 0, 1, 1], [], []>} : vector<8x128xbf16>, vector<128x384xbf16>, vector<8x384xf32> -> vector<8x384xf32>
    %329 = vector.extract_strided_slice %326 {offsets = [0, 0], sizes = [8, 128], strides = [1, 1]} : vector<8x384xf32> to vector<8x128xf32>
    %330 = vector.extract_strided_slice %328 {offsets = [0, 0], sizes = [8, 128], strides = [1, 1]} : vector<8x384xf32> to vector<8x128xf32>
    %331 = arith.addf %329, %330 : vector<8x128xf32>
    %332 = arith.negf %331 : vector<8x128xf32>
    %333 = math.exp %332 : vector<8x128xf32>
    %cst_99 = arith.constant 1.000000e+00 : f32
    %334 = vector.broadcast %cst_99 : f32 to vector<8x128xf32>
    %335 = arith.addf %334, %333 : vector<8x128xf32>
    %336 = arith.divf %334, %335 : vector<8x128xf32>
    %337 = vector.extract_strided_slice %326 {offsets = [0, 128], sizes = [8, 128], strides = [1, 1]} : vector<8x384xf32> to vector<8x128xf32>
    %338 = vector.extract_strided_slice %328 {offsets = [0, 128], sizes = [8, 128], strides = [1, 1]} : vector<8x384xf32> to vector<8x128xf32>
    %339 = arith.addf %337, %338 : vector<8x128xf32>
    %340 = arith.negf %339 : vector<8x128xf32>
    %341 = math.exp %340 : vector<8x128xf32>
    %cst_100 = arith.constant 1.000000e+00 : f32
    %342 = vector.broadcast %cst_100 : f32 to vector<8x128xf32>
    %343 = arith.addf %342, %341 : vector<8x128xf32>
    %344 = arith.divf %342, %343 : vector<8x128xf32>
    %345 = vector.extract_strided_slice %326 {offsets = [0, 256], sizes = [8, 128], strides = [1, 1]} : vector<8x384xf32> to vector<8x128xf32>
    %346 = vector.extract_strided_slice %328 {offsets = [0, 256], sizes = [8, 128], strides = [1, 1]} : vector<8x384xf32> to vector<8x128xf32>
    %347 = arith.addf %346, %24 : vector<8x128xf32>
    %348 = arith.mulf %336, %347 : vector<8x128xf32>
    %349 = arith.addf %345, %348 : vector<8x128xf32>
    %350 = math.tanh %349 : vector<8x128xf32>
    %cst_101 = arith.constant 1.000000e+00 : f32
    %351 = vector.broadcast %cst_101 : f32 to vector<8x128xf32>
    %352 = arith.subf %351, %344 : vector<8x128xf32>
    %353 = arith.mulf %352, %350 : vector<8x128xf32>
    %354 = arith.mulf %344, %282 : vector<8x128xf32>
    %355 = arith.addf %353, %354 : vector<8x128xf32>
    %356 = arith.index_cast %323 : i32 to index
    %c0_102 = arith.constant 0 : index
    %c0_103 = arith.constant 0 : index
    %357 = vector.load %arg16[%356, %c0_102, %c0_103] : memref<8x8x384xf32, #tpu.memory_space<vmem>>, vector<1x8x384xf32>
    %358 = vector.shape_cast %357 : vector<1x8x384xf32> to vector<8x384xf32>
    %359 = arith.truncf %314 : vector<8x128xf32> to vector<8x128xbf16>
    %cst_104 = arith.constant dense<0.000000e+00> : vector<8x384xf32>
    %360 = tpu.matmul %359, %26, %cst_104 {dimension_numbers = #tpu.dot_dimension_numbers<[1], [0], [0], [1], [0, 0, 1, 1], [], []>} : vector<8x128xbf16>, vector<128x384xbf16>, vector<8x384xf32> -> vector<8x384xf32>
    %361 = vector.extract_strided_slice %358 {offsets = [0, 0], sizes = [8, 128], strides = [1, 1]} : vector<8x384xf32> to vector<8x128xf32>
    %362 = vector.extract_strided_slice %360 {offsets = [0, 0], sizes = [8, 128], strides = [1, 1]} : vector<8x384xf32> to vector<8x128xf32>
    %363 = arith.addf %361, %362 : vector<8x128xf32>
    %364 = arith.negf %363 : vector<8x128xf32>
    %365 = math.exp %364 : vector<8x128xf32>
    %cst_105 = arith.constant 1.000000e+00 : f32
    %366 = vector.broadcast %cst_105 : f32 to vector<8x128xf32>
    %367 = arith.addf %366, %365 : vector<8x128xf32>
    %368 = arith.divf %366, %367 : vector<8x128xf32>
    %369 = vector.extract_strided_slice %358 {offsets = [0, 128], sizes = [8, 128], strides = [1, 1]} : vector<8x384xf32> to vector<8x128xf32>
    %370 = vector.extract_strided_slice %360 {offsets = [0, 128], sizes = [8, 128], strides = [1, 1]} : vector<8x384xf32> to vector<8x128xf32>
    %371 = arith.addf %369, %370 : vector<8x128xf32>
    %372 = arith.negf %371 : vector<8x128xf32>
    %373 = math.exp %372 : vector<8x128xf32>
    %cst_106 = arith.constant 1.000000e+00 : f32
    %374 = vector.broadcast %cst_106 : f32 to vector<8x128xf32>
    %375 = arith.addf %374, %373 : vector<8x128xf32>
    %376 = arith.divf %374, %375 : vector<8x128xf32>
    %377 = vector.extract_strided_slice %358 {offsets = [0, 256], sizes = [8, 128], strides = [1, 1]} : vector<8x384xf32> to vector<8x128xf32>
    %378 = vector.extract_strided_slice %360 {offsets = [0, 256], sizes = [8, 128], strides = [1, 1]} : vector<8x384xf32> to vector<8x128xf32>
    %379 = arith.addf %378, %30 : vector<8x128xf32>
    %380 = arith.mulf %368, %379 : vector<8x128xf32>
    %381 = arith.addf %377, %380 : vector<8x128xf32>
    %382 = math.tanh %381 : vector<8x128xf32>
    %cst_107 = arith.constant 1.000000e+00 : f32
    %383 = vector.broadcast %cst_107 : f32 to vector<8x128xf32>
    %384 = arith.subf %383, %376 : vector<8x128xf32>
    %385 = arith.mulf %384, %382 : vector<8x128xf32>
    %386 = arith.mulf %376, %314 : vector<8x128xf32>
    %387 = arith.addf %385, %386 : vector<8x128xf32>
    %388 = arith.index_cast %c4_i32 : i32 to index
    %c0_108 = arith.constant 0 : index
    %c0_109 = arith.constant 0 : index
    %389 = vector.load %arg18[%388, %c0_108, %c0_109] : memref<8x8x128xf32, #tpu.memory_space<vmem>>, vector<1x8x128xf32>
    %390 = vector.shape_cast %389 : vector<1x8x128xf32> to vector<8x128xf32>
    %391 = vector.shape_cast %355 : vector<8x128xf32> to vector<1x8x128xf32>
    tpu.vector_store %arg18[%388, %c0_108, %c0_109], %391 {strides = array<i32>} : memref<8x8x128xf32, #tpu.memory_space<vmem>>, vector<1x8x128xf32>,
    %392 = arith.index_cast %323 : i32 to index
    %c0_110 = arith.constant 0 : index
    %c0_111 = arith.constant 0 : index
    %393 = vector.load %arg19[%392, %c0_110, %c0_111] : memref<8x8x128xf32, #tpu.memory_space<vmem>>, vector<1x8x128xf32>
    %394 = vector.shape_cast %393 : vector<1x8x128xf32> to vector<8x128xf32>
    %395 = vector.shape_cast %387 : vector<8x128xf32> to vector<1x8x128xf32>
    tpu.vector_store %arg19[%392, %c0_110, %c0_111], %395 {strides = array<i32>} : memref<8x8x128xf32, #tpu.memory_space<vmem>>, vector<1x8x128xf32>,
    %c5_i32 = arith.constant 5 : i32
    %c7_i32_112 = arith.constant 7 : i32
    %396 = arith.subi %c7_i32_112, %c5_i32 : i32
    %397 = arith.index_cast %c5_i32 : i32 to index
    %c0_113 = arith.constant 0 : index
    %c0_114 = arith.constant 0 : index
    %398 = vector.load %arg15[%397, %c0_113, %c0_114] : memref<8x8x384xf32, #tpu.memory_space<vmem>>, vector<1x8x384xf32>
    %399 = vector.shape_cast %398 : vector<1x8x384xf32> to vector<8x384xf32>
    %400 = arith.truncf %355 : vector<8x128xf32> to vector<8x128xbf16>
    %cst_115 = arith.constant dense<0.000000e+00> : vector<8x384xf32>
    %401 = tpu.matmul %400, %20, %cst_115 {dimension_numbers = #tpu.dot_dimension_numbers<[1], [0], [0], [1], [0, 0, 1, 1], [], []>} : vector<8x128xbf16>, vector<128x384xbf16>, vector<8x384xf32> -> vector<8x384xf32>
    %402 = vector.extract_strided_slice %399 {offsets = [0, 0], sizes = [8, 128], strides = [1, 1]} : vector<8x384xf32> to vector<8x128xf32>
    %403 = vector.extract_strided_slice %401 {offsets = [0, 0], sizes = [8, 128], strides = [1, 1]} : vector<8x384xf32> to vector<8x128xf32>
    %404 = arith.addf %402, %403 : vector<8x128xf32>
    %405 = arith.negf %404 : vector<8x128xf32>
    %406 = math.exp %405 : vector<8x128xf32>
    %cst_116 = arith.constant 1.000000e+00 : f32
    %407 = vector.broadcast %cst_116 : f32 to vector<8x128xf32>
    %408 = arith.addf %407, %406 : vector<8x128xf32>
    %409 = arith.divf %407, %408 : vector<8x128xf32>
    %410 = vector.extract_strided_slice %399 {offsets = [0, 128], sizes = [8, 128], strides = [1, 1]} : vector<8x384xf32> to vector<8x128xf32>
    %411 = vector.extract_strided_slice %401 {offsets = [0, 128], sizes = [8, 128], strides = [1, 1]} : vector<8x384xf32> to vector<8x128xf32>
    %412 = arith.addf %410, %411 : vector<8x128xf32>
    %413 = arith.negf %412 : vector<8x128xf32>
    %414 = math.exp %413 : vector<8x128xf32>
    %cst_117 = arith.constant 1.000000e+00 : f32
    %415 = vector.broadcast %cst_117 : f32 to vector<8x128xf32>
    %416 = arith.addf %415, %414 : vector<8x128xf32>
    %417 = arith.divf %415, %416 : vector<8x128xf32>
    %418 = vector.extract_strided_slice %399 {offsets = [0, 256], sizes = [8, 128], strides = [1, 1]} : vector<8x384xf32> to vector<8x128xf32>
    %419 = vector.extract_strided_slice %401 {offsets = [0, 256], sizes = [8, 128], strides = [1, 1]} : vector<8x384xf32> to vector<8x128xf32>
    %420 = arith.addf %419, %24 : vector<8x128xf32>
    %421 = arith.mulf %409, %420 : vector<8x128xf32>
    %422 = arith.addf %418, %421 : vector<8x128xf32>
    %423 = math.tanh %422 : vector<8x128xf32>
    %cst_118 = arith.constant 1.000000e+00 : f32
    %424 = vector.broadcast %cst_118 : f32 to vector<8x128xf32>
    %425 = arith.subf %424, %417 : vector<8x128xf32>
    %426 = arith.mulf %425, %423 : vector<8x128xf32>
    %427 = arith.mulf %417, %355 : vector<8x128xf32>
    %428 = arith.addf %426, %427 : vector<8x128xf32>
    %429 = arith.index_cast %396 : i32 to index
    %c0_119 = arith.constant 0 : index
    %c0_120 = arith.constant 0 : index
    %430 = vector.load %arg16[%429, %c0_119, %c0_120] : memref<8x8x384xf32, #tpu.memory_space<vmem>>, vector<1x8x384xf32>
    %431 = vector.shape_cast %430 : vector<1x8x384xf32> to vector<8x384xf32>
    %432 = arith.truncf %387 : vector<8x128xf32> to vector<8x128xbf16>
    %cst_121 = arith.constant dense<0.000000e+00> : vector<8x384xf32>
    %433 = tpu.matmul %432, %26, %cst_121 {dimension_numbers = #tpu.dot_dimension_numbers<[1], [0], [0], [1], [0, 0, 1, 1], [], []>} : vector<8x128xbf16>, vector<128x384xbf16>, vector<8x384xf32> -> vector<8x384xf32>
    %434 = vector.extract_strided_slice %431 {offsets = [0, 0], sizes = [8, 128], strides = [1, 1]} : vector<8x384xf32> to vector<8x128xf32>
    %435 = vector.extract_strided_slice %433 {offsets = [0, 0], sizes = [8, 128], strides = [1, 1]} : vector<8x384xf32> to vector<8x128xf32>
    %436 = arith.addf %434, %435 : vector<8x128xf32>
    %437 = arith.negf %436 : vector<8x128xf32>
    %438 = math.exp %437 : vector<8x128xf32>
    %cst_122 = arith.constant 1.000000e+00 : f32
    %439 = vector.broadcast %cst_122 : f32 to vector<8x128xf32>
    %440 = arith.addf %439, %438 : vector<8x128xf32>
    %441 = arith.divf %439, %440 : vector<8x128xf32>
    %442 = vector.extract_strided_slice %431 {offsets = [0, 128], sizes = [8, 128], strides = [1, 1]} : vector<8x384xf32> to vector<8x128xf32>
    %443 = vector.extract_strided_slice %433 {offsets = [0, 128], sizes = [8, 128], strides = [1, 1]} : vector<8x384xf32> to vector<8x128xf32>
    %444 = arith.addf %442, %443 : vector<8x128xf32>
    %445 = arith.negf %444 : vector<8x128xf32>
    %446 = math.exp %445 : vector<8x128xf32>
    %cst_123 = arith.constant 1.000000e+00 : f32
    %447 = vector.broadcast %cst_123 : f32 to vector<8x128xf32>
    %448 = arith.addf %447, %446 : vector<8x128xf32>
    %449 = arith.divf %447, %448 : vector<8x128xf32>
    %450 = vector.extract_strided_slice %431 {offsets = [0, 256], sizes = [8, 128], strides = [1, 1]} : vector<8x384xf32> to vector<8x128xf32>
    %451 = vector.extract_strided_slice %433 {offsets = [0, 256], sizes = [8, 128], strides = [1, 1]} : vector<8x384xf32> to vector<8x128xf32>
    %452 = arith.addf %451, %30 : vector<8x128xf32>
    %453 = arith.mulf %441, %452 : vector<8x128xf32>
    %454 = arith.addf %450, %453 : vector<8x128xf32>
    %455 = math.tanh %454 : vector<8x128xf32>
    %cst_124 = arith.constant 1.000000e+00 : f32
    %456 = vector.broadcast %cst_124 : f32 to vector<8x128xf32>
    %457 = arith.subf %456, %449 : vector<8x128xf32>
    %458 = arith.mulf %457, %455 : vector<8x128xf32>
    %459 = arith.mulf %449, %387 : vector<8x128xf32>
    %460 = arith.addf %458, %459 : vector<8x128xf32>
    %461 = arith.index_cast %c5_i32 : i32 to index
    %c0_125 = arith.constant 0 : index
    %c0_126 = arith.constant 0 : index
    %462 = vector.load %arg18[%461, %c0_125, %c0_126] : memref<8x8x128xf32, #tpu.memory_space<vmem>>, vector<1x8x128xf32>
    %463 = vector.shape_cast %462 : vector<1x8x128xf32> to vector<8x128xf32>
    %464 = vector.shape_cast %428 : vector<8x128xf32> to vector<1x8x128xf32>
    tpu.vector_store %arg18[%461, %c0_125, %c0_126], %464 {strides = array<i32>} : memref<8x8x128xf32, #tpu.memory_space<vmem>>, vector<1x8x128xf32>,
    %465 = arith.index_cast %396 : i32 to index
    %c0_127 = arith.constant 0 : index
    %c0_128 = arith.constant 0 : index
    %466 = vector.load %arg19[%465, %c0_127, %c0_128] : memref<8x8x128xf32, #tpu.memory_space<vmem>>, vector<1x8x128xf32>
    %467 = vector.shape_cast %466 : vector<1x8x128xf32> to vector<8x128xf32>
    %468 = vector.shape_cast %460 : vector<8x128xf32> to vector<1x8x128xf32>
    tpu.vector_store %arg19[%465, %c0_127, %c0_128], %468 {strides = array<i32>} : memref<8x8x128xf32, #tpu.memory_space<vmem>>, vector<1x8x128xf32>,
    %c6_i32 = arith.constant 6 : i32
    %c7_i32_129 = arith.constant 7 : i32
    %469 = arith.subi %c7_i32_129, %c6_i32 : i32
    %470 = arith.index_cast %c6_i32 : i32 to index
    %c0_130 = arith.constant 0 : index
    %c0_131 = arith.constant 0 : index
    %471 = vector.load %arg15[%470, %c0_130, %c0_131] : memref<8x8x384xf32, #tpu.memory_space<vmem>>, vector<1x8x384xf32>
    %472 = vector.shape_cast %471 : vector<1x8x384xf32> to vector<8x384xf32>
    %473 = arith.truncf %428 : vector<8x128xf32> to vector<8x128xbf16>
    %cst_132 = arith.constant dense<0.000000e+00> : vector<8x384xf32>
    %474 = tpu.matmul %473, %20, %cst_132 {dimension_numbers = #tpu.dot_dimension_numbers<[1], [0], [0], [1], [0, 0, 1, 1], [], []>} : vector<8x128xbf16>, vector<128x384xbf16>, vector<8x384xf32> -> vector<8x384xf32>
    %475 = vector.extract_strided_slice %472 {offsets = [0, 0], sizes = [8, 128], strides = [1, 1]} : vector<8x384xf32> to vector<8x128xf32>
    %476 = vector.extract_strided_slice %474 {offsets = [0, 0], sizes = [8, 128], strides = [1, 1]} : vector<8x384xf32> to vector<8x128xf32>
    %477 = arith.addf %475, %476 : vector<8x128xf32>
    %478 = arith.negf %477 : vector<8x128xf32>
    %479 = math.exp %478 : vector<8x128xf32>
    %cst_133 = arith.constant 1.000000e+00 : f32
    %480 = vector.broadcast %cst_133 : f32 to vector<8x128xf32>
    %481 = arith.addf %480, %479 : vector<8x128xf32>
    %482 = arith.divf %480, %481 : vector<8x128xf32>
    %483 = vector.extract_strided_slice %472 {offsets = [0, 128], sizes = [8, 128], strides = [1, 1]} : vector<8x384xf32> to vector<8x128xf32>
    %484 = vector.extract_strided_slice %474 {offsets = [0, 128], sizes = [8, 128], strides = [1, 1]} : vector<8x384xf32> to vector<8x128xf32>
    %485 = arith.addf %483, %484 : vector<8x128xf32>
    %486 = arith.negf %485 : vector<8x128xf32>
    %487 = math.exp %486 : vector<8x128xf32>
    %cst_134 = arith.constant 1.000000e+00 : f32
    %488 = vector.broadcast %cst_134 : f32 to vector<8x128xf32>
    %489 = arith.addf %488, %487 : vector<8x128xf32>
    %490 = arith.divf %488, %489 : vector<8x128xf32>
    %491 = vector.extract_strided_slice %472 {offsets = [0, 256], sizes = [8, 128], strides = [1, 1]} : vector<8x384xf32> to vector<8x128xf32>
    %492 = vector.extract_strided_slice %474 {offsets = [0, 256], sizes = [8, 128], strides = [1, 1]} : vector<8x384xf32> to vector<8x128xf32>
    %493 = arith.addf %492, %24 : vector<8x128xf32>
    %494 = arith.mulf %482, %493 : vector<8x128xf32>
    %495 = arith.addf %491, %494 : vector<8x128xf32>
    %496 = math.tanh %495 : vector<8x128xf32>
    %cst_135 = arith.constant 1.000000e+00 : f32
    %497 = vector.broadcast %cst_135 : f32 to vector<8x128xf32>
    %498 = arith.subf %497, %490 : vector<8x128xf32>
    %499 = arith.mulf %498, %496 : vector<8x128xf32>
    %500 = arith.mulf %490, %428 : vector<8x128xf32>
    %501 = arith.addf %499, %500 : vector<8x128xf32>
    %502 = arith.index_cast %469 : i32 to index
    %c0_136 = arith.constant 0 : index
    %c0_137 = arith.constant 0 : index
    %503 = vector.load %arg16[%502, %c0_136, %c0_137] : memref<8x8x384xf32, #tpu.memory_space<vmem>>, vector<1x8x384xf32>
    %504 = vector.shape_cast %503 : vector<1x8x384xf32> to vector<8x384xf32>
    %505 = arith.truncf %460 : vector<8x128xf32> to vector<8x128xbf16>
    %cst_138 = arith.constant dense<0.000000e+00> : vector<8x384xf32>
    %506 = tpu.matmul %505, %26, %cst_138 {dimension_numbers = #tpu.dot_dimension_numbers<[1], [0], [0], [1], [0, 0, 1, 1], [], []>} : vector<8x128xbf16>, vector<128x384xbf16>, vector<8x384xf32> -> vector<8x384xf32>
    %507 = vector.extract_strided_slice %504 {offsets = [0, 0], sizes = [8, 128], strides = [1, 1]} : vector<8x384xf32> to vector<8x128xf32>
    %508 = vector.extract_strided_slice %506 {offsets = [0, 0], sizes = [8, 128], strides = [1, 1]} : vector<8x384xf32> to vector<8x128xf32>
    %509 = arith.addf %507, %508 : vector<8x128xf32>
    %510 = arith.negf %509 : vector<8x128xf32>
    %511 = math.exp %510 : vector<8x128xf32>
    %cst_139 = arith.constant 1.000000e+00 : f32
    %512 = vector.broadcast %cst_139 : f32 to vector<8x128xf32>
    %513 = arith.addf %512, %511 : vector<8x128xf32>
    %514 = arith.divf %512, %513 : vector<8x128xf32>
    %515 = vector.extract_strided_slice %504 {offsets = [0, 128], sizes = [8, 128], strides = [1, 1]} : vector<8x384xf32> to vector<8x128xf32>
    %516 = vector.extract_strided_slice %506 {offsets = [0, 128], sizes = [8, 128], strides = [1, 1]} : vector<8x384xf32> to vector<8x128xf32>
    %517 = arith.addf %515, %516 : vector<8x128xf32>
    %518 = arith.negf %517 : vector<8x128xf32>
    %519 = math.exp %518 : vector<8x128xf32>
    %cst_140 = arith.constant 1.000000e+00 : f32
    %520 = vector.broadcast %cst_140 : f32 to vector<8x128xf32>
    %521 = arith.addf %520, %519 : vector<8x128xf32>
    %522 = arith.divf %520, %521 : vector<8x128xf32>
    %523 = vector.extract_strided_slice %504 {offsets = [0, 256], sizes = [8, 128], strides = [1, 1]} : vector<8x384xf32> to vector<8x128xf32>
    %524 = vector.extract_strided_slice %506 {offsets = [0, 256], sizes = [8, 128], strides = [1, 1]} : vector<8x384xf32> to vector<8x128xf32>
    %525 = arith.addf %524, %30 : vector<8x128xf32>
    %526 = arith.mulf %514, %525 : vector<8x128xf32>
    %527 = arith.addf %523, %526 : vector<8x128xf32>
    %528 = math.tanh %527 : vector<8x128xf32>
    %cst_141 = arith.constant 1.000000e+00 : f32
    %529 = vector.broadcast %cst_141 : f32 to vector<8x128xf32>
    %530 = arith.subf %529, %522 : vector<8x128xf32>
    %531 = arith.mulf %530, %528 : vector<8x128xf32>
    %532 = arith.mulf %522, %460 : vector<8x128xf32>
    %533 = arith.addf %531, %532 : vector<8x128xf32>
    %534 = arith.index_cast %c6_i32 : i32 to index
    %c0_142 = arith.constant 0 : index
    %c0_143 = arith.constant 0 : index
    %535 = vector.load %arg18[%534, %c0_142, %c0_143] : memref<8x8x128xf32, #tpu.memory_space<vmem>>, vector<1x8x128xf32>
    %536 = vector.shape_cast %535 : vector<1x8x128xf32> to vector<8x128xf32>
    %537 = vector.shape_cast %501 : vector<8x128xf32> to vector<1x8x128xf32>
    tpu.vector_store %arg18[%534, %c0_142, %c0_143], %537 {strides = array<i32>} : memref<8x8x128xf32, #tpu.memory_space<vmem>>, vector<1x8x128xf32>,
    %538 = arith.index_cast %469 : i32 to index
    %c0_144 = arith.constant 0 : index
    %c0_145 = arith.constant 0 : index
    %539 = vector.load %arg19[%538, %c0_144, %c0_145] : memref<8x8x128xf32, #tpu.memory_space<vmem>>, vector<1x8x128xf32>
    %540 = vector.shape_cast %539 : vector<1x8x128xf32> to vector<8x128xf32>
    %541 = vector.shape_cast %533 : vector<8x128xf32> to vector<1x8x128xf32>
    tpu.vector_store %arg19[%538, %c0_144, %c0_145], %541 {strides = array<i32>} : memref<8x8x128xf32, #tpu.memory_space<vmem>>, vector<1x8x128xf32>,
    %c7_i32_146 = arith.constant 7 : i32
    %c7_i32_147 = arith.constant 7 : i32
    %542 = arith.subi %c7_i32_147, %c7_i32_146 : i32
    %543 = arith.index_cast %c7_i32_146 : i32 to index
    %c0_148 = arith.constant 0 : index
    %c0_149 = arith.constant 0 : index
    %544 = vector.load %arg15[%543, %c0_148, %c0_149] : memref<8x8x384xf32, #tpu.memory_space<vmem>>, vector<1x8x384xf32>
    %545 = vector.shape_cast %544 : vector<1x8x384xf32> to vector<8x384xf32>
    %546 = arith.truncf %501 : vector<8x128xf32> to vector<8x128xbf16>
    %cst_150 = arith.constant dense<0.000000e+00> : vector<8x384xf32>
    %547 = tpu.matmul %546, %20, %cst_150 {dimension_numbers = #tpu.dot_dimension_numbers<[1], [0], [0], [1], [0, 0, 1, 1], [], []>} : vector<8x128xbf16>, vector<128x384xbf16>, vector<8x384xf32> -> vector<8x384xf32>
    %548 = vector.extract_strided_slice %545 {offsets = [0, 0], sizes = [8, 128], strides = [1, 1]} : vector<8x384xf32> to vector<8x128xf32>
    %549 = vector.extract_strided_slice %547 {offsets = [0, 0], sizes = [8, 128], strides = [1, 1]} : vector<8x384xf32> to vector<8x128xf32>
    %550 = arith.addf %548, %549 : vector<8x128xf32>
    %551 = arith.negf %550 : vector<8x128xf32>
    %552 = math.exp %551 : vector<8x128xf32>
    %cst_151 = arith.constant 1.000000e+00 : f32
    %553 = vector.broadcast %cst_151 : f32 to vector<8x128xf32>
    %554 = arith.addf %553, %552 : vector<8x128xf32>
    %555 = arith.divf %553, %554 : vector<8x128xf32>
    %556 = vector.extract_strided_slice %545 {offsets = [0, 128], sizes = [8, 128], strides = [1, 1]} : vector<8x384xf32> to vector<8x128xf32>
    %557 = vector.extract_strided_slice %547 {offsets = [0, 128], sizes = [8, 128], strides = [1, 1]} : vector<8x384xf32> to vector<8x128xf32>
    %558 = arith.addf %556, %557 : vector<8x128xf32>
    %559 = arith.negf %558 : vector<8x128xf32>
    %560 = math.exp %559 : vector<8x128xf32>
    %cst_152 = arith.constant 1.000000e+00 : f32
    %561 = vector.broadcast %cst_152 : f32 to vector<8x128xf32>
    %562 = arith.addf %561, %560 : vector<8x128xf32>
    %563 = arith.divf %561, %562 : vector<8x128xf32>
    %564 = vector.extract_strided_slice %545 {offsets = [0, 256], sizes = [8, 128], strides = [1, 1]} : vector<8x384xf32> to vector<8x128xf32>
    %565 = vector.extract_strided_slice %547 {offsets = [0, 256], sizes = [8, 128], strides = [1, 1]} : vector<8x384xf32> to vector<8x128xf32>
    %566 = arith.addf %565, %24 : vector<8x128xf32>
    %567 = arith.mulf %555, %566 : vector<8x128xf32>
    %568 = arith.addf %564, %567 : vector<8x128xf32>
    %569 = math.tanh %568 : vector<8x128xf32>
    %cst_153 = arith.constant 1.000000e+00 : f32
    %570 = vector.broadcast %cst_153 : f32 to vector<8x128xf32>
    %571 = arith.subf %570, %563 : vector<8x128xf32>
    %572 = arith.mulf %571, %569 : vector<8x128xf32>
    %573 = arith.mulf %563, %501 : vector<8x128xf32>
    %574 = arith.addf %572, %573 : vector<8x128xf32>
    %575 = arith.index_cast %542 : i32 to index
    %c0_154 = arith.constant 0 : index
    %c0_155 = arith.constant 0 : index
    %576 = vector.load %arg16[%575, %c0_154, %c0_155] : memref<8x8x384xf32, #tpu.memory_space<vmem>>, vector<1x8x384xf32>
    %577 = vector.shape_cast %576 : vector<1x8x384xf32> to vector<8x384xf32>
    %578 = arith.truncf %533 : vector<8x128xf32> to vector<8x128xbf16>
    %cst_156 = arith.constant dense<0.000000e+00> : vector<8x384xf32>
    %579 = tpu.matmul %578, %26, %cst_156 {dimension_numbers = #tpu.dot_dimension_numbers<[1], [0], [0], [1], [0, 0, 1, 1], [], []>} : vector<8x128xbf16>, vector<128x384xbf16>, vector<8x384xf32> -> vector<8x384xf32>
    %580 = vector.extract_strided_slice %577 {offsets = [0, 0], sizes = [8, 128], strides = [1, 1]} : vector<8x384xf32> to vector<8x128xf32>
    %581 = vector.extract_strided_slice %579 {offsets = [0, 0], sizes = [8, 128], strides = [1, 1]} : vector<8x384xf32> to vector<8x128xf32>
    %582 = arith.addf %580, %581 : vector<8x128xf32>
    %583 = arith.negf %582 : vector<8x128xf32>
    %584 = math.exp %583 : vector<8x128xf32>
    %cst_157 = arith.constant 1.000000e+00 : f32
    %585 = vector.broadcast %cst_157 : f32 to vector<8x128xf32>
    %586 = arith.addf %585, %584 : vector<8x128xf32>
    %587 = arith.divf %585, %586 : vector<8x128xf32>
    %588 = vector.extract_strided_slice %577 {offsets = [0, 128], sizes = [8, 128], strides = [1, 1]} : vector<8x384xf32> to vector<8x128xf32>
    %589 = vector.extract_strided_slice %579 {offsets = [0, 128], sizes = [8, 128], strides = [1, 1]} : vector<8x384xf32> to vector<8x128xf32>
    %590 = arith.addf %588, %589 : vector<8x128xf32>
    %591 = arith.negf %590 : vector<8x128xf32>
    %592 = math.exp %591 : vector<8x128xf32>
    %cst_158 = arith.constant 1.000000e+00 : f32
    %593 = vector.broadcast %cst_158 : f32 to vector<8x128xf32>
    %594 = arith.addf %593, %592 : vector<8x128xf32>
    %595 = arith.divf %593, %594 : vector<8x128xf32>
    %596 = vector.extract_strided_slice %577 {offsets = [0, 256], sizes = [8, 128], strides = [1, 1]} : vector<8x384xf32> to vector<8x128xf32>
    %597 = vector.extract_strided_slice %579 {offsets = [0, 256], sizes = [8, 128], strides = [1, 1]} : vector<8x384xf32> to vector<8x128xf32>
    %598 = arith.addf %597, %30 : vector<8x128xf32>
    %599 = arith.mulf %587, %598 : vector<8x128xf32>
    %600 = arith.addf %596, %599 : vector<8x128xf32>
    %601 = math.tanh %600 : vector<8x128xf32>
    %cst_159 = arith.constant 1.000000e+00 : f32
    %602 = vector.broadcast %cst_159 : f32 to vector<8x128xf32>
    %603 = arith.subf %602, %595 : vector<8x128xf32>
    %604 = arith.mulf %603, %601 : vector<8x128xf32>
    %605 = arith.mulf %595, %533 : vector<8x128xf32>
    %606 = arith.addf %604, %605 : vector<8x128xf32>
    %607 = arith.index_cast %c7_i32_146 : i32 to index
    %c0_160 = arith.constant 0 : index
    %c0_161 = arith.constant 0 : index
    %608 = vector.load %arg18[%607, %c0_160, %c0_161] : memref<8x8x128xf32, #tpu.memory_space<vmem>>, vector<1x8x128xf32>
    %609 = vector.shape_cast %608 : vector<1x8x128xf32> to vector<8x128xf32>
    %610 = vector.shape_cast %574 : vector<8x128xf32> to vector<1x8x128xf32>
    tpu.vector_store %arg18[%607, %c0_160, %c0_161], %610 {strides = array<i32>} : memref<8x8x128xf32, #tpu.memory_space<vmem>>, vector<1x8x128xf32>,
    %611 = arith.index_cast %542 : i32 to index
    %c0_162 = arith.constant 0 : index
    %c0_163 = arith.constant 0 : index
    %612 = vector.load %arg19[%611, %c0_162, %c0_163] : memref<8x8x128xf32, #tpu.memory_space<vmem>>, vector<1x8x128xf32>
    %613 = vector.shape_cast %612 : vector<1x8x128xf32> to vector<8x128xf32>
    %614 = vector.shape_cast %606 : vector<8x128xf32> to vector<1x8x128xf32>
    tpu.vector_store %arg19[%611, %c0_162, %c0_163], %614 {strides = array<i32>} : memref<8x8x128xf32, #tpu.memory_space<vmem>>, vector<1x8x128xf32>,
    %c8_i32 = arith.constant 8 : i32
    %c0_164 = arith.constant 0 : index
    %c0_165 = arith.constant 0 : index
    %c0_166 = arith.constant 0 : index
    %615 = vector.load %arg18[%c0_164, %c0_165, %c0_166] : memref<8x8x128xf32, #tpu.memory_space<vmem>>, vector<8x8x128xf32>
    %616 = vector.shape_cast %615 : vector<8x8x128xf32> to vector<64x128xf32>
    %c0_167 = arith.constant 0 : index
    %c0_168 = arith.constant 0 : index
    %c0_169 = arith.constant 0 : index
    %617 = vector.load %arg19[%c0_167, %c0_168, %c0_169] : memref<8x8x128xf32, #tpu.memory_space<vmem>>, vector<8x8x128xf32>
    %618 = vector.shape_cast %617 : vector<8x8x128xf32> to vector<64x128xf32>
    %619 = tpu.concatenate %616, %618 in 1 : vector<64x128xf32>, vector<64x128xf32> -> vector<64x256xf32>
    %620 = arith.truncf %619 : vector<64x256xf32> to vector<64x256xbf16>
    %c0_170 = arith.constant 0 : index
    %c0_171 = arith.constant 0 : index
    %621 = vector.load %arg5[%c0_170, %c0_171] : memref<256x384xbf16, #tpu.memory_space<vmem>>, vector<256x384xbf16>
    %cst_172 = arith.constant dense<0.000000e+00> : vector<64x384xf32>
    %622 = tpu.matmul %620, %621, %cst_172 {dimension_numbers = #tpu.dot_dimension_numbers<[1], [0], [0], [1], [0, 0, 1, 1], [], []>} : vector<64x256xbf16>, vector<256x384xbf16>, vector<64x384xf32> -> vector<64x384xf32>
    %c0_173 = arith.constant 0 : index
    %c0_174 = arith.constant 0 : index
    %c0_175 = arith.constant 0 : index
    %623 = vector.load %arg8[%c0_173, %c0_174, %c0_175] : memref<2x1x384xf32, #tpu.memory_space<vmem>>, vector<1x1x384xf32>
    %624 = vector.shape_cast %623 : vector<1x1x384xf32> to vector<1x384xf32>
    %625 = vector.broadcast %624 : vector<1x384xf32> to vector<64x384xf32>
    %626 = arith.addf %622, %625 : vector<64x384xf32>
    %627 = vector.shape_cast %626 : vector<64x384xf32> to vector<8x8x384xf32>
    %c0_176 = arith.constant 0 : index
    %c0_177 = arith.constant 0 : index
    %c0_178 = arith.constant 0 : index
    %628 = vector.load %arg17[%c0_176, %c0_177, %c0_178] : memref<8x8x384xf32, #tpu.memory_space<vmem>>, vector<8x8x384xf32>
    tpu.vector_store %arg17[%c0_176, %c0_177, %c0_178], %627 {strides = array<i32>} : memref<8x8x384xf32, #tpu.memory_space<vmem>>, vector<8x8x384xf32>,
    %c0_179 = arith.constant 0 : index
    %c0_180 = arith.constant 0 : index
    %c0_181 = arith.constant 0 : index
    %629 = vector.load %arg7[%c0_179, %c0_180, %c0_181] : memref<2x128x384xbf16, #tpu.memory_space<vmem>>, vector<1x128x384xbf16>
    %630 = vector.shape_cast %629 : vector<1x128x384xbf16> to vector<128x384xbf16>
    %c0_182 = arith.constant 0 : index
    %c0_183 = arith.constant 0 : index
    %c0_184 = arith.constant 0 : index
    %631 = vector.load %arg9[%c0_182, %c0_183, %c0_184] : memref<2x1x128xf32, #tpu.memory_space<vmem>>, vector<1x1x128xf32>
    %632 = vector.shape_cast %631 : vector<1x1x128xf32> to vector<1x128xf32>
    %633 = vector.shape_cast %632 : vector<1x128xf32> to vector<1x128xf32>
    %634 = vector.broadcast %633 : vector<1x128xf32> to vector<8x128xf32>
    %c0_i32_185 = arith.constant 0 : i32
    %635 = arith.index_cast %c0_i32_185 : i32 to index
    %c0_186 = arith.constant 0 : index
    %c0_187 = arith.constant 0 : index
    %636 = vector.load %arg17[%635, %c0_186, %c0_187] : memref<8x8x384xf32, #tpu.memory_space<vmem>>, vector<1x8x384xf32>
    %637 = vector.shape_cast %636 : vector<1x8x384xf32> to vector<8x384xf32>
    %638 = arith.truncf %0 : vector<8x128xf32> to vector<8x128xbf16>
    %cst_188 = arith.constant dense<0.000000e+00> : vector<8x384xf32>
    %639 = tpu.matmul %638, %630, %cst_188 {dimension_numbers = #tpu.dot_dimension_numbers<[1], [0], [0], [1], [0, 0, 1, 1], [], []>} : vector<8x128xbf16>, vector<128x384xbf16>, vector<8x384xf32> -> vector<8x384xf32>
    %640 = vector.extract_strided_slice %637 {offsets = [0, 0], sizes = [8, 128], strides = [1, 1]} : vector<8x384xf32> to vector<8x128xf32>
    %641 = vector.extract_strided_slice %639 {offsets = [0, 0], sizes = [8, 128], strides = [1, 1]} : vector<8x384xf32> to vector<8x128xf32>
    %642 = arith.addf %640, %641 : vector<8x128xf32>
    %643 = arith.negf %642 : vector<8x128xf32>
    %644 = math.exp %643 : vector<8x128xf32>
    %cst_189 = arith.constant 1.000000e+00 : f32
    %645 = vector.broadcast %cst_189 : f32 to vector<8x128xf32>
    %646 = arith.addf %645, %644 : vector<8x128xf32>
    %647 = arith.divf %645, %646 : vector<8x128xf32>
    %648 = vector.extract_strided_slice %637 {offsets = [0, 128], sizes = [8, 128], strides = [1, 1]} : vector<8x384xf32> to vector<8x128xf32>
    %649 = vector.extract_strided_slice %639 {offsets = [0, 128], sizes = [8, 128], strides = [1, 1]} : vector<8x384xf32> to vector<8x128xf32>
    %650 = arith.addf %648, %649 : vector<8x128xf32>
    %651 = arith.negf %650 : vector<8x128xf32>
    %652 = math.exp %651 : vector<8x128xf32>
    %cst_190 = arith.constant 1.000000e+00 : f32
    %653 = vector.broadcast %cst_190 : f32 to vector<8x128xf32>
    %654 = arith.addf %653, %652 : vector<8x128xf32>
    %655 = arith.divf %653, %654 : vector<8x128xf32>
    %656 = vector.extract_strided_slice %637 {offsets = [0, 256], sizes = [8, 128], strides = [1, 1]} : vector<8x384xf32> to vector<8x128xf32>
    %657 = vector.extract_strided_slice %639 {offsets = [0, 256], sizes = [8, 128], strides = [1, 1]} : vector<8x384xf32> to vector<8x128xf32>
    %658 = arith.addf %657, %634 : vector<8x128xf32>
    %659 = arith.mulf %647, %658 : vector<8x128xf32>
    %660 = arith.addf %656, %659 : vector<8x128xf32>
    %661 = math.tanh %660 : vector<8x128xf32>
    %cst_191 = arith.constant 1.000000e+00 : f32
    %662 = vector.broadcast %cst_191 : f32 to vector<8x128xf32>
    %663 = arith.subf %662, %655 : vector<8x128xf32>
    %664 = arith.mulf %663, %661 : vector<8x128xf32>
    %665 = arith.mulf %655, %0 : vector<8x128xf32>
    %666 = arith.addf %664, %665 : vector<8x128xf32>
    %c1_i32_192 = arith.constant 1 : i32
    %667 = arith.index_cast %c1_i32_192 : i32 to index
    %c0_193 = arith.constant 0 : index
    %c0_194 = arith.constant 0 : index
    %668 = vector.load %arg17[%667, %c0_193, %c0_194] : memref<8x8x384xf32, #tpu.memory_space<vmem>>, vector<1x8x384xf32>
    %669 = vector.shape_cast %668 : vector<1x8x384xf32> to vector<8x384xf32>
    %670 = arith.truncf %666 : vector<8x128xf32> to vector<8x128xbf16>
    %cst_195 = arith.constant dense<0.000000e+00> : vector<8x384xf32>
    %671 = tpu.matmul %670, %630, %cst_195 {dimension_numbers = #tpu.dot_dimension_numbers<[1], [0], [0], [1], [0, 0, 1, 1], [], []>} : vector<8x128xbf16>, vector<128x384xbf16>, vector<8x384xf32> -> vector<8x384xf32>
    %672 = vector.extract_strided_slice %669 {offsets = [0, 0], sizes = [8, 128], strides = [1, 1]} : vector<8x384xf32> to vector<8x128xf32>
    %673 = vector.extract_strided_slice %671 {offsets = [0, 0], sizes = [8, 128], strides = [1, 1]} : vector<8x384xf32> to vector<8x128xf32>
    %674 = arith.addf %672, %673 : vector<8x128xf32>
    %675 = arith.negf %674 : vector<8x128xf32>
    %676 = math.exp %675 : vector<8x128xf32>
    %cst_196 = arith.constant 1.000000e+00 : f32
    %677 = vector.broadcast %cst_196 : f32 to vector<8x128xf32>
    %678 = arith.addf %677, %676 : vector<8x128xf32>
    %679 = arith.divf %677, %678 : vector<8x128xf32>
    %680 = vector.extract_strided_slice %669 {offsets = [0, 128], sizes = [8, 128], strides = [1, 1]} : vector<8x384xf32> to vector<8x128xf32>
    %681 = vector.extract_strided_slice %671 {offsets = [0, 128], sizes = [8, 128], strides = [1, 1]} : vector<8x384xf32> to vector<8x128xf32>
    %682 = arith.addf %680, %681 : vector<8x128xf32>
    %683 = arith.negf %682 : vector<8x128xf32>
    %684 = math.exp %683 : vector<8x128xf32>
    %cst_197 = arith.constant 1.000000e+00 : f32
    %685 = vector.broadcast %cst_197 : f32 to vector<8x128xf32>
    %686 = arith.addf %685, %684 : vector<8x128xf32>
    %687 = arith.divf %685, %686 : vector<8x128xf32>
    %688 = vector.extract_strided_slice %669 {offsets = [0, 256], sizes = [8, 128], strides = [1, 1]} : vector<8x384xf32> to vector<8x128xf32>
    %689 = vector.extract_strided_slice %671 {offsets = [0, 256], sizes = [8, 128], strides = [1, 1]} : vector<8x384xf32> to vector<8x128xf32>
    %690 = arith.addf %689, %634 : vector<8x128xf32>
    %691 = arith.mulf %679, %690 : vector<8x128xf32>
    %692 = arith.addf %688, %691 : vector<8x128xf32>
    %693 = math.tanh %692 : vector<8x128xf32>
    %cst_198 = arith.constant 1.000000e+00 : f32
    %694 = vector.broadcast %cst_198 : f32 to vector<8x128xf32>
    %695 = arith.subf %694, %687 : vector<8x128xf32>
    %696 = arith.mulf %695, %693 : vector<8x128xf32>
    %697 = arith.mulf %687, %666 : vector<8x128xf32>
    %698 = arith.addf %696, %697 : vector<8x128xf32>
    %c2_i32_199 = arith.constant 2 : i32
    %699 = arith.index_cast %c2_i32_199 : i32 to index
    %c0_200 = arith.constant 0 : index
    %c0_201 = arith.constant 0 : index
    %700 = vector.load %arg17[%699, %c0_200, %c0_201] : memref<8x8x384xf32, #tpu.memory_space<vmem>>, vector<1x8x384xf32>
    %701 = vector.shape_cast %700 : vector<1x8x384xf32> to vector<8x384xf32>
    %702 = arith.truncf %698 : vector<8x128xf32> to vector<8x128xbf16>
    %cst_202 = arith.constant dense<0.000000e+00> : vector<8x384xf32>
    %703 = tpu.matmul %702, %630, %cst_202 {dimension_numbers = #tpu.dot_dimension_numbers<[1], [0], [0], [1], [0, 0, 1, 1], [], []>} : vector<8x128xbf16>, vector<128x384xbf16>, vector<8x384xf32> -> vector<8x384xf32>
    %704 = vector.extract_strided_slice %701 {offsets = [0, 0], sizes = [8, 128], strides = [1, 1]} : vector<8x384xf32> to vector<8x128xf32>
    %705 = vector.extract_strided_slice %703 {offsets = [0, 0], sizes = [8, 128], strides = [1, 1]} : vector<8x384xf32> to vector<8x128xf32>
    %706 = arith.addf %704, %705 : vector<8x128xf32>
    %707 = arith.negf %706 : vector<8x128xf32>
    %708 = math.exp %707 : vector<8x128xf32>
    %cst_203 = arith.constant 1.000000e+00 : f32
    %709 = vector.broadcast %cst_203 : f32 to vector<8x128xf32>
    %710 = arith.addf %709, %708 : vector<8x128xf32>
    %711 = arith.divf %709, %710 : vector<8x128xf32>
    %712 = vector.extract_strided_slice %701 {offsets = [0, 128], sizes = [8, 128], strides = [1, 1]} : vector<8x384xf32> to vector<8x128xf32>
    %713 = vector.extract_strided_slice %703 {offsets = [0, 128], sizes = [8, 128], strides = [1, 1]} : vector<8x384xf32> to vector<8x128xf32>
    %714 = arith.addf %712, %713 : vector<8x128xf32>
    %715 = arith.negf %714 : vector<8x128xf32>
    %716 = math.exp %715 : vector<8x128xf32>
    %cst_204 = arith.constant 1.000000e+00 : f32
    %717 = vector.broadcast %cst_204 : f32 to vector<8x128xf32>
    %718 = arith.addf %717, %716 : vector<8x128xf32>
    %719 = arith.divf %717, %718 : vector<8x128xf32>
    %720 = vector.extract_strided_slice %701 {offsets = [0, 256], sizes = [8, 128], strides = [1, 1]} : vector<8x384xf32> to vector<8x128xf32>
    %721 = vector.extract_strided_slice %703 {offsets = [0, 256], sizes = [8, 128], strides = [1, 1]} : vector<8x384xf32> to vector<8x128xf32>
    %722 = arith.addf %721, %634 : vector<8x128xf32>
    %723 = arith.mulf %711, %722 : vector<8x128xf32>
    %724 = arith.addf %720, %723 : vector<8x128xf32>
    %725 = math.tanh %724 : vector<8x128xf32>
    %cst_205 = arith.constant 1.000000e+00 : f32
    %726 = vector.broadcast %cst_205 : f32 to vector<8x128xf32>
    %727 = arith.subf %726, %719 : vector<8x128xf32>
    %728 = arith.mulf %727, %725 : vector<8x128xf32>
    %729 = arith.mulf %719, %698 : vector<8x128xf32>
    %730 = arith.addf %728, %729 : vector<8x128xf32>
    %c3_i32_206 = arith.constant 3 : i32
    %731 = arith.index_cast %c3_i32_206 : i32 to index
    %c0_207 = arith.constant 0 : index
    %c0_208 = arith.constant 0 : index
    %732 = vector.load %arg17[%731, %c0_207, %c0_208] : memref<8x8x384xf32, #tpu.memory_space<vmem>>, vector<1x8x384xf32>
    %733 = vector.shape_cast %732 : vector<1x8x384xf32> to vector<8x384xf32>
    %734 = arith.truncf %730 : vector<8x128xf32> to vector<8x128xbf16>
    %cst_209 = arith.constant dense<0.000000e+00> : vector<8x384xf32>
    %735 = tpu.matmul %734, %630, %cst_209 {dimension_numbers = #tpu.dot_dimension_numbers<[1], [0], [0], [1], [0, 0, 1, 1], [], []>} : vector<8x128xbf16>, vector<128x384xbf16>, vector<8x384xf32> -> vector<8x384xf32>
    %736 = vector.extract_strided_slice %733 {offsets = [0, 0], sizes = [8, 128], strides = [1, 1]} : vector<8x384xf32> to vector<8x128xf32>
    %737 = vector.extract_strided_slice %735 {offsets = [0, 0], sizes = [8, 128], strides = [1, 1]} : vector<8x384xf32> to vector<8x128xf32>
    %738 = arith.addf %736, %737 : vector<8x128xf32>
    %739 = arith.negf %738 : vector<8x128xf32>
    %740 = math.exp %739 : vector<8x128xf32>
    %cst_210 = arith.constant 1.000000e+00 : f32
    %741 = vector.broadcast %cst_210 : f32 to vector<8x128xf32>
    %742 = arith.addf %741, %740 : vector<8x128xf32>
    %743 = arith.divf %741, %742 : vector<8x128xf32>
    %744 = vector.extract_strided_slice %733 {offsets = [0, 128], sizes = [8, 128], strides = [1, 1]} : vector<8x384xf32> to vector<8x128xf32>
    %745 = vector.extract_strided_slice %735 {offsets = [0, 128], sizes = [8, 128], strides = [1, 1]} : vector<8x384xf32> to vector<8x128xf32>
    %746 = arith.addf %744, %745 : vector<8x128xf32>
    %747 = arith.negf %746 : vector<8x128xf32>
    %748 = math.exp %747 : vector<8x128xf32>
    %cst_211 = arith.constant 1.000000e+00 : f32
    %749 = vector.broadcast %cst_211 : f32 to vector<8x128xf32>
    %750 = arith.addf %749, %748 : vector<8x128xf32>
    %751 = arith.divf %749, %750 : vector<8x128xf32>
    %752 = vector.extract_strided_slice %733 {offsets = [0, 256], sizes = [8, 128], strides = [1, 1]} : vector<8x384xf32> to vector<8x128xf32>
    %753 = vector.extract_strided_slice %735 {offsets = [0, 256], sizes = [8, 128], strides = [1, 1]} : vector<8x384xf32> to vector<8x128xf32>
    %754 = arith.addf %753, %634 : vector<8x128xf32>
    %755 = arith.mulf %743, %754 : vector<8x128xf32>
    %756 = arith.addf %752, %755 : vector<8x128xf32>
    %757 = math.tanh %756 : vector<8x128xf32>
    %cst_212 = arith.constant 1.000000e+00 : f32
    %758 = vector.broadcast %cst_212 : f32 to vector<8x128xf32>
    %759 = arith.subf %758, %751 : vector<8x128xf32>
    %760 = arith.mulf %759, %757 : vector<8x128xf32>
    %761 = arith.mulf %751, %730 : vector<8x128xf32>
    %762 = arith.addf %760, %761 : vector<8x128xf32>
    %c4_i32_213 = arith.constant 4 : i32
    %763 = arith.index_cast %c4_i32_213 : i32 to index
    %c0_214 = arith.constant 0 : index
    %c0_215 = arith.constant 0 : index
    %764 = vector.load %arg17[%763, %c0_214, %c0_215] : memref<8x8x384xf32, #tpu.memory_space<vmem>>, vector<1x8x384xf32>
    %765 = vector.shape_cast %764 : vector<1x8x384xf32> to vector<8x384xf32>
    %766 = arith.truncf %762 : vector<8x128xf32> to vector<8x128xbf16>
    %cst_216 = arith.constant dense<0.000000e+00> : vector<8x384xf32>
    %767 = tpu.matmul %766, %630, %cst_216 {dimension_numbers = #tpu.dot_dimension_numbers<[1], [0], [0], [1], [0, 0, 1, 1], [], []>} : vector<8x128xbf16>, vector<128x384xbf16>, vector<8x384xf32> -> vector<8x384xf32>
    %768 = vector.extract_strided_slice %765 {offsets = [0, 0], sizes = [8, 128], strides = [1, 1]} : vector<8x384xf32> to vector<8x128xf32>
    %769 = vector.extract_strided_slice %767 {offsets = [0, 0], sizes = [8, 128], strides = [1, 1]} : vector<8x384xf32> to vector<8x128xf32>
    %770 = arith.addf %768, %769 : vector<8x128xf32>
    %771 = arith.negf %770 : vector<8x128xf32>
    %772 = math.exp %771 : vector<8x128xf32>
    %cst_217 = arith.constant 1.000000e+00 : f32
    %773 = vector.broadcast %cst_217 : f32 to vector<8x128xf32>
    %774 = arith.addf %773, %772 : vector<8x128xf32>
    %775 = arith.divf %773, %774 : vector<8x128xf32>
    %776 = vector.extract_strided_slice %765 {offsets = [0, 128], sizes = [8, 128], strides = [1, 1]} : vector<8x384xf32> to vector<8x128xf32>
    %777 = vector.extract_strided_slice %767 {offsets = [0, 128], sizes = [8, 128], strides = [1, 1]} : vector<8x384xf32> to vector<8x128xf32>
    %778 = arith.addf %776, %777 : vector<8x128xf32>
    %779 = arith.negf %778 : vector<8x128xf32>
    %780 = math.exp %779 : vector<8x128xf32>
    %cst_218 = arith.constant 1.000000e+00 : f32
    %781 = vector.broadcast %cst_218 : f32 to vector<8x128xf32>
    %782 = arith.addf %781, %780 : vector<8x128xf32>
    %783 = arith.divf %781, %782 : vector<8x128xf32>
    %784 = vector.extract_strided_slice %765 {offsets = [0, 256], sizes = [8, 128], strides = [1, 1]} : vector<8x384xf32> to vector<8x128xf32>
    %785 = vector.extract_strided_slice %767 {offsets = [0, 256], sizes = [8, 128], strides = [1, 1]} : vector<8x384xf32> to vector<8x128xf32>
    %786 = arith.addf %785, %634 : vector<8x128xf32>
    %787 = arith.mulf %775, %786 : vector<8x128xf32>
    %788 = arith.addf %784, %787 : vector<8x128xf32>
    %789 = math.tanh %788 : vector<8x128xf32>
    %cst_219 = arith.constant 1.000000e+00 : f32
    %790 = vector.broadcast %cst_219 : f32 to vector<8x128xf32>
    %791 = arith.subf %790, %783 : vector<8x128xf32>
    %792 = arith.mulf %791, %789 : vector<8x128xf32>
    %793 = arith.mulf %783, %762 : vector<8x128xf32>
    %794 = arith.addf %792, %793 : vector<8x128xf32>
    %c5_i32_220 = arith.constant 5 : i32
    %795 = arith.index_cast %c5_i32_220 : i32 to index
    %c0_221 = arith.constant 0 : index
    %c0_222 = arith.constant 0 : index
    %796 = vector.load %arg17[%795, %c0_221, %c0_222] : memref<8x8x384xf32, #tpu.memory_space<vmem>>, vector<1x8x384xf32>
    %797 = vector.shape_cast %796 : vector<1x8x384xf32> to vector<8x384xf32>
    %798 = arith.truncf %794 : vector<8x128xf32> to vector<8x128xbf16>
    %cst_223 = arith.constant dense<0.000000e+00> : vector<8x384xf32>
    %799 = tpu.matmul %798, %630, %cst_223 {dimension_numbers = #tpu.dot_dimension_numbers<[1], [0], [0], [1], [0, 0, 1, 1], [], []>} : vector<8x128xbf16>, vector<128x384xbf16>, vector<8x384xf32> -> vector<8x384xf32>
    %800 = vector.extract_strided_slice %797 {offsets = [0, 0], sizes = [8, 128], strides = [1, 1]} : vector<8x384xf32> to vector<8x128xf32>
    %801 = vector.extract_strided_slice %799 {offsets = [0, 0], sizes = [8, 128], strides = [1, 1]} : vector<8x384xf32> to vector<8x128xf32>
    %802 = arith.addf %800, %801 : vector<8x128xf32>
    %803 = arith.negf %802 : vector<8x128xf32>
    %804 = math.exp %803 : vector<8x128xf32>
    %cst_224 = arith.constant 1.000000e+00 : f32
    %805 = vector.broadcast %cst_224 : f32 to vector<8x128xf32>
    %806 = arith.addf %805, %804 : vector<8x128xf32>
    %807 = arith.divf %805, %806 : vector<8x128xf32>
    %808 = vector.extract_strided_slice %797 {offsets = [0, 128], sizes = [8, 128], strides = [1, 1]} : vector<8x384xf32> to vector<8x128xf32>
    %809 = vector.extract_strided_slice %799 {offsets = [0, 128], sizes = [8, 128], strides = [1, 1]} : vector<8x384xf32> to vector<8x128xf32>
    %810 = arith.addf %808, %809 : vector<8x128xf32>
    %811 = arith.negf %810 : vector<8x128xf32>
    %812 = math.exp %811 : vector<8x128xf32>
    %cst_225 = arith.constant 1.000000e+00 : f32
    %813 = vector.broadcast %cst_225 : f32 to vector<8x128xf32>
    %814 = arith.addf %813, %812 : vector<8x128xf32>
    %815 = arith.divf %813, %814 : vector<8x128xf32>
    %816 = vector.extract_strided_slice %797 {offsets = [0, 256], sizes = [8, 128], strides = [1, 1]} : vector<8x384xf32> to vector<8x128xf32>
    %817 = vector.extract_strided_slice %799 {offsets = [0, 256], sizes = [8, 128], strides = [1, 1]} : vector<8x384xf32> to vector<8x128xf32>
    %818 = arith.addf %817, %634 : vector<8x128xf32>
    %819 = arith.mulf %807, %818 : vector<8x128xf32>
    %820 = arith.addf %816, %819 : vector<8x128xf32>
    %821 = math.tanh %820 : vector<8x128xf32>
    %cst_226 = arith.constant 1.000000e+00 : f32
    %822 = vector.broadcast %cst_226 : f32 to vector<8x128xf32>
    %823 = arith.subf %822, %815 : vector<8x128xf32>
    %824 = arith.mulf %823, %821 : vector<8x128xf32>
    %825 = arith.mulf %815, %794 : vector<8x128xf32>
    %826 = arith.addf %824, %825 : vector<8x128xf32>
    %c6_i32_227 = arith.constant 6 : i32
    %827 = arith.index_cast %c6_i32_227 : i32 to index
    %c0_228 = arith.constant 0 : index
    %c0_229 = arith.constant 0 : index
    %828 = vector.load %arg17[%827, %c0_228, %c0_229] : memref<8x8x384xf32, #tpu.memory_space<vmem>>, vector<1x8x384xf32>
    %829 = vector.shape_cast %828 : vector<1x8x384xf32> to vector<8x384xf32>
    %830 = arith.truncf %826 : vector<8x128xf32> to vector<8x128xbf16>
    %cst_230 = arith.constant dense<0.000000e+00> : vector<8x384xf32>
    %831 = tpu.matmul %830, %630, %cst_230 {dimension_numbers = #tpu.dot_dimension_numbers<[1], [0], [0], [1], [0, 0, 1, 1], [], []>} : vector<8x128xbf16>, vector<128x384xbf16>, vector<8x384xf32> -> vector<8x384xf32>
    %832 = vector.extract_strided_slice %829 {offsets = [0, 0], sizes = [8, 128], strides = [1, 1]} : vector<8x384xf32> to vector<8x128xf32>
    %833 = vector.extract_strided_slice %831 {offsets = [0, 0], sizes = [8, 128], strides = [1, 1]} : vector<8x384xf32> to vector<8x128xf32>
    %834 = arith.addf %832, %833 : vector<8x128xf32>
    %835 = arith.negf %834 : vector<8x128xf32>
    %836 = math.exp %835 : vector<8x128xf32>
    %cst_231 = arith.constant 1.000000e+00 : f32
    %837 = vector.broadcast %cst_231 : f32 to vector<8x128xf32>
    %838 = arith.addf %837, %836 : vector<8x128xf32>
    %839 = arith.divf %837, %838 : vector<8x128xf32>
    %840 = vector.extract_strided_slice %829 {offsets = [0, 128], sizes = [8, 128], strides = [1, 1]} : vector<8x384xf32> to vector<8x128xf32>
    %841 = vector.extract_strided_slice %831 {offsets = [0, 128], sizes = [8, 128], strides = [1, 1]} : vector<8x384xf32> to vector<8x128xf32>
    %842 = arith.addf %840, %841 : vector<8x128xf32>
    %843 = arith.negf %842 : vector<8x128xf32>
    %844 = math.exp %843 : vector<8x128xf32>
    %cst_232 = arith.constant 1.000000e+00 : f32
    %845 = vector.broadcast %cst_232 : f32 to vector<8x128xf32>
    %846 = arith.addf %845, %844 : vector<8x128xf32>
    %847 = arith.divf %845, %846 : vector<8x128xf32>
    %848 = vector.extract_strided_slice %829 {offsets = [0, 256], sizes = [8, 128], strides = [1, 1]} : vector<8x384xf32> to vector<8x128xf32>
    %849 = vector.extract_strided_slice %831 {offsets = [0, 256], sizes = [8, 128], strides = [1, 1]} : vector<8x384xf32> to vector<8x128xf32>
    %850 = arith.addf %849, %634 : vector<8x128xf32>
    %851 = arith.mulf %839, %850 : vector<8x128xf32>
    %852 = arith.addf %848, %851 : vector<8x128xf32>
    %853 = math.tanh %852 : vector<8x128xf32>
    %cst_233 = arith.constant 1.000000e+00 : f32
    %854 = vector.broadcast %cst_233 : f32 to vector<8x128xf32>
    %855 = arith.subf %854, %847 : vector<8x128xf32>
    %856 = arith.mulf %855, %853 : vector<8x128xf32>
    %857 = arith.mulf %847, %826 : vector<8x128xf32>
    %858 = arith.addf %856, %857 : vector<8x128xf32>
    %c7_i32_234 = arith.constant 7 : i32
    %859 = arith.index_cast %c7_i32_234 : i32 to index
    %c0_235 = arith.constant 0 : index
    %c0_236 = arith.constant 0 : index
    %860 = vector.load %arg17[%859, %c0_235, %c0_236] : memref<8x8x384xf32, #tpu.memory_space<vmem>>, vector<1x8x384xf32>
    %861 = vector.shape_cast %860 : vector<1x8x384xf32> to vector<8x384xf32>
    %862 = arith.truncf %858 : vector<8x128xf32> to vector<8x128xbf16>
    %cst_237 = arith.constant dense<0.000000e+00> : vector<8x384xf32>
    %863 = tpu.matmul %862, %630, %cst_237 {dimension_numbers = #tpu.dot_dimension_numbers<[1], [0], [0], [1], [0, 0, 1, 1], [], []>} : vector<8x128xbf16>, vector<128x384xbf16>, vector<8x384xf32> -> vector<8x384xf32>
    %864 = vector.extract_strided_slice %861 {offsets = [0, 0], sizes = [8, 128], strides = [1, 1]} : vector<8x384xf32> to vector<8x128xf32>
    %865 = vector.extract_strided_slice %863 {offsets = [0, 0], sizes = [8, 128], strides = [1, 1]} : vector<8x384xf32> to vector<8x128xf32>
    %866 = arith.addf %864, %865 : vector<8x128xf32>
    %867 = arith.negf %866 : vector<8x128xf32>
    %868 = math.exp %867 : vector<8x128xf32>
    %cst_238 = arith.constant 1.000000e+00 : f32
    %869 = vector.broadcast %cst_238 : f32 to vector<8x128xf32>
    %870 = arith.addf %869, %868 : vector<8x128xf32>
    %871 = arith.divf %869, %870 : vector<8x128xf32>
    %872 = vector.extract_strided_slice %861 {offsets = [0, 128], sizes = [8, 128], strides = [1, 1]} : vector<8x384xf32> to vector<8x128xf32>
    %873 = vector.extract_strided_slice %863 {offsets = [0, 128], sizes = [8, 128], strides = [1, 1]} : vector<8x384xf32> to vector<8x128xf32>
    %874 = arith.addf %872, %873 : vector<8x128xf32>
    %875 = arith.negf %874 : vector<8x128xf32>
    %876 = math.exp %875 : vector<8x128xf32>
    %cst_239 = arith.constant 1.000000e+00 : f32
    %877 = vector.broadcast %cst_239 : f32 to vector<8x128xf32>
    %878 = arith.addf %877, %876 : vector<8x128xf32>
    %879 = arith.divf %877, %878 : vector<8x128xf32>
    %880 = vector.extract_strided_slice %861 {offsets = [0, 256], sizes = [8, 128], strides = [1, 1]} : vector<8x384xf32> to vector<8x128xf32>
    %881 = vector.extract_strided_slice %863 {offsets = [0, 256], sizes = [8, 128], strides = [1, 1]} : vector<8x384xf32> to vector<8x128xf32>
    %882 = arith.addf %881, %634 : vector<8x128xf32>
    %883 = arith.mulf %871, %882 : vector<8x128xf32>
    %884 = arith.addf %880, %883 : vector<8x128xf32>
    %885 = math.tanh %884 : vector<8x128xf32>
    %cst_240 = arith.constant 1.000000e+00 : f32
    %886 = vector.broadcast %cst_240 : f32 to vector<8x128xf32>
    %887 = arith.subf %886, %879 : vector<8x128xf32>
    %888 = arith.mulf %887, %885 : vector<8x128xf32>
    %889 = arith.mulf %879, %858 : vector<8x128xf32>
    %890 = arith.addf %888, %889 : vector<8x128xf32>
    %c8_i32_241 = arith.constant 8 : i32
    %c7 = arith.constant 7 : index
    %c0_242 = arith.constant 0 : index
    %c0_243 = arith.constant 0 : index
    %891 = vector.load %arg18[%c7, %c0_242, %c0_243] : memref<8x8x128xf32, #tpu.memory_space<vmem>>, vector<1x8x128xf32>
    %892 = vector.shape_cast %891 : vector<1x8x128xf32> to vector<8x128xf32>
    %c7_244 = arith.constant 7 : index
    %c0_245 = arith.constant 0 : index
    %c0_246 = arith.constant 0 : index
    %893 = vector.load %arg19[%c7_244, %c0_245, %c0_246] : memref<8x8x128xf32, #tpu.memory_space<vmem>>, vector<1x8x128xf32>
    %894 = vector.shape_cast %893 : vector<1x8x128xf32> to vector<8x128xf32>
    %895 = tpu.concatenate %892, %894 in 1 : vector<8x128xf32>, vector<8x128xf32> -> vector<8x256xf32>
    %896 = arith.truncf %895 : vector<8x256xf32> to vector<8x256xbf16>
    %c0_247 = arith.constant 0 : index
    %c0_248 = arith.constant 0 : index
    %897 = vector.load %arg6[%c0_247, %c0_248] : memref<256x384xbf16, #tpu.memory_space<vmem>>, vector<256x384xbf16>
    %cst_249 = arith.constant dense<0.000000e+00> : vector<8x384xf32>
    %898 = tpu.matmul %896, %897, %cst_249 {dimension_numbers = #tpu.dot_dimension_numbers<[1], [0], [0], [1], [0, 0, 1, 1], [], []>} : vector<8x256xbf16>, vector<256x384xbf16>, vector<8x384xf32> -> vector<8x384xf32>
    %c1_250 = arith.constant 1 : index
    %c0_251 = arith.constant 0 : index
    %c0_252 = arith.constant 0 : index
    %899 = vector.load %arg8[%c1_250, %c0_251, %c0_252] : memref<2x1x384xf32, #tpu.memory_space<vmem>>, vector<1x1x384xf32>
    %900 = vector.shape_cast %899 : vector<1x1x384xf32> to vector<1x384xf32>
    %901 = vector.broadcast %900 : vector<1x384xf32> to vector<8x384xf32>
    %902 = arith.addf %898, %901 : vector<8x384xf32>
    %c1_253 = arith.constant 1 : index
    %c0_254 = arith.constant 0 : index
    %c0_255 = arith.constant 0 : index
    %903 = vector.load %arg7[%c1_253, %c0_254, %c0_255] : memref<2x128x384xbf16, #tpu.memory_space<vmem>>, vector<1x128x384xbf16>
    %904 = vector.shape_cast %903 : vector<1x128x384xbf16> to vector<128x384xbf16>
    %c1_256 = arith.constant 1 : index
    %c0_257 = arith.constant 0 : index
    %c0_258 = arith.constant 0 : index
    %905 = vector.load %arg9[%c1_256, %c0_257, %c0_258] : memref<2x1x128xf32, #tpu.memory_space<vmem>>, vector<1x1x128xf32>
    %906 = vector.shape_cast %905 : vector<1x1x128xf32> to vector<1x128xf32>
    %907 = vector.shape_cast %906 : vector<1x128xf32> to vector<1x128xf32>
    %908 = vector.broadcast %907 : vector<1x128xf32> to vector<8x128xf32>
    %909 = arith.truncf %0 : vector<8x128xf32> to vector<8x128xbf16>
    %cst_259 = arith.constant dense<0.000000e+00> : vector<8x384xf32>
    %910 = tpu.matmul %909, %904, %cst_259 {dimension_numbers = #tpu.dot_dimension_numbers<[1], [0], [0], [1], [0, 0, 1, 1], [], []>} : vector<8x128xbf16>, vector<128x384xbf16>, vector<8x384xf32> -> vector<8x384xf32>
    %911 = vector.extract_strided_slice %902 {offsets = [0, 0], sizes = [8, 128], strides = [1, 1]} : vector<8x384xf32> to vector<8x128xf32>
    %912 = vector.extract_strided_slice %910 {offsets = [0, 0], sizes = [8, 128], strides = [1, 1]} : vector<8x384xf32> to vector<8x128xf32>
    %913 = arith.addf %911, %912 : vector<8x128xf32>
    %914 = arith.negf %913 : vector<8x128xf32>
    %915 = math.exp %914 : vector<8x128xf32>
    %cst_260 = arith.constant 1.000000e+00 : f32
    %916 = vector.broadcast %cst_260 : f32 to vector<8x128xf32>
    %917 = arith.addf %916, %915 : vector<8x128xf32>
    %918 = arith.divf %916, %917 : vector<8x128xf32>
    %919 = vector.extract_strided_slice %902 {offsets = [0, 128], sizes = [8, 128], strides = [1, 1]} : vector<8x384xf32> to vector<8x128xf32>
    %920 = vector.extract_strided_slice %910 {offsets = [0, 128], sizes = [8, 128], strides = [1, 1]} : vector<8x384xf32> to vector<8x128xf32>
    %921 = arith.addf %919, %920 : vector<8x128xf32>
    %922 = arith.negf %921 : vector<8x128xf32>
    %923 = math.exp %922 : vector<8x128xf32>
    %cst_261 = arith.constant 1.000000e+00 : f32
    %924 = vector.broadcast %cst_261 : f32 to vector<8x128xf32>
    %925 = arith.addf %924, %923 : vector<8x128xf32>
    %926 = arith.divf %924, %925 : vector<8x128xf32>
    %927 = vector.extract_strided_slice %902 {offsets = [0, 256], sizes = [8, 128], strides = [1, 1]} : vector<8x384xf32> to vector<8x128xf32>
    %928 = vector.extract_strided_slice %910 {offsets = [0, 256], sizes = [8, 128], strides = [1, 1]} : vector<8x384xf32> to vector<8x128xf32>
    %929 = arith.addf %928, %908 : vector<8x128xf32>
    %930 = arith.mulf %918, %929 : vector<8x128xf32>
    %931 = arith.addf %927, %930 : vector<8x128xf32>
    %932 = math.tanh %931 : vector<8x128xf32>
    %cst_262 = arith.constant 1.000000e+00 : f32
    %933 = vector.broadcast %cst_262 : f32 to vector<8x128xf32>
    %934 = arith.subf %933, %926 : vector<8x128xf32>
    %935 = arith.mulf %934, %932 : vector<8x128xf32>
    %936 = arith.mulf %926, %0 : vector<8x128xf32>
    %937 = arith.addf %935, %936 : vector<8x128xf32>
    %938 = tpu.concatenate %890, %937 in 1 : vector<8x128xf32>, vector<8x128xf32> -> vector<8x256xf32>
    %c0_263 = arith.constant 0 : index
    %c0_264 = arith.constant 0 : index
    %939 = vector.load %arg10[%c0_263, %c0_264] : memref<256x128xf32, #tpu.memory_space<vmem>>, vector<256x128xf32>
    %cst_265 = arith.constant dense<0.000000e+00> : vector<8x128xf32>
    %940 = tpu.matmul %938, %939, %cst_265 {dimension_numbers = #tpu.dot_dimension_numbers<[1], [0], [0], [1], [0, 0, 1, 1], [], []>} : vector<8x256xf32>, vector<256x128xf32>, vector<8x128xf32> -> vector<8x128xf32>
    %c0_266 = arith.constant 0 : index
    %c0_267 = arith.constant 0 : index
    %941 = vector.load %arg11[%c0_266, %c0_267] : memref<1x128xf32, #tpu.memory_space<vmem>>, vector<1x128xf32>
    %942 = vector.broadcast %941 : vector<1x128xf32> to vector<8x128xf32>
    %943 = arith.addf %940, %942 : vector<8x128xf32>
    %cst_268 = arith.constant 0.000000e+00 : f32
    %944 = vector.broadcast %cst_268 : f32 to vector<8x128xf32>
    %945 = arith.maximumf %943, %944 : vector<8x128xf32>
    %c0_269 = arith.constant 0 : index
    %c0_270 = arith.constant 0 : index
    %946 = vector.load %arg12[%c0_269, %c0_270] : memref<128x2xf32, #tpu.memory_space<vmem>>, vector<128x2xf32>
    %cst_271 = arith.constant dense<0.000000e+00> : vector<8x2xf32>
    %947 = tpu.matmul %945, %946, %cst_271 {dimension_numbers = #tpu.dot_dimension_numbers<[1], [0], [0], [1], [0, 0, 1, 1], [], []>} : vector<8x128xf32>, vector<128x2xf32>, vector<8x2xf32> -> vector<8x2xf32>
    %c0_272 = arith.constant 0 : index
    %c0_273 = arith.constant 0 : index
    %948 = vector.load %arg13[%c0_272, %c0_273] : memref<1x2xf32, #tpu.memory_space<vmem>>, vector<1x2xf32>
    %949 = vector.broadcast %948 : vector<1x2xf32> to vector<8x2xf32>
    %950 = arith.addf %947, %949 : vector<8x2xf32>
    %951 = vector.extract_strided_slice %950 {offsets = [0, 0], sizes = [2, 2], strides = [1, 1]} : vector<8x2xf32> to vector<2x2xf32>
    %c0_274 = arith.constant 0 : index
    %c0_275 = arith.constant 0 : index
    %952 = vector.load %arg14[%c0_274, %c0_275] : memref<2x2xf32, #tpu.memory_space<vmem>>, vector<2x2xf32>
    tpu.vector_store %arg14[%c0_274, %c0_275], %951 {strides = array<i32>} : memref<2x2xf32, #tpu.memory_space<vmem>>, vector<2x2xf32>,
    return
  }
}

</mosaic_0001>

<llo_original>
// kernel: efficient_gru_forward.2
$region0: #{efficient_gru_forward.2}
  #allocation0 [shape = 'u32[]', space=smem, size = 0x4, offset = 0x4, fixed_abs, tag = 'smem constant byte address 0x4 - core index']
  #allocation1 [shape = 'u32[144,128]{1,0:T(1,128)}', space=vmem, size = 0x12000, scoped, tag = 'internal scratch']
  %s0 = inlined_call_operand.vmem [shape: bf16[27,4096], index: 0, kind: input, shape index: {}]
  %s1 = inlined_call_operand.vmem [shape: bf16[16,4096], index: 1, kind: input, shape index: {}]
  %s2 = inlined_call_operand.vmem [shape: bf16[8,27], index: 2, kind: input, shape index: {}]
  %s3 = inlined_call_operand.vmem [shape: f32[8,1], index: 3, kind: input, shape index: {}]
  %s4 = inlined_call_operand.vmem [shape: bf16[8,128], index: 4, kind: input, shape index: {}]
  %s5 = inlined_call_operand.vmem [shape: f32[1,128], index: 5, kind: input, shape index: {}]
  %s6 = inlined_call_operand.vmem [shape: bf16[8,8,128], index: 6, kind: output, shape index: {}]
  %s7 = sld [smem:[#allocation0]]
  $region34: #{efficient_gru_forward.2} parent=0
    _
  %s9 = ssub.s32 1, %s7
  %s10 = scalar_select 0, %s9, %s7
  // Predicated region
  $region2: #{efficient_gru_forward.2} parent=0 // pred_check
    _
  $region3: #{efficient_gru_forward.2} parent=0 // pred_check_branch
    %12 = sbr.rel (0) target = $region5
  $region4: #{efficient_gru_forward.2} parent=0 // pred_region
    _
  $region5: #{efficient_gru_forward.2} parent=0 // pred_fallthru
    _
  // Predicated region
  $region6: #{efficient_gru_forward.2} parent=0 // pred_check
    _
  $region7: #{efficient_gru_forward.2} parent=0 // pred_check_branch
    %14 = sbr.rel (0) target = $region9
  $region8: #{efficient_gru_forward.2} parent=0 // pred_region
    _
  $region9: #{efficient_gru_forward.2} parent=0 // pred_fallthru
    _
  // Predicated region
  $region10: #{efficient_gru_forward.2} parent=0 // pred_check
    _
  $region11: #{efficient_gru_forward.2} parent=0 // pred_check_branch
    %16 = sbr.rel (0) target = $region13
  $region12: #{efficient_gru_forward.2} parent=0 // pred_region
    _
  $region13: #{efficient_gru_forward.2} parent=0 // pred_fallthru
    _
  // Predicated region
  $region14: #{efficient_gru_forward.2} parent=0 // pred_check
    _
  $region15: #{efficient_gru_forward.2} parent=0 // pred_check_branch
    %18 = sbr.rel (0) target = $region17
  $region16: #{efficient_gru_forward.2} parent=0 // pred_region
    _
  $region17: #{efficient_gru_forward.2} parent=0 // pred_fallthru
    _
  // Predicated region
  $region18: #{efficient_gru_forward.2} parent=0 // pred_check
    _
  $region19: #{efficient_gru_forward.2} parent=0 // pred_check_branch
    %20 = sbr.rel (0) target = $region21
  $region20: #{efficient_gru_forward.2} parent=0 // pred_region
    _
  $region21: #{efficient_gru_forward.2} parent=0 // pred_fallthru
    _
  // Predicated region
  $region22: #{efficient_gru_forward.2} parent=0 // pred_check
    _
  $region23: #{efficient_gru_forward.2} parent=0 // pred_check_branch
    %22 = sbr.rel (0) target = $region25
  $region24: #{efficient_gru_forward.2} parent=0 // pred_region
    _
  $region25: #{efficient_gru_forward.2} parent=0 // pred_fallthru
    _
  %v24 = vld [vmem:[%s2] sm:$0xf]
  %v25 = vld [vmem:[%s0] sm:$0xff]
  %v26 = vld [vmem:[%s0 + $0x8] sm:$0xff]
  %v27 = vld [vmem:[%s0 + $0x10] sm:$0xff]
  %v28 = vld [vmem:[%s0 + $0x18] sm:$0xff]
  %v29 = vld [vmem:[%s0 + $0x20] sm:$0xff]
  %v30 = vld [vmem:[%s0 + $0x28] sm:$0xff]
  %v31 = vld [vmem:[%s0 + $0x30] sm:$0xff]
  %v32 = vld [vmem:[%s0 + $0x38] sm:$0xff]
  %v33 = vld [vmem:[%s0 + $0x40] sm:$0xff]
  %v34 = vld [vmem:[%s0 + $0x48] sm:$0xff]
  %v35 = vld [vmem:[%s0 + $0x50] sm:$0xff]
  %v36 = vld [vmem:[%s0 + $0x58] sm:$0xff]
  %v37 = vld [vmem:[%s0 + $0x60] sm:$0xff]
  %v38 = vld [vmem:[%s0 + $0x68] sm:$0xff]
  %v39 = vld [vmem:[%s0 + $0x70] sm:$0xff]
  %v40 = vld [vmem:[%s0 + $0x78] sm:$0xff]
  %v41 = vld [vmem:[%s0 + $0x80] sm:$0xff]
  %v42 = vld [vmem:[%s0 + $0x88] sm:$0xff]
  %v43 = vld [vmem:[%s0 + $0x90] sm:$0xff]
  %v44 = vld [vmem:[%s0 + $0x98] sm:$0xff]
  %v45 = vld [vmem:[%s0 + $0xa0] sm:$0xff]
  %v46 = vld [vmem:[%s0 + $0xa8] sm:$0xff]
  %v47 = vld [vmem:[%s0 + $0xb0] sm:$0xff]
  %v48 = vld [vmem:[%s0 + $0xb8] sm:$0xff]
  %v49 = vld [vmem:[%s0 + $0xc0] sm:$0xff]
  %v50 = vld [vmem:[%s0 + $0xc8] sm:$0xff]
  %v51 = vld [vmem:[%s0 + $0xd0] sm:$0xff]
  %v52 = vld [vmem:[%s0 + $0xd8] sm:$0xff]
  %v53 = vld [vmem:[%s0 + $0xe0] sm:$0xff]
  %v54 = vld [vmem:[%s0 + $0xe8] sm:$0xff]
  %v55 = vld [vmem:[%s0 + $0xf0] sm:$0xff]
  %v56 = vld [vmem:[%s0 + $0xf8] sm:$0xff]
  %v57 = vld [vmem:[%s0 + $0x100] sm:$0xff]
  %v58 = vld [vmem:[%s0 + $0x108] sm:$0xff]
  %v59 = vld [vmem:[%s0 + $0x110] sm:$0xff]
  %v60 = vld [vmem:[%s0 + $0x118] sm:$0xff]
  %v61 = vld [vmem:[%s0 + $0x120] sm:$0xff]
  %v62 = vld [vmem:[%s0 + $0x128] sm:$0xff]
  %v63 = vld [vmem:[%s0 + $0x130] sm:$0xff]
  %v64 = vld [vmem:[%s0 + $0x138] sm:$0xff]
  %v65 = vld [vmem:[%s0 + $0x140] sm:$0xff]
  %v66 = vld [vmem:[%s0 + $0x148] sm:$0xff]
  %v67 = vld [vmem:[%s0 + $0x150] sm:$0xff]
  %v68 = vld [vmem:[%s0 + $0x158] sm:$0xff]
  %v69 = vld [vmem:[%s0 + $0x160] sm:$0xff]
  %v70 = vld [vmem:[%s0 + $0x168] sm:$0xff]
  %v71 = vld [vmem:[%s0 + $0x170] sm:$0xff]
  %v72 = vld [vmem:[%s0 + $0x178] sm:$0xff]
  %v73 = vld [vmem:[%s0 + $0x180] sm:$0x33]
  %v74 = vld [vmem:[%s0 + $0x188] sm:$0x33]
  %v75 = vld [vmem:[%s0 + $0x190] sm:$0x33]
  %v76 = vld [vmem:[%s0 + $0x198] sm:$0x33]
  %v77 = vld [vmem:[%s0 + $0x1a0] sm:$0x33]
  %v78 = vld [vmem:[%s0 + $0x1a8] sm:$0x33]
  %v79 = vld [vmem:[%s0 + $0x1b0] sm:$0x33]
  %v80 = vld [vmem:[%s0 + $0x1b8] sm:$0x33]
  %v81 = vld [vmem:[%s0 + $0x1c0] sm:$0x33]
  %v82 = vld [vmem:[%s0 + $0x1c8] sm:$0x33]
  %v83 = vld [vmem:[%s0 + $0x1d0] sm:$0x33]
  %v84 = vld [vmem:[%s0 + $0x1d8] sm:$0x33]
  %v85 = vld [vmem:[%s0 + $0x1e0] sm:$0x33]
  %v86 = vld [vmem:[%s0 + $0x1e8] sm:$0x33]
  %v87 = vld [vmem:[%s0 + $0x1f0] sm:$0x33]
  %v88 = vld [vmem:[%s0 + $0x1f8] sm:$0x33]
  %v89 = vld [vmem:[%s3] sm:$0xff]
  %91 = vset.pattern.permute.xlu0 0
  %92 = vperm.xlu0 %91, %v89
  %v93 = vpop.permute.xlu0 %92
  %v159 = vunpack.c.l.b16 %v25
  %v160 = vunpack.c.h.b16 %v25
  %v161 = vunpack.c.l.b16 %v26
  %v162 = vunpack.c.h.b16 %v26
  %v163 = vunpack.c.l.b16 %v27
  %v164 = vunpack.c.h.b16 %v27
  %v165 = vunpack.c.l.b16 %v28
  %v166 = vunpack.c.h.b16 %v28
  %v167 = vunpack.c.l.b16 %v29
  %v168 = vunpack.c.h.b16 %v29
  %v169 = vunpack.c.l.b16 %v30
  %v170 = vunpack.c.h.b16 %v30
  %v171 = vunpack.c.l.b16 %v31
  %v172 = vunpack.c.h.b16 %v31
  %v173 = vunpack.c.l.b16 %v32
  %v174 = vunpack.c.h.b16 %v32
  %v175 = vunpack.c.l.b16 %v33
  %v176 = vunpack.c.h.b16 %v33
  %v177 = vunpack.c.l.b16 %v34
  %v178 = vunpack.c.h.b16 %v34
  %v179 = vunpack.c.l.b16 %v35
  %v180 = vunpack.c.h.b16 %v35
  %v181 = vunpack.c.l.b16 %v36
  %v182 = vunpack.c.h.b16 %v36
  %v183 = vunpack.c.l.b16 %v37
  %v184 = vunpack.c.h.b16 %v37
  %v185 = vunpack.c.l.b16 %v38
  %v186 = vunpack.c.h.b16 %v38
  %v187 = vunpack.c.l.b16 %v39
  %v188 = vunpack.c.h.b16 %v39
  %v189 = vunpack.c.l.b16 %v40
  %v190 = vunpack.c.h.b16 %v40
  %v191 = vunpack.c.l.b16 %v41
  %v192 = vunpack.c.h.b16 %v41
  %v193 = vunpack.c.l.b16 %v42
  %v194 = vunpack.c.h.b16 %v42
  %v195 = vunpack.c.l.b16 %v43
  %v196 = vunpack.c.h.b16 %v43
  %v197 = vunpack.c.l.b16 %v44
  %v198 = vunpack.c.h.b16 %v44
  %v199 = vunpack.c.l.b16 %v45
  %v200 = vunpack.c.h.b16 %v45
  %v201 = vunpack.c.l.b16 %v46
  %v202 = vunpack.c.h.b16 %v46
  %v203 = vunpack.c.l.b16 %v47
  %v204 = vunpack.c.h.b16 %v47
  %v205 = vunpack.c.l.b16 %v48
  %v206 = vunpack.c.h.b16 %v48
  %v207 = vunpack.c.l.b16 %v49
  %v208 = vunpack.c.h.b16 %v49
  %v209 = vunpack.c.l.b16 %v50
  %v210 = vunpack.c.h.b16 %v50
  %v211 = vunpack.c.l.b16 %v51
  %v212 = vunpack.c.h.b16 %v51
  %v213 = vunpack.c.l.b16 %v52
  %v214 = vunpack.c.h.b16 %v52
  %v215 = vunpack.c.l.b16 %v53
  %v216 = vunpack.c.h.b16 %v53
  %v217 = vunpack.c.l.b16 %v54
  %v218 = vunpack.c.h.b16 %v54
  %v219 = vunpack.c.l.b16 %v55
  %v220 = vunpack.c.h.b16 %v55
  %v221 = vunpack.c.l.b16 %v56
  %v222 = vunpack.c.h.b16 %v56
  %v223 = vunpack.c.l.b16 %v57
  %v224 = vunpack.c.h.b16 %v57
  %v225 = vunpack.c.l.b16 %v58
  %v226 = vunpack.c.h.b16 %v58
  %v227 = vunpack.c.l.b16 %v59
  %v228 = vunpack.c.h.b16 %v59
  %v229 = vunpack.c.l.b16 %v60
  %v230 = vunpack.c.h.b16 %v60
  %v231 = vunpack.c.l.b16 %v61
  %v232 = vunpack.c.h.b16 %v61
  %v233 = vunpack.c.l.b16 %v62
  %v234 = vunpack.c.h.b16 %v62
  %v235 = vunpack.c.l.b16 %v63
  %v236 = vunpack.c.h.b16 %v63
  %v237 = vunpack.c.l.b16 %v64
  %v238 = vunpack.c.h.b16 %v64
  %v239 = vunpack.c.l.b16 %v65
  %v240 = vunpack.c.h.b16 %v65
  %v241 = vunpack.c.l.b16 %v66
  %v242 = vunpack.c.h.b16 %v66
  %v243 = vunpack.c.l.b16 %v67
  %v244 = vunpack.c.h.b16 %v67
  %v245 = vunpack.c.l.b16 %v68
  %v246 = vunpack.c.h.b16 %v68
  %v247 = vunpack.c.l.b16 %v69
  %v248 = vunpack.c.h.b16 %v69
  %v249 = vunpack.c.l.b16 %v70
  %v250 = vunpack.c.h.b16 %v70
  %v251 = vunpack.c.l.b16 %v71
  %v252 = vunpack.c.h.b16 %v71
  %v253 = vunpack.c.l.b16 %v72
  %v254 = vunpack.c.h.b16 %v72
  %v255 = vunpack.c.l.b16 %v73
  %v256 = vunpack.c.h.b16 %v73
  %v257 = vunpack.c.l.b16 %v74
  %v258 = vunpack.c.h.b16 %v74
  %v259 = vunpack.c.l.b16 %v75
  %v260 = vunpack.c.h.b16 %v75
  %v261 = vunpack.c.l.b16 %v76
  %v262 = vunpack.c.h.b16 %v76
  %v263 = vunpack.c.l.b16 %v77
  %v264 = vunpack.c.h.b16 %v77
  %v265 = vunpack.c.l.b16 %v78
  %v266 = vunpack.c.h.b16 %v78
  %v267 = vunpack.c.l.b16 %v79
  %v268 = vunpack.c.h.b16 %v79
  %v269 = vunpack.c.l.b16 %v80
  %v270 = vunpack.c.h.b16 %v80
  %v271 = vunpack.c.l.b16 %v81
  %v272 = vunpack.c.h.b16 %v81
  %v273 = vunpack.c.l.b16 %v82
  %v274 = vunpack.c.h.b16 %v82
  %v275 = vunpack.c.l.b16 %v83
  %v276 = vunpack.c.h.b16 %v83
  %v277 = vunpack.c.l.b16 %v84
  %v278 = vunpack.c.h.b16 %v84
  %v279 = vunpack.c.l.b16 %v85
  %v280 = vunpack.c.h.b16 %v85
  %v281 = vunpack.c.l.b16 %v86
  %v282 = vunpack.c.h.b16 %v86
  %v283 = vunpack.c.l.b16 %v87
  %v284 = vunpack.c.h.b16 %v87
  %v285 = vunpack.c.l.b16 %v88
  %v286 = vunpack.c.h.b16 %v88
  %v287 = vpack.c.b16 %v191, %v159
  %v288 = vpack.c.b16 %v192, %v160
  %v289 = vpack.c.b16 %v193, %v161
  %v290 = vpack.c.b16 %v194, %v162
  %v291 = vpack.c.b16 %v195, %v163
  %v292 = vpack.c.b16 %v196, %v164
  %v293 = vpack.c.b16 %v197, %v165
  %v294 = vpack.c.b16 %v198, %v166
  %v295 = vpack.c.b16 %v199, %v167
  %v296 = vpack.c.b16 %v200, %v168
  %v297 = vpack.c.b16 %v201, %v169
  %v298 = vpack.c.b16 %v202, %v170
  %v299 = vpack.c.b16 %v203, %v171
  %v300 = vpack.c.b16 %v204, %v172
  %v301 = vpack.c.b16 %v205, %v173
  %v302 = vpack.c.b16 %v206, %v174
  %v303 = vpack.c.b16 %v207, %v175
  %v304 = vpack.c.b16 %v208, %v176
  %v305 = vpack.c.b16 %v209, %v177
  %v306 = vpack.c.b16 %v210, %v178
  %v307 = vpack.c.b16 %v211, %v179
  %v308 = vpack.c.b16 %v212, %v180
  %v309 = vpack.c.b16 %v213, %v181
  %v310 = vpack.c.b16 %v214, %v182
  %v311 = vpack.c.b16 %v215, %v183
  %v312 = vpack.c.b16 %v216, %v184
  %v313 = vpack.c.b16 %v217, %v185
  %v314 = vpack.c.b16 %v218, %v186
  %v315 = vpack.c.b16 %v219, %v187
  %v316 = vpack.c.b16 %v220, %v188
  %v317 = vpack.c.b16 %v221, %v189
  %v318 = vpack.c.b16 %v222, %v190
  %v319 = vpack.c.b16 %v255, %v223
  %v320 = vpack.c.b16 %v256, %v224
  %v321 = vpack.c.b16 %v257, %v225
  %v322 = vpack.c.b16 %v258, %v226
  %v323 = vpack.c.b16 %v259, %v227
  %v324 = vpack.c.b16 %v260, %v228
  %v325 = vpack.c.b16 %v261, %v229
  %v326 = vpack.c.b16 %v262, %v230
  %v327 = vpack.c.b16 %v263, %v231
  %v328 = vpack.c.b16 %v264, %v232
  %v329 = vpack.c.b16 %v265, %v233
  %v330 = vpack.c.b16 %v266, %v234
  %v331 = vpack.c.b16 %v267, %v235
  %v332 = vpack.c.b16 %v268, %v236
  %v333 = vpack.c.b16 %v269, %v237
  %v334 = vpack.c.b16 %v270, %v238
  %v335 = vpack.c.b16 %v271, %v239
  %v336 = vpack.c.b16 %v272, %v240
  %v337 = vpack.c.b16 %v273, %v241
  %v338 = vpack.c.b16 %v274, %v242
  %v339 = vpack.c.b16 %v275, %v243
  %v340 = vpack.c.b16 %v276, %v244
  %v341 = vpack.c.b16 %v277, %v245
  %v342 = vpack.c.b16 %v278, %v246
  %v343 = vpack.c.b16 %v279, %v247
  %v344 = vpack.c.b16 %v280, %v248
  %v345 = vpack.c.b16 %v281, %v249
  %v346 = vpack.c.b16 %v282, %v250
  %v347 = vpack.c.b16 %v283, %v251
  %v348 = vpack.c.b16 %v284, %v252
  %v349 = vpack.c.b16 %v285, %v253
  %v350 = vpack.c.b16 %v286, %v254
  %vm383 = vcmask 220160
  %v385 = vsel %vm383, %v24, 0
  %vm387 = vcmask 1044480
  %vm388 = vcmask 1045504
  %v389 = vsel %vm387, 4294967295, 65535
  %v390 = vsel %vm388, %v389, 0
  %v392 = vand.u32 %v319, %v390
  %v395 = vand.u32 %v320, %v390
  %v398 = vand.u32 %v321, %v390
  %v401 = vand.u32 %v322, %v390
  %v404 = vand.u32 %v323, %v390
  %v407 = vand.u32 %v324, %v390
  %v410 = vand.u32 %v325, %v390
  %v413 = vand.u32 %v326, %v390
  %v416 = vand.u32 %v327, %v390
  %v419 = vand.u32 %v328, %v390
  %v422 = vand.u32 %v329, %v390
  %v425 = vand.u32 %v330, %v390
  %v428 = vand.u32 %v331, %v390
  %v431 = vand.u32 %v332, %v390
  %v434 = vand.u32 %v333, %v390
  %v437 = vand.u32 %v334, %v390
  %v440 = vand.u32 %v335, %v390
  %v443 = vand.u32 %v336, %v390
  %v446 = vand.u32 %v337, %v390
  %v449 = vand.u32 %v338, %v390
  %v452 = vand.u32 %v339, %v390
  %v455 = vand.u32 %v340, %v390
  %v458 = vand.u32 %v341, %v390
  %v461 = vand.u32 %v342, %v390
  %v464 = vand.u32 %v343, %v390
  %v467 = vand.u32 %v344, %v390
  %v470 = vand.u32 %v345, %v390
  %v473 = vand.u32 %v346, %v390
  %v476 = vand.u32 %v347, %v390
  %v479 = vand.u32 %v348, %v390
  %v482 = vand.u32 %v349, %v390
  %v485 = vand.u32 %v350, %v390
  %487 = vmatprep.subr.bf16.mxu0 %v288
  %488 = vmatpush1.bf16.msra.mxu0 %v287
  %489 = vmatprep.subr.bf16.mxu0 %v395
  %490 = vmatpush1.bf16.msra.mxu0 %v392
  %491 = vmatprep.subr.bf16.mxu0 0
  %492 = vmatpush1.bf16.msra.mxu0 0
  %493 = vmatprep.subr.bf16.mxu0 0
  %494 = vmatpush1.bf16.msra.mxu0 0
  %495 = vmatprep.subr.bf16.mxu0 0
  %496 = vmatpush1.bf16.msra.mxu0 0
  %497 = vmatprep.subr.bf16.mxu0 0
  %498 = vmatpush1.bf16.msra.mxu0 0
  %499 = vmatprep.subr.bf16.mxu0 0
  %500 = vmatpush1.bf16.msra.mxu0 0
  %501 = vmatprep.subr.bf16.mxu0 0
  %502 = vmatpush1.bf16.msra.mxu0 0
  %503 = vmatprep.subr.bf16.mxu0 0
  %504 = vmatpush1.bf16.msra.mxu0 0
  %505 = vmatprep.subr.bf16.mxu0 0
  %506 = vmatpush1.bf16.msra.mxu0 0
  %507 = vmatprep.subr.bf16.mxu0 0
  %508 = vmatpush1.bf16.msra.mxu0 0
  %509 = vmatprep.subr.bf16.mxu0 0
  %510 = vmatpush1.bf16.msra.mxu0 0
  %511 = vmatprep.subr.bf16.mxu0 0
  %512 = vmatpush1.bf16.msra.mxu0 0
  %513 = vmatprep.subr.bf16.mxu0 0
  %514 = vmatpush1.bf16.msra.mxu0 0
  %515 = vmatprep.subr.bf16.mxu0 0
  %516 = vmatpush1.bf16.msra.mxu0 0
  %517 = vmatprep.subr.bf16.mxu0 0
  %518 = vmatpush1.bf16.msra.mxu0 0
  %519 = vmatprep.mubr.bf16.mxu0 0
  %520 = vmatmul.mubr.bf16.gmra.mrb[0].mxu0 %v385
  %v521 = vpop.f32.mrb[0].mxu0
  %v522 = vadd.f32 %v93, %v521
  %v523 = vpop.f32.mrb[0].mxu0
  %v524 = vadd.f32 %v93, %v523
  %v525 = vpop.f32.mrb[0].mxu0
  %v526 = vpop.f32.mrb[0].mxu0
  %527 = vdwg.mxu0
  %528 = vmatprep.subr.bf16.mxu0 %v290
  %529 = vmatpush1.bf16.msra.mxu0 %v289
  %530 = vmatprep.subr.bf16.mxu0 %v401
  %531 = vmatpush1.bf16.msra.mxu0 %v398
  %532 = vmatprep.subr.bf16.mxu0 0
  %533 = vmatpush1.bf16.msra.mxu0 0
  %534 = vmatprep.subr.bf16.mxu0 0
  %535 = vmatpush1.bf16.msra.mxu0 0
  %536 = vmatprep.subr.bf16.mxu0 0
  %537 = vmatpush1.bf16.msra.mxu0 0
  %538 = vmatprep.subr.bf16.mxu0 0
  %539 = vmatpush1.bf16.msra.mxu0 0
  %540 = vmatprep.subr.bf16.mxu0 0
  %541 = vmatpush1.bf16.msra.mxu0 0
  %542 = vmatprep.subr.bf16.mxu0 0
  %543 = vmatpush1.bf16.msra.mxu0 0
  %544 = vmatprep.subr.bf16.mxu0 0
  %545 = vmatpush1.bf16.msra.mxu0 0
  %546 = vmatprep.subr.bf16.mxu0 0
  %547 = vmatpush1.bf16.msra.mxu0 0
  %548 = vmatprep.subr.bf16.mxu0 0
  %549 = vmatpush1.bf16.msra.mxu0 0
  %550 = vmatprep.subr.bf16.mxu0 0
  %551 = vmatpush1.bf16.msra.mxu0 0
  %552 = vmatprep.subr.bf16.mxu0 0
  %553 = vmatpush1.bf16.msra.mxu0 0
  %554 = vmatprep.subr.bf16.mxu0 0
  %555 = vmatpush1.bf16.msra.mxu0 0
  %556 = vmatprep.subr.bf16.mxu0 0
  %557 = vmatpush1.bf16.msra.mxu0 0
  %558 = vmatprep.subr.bf16.mxu0 0
  %559 = vmatpush1.bf16.msra.mxu0 0
  %560 = vmatprep.mubr.bf16.mxu0 0
  %561 = vmatmul.mubr.bf16.gmra.mrb[0].mxu0 %v385
  %v562 = vpop.f32.mrb[0].mxu0
  %v563 = vadd.f32 %v93, %v562
  %v564 = vpop.f32.mrb[0].mxu0
  %v565 = vadd.f32 %v93, %v564
  %v566 = vpop.f32.mrb[0].mxu0
  %v567 = vpop.f32.mrb[0].mxu0
  %568 = vdwg.mxu0
  %569 = vmatprep.subr.bf16.mxu0 %v292
  %570 = vmatpush1.bf16.msra.mxu0 %v291
  %571 = vmatprep.subr.bf16.mxu0 %v407
  %572 = vmatpush1.bf16.msra.mxu0 %v404
  %573 = vmatprep.subr.bf16.mxu0 0
  %574 = vmatpush1.bf16.msra.mxu0 0
  %575 = vmatprep.subr.bf16.mxu0 0
  %576 = vmatpush1.bf16.msra.mxu0 0
  %577 = vmatprep.subr.bf16.mxu0 0
  %578 = vmatpush1.bf16.msra.mxu0 0
  %579 = vmatprep.subr.bf16.mxu0 0
  %580 = vmatpush1.bf16.msra.mxu0 0
  %581 = vmatprep.subr.bf16.mxu0 0
  %582 = vmatpush1.bf16.msra.mxu0 0
  %583 = vmatprep.subr.bf16.mxu0 0
  %584 = vmatpush1.bf16.msra.mxu0 0
  %585 = vmatprep.subr.bf16.mxu0 0
  %586 = vmatpush1.bf16.msra.mxu0 0
  %587 = vmatprep.subr.bf16.mxu0 0
  %588 = vmatpush1.bf16.msra.mxu0 0
  %589 = vmatprep.subr.bf16.mxu0 0
  %590 = vmatpush1.bf16.msra.mxu0 0
  %591 = vmatprep.subr.bf16.mxu0 0
  %592 = vmatpush1.bf16.msra.mxu0 0
  %593 = vmatprep.subr.bf16.mxu0 0
  %594 = vmatpush1.bf16.msra.mxu0 0
  %595 = vmatprep.subr.bf16.mxu0 0
  %596 = vmatpush1.bf16.msra.mxu0 0
  %597 = vmatprep.subr.bf16.mxu0 0
  %598 = vmatpush1.bf16.msra.mxu0 0
  %599 = vmatprep.subr.bf16.mxu0 0
  %600 = vmatpush1.bf16.msra.mxu0 0
  %601 = vmatprep.mubr.bf16.mxu0 0
  %602 = vmatmul.mubr.bf16.gmra.mrb[0].mxu0 %v385
  %v603 = vpop.f32.mrb[0].mxu0
  %v604 = vadd.f32 %v93, %v603
  %v605 = vpop.f32.mrb[0].mxu0
  %v606 = vadd.f32 %v93, %v605
  %v607 = vpop.f32.mrb[0].mxu0
  %v608 = vpop.f32.mrb[0].mxu0
  %609 = vdwg.mxu0
  %610 = vmatprep.subr.bf16.mxu0 %v294
  %611 = vmatpush1.bf16.msra.mxu0 %v293
  %612 = vmatprep.subr.bf16.mxu0 %v413
  %613 = vmatpush1.bf16.msra.mxu0 %v410
  %614 = vmatprep.subr.bf16.mxu0 0
  %615 = vmatpush1.bf16.msra.mxu0 0
  %616 = vmatprep.subr.bf16.mxu0 0
  %617 = vmatpush1.bf16.msra.mxu0 0
  %618 = vmatprep.subr.bf16.mxu0 0
  %619 = vmatpush1.bf16.msra.mxu0 0
  %620 = vmatprep.subr.bf16.mxu0 0
  %621 = vmatpush1.bf16.msra.mxu0 0
  %622 = vmatprep.subr.bf16.mxu0 0
  %623 = vmatpush1.bf16.msra.mxu0 0
  %624 = vmatprep.subr.bf16.mxu0 0
  %625 = vmatpush1.bf16.msra.mxu0 0
  %626 = vmatprep.subr.bf16.mxu0 0
  %627 = vmatpush1.bf16.msra.mxu0 0
  %628 = vmatprep.subr.bf16.mxu0 0
  %629 = vmatpush1.bf16.msra.mxu0 0
  %630 = vmatprep.subr.bf16.mxu0 0
  %631 = vmatpush1.bf16.msra.mxu0 0
  %632 = vmatprep.subr.bf16.mxu0 0
  %633 = vmatpush1.bf16.msra.mxu0 0
  %634 = vmatprep.subr.bf16.mxu0 0
  %635 = vmatpush1.bf16.msra.mxu0 0
  %636 = vmatprep.subr.bf16.mxu0 0
  %637 = vmatpush1.bf16.msra.mxu0 0
  %638 = vmatprep.subr.bf16.mxu0 0
  %639 = vmatpush1.bf16.msra.mxu0 0
  %640 = vmatprep.subr.bf16.mxu0 0
  %641 = vmatpush1.bf16.msra.mxu0 0
  %642 = vmatprep.mubr.bf16.mxu0 0
  %643 = vmatmul.mubr.bf16.gmra.mrb[0].mxu0 %v385
  %v644 = vpop.f32.mrb[0].mxu0
  %v645 = vadd.f32 %v93, %v644
  %v646 = vpop.f32.mrb[0].mxu0
  %v647 = vadd.f32 %v93, %v646
  %v648 = vpop.f32.mrb[0].mxu0
  %v649 = vpop.f32.mrb[0].mxu0
  %650 = vdwg.mxu0
  %651 = vmatprep.subr.bf16.mxu0 %v296
  %652 = vmatpush1.bf16.msra.mxu0 %v295
  %653 = vmatprep.subr.bf16.mxu0 %v419
  %654 = vmatpush1.bf16.msra.mxu0 %v416
  %655 = vmatprep.subr.bf16.mxu0 0
  %656 = vmatpush1.bf16.msra.mxu0 0
  %657 = vmatprep.subr.bf16.mxu0 0
  %658 = vmatpush1.bf16.msra.mxu0 0
  %659 = vmatprep.subr.bf16.mxu0 0
  %660 = vmatpush1.bf16.msra.mxu0 0
  %661 = vmatprep.subr.bf16.mxu0 0
  %662 = vmatpush1.bf16.msra.mxu0 0
  %663 = vmatprep.subr.bf16.mxu0 0
  %664 = vmatpush1.bf16.msra.mxu0 0
  %665 = vmatprep.subr.bf16.mxu0 0
  %666 = vmatpush1.bf16.msra.mxu0 0
  %667 = vmatprep.subr.bf16.mxu0 0
  %668 = vmatpush1.bf16.msra.mxu0 0
  %669 = vmatprep.subr.bf16.mxu0 0
  %670 = vmatpush1.bf16.msra.mxu0 0
  %671 = vmatprep.subr.bf16.mxu0 0
  %672 = vmatpush1.bf16.msra.mxu0 0
  %673 = vmatprep.subr.bf16.mxu0 0
  %674 = vmatpush1.bf16.msra.mxu0 0
  %675 = vmatprep.subr.bf16.mxu0 0
  %676 = vmatpush1.bf16.msra.mxu0 0
  %677 = vmatprep.subr.bf16.mxu0 0
  %678 = vmatpush1.bf16.msra.mxu0 0
  %679 = vmatprep.subr.bf16.mxu0 0
  %680 = vmatpush1.bf16.msra.mxu0 0
  %681 = vmatprep.subr.bf16.mxu0 0
  %682 = vmatpush1.bf16.msra.mxu0 0
  %683 = vmatprep.mubr.bf16.mxu0 0
  %684 = vmatmul.mubr.bf16.gmra.mrb[0].mxu0 %v385
  %v685 = vpop.f32.mrb[0].mxu0
  %v686 = vadd.f32 %v93, %v685
  %v687 = vpop.f32.mrb[0].mxu0
  %v688 = vadd.f32 %v93, %v687
  %v689 = vpop.f32.mrb[0].mxu0
  %v690 = vpop.f32.mrb[0].mxu0
  %691 = vdwg.mxu0
  %692 = vmatprep.subr.bf16.mxu0 %v298
  %693 = vmatpush1.bf16.msra.mxu0 %v297
  %694 = vmatprep.subr.bf16.mxu0 %v425
  %695 = vmatpush1.bf16.msra.mxu0 %v422
  %696 = vmatprep.subr.bf16.mxu0 0
  %697 = vmatpush1.bf16.msra.mxu0 0
  %698 = vmatprep.subr.bf16.mxu0 0
  %699 = vmatpush1.bf16.msra.mxu0 0
  %700 = vmatprep.subr.bf16.mxu0 0
  %701 = vmatpush1.bf16.msra.mxu0 0
  %702 = vmatprep.subr.bf16.mxu0 0
  %703 = vmatpush1.bf16.msra.mxu0 0
  %704 = vmatprep.subr.bf16.mxu0 0
  %705 = vmatpush1.bf16.msra.mxu0 0
  %706 = vmatprep.subr.bf16.mxu0 0
  %707 = vmatpush1.bf16.msra.mxu0 0
  %708 = vmatprep.subr.bf16.mxu0 0
  %709 = vmatpush1.bf16.msra.mxu0 0
  %710 = vmatprep.subr.bf16.mxu0 0
  %711 = vmatpush1.bf16.msra.mxu0 0
  %712 = vmatprep.subr.bf16.mxu0 0
  %713 = vmatpush1.bf16.msra.mxu0 0
  %714 = vmatprep.subr.bf16.mxu0 0
  %715 = vmatpush1.bf16.msra.mxu0 0
  %716 = vmatprep.subr.bf16.mxu0 0
  %717 = vmatpush1.bf16.msra.mxu0 0
  %718 = vmatprep.subr.bf16.mxu0 0
  %719 = vmatpush1.bf16.msra.mxu0 0
  %720 = vmatprep.subr.bf16.mxu0 0
  %721 = vmatpush1.bf16.msra.mxu0 0
  %722 = vmatprep.subr.bf16.mxu0 0
  %723 = vmatpush1.bf16.msra.mxu0 0
  %724 = vmatprep.mubr.bf16.mxu0 0
  %725 = vmatmul.mubr.bf16.gmra.mrb[0].mxu0 %v385
  %v726 = vpop.f32.mrb[0].mxu0
  %v727 = vadd.f32 %v93, %v726
  %v728 = vpop.f32.mrb[0].mxu0
  %v729 = vadd.f32 %v93, %v728
  %v730 = vpop.f32.mrb[0].mxu0
  %v731 = vpop.f32.mrb[0].mxu0
  %732 = vdwg.mxu0
  %733 = vmatprep.subr.bf16.mxu0 %v300
  %734 = vmatpush1.bf16.msra.mxu0 %v299
  %735 = vmatprep.subr.bf16.mxu0 %v431
  %736 = vmatpush1.bf16.msra.mxu0 %v428
  %737 = vmatprep.subr.bf16.mxu0 0
  %738 = vmatpush1.bf16.msra.mxu0 0
  %739 = vmatprep.subr.bf16.mxu0 0
  %740 = vmatpush1.bf16.msra.mxu0 0
  %741 = vmatprep.subr.bf16.mxu0 0
  %742 = vmatpush1.bf16.msra.mxu0 0
  %743 = vmatprep.subr.bf16.mxu0 0
  %744 = vmatpush1.bf16.msra.mxu0 0
  %745 = vmatprep.subr.bf16.mxu0 0
  %746 = vmatpush1.bf16.msra.mxu0 0
  %747 = vmatprep.subr.bf16.mxu0 0
  %748 = vmatpush1.bf16.msra.mxu0 0
  %749 = vmatprep.subr.bf16.mxu0 0
  %750 = vmatpush1.bf16.msra.mxu0 0
  %751 = vmatprep.subr.bf16.mxu0 0
  %752 = vmatpush1.bf16.msra.mxu0 0
  %753 = vmatprep.subr.bf16.mxu0 0
  %754 = vmatpush1.bf16.msra.mxu0 0
  %755 = vmatprep.subr.bf16.mxu0 0
  %756 = vmatpush1.bf16.msra.mxu0 0
  %757 = vmatprep.subr.bf16.mxu0 0
  %758 = vmatpush1.bf16.msra.mxu0 0
  %759 = vmatprep.subr.bf16.mxu0 0
  %760 = vmatpush1.bf16.msra.mxu0 0
  %761 = vmatprep.subr.bf16.mxu0 0
  %762 = vmatpush1.bf16.msra.mxu0 0
  %763 = vmatprep.subr.bf16.mxu0 0
  %764 = vmatpush1.bf16.msra.mxu0 0
  %765 = vmatprep.mubr.bf16.mxu0 0
  %766 = vmatmul.mubr.bf16.gmra.mrb[0].mxu0 %v385
  %v767 = vpop.f32.mrb[0].mxu0
  %v768 = vadd.f32 %v93, %v767
  %v769 = vpop.f32.mrb[0].mxu0
  %v770 = vadd.f32 %v93, %v769
  %v771 = vpop.f32.mrb[0].mxu0
  %v772 = vpop.f32.mrb[0].mxu0
  %773 = vdwg.mxu0
  %774 = vmatprep.subr.bf16.mxu0 %v302
  %775 = vmatpush1.bf16.msra.mxu0 %v301
  %776 = vmatprep.subr.bf16.mxu0 %v437
  %777 = vmatpush1.bf16.msra.mxu0 %v434
  %778 = vmatprep.subr.bf16.mxu0 0
  %779 = vmatpush1.bf16.msra.mxu0 0
  %780 = vmatprep.subr.bf16.mxu0 0
  %781 = vmatpush1.bf16.msra.mxu0 0
  %782 = vmatprep.subr.bf16.mxu0 0
  %783 = vmatpush1.bf16.msra.mxu0 0
  %784 = vmatprep.subr.bf16.mxu0 0
  %785 = vmatpush1.bf16.msra.mxu0 0
  %786 = vmatprep.subr.bf16.mxu0 0
  %787 = vmatpush1.bf16.msra.mxu0 0
  %788 = vmatprep.subr.bf16.mxu0 0
  %789 = vmatpush1.bf16.msra.mxu0 0
  %790 = vmatprep.subr.bf16.mxu0 0
  %791 = vmatpush1.bf16.msra.mxu0 0
  %792 = vmatprep.subr.bf16.mxu0 0
  %793 = vmatpush1.bf16.msra.mxu0 0
  %794 = vmatprep.subr.bf16.mxu0 0
  %795 = vmatpush1.bf16.msra.mxu0 0
  %796 = vmatprep.subr.bf16.mxu0 0
  %797 = vmatpush1.bf16.msra.mxu0 0
  %798 = vmatprep.subr.bf16.mxu0 0
  %799 = vmatpush1.bf16.msra.mxu0 0
  %800 = vmatprep.subr.bf16.mxu0 0
  %801 = vmatpush1.bf16.msra.mxu0 0
  %802 = vmatprep.subr.bf16.mxu0 0
  %803 = vmatpush1.bf16.msra.mxu0 0
  %804 = vmatprep.subr.bf16.mxu0 0
  %805 = vmatpush1.bf16.msra.mxu0 0
  %806 = vmatprep.mubr.bf16.mxu0 0
  %807 = vmatmul.mubr.bf16.gmra.mrb[0].mxu0 %v385
  %v808 = vpop.f32.mrb[0].mxu0
  %v809 = vadd.f32 %v93, %v808
  %v810 = vpop.f32.mrb[0].mxu0
  %v811 = vadd.f32 %v93, %v810
  %v812 = vpop.f32.mrb[0].mxu0
  %v813 = vpop.f32.mrb[0].mxu0
  %814 = vdwg.mxu0
  %815 = vmatprep.subr.bf16.mxu0 %v304
  %816 = vmatpush1.bf16.msra.mxu0 %v303
  %817 = vmatprep.subr.bf16.mxu0 %v443
  %818 = vmatpush1.bf16.msra.mxu0 %v440
  %819 = vmatprep.subr.bf16.mxu0 0
  %820 = vmatpush1.bf16.msra.mxu0 0
  %821 = vmatprep.subr.bf16.mxu0 0
  %822 = vmatpush1.bf16.msra.mxu0 0
  %823 = vmatprep.subr.bf16.mxu0 0
  %824 = vmatpush1.bf16.msra.mxu0 0
  %825 = vmatprep.subr.bf16.mxu0 0
  %826 = vmatpush1.bf16.msra.mxu0 0
  %827 = vmatprep.subr.bf16.mxu0 0
  %828 = vmatpush1.bf16.msra.mxu0 0
  %829 = vmatprep.subr.bf16.mxu0 0
  %830 = vmatpush1.bf16.msra.mxu0 0
  %831 = vmatprep.subr.bf16.mxu0 0
  %832 = vmatpush1.bf16.msra.mxu0 0
  %833 = vmatprep.subr.bf16.mxu0 0
  %834 = vmatpush1.bf16.msra.mxu0 0
  %835 = vmatprep.subr.bf16.mxu0 0
  %836 = vmatpush1.bf16.msra.mxu0 0
  %837 = vmatprep.subr.bf16.mxu0 0
  %838 = vmatpush1.bf16.msra.mxu0 0
  %839 = vmatprep.subr.bf16.mxu0 0
  %840 = vmatpush1.bf16.msra.mxu0 0
  %841 = vmatprep.subr.bf16.mxu0 0
  %842 = vmatpush1.bf16.msra.mxu0 0
  %843 = vmatprep.subr.bf16.mxu0 0
  %844 = vmatpush1.bf16.msra.mxu0 0
  %845 = vmatprep.subr.bf16.mxu0 0
  %846 = vmatpush1.bf16.msra.mxu0 0
  %847 = vmatprep.mubr.bf16.mxu0 0
  %848 = vmatmul.mubr.bf16.gmra.mrb[0].mxu0 %v385
  %v849 = vpop.f32.mrb[0].mxu0
  %v850 = vadd.f32 %v93, %v849
  %v851 = vpop.f32.mrb[0].mxu0
  %v852 = vadd.f32 %v93, %v851
  %v853 = vpop.f32.mrb[0].mxu0
  %v854 = vpop.f32.mrb[0].mxu0
  %855 = vdwg.mxu0
  %856 = vmatprep.subr.bf16.mxu0 %v306
  %857 = vmatpush1.bf16.msra.mxu0 %v305
  %858 = vmatprep.subr.bf16.mxu0 %v449
  %859 = vmatpush1.bf16.msra.mxu0 %v446
  %860 = vmatprep.subr.bf16.mxu0 0
  %861 = vmatpush1.bf16.msra.mxu0 0
  %862 = vmatprep.subr.bf16.mxu0 0
  %863 = vmatpush1.bf16.msra.mxu0 0
  %864 = vmatprep.subr.bf16.mxu0 0
  %865 = vmatpush1.bf16.msra.mxu0 0
  %866 = vmatprep.subr.bf16.mxu0 0
  %867 = vmatpush1.bf16.msra.mxu0 0
  %868 = vmatprep.subr.bf16.mxu0 0
  %869 = vmatpush1.bf16.msra.mxu0 0
  %870 = vmatprep.subr.bf16.mxu0 0
  %871 = vmatpush1.bf16.msra.mxu0 0
  %872 = vmatprep.subr.bf16.mxu0 0
  %873 = vmatpush1.bf16.msra.mxu0 0
  %874 = vmatprep.subr.bf16.mxu0 0
  %875 = vmatpush1.bf16.msra.mxu0 0
  %876 = vmatprep.subr.bf16.mxu0 0
  %877 = vmatpush1.bf16.msra.mxu0 0
  %878 = vmatprep.subr.bf16.mxu0 0
  %879 = vmatpush1.bf16.msra.mxu0 0
  %880 = vmatprep.subr.bf16.mxu0 0
  %881 = vmatpush1.bf16.msra.mxu0 0
  %882 = vmatprep.subr.bf16.mxu0 0
  %883 = vmatpush1.bf16.msra.mxu0 0
  %884 = vmatprep.subr.bf16.mxu0 0
  %885 = vmatpush1.bf16.msra.mxu0 0
  %886 = vmatprep.subr.bf16.mxu0 0
  %887 = vmatpush1.bf16.msra.mxu0 0
  %888 = vmatprep.mubr.bf16.mxu0 0
  %889 = vmatmul.mubr.bf16.gmra.mrb[0].mxu0 %v385
  %v890 = vpop.f32.mrb[0].mxu0
  %v891 = vadd.f32 %v93, %v890
  %v892 = vpop.f32.mrb[0].mxu0
  %v893 = vadd.f32 %v93, %v892
  %v894 = vpop.f32.mrb[0].mxu0
  %v895 = vpop.f32.mrb[0].mxu0
  %896 = vdwg.mxu0
  %897 = vmatprep.subr.bf16.mxu0 %v308
  %898 = vmatpush1.bf16.msra.mxu0 %v307
  %899 = vmatprep.subr.bf16.mxu0 %v455
  %900 = vmatpush1.bf16.msra.mxu0 %v452
  %901 = vmatprep.subr.bf16.mxu0 0
  %902 = vmatpush1.bf16.msra.mxu0 0
  %903 = vmatprep.subr.bf16.mxu0 0
  %904 = vmatpush1.bf16.msra.mxu0 0
  %905 = vmatprep.subr.bf16.mxu0 0
  %906 = vmatpush1.bf16.msra.mxu0 0
  %907 = vmatprep.subr.bf16.mxu0 0
  %908 = vmatpush1.bf16.msra.mxu0 0
  %909 = vmatprep.subr.bf16.mxu0 0
  %910 = vmatpush1.bf16.msra.mxu0 0
  %911 = vmatprep.subr.bf16.mxu0 0
  %912 = vmatpush1.bf16.msra.mxu0 0
  %913 = vmatprep.subr.bf16.mxu0 0
  %914 = vmatpush1.bf16.msra.mxu0 0
  %915 = vmatprep.subr.bf16.mxu0 0
  %916 = vmatpush1.bf16.msra.mxu0 0
  %917 = vmatprep.subr.bf16.mxu0 0
  %918 = vmatpush1.bf16.msra.mxu0 0
  %919 = vmatprep.subr.bf16.mxu0 0
  %920 = vmatpush1.bf16.msra.mxu0 0
  %921 = vmatprep.subr.bf16.mxu0 0
  %922 = vmatpush1.bf16.msra.mxu0 0
  %923 = vmatprep.subr.bf16.mxu0 0
  %924 = vmatpush1.bf16.msra.mxu0 0
  %925 = vmatprep.subr.bf16.mxu0 0
  %926 = vmatpush1.bf16.msra.mxu0 0
  %927 = vmatprep.subr.bf16.mxu0 0
  %928 = vmatpush1.bf16.msra.mxu0 0
  %929 = vmatprep.mubr.bf16.mxu0 0
  %930 = vmatmul.mubr.bf16.gmra.mrb[0].mxu0 %v385
  %v931 = vpop.f32.mrb[0].mxu0
  %v932 = vadd.f32 %v93, %v931
  %v933 = vpop.f32.mrb[0].mxu0
  %v934 = vadd.f32 %v93, %v933
  %v935 = vpop.f32.mrb[0].mxu0
  %v936 = vpop.f32.mrb[0].mxu0
  %937 = vdwg.mxu0
  %938 = vmatprep.subr.bf16.mxu0 %v310
  %939 = vmatpush1.bf16.msra.mxu0 %v309
  %940 = vmatprep.subr.bf16.mxu0 %v461
  %941 = vmatpush1.bf16.msra.mxu0 %v458
  %942 = vmatprep.subr.bf16.mxu0 0
  %943 = vmatpush1.bf16.msra.mxu0 0
  %944 = vmatprep.subr.bf16.mxu0 0
  %945 = vmatpush1.bf16.msra.mxu0 0
  %946 = vmatprep.subr.bf16.mxu0 0
  %947 = vmatpush1.bf16.msra.mxu0 0
  %948 = vmatprep.subr.bf16.mxu0 0
  %949 = vmatpush1.bf16.msra.mxu0 0
  %950 = vmatprep.subr.bf16.mxu0 0
  %951 = vmatpush1.bf16.msra.mxu0 0
  %952 = vmatprep.subr.bf16.mxu0 0
  %953 = vmatpush1.bf16.msra.mxu0 0
  %954 = vmatprep.subr.bf16.mxu0 0
  %955 = vmatpush1.bf16.msra.mxu0 0
  %956 = vmatprep.subr.bf16.mxu0 0
  %957 = vmatpush1.bf16.msra.mxu0 0
  %958 = vmatprep.subr.bf16.mxu0 0
  %959 = vmatpush1.bf16.msra.mxu0 0
  %960 = vmatprep.subr.bf16.mxu0 0
  %961 = vmatpush1.bf16.msra.mxu0 0
  %962 = vmatprep.subr.bf16.mxu0 0
  %963 = vmatpush1.bf16.msra.mxu0 0
  %964 = vmatprep.subr.bf16.mxu0 0
  %965 = vmatpush1.bf16.msra.mxu0 0
  %966 = vmatprep.subr.bf16.mxu0 0
  %967 = vmatpush1.bf16.msra.mxu0 0
  %968 = vmatprep.subr.bf16.mxu0 0
  %969 = vmatpush1.bf16.msra.mxu0 0
  %970 = vmatprep.mubr.bf16.mxu0 0
  %971 = vmatmul.mubr.bf16.gmra.mrb[0].mxu0 %v385
  %v972 = vpop.f32.mrb[0].mxu0
  %v973 = vadd.f32 %v93, %v972
  %v974 = vpop.f32.mrb[0].mxu0
  %v975 = vadd.f32 %v93, %v974
  %v976 = vpop.f32.mrb[0].mxu0
  %v977 = vpop.f32.mrb[0].mxu0
  %978 = vdwg.mxu0
  %979 = vmatprep.subr.bf16.mxu0 %v312
  %980 = vmatpush1.bf16.msra.mxu0 %v311
  %981 = vmatprep.subr.bf16.mxu0 %v467
  %982 = vmatpush1.bf16.msra.mxu0 %v464
  %983 = vmatprep.subr.bf16.mxu0 0
  %984 = vmatpush1.bf16.msra.mxu0 0
  %985 = vmatprep.subr.bf16.mxu0 0
  %986 = vmatpush1.bf16.msra.mxu0 0
  %987 = vmatprep.subr.bf16.mxu0 0
  %988 = vmatpush1.bf16.msra.mxu0 0
  %989 = vmatprep.subr.bf16.mxu0 0
  %990 = vmatpush1.bf16.msra.mxu0 0
  %991 = vmatprep.subr.bf16.mxu0 0
  %992 = vmatpush1.bf16.msra.mxu0 0
  %993 = vmatprep.subr.bf16.mxu0 0
  %994 = vmatpush1.bf16.msra.mxu0 0
  %995 = vmatprep.subr.bf16.mxu0 0
  %996 = vmatpush1.bf16.msra.mxu0 0
  %997 = vmatprep.subr.bf16.mxu0 0
  %998 = vmatpush1.bf16.msra.mxu0 0
  %999 = vmatprep.subr.bf16.mxu0 0
  %1000 = vmatpush1.bf16.msra.mxu0 0
  %1001 = vmatprep.subr.bf16.mxu0 0
  %1002 = vmatpush1.bf16.msra.mxu0 0
  %1003 = vmatprep.subr.bf16.mxu0 0
  %1004 = vmatpush1.bf16.msra.mxu0 0
  %1005 = vmatprep.subr.bf16.mxu0 0
  %1006 = vmatpush1.bf16.msra.mxu0 0
  %1007 = vmatprep.subr.bf16.mxu0 0
  %1008 = vmatpush1.bf16.msra.mxu0 0
  %1009 = vmatprep.subr.bf16.mxu0 0
  %1010 = vmatpush1.bf16.msra.mxu0 0
  %1011 = vmatprep.mubr.bf16.mxu0 0
  %1012 = vmatmul.mubr.bf16.gmra.mrb[0].mxu0 %v385
  %v1013 = vpop.f32.mrb[0].mxu0
  %v1014 = vadd.f32 %v93, %v1013
  %v1015 = vpop.f32.mrb[0].mxu0
  %v1016 = vadd.f32 %v93, %v1015
  %v1017 = vpop.f32.mrb[0].mxu0
  %v1018 = vpop.f32.mrb[0].mxu0
  %1019 = vdwg.mxu0
  %1020 = vmatprep.subr.bf16.mxu0 %v314
  %1021 = vmatpush1.bf16.msra.mxu0 %v313
  %1022 = vmatprep.subr.bf16.mxu0 %v473
  %1023 = vmatpush1.bf16.msra.mxu0 %v470
  %1024 = vmatprep.subr.bf16.mxu0 0
  %1025 = vmatpush1.bf16.msra.mxu0 0
  %1026 = vmatprep.subr.bf16.mxu0 0
  %1027 = vmatpush1.bf16.msra.mxu0 0
  %1028 = vmatprep.subr.bf16.mxu0 0
  %1029 = vmatpush1.bf16.msra.mxu0 0
  %1030 = vmatprep.subr.bf16.mxu0 0
  %1031 = vmatpush1.bf16.msra.mxu0 0
  %1032 = vmatprep.subr.bf16.mxu0 0
  %1033 = vmatpush1.bf16.msra.mxu0 0
  %1034 = vmatprep.subr.bf16.mxu0 0
  %1035 = vmatpush1.bf16.msra.mxu0 0
  %1036 = vmatprep.subr.bf16.mxu0 0
  %1037 = vmatpush1.bf16.msra.mxu0 0
  %1038 = vmatprep.subr.bf16.mxu0 0
  %1039 = vmatpush1.bf16.msra.mxu0 0
  %1040 = vmatprep.subr.bf16.mxu0 0
  %1041 = vmatpush1.bf16.msra.mxu0 0
  %1042 = vmatprep.subr.bf16.mxu0 0
  %1043 = vmatpush1.bf16.msra.mxu0 0
  %1044 = vmatprep.subr.bf16.mxu0 0
  %1045 = vmatpush1.bf16.msra.mxu0 0
  %1046 = vmatprep.subr.bf16.mxu0 0
  %1047 = vmatpush1.bf16.msra.mxu0 0
  %1048 = vmatprep.subr.bf16.mxu0 0
  %1049 = vmatpush1.bf16.msra.mxu0 0
  %1050 = vmatprep.subr.bf16.mxu0 0
  %1051 = vmatpush1.bf16.msra.mxu0 0
  %1052 = vmatprep.mubr.bf16.mxu0 0
  %1053 = vmatmul.mubr.bf16.gmra.mrb[0].mxu0 %v385
  %v1054 = vpop.f32.mrb[0].mxu0
  %v1055 = vadd.f32 %v93, %v1054
  %v1056 = vpop.f32.mrb[0].mxu0
  %v1057 = vadd.f32 %v93, %v1056
  %v1058 = vpop.f32.mrb[0].mxu0
  %v1059 = vpop.f32.mrb[0].mxu0
  %1060 = vdwg.mxu0
  %1061 = vmatprep.subr.bf16.mxu0 %v316
  %1062 = vmatpush1.bf16.msra.mxu0 %v315
  %1063 = vmatprep.subr.bf16.mxu0 %v479
  %1064 = vmatpush1.bf16.msra.mxu0 %v476
  %1065 = vmatprep.subr.bf16.mxu0 0
  %1066 = vmatpush1.bf16.msra.mxu0 0
  %1067 = vmatprep.subr.bf16.mxu0 0
  %1068 = vmatpush1.bf16.msra.mxu0 0
  %1069 = vmatprep.subr.bf16.mxu0 0
  %1070 = vmatpush1.bf16.msra.mxu0 0
  %1071 = vmatprep.subr.bf16.mxu0 0
  %1072 = vmatpush1.bf16.msra.mxu0 0
  %1073 = vmatprep.subr.bf16.mxu0 0
  %1074 = vmatpush1.bf16.msra.mxu0 0
  %1075 = vmatprep.subr.bf16.mxu0 0
  %1076 = vmatpush1.bf16.msra.mxu0 0
  %1077 = vmatprep.subr.bf16.mxu0 0
  %1078 = vmatpush1.bf16.msra.mxu0 0
  %1079 = vmatprep.subr.bf16.mxu0 0
  %1080 = vmatpush1.bf16.msra.mxu0 0
  %1081 = vmatprep.subr.bf16.mxu0 0
  %1082 = vmatpush1.bf16.msra.mxu0 0
  %1083 = vmatprep.subr.bf16.mxu0 0
  %1084 = vmatpush1.bf16.msra.mxu0 0
  %1085 = vmatprep.subr.bf16.mxu0 0
  %1086 = vmatpush1.bf16.msra.mxu0 0
  %1087 = vmatprep.subr.bf16.mxu0 0
  %1088 = vmatpush1.bf16.msra.mxu0 0
  %1089 = vmatprep.subr.bf16.mxu0 0
  %1090 = vmatpush1.bf16.msra.mxu0 0
  %1091 = vmatprep.subr.bf16.mxu0 0
  %1092 = vmatpush1.bf16.msra.mxu0 0
  %1093 = vmatprep.mubr.bf16.mxu0 0
  %1094 = vmatmul.mubr.bf16.gmra.mrb[0].mxu0 %v385
  %v1095 = vpop.f32.mrb[0].mxu0
  %v1096 = vadd.f32 %v93, %v1095
  %v1097 = vpop.f32.mrb[0].mxu0
  %v1098 = vadd.f32 %v93, %v1097
  %v1099 = vpop.f32.mrb[0].mxu0
  %v1100 = vpop.f32.mrb[0].mxu0
  %1101 = vdwg.mxu0
  %1102 = vmatprep.subr.bf16.mxu0 %v318
  %1103 = vmatpush1.bf16.msra.mxu0 %v317
  %1104 = vmatprep.subr.bf16.mxu0 %v485
  %1105 = vmatpush1.bf16.msra.mxu0 %v482
  %1106 = vmatprep.subr.bf16.mxu0 0
  %1107 = vmatpush1.bf16.msra.mxu0 0
  %1108 = vmatprep.subr.bf16.mxu0 0
  %1109 = vmatpush1.bf16.msra.mxu0 0
  %1110 = vmatprep.subr.bf16.mxu0 0
  %1111 = vmatpush1.bf16.msra.mxu0 0
  %1112 = vmatprep.subr.bf16.mxu0 0
  %1113 = vmatpush1.bf16.msra.mxu0 0
  %1114 = vmatprep.subr.bf16.mxu0 0
  %1115 = vmatpush1.bf16.msra.mxu0 0
  %1116 = vmatprep.subr.bf16.mxu0 0
  %1117 = vmatpush1.bf16.msra.mxu0 0
  %1118 = vmatprep.subr.bf16.mxu0 0
  %1119 = vmatpush1.bf16.msra.mxu0 0
  %1120 = vmatprep.subr.bf16.mxu0 0
  %1121 = vmatpush1.bf16.msra.mxu0 0
  %1122 = vmatprep.subr.bf16.mxu0 0
  %1123 = vmatpush1.bf16.msra.mxu0 0
  %1124 = vmatprep.subr.bf16.mxu0 0
  %1125 = vmatpush1.bf16.msra.mxu0 0
  %1126 = vmatprep.subr.bf16.mxu0 0
  %1127 = vmatpush1.bf16.msra.mxu0 0
  %1128 = vmatprep.subr.bf16.mxu0 0
  %1129 = vmatpush1.bf16.msra.mxu0 0
  %1130 = vmatprep.subr.bf16.mxu0 0
  %1131 = vmatpush1.bf16.msra.mxu0 0
  %1132 = vmatprep.subr.bf16.mxu0 0
  %1133 = vmatpush1.bf16.msra.mxu0 0
  %1134 = vmatprep.mubr.bf16.mxu0 0
  %1135 = vmatmul.mubr.bf16.gmra.mrb[0].mxu0 %v385
  %v1136 = vpop.f32.mrb[0].mxu0
  %v1137 = vadd.f32 %v93, %v1136
  %v1138 = vpop.f32.mrb[0].mxu0
  %v1139 = vadd.f32 %v93, %v1138
  %v1140 = vpop.f32.mrb[0].mxu0
  %v1141 = vpop.f32.mrb[0].mxu0
  %1142 = vdwg.mxu0
  %v1143 = vxor.u32 %v522, 2147483648
  %v1144 = vxor.u32 %v524, 2147483648
  %v1145 = vxor.u32 %v563, 2147483648
  %v1146 = vxor.u32 %v565, 2147483648
  %v1147 = vxor.u32 %v604, 2147483648
  %v1148 = vxor.u32 %v606, 2147483648
  %v1149 = vxor.u32 %v645, 2147483648
  %v1150 = vxor.u32 %v647, 2147483648
  %v1151 = vxor.u32 %v686, 2147483648
  %v1152 = vxor.u32 %v688, 2147483648
  %v1153 = vxor.u32 %v727, 2147483648
  %v1154 = vxor.u32 %v729, 2147483648
  %v1155 = vxor.u32 %v768, 2147483648
  %v1156 = vxor.u32 %v770, 2147483648
  %v1157 = vxor.u32 %v809, 2147483648
  %v1158 = vxor.u32 %v811, 2147483648
  %v1159 = vxor.u32 %v850, 2147483648
  %v1160 = vxor.u32 %v852, 2147483648
  %v1161 = vxor.u32 %v891, 2147483648
  %v1162 = vxor.u32 %v893, 2147483648
  %v1163 = vxor.u32 %v932, 2147483648
  %v1164 = vxor.u32 %v934, 2147483648
  %v1165 = vxor.u32 %v973, 2147483648
  %v1166 = vxor.u32 %v975, 2147483648
  %v1167 = vxor.u32 %v1014, 2147483648
  %v1168 = vxor.u32 %v1016, 2147483648
  %v1169 = vxor.u32 %v1055, 2147483648
  %v1170 = vxor.u32 %v1057, 2147483648
  %v1171 = vxor.u32 %v1096, 2147483648
  %v1172 = vxor.u32 %v1098, 2147483648
  %v1173 = vxor.u32 %v1137, 2147483648
  %v1174 = vxor.u32 %v1139, 2147483648
  %v1175 = vmul.f32 %v1143, 1.442695
  %v1176 = vpow.pop %v1175
  %v1177 = vmul.f32 %v1144, 1.442695
  %v1178 = vpow.pop %v1177
  %v1179 = vmul.f32 %v1145, 1.442695
  %v1180 = vpow.pop %v1179
  %v1181 = vmul.f32 %v1146, 1.442695
  %v1182 = vpow.pop %v1181
  %v1183 = vmul.f32 %v1147, 1.442695
  %v1184 = vpow.pop %v1183
  %v1185 = vmul.f32 %v1148, 1.442695
  %v1186 = vpow.pop %v1185
  %v1187 = vmul.f32 %v1149, 1.442695
  %v1188 = vpow.pop %v1187
  %v1189 = vmul.f32 %v1150, 1.442695
  %v1190 = vpow.pop %v1189
  %v1191 = vmul.f32 %v1151, 1.442695
  %v1192 = vpow.pop %v1191
  %v1193 = vmul.f32 %v1152, 1.442695
  %v1194 = vpow.pop %v1193
  %v1195 = vmul.f32 %v1153, 1.442695
  %v1196 = vpow.pop %v1195
  %v1197 = vmul.f32 %v1154, 1.442695
  %v1198 = vpow.pop %v1197
  %v1199 = vmul.f32 %v1155, 1.442695
  %v1200 = vpow.pop %v1199
  %v1201 = vmul.f32 %v1156, 1.442695
  %v1202 = vpow.pop %v1201
  %v1203 = vmul.f32 %v1157, 1.442695
  %v1204 = vpow.pop %v1203
  %v1205 = vmul.f32 %v1158, 1.442695
  %v1206 = vpow.pop %v1205
  %v1207 = vmul.f32 %v1159, 1.442695
  %v1208 = vpow.pop %v1207
  %v1209 = vmul.f32 %v1160, 1.442695
  %v1210 = vpow.pop %v1209
  %v1211 = vmul.f32 %v1161, 1.442695
  %v1212 = vpow.pop %v1211
  %v1213 = vmul.f32 %v1162, 1.442695
  %v1214 = vpow.pop %v1213
  %v1215 = vmul.f32 %v1163, 1.442695
  %v1216 = vpow.pop %v1215
  %v1217 = vmul.f32 %v1164, 1.442695
  %v1218 = vpow.pop %v1217
  %v1219 = vmul.f32 %v1165, 1.442695
  %v1220 = vpow.pop %v1219
  %v1221 = vmul.f32 %v1166, 1.442695
  %v1222 = vpow.pop %v1221
  %v1223 = vmul.f32 %v1167, 1.442695
  %v1224 = vpow.pop %v1223
  %v1225 = vmul.f32 %v1168, 1.442695
  %v1226 = vpow.pop %v1225
  %v1227 = vmul.f32 %v1169, 1.442695
  %v1228 = vpow.pop %v1227
  %v1229 = vmul.f32 %v1170, 1.442695
  %v1230 = vpow.pop %v1229
  %v1231 = vmul.f32 %v1171, 1.442695
  %v1232 = vpow.pop %v1231
  %v1233 = vmul.f32 %v1172, 1.442695
  %v1234 = vpow.pop %v1233
  %v1235 = vmul.f32 %v1173, 1.442695
  %v1236 = vpow.pop %v1235
  %v1237 = vmul.f32 %v1174, 1.442695
  %v1238 = vpow.pop %v1237
  %v1239 = vadd.f32 %v1176, 1.0
  %v1240 = vadd.f32 %v1178, 1.0
  %v1241 = vadd.f32 %v1180, 1.0
  %v1242 = vadd.f32 %v1182, 1.0
  %v1243 = vadd.f32 %v1184, 1.0
  %v1244 = vadd.f32 %v1186, 1.0
  %v1245 = vadd.f32 %v1188, 1.0
  %v1246 = vadd.f32 %v1190, 1.0
  %v1247 = vadd.f32 %v1192, 1.0
  %v1248 = vadd.f32 %v1194, 1.0
  %v1249 = vadd.f32 %v1196, 1.0
  %v1250 = vadd.f32 %v1198, 1.0
  %v1251 = vadd.f32 %v1200, 1.0
  %v1252 = vadd.f32 %v1202, 1.0
  %v1253 = vadd.f32 %v1204, 1.0
  %v1254 = vadd.f32 %v1206, 1.0
  %v1255 = vadd.f32 %v1208, 1.0
  %v1256 = vadd.f32 %v1210, 1.0
  %v1257 = vadd.f32 %v1212, 1.0
  %v1258 = vadd.f32 %v1214, 1.0
  %v1259 = vadd.f32 %v1216, 1.0
  %v1260 = vadd.f32 %v1218, 1.0
  %v1261 = vadd.f32 %v1220, 1.0
  %v1262 = vadd.f32 %v1222, 1.0
  %v1263 = vadd.f32 %v1224, 1.0
  %v1264 = vadd.f32 %v1226, 1.0
  %v1265 = vadd.f32 %v1228, 1.0
  %v1266 = vadd.f32 %v1230, 1.0
  %v1267 = vadd.f32 %v1232, 1.0
  %v1268 = vadd.f32 %v1234, 1.0
  %v1269 = vadd.f32 %v1236, 1.0
  %v1270 = vadd.f32 %v1238, 1.0
  %v1271 = vrcp.pop %v1239
  %v1272 = vmul.f32 1.0, %v1271
  %v1273 = vrcp.pop %v1240
  %v1274 = vmul.f32 1.0, %v1273
  %v1275 = vrcp.pop %v1241
  %v1276 = vmul.f32 1.0, %v1275
  %v1277 = vrcp.pop %v1242
  %v1278 = vmul.f32 1.0, %v1277
  %v1279 = vrcp.pop %v1243
  %v1280 = vmul.f32 1.0, %v1279
  %v1281 = vrcp.pop %v1244
  %v1282 = vmul.f32 1.0, %v1281
  %v1283 = vrcp.pop %v1245
  %v1284 = vmul.f32 1.0, %v1283
  %v1285 = vrcp.pop %v1246
  %v1286 = vmul.f32 1.0, %v1285
  %v1287 = vrcp.pop %v1247
  %v1288 = vmul.f32 1.0, %v1287
  %v1289 = vrcp.pop %v1248
  %v1290 = vmul.f32 1.0, %v1289
  %v1291 = vrcp.pop %v1249
  %v1292 = vmul.f32 1.0, %v1291
  %v1293 = vrcp.pop %v1250
  %v1294 = vmul.f32 1.0, %v1293
  %v1295 = vrcp.pop %v1251
  %v1296 = vmul.f32 1.0, %v1295
  %v1297 = vrcp.pop %v1252
  %v1298 = vmul.f32 1.0, %v1297
  %v1299 = vrcp.pop %v1253
  %v1300 = vmul.f32 1.0, %v1299
  %v1301 = vrcp.pop %v1254
  %v1302 = vmul.f32 1.0, %v1301
  %v1303 = vrcp.pop %v1255
  %v1304 = vmul.f32 1.0, %v1303
  %v1305 = vrcp.pop %v1256
  %v1306 = vmul.f32 1.0, %v1305
  %v1307 = vrcp.pop %v1257
  %v1308 = vmul.f32 1.0, %v1307
  %v1309 = vrcp.pop %v1258
  %v1310 = vmul.f32 1.0, %v1309
  %v1311 = vrcp.pop %v1259
  %v1312 = vmul.f32 1.0, %v1311
  %v1313 = vrcp.pop %v1260
  %v1314 = vmul.f32 1.0, %v1313
  %v1315 = vrcp.pop %v1261
  %v1316 = vmul.f32 1.0, %v1315
  %v1317 = vrcp.pop %v1262
  %v1318 = vmul.f32 1.0, %v1317
  %v1319 = vrcp.pop %v1263
  %v1320 = vmul.f32 1.0, %v1319
  %v1321 = vrcp.pop %v1264
  %v1322 = vmul.f32 1.0, %v1321
  %v1323 = vrcp.pop %v1265
  %v1324 = vmul.f32 1.0, %v1323
  %v1325 = vrcp.pop %v1266
  %v1326 = vmul.f32 1.0, %v1325
  %v1327 = vrcp.pop %v1267
  %v1328 = vmul.f32 1.0, %v1327
  %v1329 = vrcp.pop %v1268
  %v1330 = vmul.f32 1.0, %v1329
  %v1331 = vrcp.pop %v1269
  %v1332 = vmul.f32 1.0, %v1331
  %v1333 = vrcp.pop %v1270
  %v1334 = vmul.f32 1.0, %v1333
  %v1335 = vmul.f32 %v522, %v1272
  %v1336 = vmul.f32 %v524, %v1274
  %v1337 = vmul.f32 %v563, %v1276
  %v1338 = vmul.f32 %v565, %v1278
  %v1339 = vmul.f32 %v604, %v1280
  %v1340 = vmul.f32 %v606, %v1282
  %v1341 = vmul.f32 %v645, %v1284
  %v1342 = vmul.f32 %v647, %v1286
  %v1343 = vmul.f32 %v686, %v1288
  %v1344 = vmul.f32 %v688, %v1290
  %v1345 = vmul.f32 %v727, %v1292
  %v1346 = vmul.f32 %v729, %v1294
  %v1347 = vmul.f32 %v768, %v1296
  %v1348 = vmul.f32 %v770, %v1298
  %v1349 = vmul.f32 %v809, %v1300
  %v1350 = vmul.f32 %v811, %v1302
  %v1351 = vmul.f32 %v850, %v1304
  %v1352 = vmul.f32 %v852, %v1306
  %v1353 = vmul.f32 %v891, %v1308
  %v1354 = vmul.f32 %v893, %v1310
  %v1355 = vmul.f32 %v932, %v1312
  %v1356 = vmul.f32 %v934, %v1314
  %v1357 = vmul.f32 %v973, %v1316
  %v1358 = vmul.f32 %v975, %v1318
  %v1359 = vmul.f32 %v1014, %v1320
  %v1360 = vmul.f32 %v1016, %v1322
  %v1361 = vmul.f32 %v1055, %v1324
  %v1362 = vmul.f32 %v1057, %v1326
  %v1363 = vmul.f32 %v1096, %v1328
  %v1364 = vmul.f32 %v1098, %v1330
  %v1365 = vmul.f32 %v1137, %v1332
  %v1366 = vmul.f32 %v1139, %v1334
  %v1367 = vpack.c.bf16 %v1335, %v1335
  %v1368 = vpack.c.bf16 %v1336, %v1336
  %v1369 = vpack.c.bf16 %v1337, %v1337
  %v1370 = vpack.c.bf16 %v1338, %v1338
  %v1371 = vpack.c.bf16 %v1339, %v1339
  %v1372 = vpack.c.bf16 %v1340, %v1340
  %v1373 = vpack.c.bf16 %v1341, %v1341
  %v1374 = vpack.c.bf16 %v1342, %v1342
  %v1375 = vpack.c.bf16 %v1343, %v1343
  %v1376 = vpack.c.bf16 %v1344, %v1344
  %v1377 = vpack.c.bf16 %v1345, %v1345
  %v1378 = vpack.c.bf16 %v1346, %v1346
  %v1379 = vpack.c.bf16 %v1347, %v1347
  %v1380 = vpack.c.bf16 %v1348, %v1348
  %v1381 = vpack.c.bf16 %v1349, %v1349
  %v1382 = vpack.c.bf16 %v1350, %v1350
  %v1383 = vpack.c.bf16 %v1351, %v1351
  %v1384 = vpack.c.bf16 %v1352, %v1352
  %v1385 = vpack.c.bf16 %v1353, %v1353
  %v1386 = vpack.c.bf16 %v1354, %v1354
  %v1387 = vpack.c.bf16 %v1355, %v1355
  %v1388 = vpack.c.bf16 %v1356, %v1356
  %v1389 = vpack.c.bf16 %v1357, %v1357
  %v1390 = vpack.c.bf16 %v1358, %v1358
  %v1391 = vpack.c.bf16 %v1359, %v1359
  %v1392 = vpack.c.bf16 %v1360, %v1360
  %v1393 = vpack.c.bf16 %v1361, %v1361
  %v1394 = vpack.c.bf16 %v1362, %v1362
  %v1395 = vpack.c.bf16 %v1363, %v1363
  %v1396 = vpack.c.bf16 %v1364, %v1364
  %v1397 = vpack.c.bf16 %v1365, %v1365
  %v1398 = vpack.c.bf16 %v1366, %v1366
  %v1399 = vld [vmem:[%s1] sm:$0xff]
  %v1400 = vld [vmem:[%s1 + $0x8] sm:$0xff]
  %v1401 = vld [vmem:[%s1 + $0x10] sm:$0xff]
  %v1402 = vld [vmem:[%s1 + $0x18] sm:$0xff]
  %v1403 = vld [vmem:[%s1 + $0x20] sm:$0xff]
  %v1404 = vld [vmem:[%s1 + $0x28] sm:$0xff]
  %v1405 = vld [vmem:[%s1 + $0x30] sm:$0xff]
  %v1406 = vld [vmem:[%s1 + $0x38] sm:$0xff]
  %v1407 = vld [vmem:[%s1 + $0x40] sm:$0xff]
  %v1408 = vld [vmem:[%s1 + $0x48] sm:$0xff]
  %v1409 = vld [vmem:[%s1 + $0x50] sm:$0xff]
  %v1410 = vld [vmem:[%s1 + $0x58] sm:$0xff]
  %v1411 = vld [vmem:[%s1 + $0x60] sm:$0xff]
  %v1412 = vld [vmem:[%s1 + $0x68] sm:$0xff]
  %v1413 = vld [vmem:[%s1 + $0x70] sm:$0xff]
  %v1414 = vld [vmem:[%s1 + $0x78] sm:$0xff]
  %v1415 = vld [vmem:[%s1 + $0x80] sm:$0xff]
  %v1416 = vld [vmem:[%s1 + $0x88] sm:$0xff]
  %v1417 = vld [vmem:[%s1 + $0x90] sm:$0xff]
  %v1418 = vld [vmem:[%s1 + $0x98] sm:$0xff]
  %v1419 = vld [vmem:[%s1 + $0xa0] sm:$0xff]
  %v1420 = vld [vmem:[%s1 + $0xa8] sm:$0xff]
  %v1421 = vld [vmem:[%s1 + $0xb0] sm:$0xff]
  %v1422 = vld [vmem:[%s1 + $0xb8] sm:$0xff]
  %v1423 = vld [vmem:[%s1 + $0xc0] sm:$0xff]
  %v1424 = vld [vmem:[%s1 + $0xc8] sm:$0xff]
  %v1425 = vld [vmem:[%s1 + $0xd0] sm:$0xff]
  %v1426 = vld [vmem:[%s1 + $0xd8] sm:$0xff]
  %v1427 = vld [vmem:[%s1 + $0xe0] sm:$0xff]
  %v1428 = vld [vmem:[%s1 + $0xe8] sm:$0xff]
  %v1429 = vld [vmem:[%s1 + $0xf0] sm:$0xff]
  %v1430 = vld [vmem:[%s1 + $0xf8] sm:$0xff]
  %v1463 = vunpack.c.l.b16 %v1399
  %v1464 = vunpack.c.h.b16 %v1399
  %v1465 = vunpack.c.l.b16 %v1400
  %v1466 = vunpack.c.h.b16 %v1400
  %v1467 = vunpack.c.l.b16 %v1401
  %v1468 = vunpack.c.h.b16 %v1401
  %v1469 = vunpack.c.l.b16 %v1402
  %v1470 = vunpack.c.h.b16 %v1402
  %v1471 = vunpack.c.l.b16 %v1403
  %v1472 = vunpack.c.h.b16 %v1403
  %v1473 = vunpack.c.l.b16 %v1404
  %v1474 = vunpack.c.h.b16 %v1404
  %v1475 = vunpack.c.l.b16 %v1405
  %v1476 = vunpack.c.h.b16 %v1405
  %v1477 = vunpack.c.l.b16 %v1406
  %v1478 = vunpack.c.h.b16 %v1406
  %v1479 = vunpack.c.l.b16 %v1407
  %v1480 = vunpack.c.h.b16 %v1407
  %v1481 = vunpack.c.l.b16 %v1408
  %v1482 = vunpack.c.h.b16 %v1408
  %v1483 = vunpack.c.l.b16 %v1409
  %v1484 = vunpack.c.h.b16 %v1409
  %v1485 = vunpack.c.l.b16 %v1410
  %v1486 = vunpack.c.h.b16 %v1410
  %v1487 = vunpack.c.l.b16 %v1411
  %v1488 = vunpack.c.h.b16 %v1411
  %v1489 = vunpack.c.l.b16 %v1412
  %v1490 = vunpack.c.h.b16 %v1412
  %v1491 = vunpack.c.l.b16 %v1413
  %v1492 = vunpack.c.h.b16 %v1413
  %v1493 = vunpack.c.l.b16 %v1414
  %v1494 = vunpack.c.h.b16 %v1414
  %v1495 = vunpack.c.l.b16 %v1415
  %v1496 = vunpack.c.h.b16 %v1415
  %v1497 = vunpack.c.l.b16 %v1416
  %v1498 = vunpack.c.h.b16 %v1416
  %v1499 = vunpack.c.l.b16 %v1417
  %v1500 = vunpack.c.h.b16 %v1417
  %v1501 = vunpack.c.l.b16 %v1418
  %v1502 = vunpack.c.h.b16 %v1418
  %v1503 = vunpack.c.l.b16 %v1419
  %v1504 = vunpack.c.h.b16 %v1419
  %v1505 = vunpack.c.l.b16 %v1420
  %v1506 = vunpack.c.h.b16 %v1420
  %v1507 = vunpack.c.l.b16 %v1421
  %v1508 = vunpack.c.h.b16 %v1421
  %v1509 = vunpack.c.l.b16 %v1422
  %v1510 = vunpack.c.h.b16 %v1422
  %v1511 = vunpack.c.l.b16 %v1423
  %v1512 = vunpack.c.h.b16 %v1423
  %v1513 = vunpack.c.l.b16 %v1424
  %v1514 = vunpack.c.h.b16 %v1424
  %v1515 = vunpack.c.l.b16 %v1425
  %v1516 = vunpack.c.h.b16 %v1425
  %v1517 = vunpack.c.l.b16 %v1426
  %v1518 = vunpack.c.h.b16 %v1426
  %v1519 = vunpack.c.l.b16 %v1427
  %v1520 = vunpack.c.h.b16 %v1427
  %v1521 = vunpack.c.l.b16 %v1428
  %v1522 = vunpack.c.h.b16 %v1428
  %v1523 = vunpack.c.l.b16 %v1429
  %v1524 = vunpack.c.h.b16 %v1429
  %v1525 = vunpack.c.l.b16 %v1430
  %v1526 = vunpack.c.h.b16 %v1430
  %v1527 = vpack.c.b16 %v1495, %v1463
  %v1528 = vpack.c.b16 %v1496, %v1464
  %v1529 = vpack.c.b16 %v1497, %v1465
  %v1530 = vpack.c.b16 %v1498, %v1466
  %v1531 = vpack.c.b16 %v1499, %v1467
  %v1532 = vpack.c.b16 %v1500, %v1468
  %v1533 = vpack.c.b16 %v1501, %v1469
  %v1534 = vpack.c.b16 %v1502, %v1470
  %v1535 = vpack.c.b16 %v1503, %v1471
  %v1536 = vpack.c.b16 %v1504, %v1472
  %v1537 = vpack.c.b16 %v1505, %v1473
  %v1538 = vpack.c.b16 %v1506, %v1474
  %v1539 = vpack.c.b16 %v1507, %v1475
  %v1540 = vpack.c.b16 %v1508, %v1476
  %v1541 = vpack.c.b16 %v1509, %v1477
  %v1542 = vpack.c.b16 %v1510, %v1478
  %v1543 = vpack.c.b16 %v1511, %v1479
  %v1544 = vpack.c.b16 %v1512, %v1480
  %v1545 = vpack.c.b16 %v1513, %v1481
  %v1546 = vpack.c.b16 %v1514, %v1482
  %v1547 = vpack.c.b16 %v1515, %v1483
  %v1548 = vpack.c.b16 %v1516, %v1484
  %v1549 = vpack.c.b16 %v1517, %v1485
  %v1550 = vpack.c.b16 %v1518, %v1486
  %v1551 = vpack.c.b16 %v1519, %v1487
  %v1552 = vpack.c.b16 %v1520, %v1488
  %v1553 = vpack.c.b16 %v1521, %v1489
  %v1554 = vpack.c.b16 %v1522, %v1490
  %v1555 = vpack.c.b16 %v1523, %v1491
  %v1556 = vpack.c.b16 %v1524, %v1492
  %v1557 = vpack.c.b16 %v1525, %v1493
  %v1558 = vpack.c.b16 %v1526, %v1494
  %1591 = vmatprep.subr.bf16.mxu0 %v1368
  %1592 = vmatpush1.bf16.xpose.msra.mxu0 %v1367
  %1593 = vmatprep.subr.bf16.mxu0 0
  %1594 = vmatpush1.bf16.xpose.msra.mxu0 0
  %1595 = vmatprep.subr.bf16.mxu0 0
  %1596 = vmatpush1.bf16.xpose.msra.mxu0 0
  %1597 = vmatprep.subr.bf16.mxu0 0
  %1598 = vmatpush1.bf16.xpose.msra.mxu0 0
  %1599 = vmatprep.subr.bf16.mxu0 0
  %1600 = vmatpush1.bf16.xpose.msra.mxu0 0
  %1601 = vmatprep.subr.bf16.mxu0 0
  %1602 = vmatpush1.bf16.xpose.msra.mxu0 0
  %1603 = vmatprep.subr.bf16.mxu0 0
  %1604 = vmatpush1.bf16.xpose.msra.mxu0 0
  %1605 = vmatprep.subr.bf16.mxu0 0
  %1606 = vmatpush1.bf16.xpose.msra.mxu0 0
  %1607 = vmatprep.subr.bf16.mxu0 0
  %1608 = vmatpush1.bf16.xpose.msra.mxu0 0
  %1609 = vmatprep.subr.bf16.mxu0 0
  %1610 = vmatpush1.bf16.xpose.msra.mxu0 0
  %1611 = vmatprep.subr.bf16.mxu0 0
  %1612 = vmatpush1.bf16.xpose.msra.mxu0 0
  %1613 = vmatprep.subr.bf16.mxu0 0
  %1614 = vmatpush1.bf16.xpose.msra.mxu0 0
  %1615 = vmatprep.subr.bf16.mxu0 0
  %1616 = vmatpush1.bf16.xpose.msra.mxu0 0
  %1617 = vmatprep.subr.bf16.mxu0 0
  %1618 = vmatpush1.bf16.xpose.msra.mxu0 0
  %1619 = vmatprep.subr.bf16.mxu0 0
  %1620 = vmatpush1.bf16.xpose.msra.mxu0 0
  %1621 = vmatprep.subr.bf16.mxu0 0
  %1622 = vmatpush1.bf16.xpose.msra.mxu0 0
  %1623 = vmatprep.mubr.bf16.mxu0 %v1528
  %1624 = vmatmul.mubr.bf16.gmra.mrb[0].mxu0 %v1527
  %v1625 = vpop.f32.mrb[0].mxu0
  %v1626 = vadd.f32 0.0, %v1625
  %v1627 = vpop.f32.mrb[0].mxu0
  %v1628 = vpop.f32.mrb[0].mxu0
  %v1629 = vadd.f32 0.0, %v1628
  %v1630 = vpop.f32.mrb[0].mxu0
  %1631 = vdwg.mxu0
  %1632 = vmatprep.subr.bf16.mxu0 %v1370
  %1633 = vmatpush1.bf16.xpose.msra.mxu0 %v1369
  %1634 = vmatprep.subr.bf16.mxu0 0
  %1635 = vmatpush1.bf16.xpose.msra.mxu0 0
  %1636 = vmatprep.subr.bf16.mxu0 0
  %1637 = vmatpush1.bf16.xpose.msra.mxu0 0
  %1638 = vmatprep.subr.bf16.mxu0 0
  %1639 = vmatpush1.bf16.xpose.msra.mxu0 0
  %1640 = vmatprep.subr.bf16.mxu0 0
  %1641 = vmatpush1.bf16.xpose.msra.mxu0 0
  %1642 = vmatprep.subr.bf16.mxu0 0
  %1643 = vmatpush1.bf16.xpose.msra.mxu0 0
  %1644 = vmatprep.subr.bf16.mxu0 0
  %1645 = vmatpush1.bf16.xpose.msra.mxu0 0
  %1646 = vmatprep.subr.bf16.mxu0 0
  %1647 = vmatpush1.bf16.xpose.msra.mxu0 0
  %1648 = vmatprep.subr.bf16.mxu0 0
  %1649 = vmatpush1.bf16.xpose.msra.mxu0 0
  %1650 = vmatprep.subr.bf16.mxu0 0
  %1651 = vmatpush1.bf16.xpose.msra.mxu0 0
  %1652 = vmatprep.subr.bf16.mxu0 0
  %1653 = vmatpush1.bf16.xpose.msra.mxu0 0
  %1654 = vmatprep.subr.bf16.mxu0 0
  %1655 = vmatpush1.bf16.xpose.msra.mxu0 0
  %1656 = vmatprep.subr.bf16.mxu0 0
  %1657 = vmatpush1.bf16.xpose.msra.mxu0 0
  %1658 = vmatprep.subr.bf16.mxu0 0
  %1659 = vmatpush1.bf16.xpose.msra.mxu0 0
  %1660 = vmatprep.subr.bf16.mxu0 0
  %1661 = vmatpush1.bf16.xpose.msra.mxu0 0
  %1662 = vmatprep.subr.bf16.mxu0 0
  %1663 = vmatpush1.bf16.xpose.msra.mxu0 0
  %1664 = vmatprep.mubr.bf16.mxu0 %v1530
  %1665 = vmatmul.mubr.bf16.gmra.mrb[0].mxu0 %v1529
  %v1666 = vpop.f32.mrb[0].mxu0
  %v1667 = vadd.f32 %v1626, %v1666
  %v1668 = vpop.f32.mrb[0].mxu0
  %v1669 = vpop.f32.mrb[0].mxu0
  %v1670 = vadd.f32 %v1629, %v1669
  %v1671 = vpop.f32.mrb[0].mxu0
  %1672 = vdwg.mxu0
  %1673 = vmatprep.subr.bf16.mxu0 %v1372
  %1674 = vmatpush1.bf16.xpose.msra.mxu0 %v1371
  %1675 = vmatprep.subr.bf16.mxu0 0
  %1676 = vmatpush1.bf16.xpose.msra.mxu0 0
  %1677 = vmatprep.subr.bf16.mxu0 0
  %1678 = vmatpush1.bf16.xpose.msra.mxu0 0
  %1679 = vmatprep.subr.bf16.mxu0 0
  %1680 = vmatpush1.bf16.xpose.msra.mxu0 0
  %1681 = vmatprep.subr.bf16.mxu0 0
  %1682 = vmatpush1.bf16.xpose.msra.mxu0 0
  %1683 = vmatprep.subr.bf16.mxu0 0
  %1684 = vmatpush1.bf16.xpose.msra.mxu0 0
  %1685 = vmatprep.subr.bf16.mxu0 0
  %1686 = vmatpush1.bf16.xpose.msra.mxu0 0
  %1687 = vmatprep.subr.bf16.mxu0 0
  %1688 = vmatpush1.bf16.xpose.msra.mxu0 0
  %1689 = vmatprep.subr.bf16.mxu0 0
  %1690 = vmatpush1.bf16.xpose.msra.mxu0 0
  %1691 = vmatprep.subr.bf16.mxu0 0
  %1692 = vmatpush1.bf16.xpose.msra.mxu0 0
  %1693 = vmatprep.subr.bf16.mxu0 0
  %1694 = vmatpush1.bf16.xpose.msra.mxu0 0
  %1695 = vmatprep.subr.bf16.mxu0 0
  %1696 = vmatpush1.bf16.xpose.msra.mxu0 0
  %1697 = vmatprep.subr.bf16.mxu0 0
  %1698 = vmatpush1.bf16.xpose.msra.mxu0 0
  %1699 = vmatprep.subr.bf16.mxu0 0
  %1700 = vmatpush1.bf16.xpose.msra.mxu0 0
  %1701 = vmatprep.subr.bf16.mxu0 0
  %1702 = vmatpush1.bf16.xpose.msra.mxu0 0
  %1703 = vmatprep.subr.bf16.mxu0 0
  %1704 = vmatpush1.bf16.xpose.msra.mxu0 0
  %1705 = vmatprep.mubr.bf16.mxu0 %v1532
  %1706 = vmatmul.mubr.bf16.gmra.mrb[0].mxu0 %v1531
  %v1707 = vpop.f32.mrb[0].mxu0
  %v1708 = vadd.f32 %v1667, %v1707
  %v1709 = vpop.f32.mrb[0].mxu0
  %v1710 = vpop.f32.mrb[0].mxu0
  %v1711 = vadd.f32 %v1670, %v1710
  %v1712 = vpop.f32.mrb[0].mxu0
  %1713 = vdwg.mxu0
  %1714 = vmatprep.subr.bf16.mxu0 %v1374
  %1715 = vmatpush1.bf16.xpose.msra.mxu0 %v1373
  %1716 = vmatprep.subr.bf16.mxu0 0
  %1717 = vmatpush1.bf16.xpose.msra.mxu0 0
  %1718 = vmatprep.subr.bf16.mxu0 0
  %1719 = vmatpush1.bf16.xpose.msra.mxu0 0
  %1720 = vmatprep.subr.bf16.mxu0 0
  %1721 = vmatpush1.bf16.xpose.msra.mxu0 0
  %1722 = vmatprep.subr.bf16.mxu0 0
  %1723 = vmatpush1.bf16.xpose.msra.mxu0 0
  %1724 = vmatprep.subr.bf16.mxu0 0
  %1725 = vmatpush1.bf16.xpose.msra.mxu0 0
  %1726 = vmatprep.subr.bf16.mxu0 0
  %1727 = vmatpush1.bf16.xpose.msra.mxu0 0
  %1728 = vmatprep.subr.bf16.mxu0 0
  %1729 = vmatpush1.bf16.xpose.msra.mxu0 0
  %1730 = vmatprep.subr.bf16.mxu0 0
  %1731 = vmatpush1.bf16.xpose.msra.mxu0 0
  %1732 = vmatprep.subr.bf16.mxu0 0
  %1733 = vmatpush1.bf16.xpose.msra.mxu0 0
  %1734 = vmatprep.subr.bf16.mxu0 0
  %1735 = vmatpush1.bf16.xpose.msra.mxu0 0
  %1736 = vmatprep.subr.bf16.mxu0 0
  %1737 = vmatpush1.bf16.xpose.msra.mxu0 0
  %1738 = vmatprep.subr.bf16.mxu0 0
  %1739 = vmatpush1.bf16.xpose.msra.mxu0 0
  %1740 = vmatprep.subr.bf16.mxu0 0
  %1741 = vmatpush1.bf16.xpose.msra.mxu0 0
  %1742 = vmatprep.subr.bf16.mxu0 0
  %1743 = vmatpush1.bf16.xpose.msra.mxu0 0
  %1744 = vmatprep.subr.bf16.mxu0 0
  %1745 = vmatpush1.bf16.xpose.msra.mxu0 0
  %1746 = vmatprep.mubr.bf16.mxu0 %v1534
  %1747 = vmatmul.mubr.bf16.gmra.mrb[0].mxu0 %v1533
  %v1748 = vpop.f32.mrb[0].mxu0
  %v1749 = vadd.f32 %v1708, %v1748
  %v1750 = vpop.f32.mrb[0].mxu0
  %v1751 = vpop.f32.mrb[0].mxu0
  %v1752 = vadd.f32 %v1711, %v1751
  %v1753 = vpop.f32.mrb[0].mxu0
  %1754 = vdwg.mxu0
  %1755 = vmatprep.subr.bf16.mxu0 %v1376
  %1756 = vmatpush1.bf16.xpose.msra.mxu0 %v1375
  %1757 = vmatprep.subr.bf16.mxu0 0
  %1758 = vmatpush1.bf16.xpose.msra.mxu0 0
  %1759 = vmatprep.subr.bf16.mxu0 0
  %1760 = vmatpush1.bf16.xpose.msra.mxu0 0
  %1761 = vmatprep.subr.bf16.mxu0 0
  %1762 = vmatpush1.bf16.xpose.msra.mxu0 0
  %1763 = vmatprep.subr.bf16.mxu0 0
  %1764 = vmatpush1.bf16.xpose.msra.mxu0 0
  %1765 = vmatprep.subr.bf16.mxu0 0
  %1766 = vmatpush1.bf16.xpose.msra.mxu0 0
  %1767 = vmatprep.subr.bf16.mxu0 0
  %1768 = vmatpush1.bf16.xpose.msra.mxu0 0
  %1769 = vmatprep.subr.bf16.mxu0 0
  %1770 = vmatpush1.bf16.xpose.msra.mxu0 0
  %1771 = vmatprep.subr.bf16.mxu0 0
  %1772 = vmatpush1.bf16.xpose.msra.mxu0 0
  %1773 = vmatprep.subr.bf16.mxu0 0
  %1774 = vmatpush1.bf16.xpose.msra.mxu0 0
  %1775 = vmatprep.subr.bf16.mxu0 0
  %1776 = vmatpush1.bf16.xpose.msra.mxu0 0
  %1777 = vmatprep.subr.bf16.mxu0 0
  %1778 = vmatpush1.bf16.xpose.msra.mxu0 0
  %1779 = vmatprep.subr.bf16.mxu0 0
  %1780 = vmatpush1.bf16.xpose.msra.mxu0 0
  %1781 = vmatprep.subr.bf16.mxu0 0
  %1782 = vmatpush1.bf16.xpose.msra.mxu0 0
  %1783 = vmatprep.subr.bf16.mxu0 0
  %1784 = vmatpush1.bf16.xpose.msra.mxu0 0
  %1785 = vmatprep.subr.bf16.mxu0 0
  %1786 = vmatpush1.bf16.xpose.msra.mxu0 0
  %1787 = vmatprep.mubr.bf16.mxu0 %v1536
  %1788 = vmatmul.mubr.bf16.gmra.mrb[0].mxu0 %v1535
  %v1789 = vpop.f32.mrb[0].mxu0
  %v1790 = vadd.f32 %v1749, %v1789
  %v1791 = vpop.f32.mrb[0].mxu0
  %v1792 = vpop.f32.mrb[0].mxu0
  %v1793 = vadd.f32 %v1752, %v1792
  %v1794 = vpop.f32.mrb[0].mxu0
  %1795 = vdwg.mxu0
  %1796 = vmatprep.subr.bf16.mxu0 %v1378
  %1797 = vmatpush1.bf16.xpose.msra.mxu0 %v1377
  %1798 = vmatprep.subr.bf16.mxu0 0
  %1799 = vmatpush1.bf16.xpose.msra.mxu0 0
  %1800 = vmatprep.subr.bf16.mxu0 0
  %1801 = vmatpush1.bf16.xpose.msra.mxu0 0
  %1802 = vmatprep.subr.bf16.mxu0 0
  %1803 = vmatpush1.bf16.xpose.msra.mxu0 0
  %1804 = vmatprep.subr.bf16.mxu0 0
  %1805 = vmatpush1.bf16.xpose.msra.mxu0 0
  %1806 = vmatprep.subr.bf16.mxu0 0
  %1807 = vmatpush1.bf16.xpose.msra.mxu0 0
  %1808 = vmatprep.subr.bf16.mxu0 0
  %1809 = vmatpush1.bf16.xpose.msra.mxu0 0
  %1810 = vmatprep.subr.bf16.mxu0 0
  %1811 = vmatpush1.bf16.xpose.msra.mxu0 0
  %1812 = vmatprep.subr.bf16.mxu0 0
  %1813 = vmatpush1.bf16.xpose.msra.mxu0 0
  %1814 = vmatprep.subr.bf16.mxu0 0
  %1815 = vmatpush1.bf16.xpose.msra.mxu0 0
  %1816 = vmatprep.subr.bf16.mxu0 0
  %1817 = vmatpush1.bf16.xpose.msra.mxu0 0
  %1818 = vmatprep.subr.bf16.mxu0 0
  %1819 = vmatpush1.bf16.xpose.msra.mxu0 0
  %1820 = vmatprep.subr.bf16.mxu0 0
  %1821 = vmatpush1.bf16.xpose.msra.mxu0 0
  %1822 = vmatprep.subr.bf16.mxu0 0
  %1823 = vmatpush1.bf16.xpose.msra.mxu0 0
  %1824 = vmatprep.subr.bf16.mxu0 0
  %1825 = vmatpush1.bf16.xpose.msra.mxu0 0
  %1826 = vmatprep.subr.bf16.mxu0 0
  %1827 = vmatpush1.bf16.xpose.msra.mxu0 0
  %1828 = vmatprep.mubr.bf16.mxu0 %v1538
  %1829 = vmatmul.mubr.bf16.gmra.mrb[0].mxu0 %v1537
  %v1830 = vpop.f32.mrb[0].mxu0
  %v1831 = vadd.f32 %v1790, %v1830
  %v1832 = vpop.f32.mrb[0].mxu0
  %v1833 = vpop.f32.mrb[0].mxu0
  %v1834 = vadd.f32 %v1793, %v1833
  %v1835 = vpop.f32.mrb[0].mxu0
  %1836 = vdwg.mxu0
  %1837 = vmatprep.subr.bf16.mxu0 %v1380
  %1838 = vmatpush1.bf16.xpose.msra.mxu0 %v1379
  %1839 = vmatprep.subr.bf16.mxu0 0
  %1840 = vmatpush1.bf16.xpose.msra.mxu0 0
  %1841 = vmatprep.subr.bf16.mxu0 0
  %1842 = vmatpush1.bf16.xpose.msra.mxu0 0
  %1843 = vmatprep.subr.bf16.mxu0 0
  %1844 = vmatpush1.bf16.xpose.msra.mxu0 0
  %1845 = vmatprep.subr.bf16.mxu0 0
  %1846 = vmatpush1.bf16.xpose.msra.mxu0 0
  %1847 = vmatprep.subr.bf16.mxu0 0
  %1848 = vmatpush1.bf16.xpose.msra.mxu0 0
  %1849 = vmatprep.subr.bf16.mxu0 0
  %1850 = vmatpush1.bf16.xpose.msra.mxu0 0
  %1851 = vmatprep.subr.bf16.mxu0 0
  %1852 = vmatpush1.bf16.xpose.msra.mxu0 0
  %1853 = vmatprep.subr.bf16.mxu0 0
  %1854 = vmatpush1.bf16.xpose.msra.mxu0 0
  %1855 = vmatprep.subr.bf16.mxu0 0
  %1856 = vmatpush1.bf16.xpose.msra.mxu0 0
  %1857 = vmatprep.subr.bf16.mxu0 0
  %1858 = vmatpush1.bf16.xpose.msra.mxu0 0
  %1859 = vmatprep.subr.bf16.mxu0 0
  %1860 = vmatpush1.bf16.xpose.msra.mxu0 0
  %1861 = vmatprep.subr.bf16.mxu0 0
  %1862 = vmatpush1.bf16.xpose.msra.mxu0 0
  %1863 = vmatprep.subr.bf16.mxu0 0
  %1864 = vmatpush1.bf16.xpose.msra.mxu0 0
  %1865 = vmatprep.subr.bf16.mxu0 0
  %1866 = vmatpush1.bf16.xpose.msra.mxu0 0
  %1867 = vmatprep.subr.bf16.mxu0 0
  %1868 = vmatpush1.bf16.xpose.msra.mxu0 0
  %1869 = vmatprep.mubr.bf16.mxu0 %v1540
  %1870 = vmatmul.mubr.bf16.gmra.mrb[0].mxu0 %v1539
  %v1871 = vpop.f32.mrb[0].mxu0
  %v1872 = vadd.f32 %v1831, %v1871
  %v1873 = vpop.f32.mrb[0].mxu0
  %v1874 = vpop.f32.mrb[0].mxu0
  %v1875 = vadd.f32 %v1834, %v1874
  %v1876 = vpop.f32.mrb[0].mxu0
  %1877 = vdwg.mxu0
  %1878 = vmatprep.subr.bf16.mxu0 %v1382
  %1879 = vmatpush1.bf16.xpose.msra.mxu0 %v1381
  %1880 = vmatprep.subr.bf16.mxu0 0
  %1881 = vmatpush1.bf16.xpose.msra.mxu0 0
  %1882 = vmatprep.subr.bf16.mxu0 0
  %1883 = vmatpush1.bf16.xpose.msra.mxu0 0
  %1884 = vmatprep.subr.bf16.mxu0 0
  %1885 = vmatpush1.bf16.xpose.msra.mxu0 0
  %1886 = vmatprep.subr.bf16.mxu0 0
  %1887 = vmatpush1.bf16.xpose.msra.mxu0 0
  %1888 = vmatprep.subr.bf16.mxu0 0
  %1889 = vmatpush1.bf16.xpose.msra.mxu0 0
  %1890 = vmatprep.subr.bf16.mxu0 0
  %1891 = vmatpush1.bf16.xpose.msra.mxu0 0
  %1892 = vmatprep.subr.bf16.mxu0 0
  %1893 = vmatpush1.bf16.xpose.msra.mxu0 0
  %1894 = vmatprep.subr.bf16.mxu0 0
  %1895 = vmatpush1.bf16.xpose.msra.mxu0 0
  %1896 = vmatprep.subr.bf16.mxu0 0
  %1897 = vmatpush1.bf16.xpose.msra.mxu0 0
  %1898 = vmatprep.subr.bf16.mxu0 0
  %1899 = vmatpush1.bf16.xpose.msra.mxu0 0
  %1900 = vmatprep.subr.bf16.mxu0 0
  %1901 = vmatpush1.bf16.xpose.msra.mxu0 0
  %1902 = vmatprep.subr.bf16.mxu0 0
  %1903 = vmatpush1.bf16.xpose.msra.mxu0 0
  %1904 = vmatprep.subr.bf16.mxu0 0
  %1905 = vmatpush1.bf16.xpose.msra.mxu0 0
  %1906 = vmatprep.subr.bf16.mxu0 0
  %1907 = vmatpush1.bf16.xpose.msra.mxu0 0
  %1908 = vmatprep.subr.bf16.mxu0 0
  %1909 = vmatpush1.bf16.xpose.msra.mxu0 0
  %1910 = vmatprep.mubr.bf16.mxu0 %v1542
  %1911 = vmatmul.mubr.bf16.gmra.mrb[0].mxu0 %v1541
  %v1912 = vpop.f32.mrb[0].mxu0
  %v1913 = vadd.f32 %v1872, %v1912
  %v1914 = vpop.f32.mrb[0].mxu0
  %v1915 = vpop.f32.mrb[0].mxu0
  %v1916 = vadd.f32 %v1875, %v1915
  %v1917 = vpop.f32.mrb[0].mxu0
  %1918 = vdwg.mxu0
  %1919 = vmatprep.subr.bf16.mxu0 %v1384
  %1920 = vmatpush1.bf16.xpose.msra.mxu0 %v1383
  %1921 = vmatprep.subr.bf16.mxu0 0
  %1922 = vmatpush1.bf16.xpose.msra.mxu0 0
  %1923 = vmatprep.subr.bf16.mxu0 0
  %1924 = vmatpush1.bf16.xpose.msra.mxu0 0
  %1925 = vmatprep.subr.bf16.mxu0 0
  %1926 = vmatpush1.bf16.xpose.msra.mxu0 0
  %1927 = vmatprep.subr.bf16.mxu0 0
  %1928 = vmatpush1.bf16.xpose.msra.mxu0 0
  %1929 = vmatprep.subr.bf16.mxu0 0
  %1930 = vmatpush1.bf16.xpose.msra.mxu0 0
  %1931 = vmatprep.subr.bf16.mxu0 0
  %1932 = vmatpush1.bf16.xpose.msra.mxu0 0
  %1933 = vmatprep.subr.bf16.mxu0 0
  %1934 = vmatpush1.bf16.xpose.msra.mxu0 0
  %1935 = vmatprep.subr.bf16.mxu0 0
  %1936 = vmatpush1.bf16.xpose.msra.mxu0 0
  %1937 = vmatprep.subr.bf16.mxu0 0
  %1938 = vmatpush1.bf16.xpose.msra.mxu0 0
  %1939 = vmatprep.subr.bf16.mxu0 0
  %1940 = vmatpush1.bf16.xpose.msra.mxu0 0
  %1941 = vmatprep.subr.bf16.mxu0 0
  %1942 = vmatpush1.bf16.xpose.msra.mxu0 0
  %1943 = vmatprep.subr.bf16.mxu0 0
  %1944 = vmatpush1.bf16.xpose.msra.mxu0 0
  %1945 = vmatprep.subr.bf16.mxu0 0
  %1946 = vmatpush1.bf16.xpose.msra.mxu0 0
  %1947 = vmatprep.subr.bf16.mxu0 0
  %1948 = vmatpush1.bf16.xpose.msra.mxu0 0
  %1949 = vmatprep.subr.bf16.mxu0 0
  %1950 = vmatpush1.bf16.xpose.msra.mxu0 0
  %1951 = vmatprep.mubr.bf16.mxu0 %v1544
  %1952 = vmatmul.mubr.bf16.gmra.mrb[0].mxu0 %v1543
  %v1953 = vpop.f32.mrb[0].mxu0
  %v1954 = vadd.f32 %v1913, %v1953
  %v1955 = vpop.f32.mrb[0].mxu0
  %v1956 = vpop.f32.mrb[0].mxu0
  %v1957 = vadd.f32 %v1916, %v1956
  %v1958 = vpop.f32.mrb[0].mxu0
  %1959 = vdwg.mxu0
  %1960 = vmatprep.subr.bf16.mxu0 %v1386
  %1961 = vmatpush1.bf16.xpose.msra.mxu0 %v1385
  %1962 = vmatprep.subr.bf16.mxu0 0
  %1963 = vmatpush1.bf16.xpose.msra.mxu0 0
  %1964 = vmatprep.subr.bf16.mxu0 0
  %1965 = vmatpush1.bf16.xpose.msra.mxu0 0
  %1966 = vmatprep.subr.bf16.mxu0 0
  %1967 = vmatpush1.bf16.xpose.msra.mxu0 0
  %1968 = vmatprep.subr.bf16.mxu0 0
  %1969 = vmatpush1.bf16.xpose.msra.mxu0 0
  %1970 = vmatprep.subr.bf16.mxu0 0
  %1971 = vmatpush1.bf16.xpose.msra.mxu0 0
  %1972 = vmatprep.subr.bf16.mxu0 0
  %1973 = vmatpush1.bf16.xpose.msra.mxu0 0
  %1974 = vmatprep.subr.bf16.mxu0 0
  %1975 = vmatpush1.bf16.xpose.msra.mxu0 0
  %1976 = vmatprep.subr.bf16.mxu0 0
  %1977 = vmatpush1.bf16.xpose.msra.mxu0 0
  %1978 = vmatprep.subr.bf16.mxu0 0
  %1979 = vmatpush1.bf16.xpose.msra.mxu0 0
  %1980 = vmatprep.subr.bf16.mxu0 0
  %1981 = vmatpush1.bf16.xpose.msra.mxu0 0
  %1982 = vmatprep.subr.bf16.mxu0 0
  %1983 = vmatpush1.bf16.xpose.msra.mxu0 0
  %1984 = vmatprep.subr.bf16.mxu0 0
  %1985 = vmatpush1.bf16.xpose.msra.mxu0 0
  %1986 = vmatprep.subr.bf16.mxu0 0
  %1987 = vmatpush1.bf16.xpose.msra.mxu0 0
  %1988 = vmatprep.subr.bf16.mxu0 0
  %1989 = vmatpush1.bf16.xpose.msra.mxu0 0
  %1990 = vmatprep.subr.bf16.mxu0 0
  %1991 = vmatpush1.bf16.xpose.msra.mxu0 0
  %1992 = vmatprep.mubr.bf16.mxu0 %v1546
  %1993 = vmatmul.mubr.bf16.gmra.mrb[0].mxu0 %v1545
  %v1994 = vpop.f32.mrb[0].mxu0
  %v1995 = vadd.f32 %v1954, %v1994
  %v1996 = vpop.f32.mrb[0].mxu0
  %v1997 = vpop.f32.mrb[0].mxu0
  %v1998 = vadd.f32 %v1957, %v1997
  %v1999 = vpop.f32.mrb[0].mxu0
  %2000 = vdwg.mxu0
  %2001 = vmatprep.subr.bf16.mxu0 %v1388
  %2002 = vmatpush1.bf16.xpose.msra.mxu0 %v1387
  %2003 = vmatprep.subr.bf16.mxu0 0
  %2004 = vmatpush1.bf16.xpose.msra.mxu0 0
  %2005 = vmatprep.subr.bf16.mxu0 0
  %2006 = vmatpush1.bf16.xpose.msra.mxu0 0
  %2007 = vmatprep.subr.bf16.mxu0 0
  %2008 = vmatpush1.bf16.xpose.msra.mxu0 0
  %2009 = vmatprep.subr.bf16.mxu0 0
  %2010 = vmatpush1.bf16.xpose.msra.mxu0 0
  %2011 = vmatprep.subr.bf16.mxu0 0
  %2012 = vmatpush1.bf16.xpose.msra.mxu0 0
  %2013 = vmatprep.subr.bf16.mxu0 0
  %2014 = vmatpush1.bf16.xpose.msra.mxu0 0
  %2015 = vmatprep.subr.bf16.mxu0 0
  %2016 = vmatpush1.bf16.xpose.msra.mxu0 0
  %2017 = vmatprep.subr.bf16.mxu0 0
  %2018 = vmatpush1.bf16.xpose.msra.mxu0 0
  %2019 = vmatprep.subr.bf16.mxu0 0
  %2020 = vmatpush1.bf16.xpose.msra.mxu0 0
  %2021 = vmatprep.subr.bf16.mxu0 0
  %2022 = vmatpush1.bf16.xpose.msra.mxu0 0
  %2023 = vmatprep.subr.bf16.mxu0 0
  %2024 = vmatpush1.bf16.xpose.msra.mxu0 0
  %2025 = vmatprep.subr.bf16.mxu0 0
  %2026 = vmatpush1.bf16.xpose.msra.mxu0 0
  %2027 = vmatprep.subr.bf16.mxu0 0
  %2028 = vmatpush1.bf16.xpose.msra.mxu0 0
  %2029 = vmatprep.subr.bf16.mxu0 0
  %2030 = vmatpush1.bf16.xpose.msra.mxu0 0
  %2031 = vmatprep.subr.bf16.mxu0 0
  %2032 = vmatpush1.bf16.xpose.msra.mxu0 0
  %2033 = vmatprep.mubr.bf16.mxu0 %v1548
  %2034 = vmatmul.mubr.bf16.gmra.mrb[0].mxu0 %v1547
  %v2035 = vpop.f32.mrb[0].mxu0
  %v2036 = vadd.f32 %v1995, %v2035
  %v2037 = vpop.f32.mrb[0].mxu0
  %v2038 = vpop.f32.mrb[0].mxu0
  %v2039 = vadd.f32 %v1998, %v2038
  %v2040 = vpop.f32.mrb[0].mxu0
  %2041 = vdwg.mxu0
  %2042 = vmatprep.subr.bf16.mxu0 %v1390
  %2043 = vmatpush1.bf16.xpose.msra.mxu0 %v1389
  %2044 = vmatprep.subr.bf16.mxu0 0
  %2045 = vmatpush1.bf16.xpose.msra.mxu0 0
  %2046 = vmatprep.subr.bf16.mxu0 0
  %2047 = vmatpush1.bf16.xpose.msra.mxu0 0
  %2048 = vmatprep.subr.bf16.mxu0 0
  %2049 = vmatpush1.bf16.xpose.msra.mxu0 0
  %2050 = vmatprep.subr.bf16.mxu0 0
  %2051 = vmatpush1.bf16.xpose.msra.mxu0 0
  %2052 = vmatprep.subr.bf16.mxu0 0
  %2053 = vmatpush1.bf16.xpose.msra.mxu0 0
  %2054 = vmatprep.subr.bf16.mxu0 0
  %2055 = vmatpush1.bf16.xpose.msra.mxu0 0
  %2056 = vmatprep.subr.bf16.mxu0 0
  %2057 = vmatpush1.bf16.xpose.msra.mxu0 0
  %2058 = vmatprep.subr.bf16.mxu0 0
  %2059 = vmatpush1.bf16.xpose.msra.mxu0 0
  %2060 = vmatprep.subr.bf16.mxu0 0
  %2061 = vmatpush1.bf16.xpose.msra.mxu0 0
  %2062 = vmatprep.subr.bf16.mxu0 0
  %2063 = vmatpush1.bf16.xpose.msra.mxu0 0
  %2064 = vmatprep.subr.bf16.mxu0 0
  %2065 = vmatpush1.bf16.xpose.msra.mxu0 0
  %2066 = vmatprep.subr.bf16.mxu0 0
  %2067 = vmatpush1.bf16.xpose.msra.mxu0 0
  %2068 = vmatprep.subr.bf16.mxu0 0
  %2069 = vmatpush1.bf16.xpose.msra.mxu0 0
  %2070 = vmatprep.subr.bf16.mxu0 0
  %2071 = vmatpush1.bf16.xpose.msra.mxu0 0
  %2072 = vmatprep.subr.bf16.mxu0 0
  %2073 = vmatpush1.bf16.xpose.msra.mxu0 0
  %2074 = vmatprep.mubr.bf16.mxu0 %v1550
  %2075 = vmatmul.mubr.bf16.gmra.mrb[0].mxu0 %v1549
  %v2076 = vpop.f32.mrb[0].mxu0
  %v2077 = vadd.f32 %v2036, %v2076
  %v2078 = vpop.f32.mrb[0].mxu0
  %v2079 = vpop.f32.mrb[0].mxu0
  %v2080 = vadd.f32 %v2039, %v2079
  %v2081 = vpop.f32.mrb[0].mxu0
  %2082 = vdwg.mxu0
  %2083 = vmatprep.subr.bf16.mxu0 %v1392
  %2084 = vmatpush1.bf16.xpose.msra.mxu0 %v1391
  %2085 = vmatprep.subr.bf16.mxu0 0
  %2086 = vmatpush1.bf16.xpose.msra.mxu0 0
  %2087 = vmatprep.subr.bf16.mxu0 0
  %2088 = vmatpush1.bf16.xpose.msra.mxu0 0
  %2089 = vmatprep.subr.bf16.mxu0 0
  %2090 = vmatpush1.bf16.xpose.msra.mxu0 0
  %2091 = vmatprep.subr.bf16.mxu0 0
  %2092 = vmatpush1.bf16.xpose.msra.mxu0 0
  %2093 = vmatprep.subr.bf16.mxu0 0
  %2094 = vmatpush1.bf16.xpose.msra.mxu0 0
  %2095 = vmatprep.subr.bf16.mxu0 0
  %2096 = vmatpush1.bf16.xpose.msra.mxu0 0
  %2097 = vmatprep.subr.bf16.mxu0 0
  %2098 = vmatpush1.bf16.xpose.msra.mxu0 0
  %2099 = vmatprep.subr.bf16.mxu0 0
  %2100 = vmatpush1.bf16.xpose.msra.mxu0 0
  %2101 = vmatprep.subr.bf16.mxu0 0
  %2102 = vmatpush1.bf16.xpose.msra.mxu0 0
  %2103 = vmatprep.subr.bf16.mxu0 0
  %2104 = vmatpush1.bf16.xpose.msra.mxu0 0
  %2105 = vmatprep.subr.bf16.mxu0 0
  %2106 = vmatpush1.bf16.xpose.msra.mxu0 0
  %2107 = vmatprep.subr.bf16.mxu0 0
  %2108 = vmatpush1.bf16.xpose.msra.mxu0 0
  %2109 = vmatprep.subr.bf16.mxu0 0
  %2110 = vmatpush1.bf16.xpose.msra.mxu0 0
  %2111 = vmatprep.subr.bf16.mxu0 0
  %2112 = vmatpush1.bf16.xpose.msra.mxu0 0
  %2113 = vmatprep.subr.bf16.mxu0 0
  %2114 = vmatpush1.bf16.xpose.msra.mxu0 0
  %2115 = vmatprep.mubr.bf16.mxu0 %v1552
  %2116 = vmatmul.mubr.bf16.gmra.mrb[0].mxu0 %v1551
  %v2117 = vpop.f32.mrb[0].mxu0
  %v2118 = vadd.f32 %v2077, %v2117
  %v2119 = vpop.f32.mrb[0].mxu0
  %v2120 = vpop.f32.mrb[0].mxu0
  %v2121 = vadd.f32 %v2080, %v2120
  %v2122 = vpop.f32.mrb[0].mxu0
  %2123 = vdwg.mxu0
  %2124 = vmatprep.subr.bf16.mxu0 %v1394
  %2125 = vmatpush1.bf16.xpose.msra.mxu0 %v1393
  %2126 = vmatprep.subr.bf16.mxu0 0
  %2127 = vmatpush1.bf16.xpose.msra.mxu0 0
  %2128 = vmatprep.subr.bf16.mxu0 0
  %2129 = vmatpush1.bf16.xpose.msra.mxu0 0
  %2130 = vmatprep.subr.bf16.mxu0 0
  %2131 = vmatpush1.bf16.xpose.msra.mxu0 0
  %2132 = vmatprep.subr.bf16.mxu0 0
  %2133 = vmatpush1.bf16.xpose.msra.mxu0 0
  %2134 = vmatprep.subr.bf16.mxu0 0
  %2135 = vmatpush1.bf16.xpose.msra.mxu0 0
  %2136 = vmatprep.subr.bf16.mxu0 0
  %2137 = vmatpush1.bf16.xpose.msra.mxu0 0
  %2138 = vmatprep.subr.bf16.mxu0 0
  %2139 = vmatpush1.bf16.xpose.msra.mxu0 0
  %2140 = vmatprep.subr.bf16.mxu0 0
  %2141 = vmatpush1.bf16.xpose.msra.mxu0 0
  %2142 = vmatprep.subr.bf16.mxu0 0
  %2143 = vmatpush1.bf16.xpose.msra.mxu0 0
  %2144 = vmatprep.subr.bf16.mxu0 0
  %2145 = vmatpush1.bf16.xpose.msra.mxu0 0
  %2146 = vmatprep.subr.bf16.mxu0 0
  %2147 = vmatpush1.bf16.xpose.msra.mxu0 0
  %2148 = vmatprep.subr.bf16.mxu0 0
  %2149 = vmatpush1.bf16.xpose.msra.mxu0 0
  %2150 = vmatprep.subr.bf16.mxu0 0
  %2151 = vmatpush1.bf16.xpose.msra.mxu0 0
  %2152 = vmatprep.subr.bf16.mxu0 0
  %2153 = vmatpush1.bf16.xpose.msra.mxu0 0
  %2154 = vmatprep.subr.bf16.mxu0 0
  %2155 = vmatpush1.bf16.xpose.msra.mxu0 0
  %2156 = vmatprep.mubr.bf16.mxu0 %v1554
  %2157 = vmatmul.mubr.bf16.gmra.mrb[0].mxu0 %v1553
  %v2158 = vpop.f32.mrb[0].mxu0
  %v2159 = vadd.f32 %v2118, %v2158
  %v2160 = vpop.f32.mrb[0].mxu0
  %v2161 = vpop.f32.mrb[0].mxu0
  %v2162 = vadd.f32 %v2121, %v2161
  %v2163 = vpop.f32.mrb[0].mxu0
  %2164 = vdwg.mxu0
  %2165 = vmatprep.subr.bf16.mxu0 %v1396
  %2166 = vmatpush1.bf16.xpose.msra.mxu0 %v1395
  %2167 = vmatprep.subr.bf16.mxu0 0
  %2168 = vmatpush1.bf16.xpose.msra.mxu0 0
  %2169 = vmatprep.subr.bf16.mxu0 0
  %2170 = vmatpush1.bf16.xpose.msra.mxu0 0
  %2171 = vmatprep.subr.bf16.mxu0 0
  %2172 = vmatpush1.bf16.xpose.msra.mxu0 0
  %2173 = vmatprep.subr.bf16.mxu0 0
  %2174 = vmatpush1.bf16.xpose.msra.mxu0 0
  %2175 = vmatprep.subr.bf16.mxu0 0
  %2176 = vmatpush1.bf16.xpose.msra.mxu0 0
  %2177 = vmatprep.subr.bf16.mxu0 0
  %2178 = vmatpush1.bf16.xpose.msra.mxu0 0
  %2179 = vmatprep.subr.bf16.mxu0 0
  %2180 = vmatpush1.bf16.xpose.msra.mxu0 0
  %2181 = vmatprep.subr.bf16.mxu0 0
  %2182 = vmatpush1.bf16.xpose.msra.mxu0 0
  %2183 = vmatprep.subr.bf16.mxu0 0
  %2184 = vmatpush1.bf16.xpose.msra.mxu0 0
  %2185 = vmatprep.subr.bf16.mxu0 0
  %2186 = vmatpush1.bf16.xpose.msra.mxu0 0
  %2187 = vmatprep.subr.bf16.mxu0 0
  %2188 = vmatpush1.bf16.xpose.msra.mxu0 0
  %2189 = vmatprep.subr.bf16.mxu0 0
  %2190 = vmatpush1.bf16.xpose.msra.mxu0 0
  %2191 = vmatprep.subr.bf16.mxu0 0
  %2192 = vmatpush1.bf16.xpose.msra.mxu0 0
  %2193 = vmatprep.subr.bf16.mxu0 0
  %2194 = vmatpush1.bf16.xpose.msra.mxu0 0
  %2195 = vmatprep.subr.bf16.mxu0 0
  %2196 = vmatpush1.bf16.xpose.msra.mxu0 0
  %2197 = vmatprep.mubr.bf16.mxu0 %v1556
  %2198 = vmatmul.mubr.bf16.gmra.mrb[0].mxu0 %v1555
  %v2199 = vpop.f32.mrb[0].mxu0
  %v2200 = vadd.f32 %v2159, %v2199
  %v2201 = vpop.f32.mrb[0].mxu0
  %v2202 = vpop.f32.mrb[0].mxu0
  %v2203 = vadd.f32 %v2162, %v2202
  %v2204 = vpop.f32.mrb[0].mxu0
  %2205 = vdwg.mxu0
  %2206 = vmatprep.subr.bf16.mxu0 %v1398
  %2207 = vmatpush1.bf16.xpose.msra.mxu0 %v1397
  %2208 = vmatprep.subr.bf16.mxu0 0
  %2209 = vmatpush1.bf16.xpose.msra.mxu0 0
  %2210 = vmatprep.subr.bf16.mxu0 0
  %2211 = vmatpush1.bf16.xpose.msra.mxu0 0
  %2212 = vmatprep.subr.bf16.mxu0 0
  %2213 = vmatpush1.bf16.xpose.msra.mxu0 0
  %2214 = vmatprep.subr.bf16.mxu0 0
  %2215 = vmatpush1.bf16.xpose.msra.mxu0 0
  %2216 = vmatprep.subr.bf16.mxu0 0
  %2217 = vmatpush1.bf16.xpose.msra.mxu0 0
  %2218 = vmatprep.subr.bf16.mxu0 0
  %2219 = vmatpush1.bf16.xpose.msra.mxu0 0
  %2220 = vmatprep.subr.bf16.mxu0 0
  %2221 = vmatpush1.bf16.xpose.msra.mxu0 0
  %2222 = vmatprep.subr.bf16.mxu0 0
  %2223 = vmatpush1.bf16.xpose.msra.mxu0 0
  %2224 = vmatprep.subr.bf16.mxu0 0
  %2225 = vmatpush1.bf16.xpose.msra.mxu0 0
  %2226 = vmatprep.subr.bf16.mxu0 0
  %2227 = vmatpush1.bf16.xpose.msra.mxu0 0
  %2228 = vmatprep.subr.bf16.mxu0 0
  %2229 = vmatpush1.bf16.xpose.msra.mxu0 0
  %2230 = vmatprep.subr.bf16.mxu0 0
  %2231 = vmatpush1.bf16.xpose.msra.mxu0 0
  %2232 = vmatprep.subr.bf16.mxu0 0
  %2233 = vmatpush1.bf16.xpose.msra.mxu0 0
  %2234 = vmatprep.subr.bf16.mxu0 0
  %2235 = vmatpush1.bf16.xpose.msra.mxu0 0
  %2236 = vmatprep.subr.bf16.mxu0 0
  %2237 = vmatpush1.bf16.xpose.msra.mxu0 0
  %2238 = vmatprep.mubr.bf16.mxu0 %v1558
  %2239 = vmatmul.mubr.bf16.gmra.mrb[0].mxu0 %v1557
  %v2240 = vpop.f32.mrb[0].mxu0
  %v2241 = vadd.f32 %v2200, %v2240
  %v2242 = vpop.f32.mrb[0].mxu0
  %v2243 = vpop.f32.mrb[0].mxu0
  %v2244 = vadd.f32 %v2203, %v2243
  %v2245 = vpop.f32.mrb[0].mxu0
  %2246 = vdwg.mxu0
  %v2247 = vmul.f32 %v2241, 0.00390625
  %v2248 = vmul.f32 %v2244, 0.00390625
  %v2249 = vpack.c.bf16 %v2248, %v2247
  %v2250 = vld [vmem:[%s4] sm:$0xf]
  %v2251 = vld [vmem:[%s5] sm:$0x1]
  %v2253 = vlaneseq
  %v2254 = vshrl.u32 %v2253, 7
  %v2255 = vsub.s32 0, %v2254
  %v2256 = vrot.slane %v2251, %v2255
  %vm2258 = vcmask 64512
  %v2260 = vsel %vm2258, %v2249, 0
  %vm2262 = vcmask 1043456
  %v2264 = vsel %vm2262, %v2250, 0
  %2266 = vmatprep.subr.bf16.mxu0 0
  %2267 = vmatpush1.bf16.msra.mxu0 %v2264
  %2268 = vmatprep.subr.bf16.mxu0 0
  %2269 = vmatpush1.bf16.msra.mxu0 0
  %2270 = vmatprep.subr.bf16.mxu0 0
  %2271 = vmatpush1.bf16.msra.mxu0 0
  %2272 = vmatprep.subr.bf16.mxu0 0
  %2273 = vmatpush1.bf16.msra.mxu0 0
  %2274 = vmatprep.subr.bf16.mxu0 0
  %2275 = vmatpush1.bf16.msra.mxu0 0
  %2276 = vmatprep.subr.bf16.mxu0 0
  %2277 = vmatpush1.bf16.msra.mxu0 0
  %2278 = vmatprep.subr.bf16.mxu0 0
  %2279 = vmatpush1.bf16.msra.mxu0 0
  %2280 = vmatprep.subr.bf16.mxu0 0
  %2281 = vmatpush1.bf16.msra.mxu0 0
  %2282 = vmatprep.subr.bf16.mxu0 0
  %2283 = vmatpush1.bf16.msra.mxu0 0
  %2284 = vmatprep.subr.bf16.mxu0 0
  %2285 = vmatpush1.bf16.msra.mxu0 0
  %2286 = vmatprep.subr.bf16.mxu0 0
  %2287 = vmatpush1.bf16.msra.mxu0 0
  %2288 = vmatprep.subr.bf16.mxu0 0
  %2289 = vmatpush1.bf16.msra.mxu0 0
  %2290 = vmatprep.subr.bf16.mxu0 0
  %2291 = vmatpush1.bf16.msra.mxu0 0
  %2292 = vmatprep.subr.bf16.mxu0 0
  %2293 = vmatpush1.bf16.msra.mxu0 0
  %2294 = vmatprep.subr.bf16.mxu0 0
  %2295 = vmatpush1.bf16.msra.mxu0 0
  %2296 = vmatprep.subr.bf16.mxu0 0
  %2297 = vmatpush1.bf16.msra.mxu0 0
  %2298 = vmatprep.mubr.bf16.mxu0 0
  %2299 = vmatmul.mubr.bf16.gmra.mrb[0].mxu0 %v2260
  %v2300 = vpop.f32.mrb[0].mxu0
  %v2301 = vadd.f32 %v2256, %v2300
  %v2302 = vpop.f32.mrb[0].mxu0
  %v2303 = vpop.f32.mrb[0].mxu0
  %v2304 = vadd.f32 %v2256, %v2303
  %v2305 = vpop.f32.mrb[0].mxu0
  %2306 = vdwg.mxu0
  %vm2307 = vcmask 1041408
  %v2308 = vsel %vm2307, %v2301, 0.0
  %v2309 = vpack.c.bf16 %v2308, %v2308
  %2310 = vst [vmem:[%s6] sm:$0xf] %v2309
  %v2312 = vrot.slane %v2301, 2
  %v2314 = vsel %vm2307, %v2312, 0.0
  %v2315 = vpack.c.bf16 %v2314, %v2314
  %s2316 = scalar_lea.vmem %s6, 4
  %2317 = vst [vmem:[%s2316] sm:$0xf] %v2315
  %v2318 = vrot.slane %v2301, 4
  %v2320 = vsel %vm2307, %v2318, 0.0
  %v2321 = vpack.c.bf16 %v2320, %v2320
  %s2322 = scalar_lea.vmem %s6, 8
  %2323 = vst [vmem:[%s2322] sm:$0xf] %v2321
  %v2324 = vrot.slane %v2301, 6
  %v2326 = vsel %vm2307, %v2324, 0.0
  %v2327 = vpack.c.bf16 %v2326, %v2326
  %s2328 = scalar_lea.vmem %s6, 12
  %2329 = vst [vmem:[%s2328] sm:$0xf] %v2327
  %v2330 = vsel %vm2307, %v2304, 0.0
  %v2331 = vpack.c.bf16 %v2330, %v2330
  %s2332 = scalar_lea.vmem %s6, 16
  %2333 = vst [vmem:[%s2332] sm:$0xf] %v2331
  %v2335 = vrot.slane %v2304, 2
  %v2337 = vsel %vm2307, %v2335, 0.0
  %v2338 = vpack.c.bf16 %v2337, %v2337
  %s2339 = scalar_lea.vmem %s6, 20
  %2340 = vst [vmem:[%s2339] sm:$0xf] %v2338
  %v2341 = vrot.slane %v2304, 4
  %v2343 = vsel %vm2307, %v2341, 0.0
  %v2344 = vpack.c.bf16 %v2343, %v2343
  %s2345 = scalar_lea.vmem %s6, 24
  %2346 = vst [vmem:[%s2345] sm:$0xf] %v2344
  %v2347 = vrot.slane %v2304, 6
  %v2349 = vsel %vm2307, %v2347, 0.0
  %v2350 = vpack.c.bf16 %v2349, %v2349
  %s2351 = scalar_lea.vmem %s6, 28
  %2352 = vst [vmem:[%s2351] sm:$0xf] %v2350
  // Predicated region
  $region26: #{efficient_gru_forward.2} parent=0 // pred_check
    _
  $region27: #{efficient_gru_forward.2} parent=0 // pred_check_branch
    %2354 = sbr.rel (0) target = $region29
  $region28: #{efficient_gru_forward.2} parent=0 // pred_region
    _
  $region29: #{efficient_gru_forward.2} parent=0 // pred_fallthru
    _
  // Predicated region
  $region30: #{efficient_gru_forward.2} parent=0 // pred_check
    _
  $region31: #{efficient_gru_forward.2} parent=0 // pred_check_branch
    %2356 = sbr.rel (0) target = $region33
  $region32: #{efficient_gru_forward.2} parent=0 // pred_region
    _
  $region33: #{efficient_gru_forward.2} parent=0 // pred_fallthru
    _

// kernel: efficient_gru_forward.3
$region0: #{efficient_gru_forward.3}
  #allocation0 [shape = 'u32[]', space=smem, size = 0x4, offset = 0x4, fixed_abs, tag = 'smem constant byte address 0x4 - core index']
  #allocation1 [shape = 'u32[144,128]{1,0:T(1,128)}', space=vmem, size = 0x12000, scoped, tag = 'internal scratch']
  #allocation2 [shape = 'f32[8,8,384]{2,1,0:T(8,128)}', space=vmem, size = 0x18000, scoped, tag = 'scratch operand']
  #allocation3 [shape = 'f32[8,8,384]{2,1,0:T(8,128)}', space=vmem, size = 0x18000, scoped, tag = 'scratch operand']
  #allocation4 [shape = 'f32[8,8,384]{2,1,0:T(8,128)}', space=vmem, size = 0x18000, scoped, tag = 'scratch operand']
  #allocation5 [shape = 'f32[8,8,128]{2,1,0:T(8,128)}', space=vmem, size = 0x8000, scoped, tag = 'scratch operand']
  #allocation6 [shape = 'f32[8,8,128]{2,1,0:T(8,128)}', space=vmem, size = 0x8000, scoped, tag = 'scratch operand']
  %s0 = inlined_call_operand.vmem [shape: bf16[8,8,128], index: 0, kind: input, shape index: {}]
  %s1 = inlined_call_operand.vmem [shape: bf16[128,768], index: 1, kind: input, shape index: {}]
  %s2 = inlined_call_operand.vmem [shape: bf16[2,128,384], index: 2, kind: input, shape index: {}]
  %s3 = inlined_call_operand.vmem [shape: f32[2,1,384], index: 3, kind: input, shape index: {}]
  %s4 = inlined_call_operand.vmem [shape: f32[2,1,128], index: 4, kind: input, shape index: {}]
  %s5 = inlined_call_operand.vmem [shape: bf16[256,384], index: 5, kind: input, shape index: {}]
  %s6 = inlined_call_operand.vmem [shape: bf16[256,384], index: 6, kind: input, shape index: {}]
  %s7 = inlined_call_operand.vmem [shape: bf16[2,128,384], index: 7, kind: input, shape index: {}]
  %s8 = inlined_call_operand.vmem [shape: f32[2,1,384], index: 8, kind: input, shape index: {}]
  %s9 = inlined_call_operand.vmem [shape: f32[2,1,128], index: 9, kind: input, shape index: {}]
  %s10 = inlined_call_operand.vmem [shape: f32[256,128], index: 10, kind: input, shape index: {}]
  %s11 = inlined_call_operand.vmem [shape: f32[1,128], index: 11, kind: input, shape index: {}]
  %s12 = inlined_call_operand.vmem [shape: f32[128,2], index: 12, kind: input, shape index: {}]
  %s13 = inlined_call_operand.vmem [shape: f32[1,2], index: 13, kind: input, shape index: {}]
  %s14 = inlined_call_operand.hbm [shape: f32[2,2], index: 14, kind: output, shape index: {}]
  %s15 = sld [smem:[#allocation0]]
  $region66: #{efficient_gru_forward.3} parent=0
    _
  %s17 = ssub.s32 1, %s15
  %s18 = scalar_select 0, %s17, %s15
  $region1: #{efficient_gru_forward.3} parent=0
    #allocation7 [shape = 'u8[1024]{0}', space=vmem, size = 0x400, scoped, tag = 'output window, operand 0, single buffered']
    #allocation8 [shape = 's32[1]{0}', space=sflag, size = 0x4, scoped, tag = 'scoped memory for efficient_gru_forward.3']
    %19 = vsyncpa [#allocation8], 0
    // Predicated region
    $region2: #{efficient_gru_forward.3} parent=1 // pred_check
      _
    $region3: #{efficient_gru_forward.3} parent=1 // pred_check_branch
      %21 = sbr.rel (0) target = $region5
    $region4: #{efficient_gru_forward.3} parent=1 // pred_region
      _
    $region5: #{efficient_gru_forward.3} parent=1 // pred_fallthru
      _
    // Predicated region
    $region6: #{efficient_gru_forward.3} parent=1 // pred_check
      _
    $region7: #{efficient_gru_forward.3} parent=1 // pred_check_branch
      %23 = sbr.rel (0) target = $region9
    $region8: #{efficient_gru_forward.3} parent=1 // pred_region
      _
    $region9: #{efficient_gru_forward.3} parent=1 // pred_fallthru
      _
    // Predicated region
    $region10: #{efficient_gru_forward.3} parent=1 // pred_check
      _
    $region11: #{efficient_gru_forward.3} parent=1 // pred_check_branch
      %25 = sbr.rel (0) target = $region13
    $region12: #{efficient_gru_forward.3} parent=1 // pred_region
      _
    $region13: #{efficient_gru_forward.3} parent=1 // pred_fallthru
      _
    // Predicated region
    $region14: #{efficient_gru_forward.3} parent=1 // pred_check
      _
    $region15: #{efficient_gru_forward.3} parent=1 // pred_check_branch
      %27 = sbr.rel (0) target = $region17
    $region16: #{efficient_gru_forward.3} parent=1 // pred_region
      _
    $region17: #{efficient_gru_forward.3} parent=1 // pred_fallthru
      _
    // Predicated region
    $region18: #{efficient_gru_forward.3} parent=1 // pred_check
      _
    $region19: #{efficient_gru_forward.3} parent=1 // pred_check_branch
      %29 = sbr.rel (0) target = $region21
    $region20: #{efficient_gru_forward.3} parent=1 // pred_region
      _
    $region21: #{efficient_gru_forward.3} parent=1 // pred_fallthru
      _
    // Predicated region
    $region22: #{efficient_gru_forward.3} parent=1 // pred_check
      _
    $region23: #{efficient_gru_forward.3} parent=1 // pred_check_branch
      %31 = sbr.rel (0) target = $region25
    $region24: #{efficient_gru_forward.3} parent=1 // pred_region
      _
    $region25: #{efficient_gru_forward.3} parent=1 // pred_fallthru
      _
    // Predicated region
    $region26: #{efficient_gru_forward.3} parent=1 // pred_check
      _
    $region27: #{efficient_gru_forward.3} parent=1 // pred_check_branch
      %33 = sbr.rel (0) target = $region29
    $region28: #{efficient_gru_forward.3} parent=1 // pred_region
      _
    $region29: #{efficient_gru_forward.3} parent=1 // pred_fallthru
      _
    // Predicated region
    $region30: #{efficient_gru_forward.3} parent=1 // pred_check
      _
    $region31: #{efficient_gru_forward.3} parent=1 // pred_check_branch
      %35 = sbr.rel (0) target = $region33
    $region32: #{efficient_gru_forward.3} parent=1 // pred_region
      _
    $region33: #{efficient_gru_forward.3} parent=1 // pred_fallthru
      _
    // Predicated region
    $region34: #{efficient_gru_forward.3} parent=1 // pred_check
      _
    $region35: #{efficient_gru_forward.3} parent=1 // pred_check_branch
      %37 = sbr.rel (0) target = $region37
    $region36: #{efficient_gru_forward.3} parent=1 // pred_region
      _
    $region37: #{efficient_gru_forward.3} parent=1 // pred_fallthru
      _
    // Predicated region
    $region38: #{efficient_gru_forward.3} parent=1 // pred_check
      _
    $region39: #{efficient_gru_forward.3} parent=1 // pred_check_branch
      %39 = sbr.rel (0) target = $region41
    $region40: #{efficient_gru_forward.3} parent=1 // pred_region
      _
    $region41: #{efficient_gru_forward.3} parent=1 // pred_fallthru
      _
    // Predicated region
    $region42: #{efficient_gru_forward.3} parent=1 // pred_check
      _
    $region43: #{efficient_gru_forward.3} parent=1 // pred_check_branch
      %41 = sbr.rel (0) target = $region45
    $region44: #{efficient_gru_forward.3} parent=1 // pred_region
      _
    $region45: #{efficient_gru_forward.3} parent=1 // pred_fallthru
      _
    // Predicated region
    $region46: #{efficient_gru_forward.3} parent=1 // pred_check
      _
    $region47: #{efficient_gru_forward.3} parent=1 // pred_check_branch
      %43 = sbr.rel (0) target = $region49
    $region48: #{efficient_gru_forward.3} parent=1 // pred_region
      _
    $region49: #{efficient_gru_forward.3} parent=1 // pred_fallthru
      _
    // Predicated region
    $region50: #{efficient_gru_forward.3} parent=1 // pred_check
      _
    $region51: #{efficient_gru_forward.3} parent=1 // pred_check_branch
      %45 = sbr.rel (0) target = $region53
    $region52: #{efficient_gru_forward.3} parent=1 // pred_region
      _
    $region53: #{efficient_gru_forward.3} parent=1 // pred_fallthru
      _
    // Predicated region
    $region54: #{efficient_gru_forward.3} parent=1 // pred_check
      _
    $region55: #{efficient_gru_forward.3} parent=1 // pred_check_branch
      %47 = sbr.rel (0) target = $region57
    $region56: #{efficient_gru_forward.3} parent=1 // pred_region
      _
    $region57: #{efficient_gru_forward.3} parent=1 // pred_fallthru
      _
    %v49 = vld [vmem:[%s0] sm:$0xf]
    %v50 = vld [vmem:[%s0 + $0x4] sm:$0xf]
    %v51 = vld [vmem:[%s0 + $0x8] sm:$0xf]
    %v52 = vld [vmem:[%s0 + $0xc] sm:$0xf]
    %v53 = vld [vmem:[%s0 + $0x10] sm:$0xf]
    %v54 = vld [vmem:[%s0 + $0x14] sm:$0xf]
    %v55 = vld [vmem:[%s0 + $0x18] sm:$0xf]
    %v56 = vld [vmem:[%s0 + $0x1c] sm:$0xf]
    %v57 = vld [vmem:[%s1] sm:$0xff]
    %v58 = vld [vmem:[%s1 + $0x8] sm:$0xff]
    %v59 = vld [vmem:[%s1 + $0x10] sm:$0xff]
    %v60 = vld [vmem:[%s1 + $0x18] sm:$0xff]
    %v61 = vld [vmem:[%s1 + $0x20] sm:$0xff]
    %v62 = vld [vmem:[%s1 + $0x28] sm:$0xff]
    %v63 = vld [vmem:[%s1 + $0x30] sm:$0xff]
    %v64 = vld [vmem:[%s1 + $0x38] sm:$0xff]
    %v65 = vld [vmem:[%s1 + $0x40] sm:$0xff]
    %v66 = vld [vmem:[%s1 + $0x48] sm:$0xff]
    %v67 = vld [vmem:[%s1 + $0x50] sm:$0xff]
    %v68 = vld [vmem:[%s1 + $0x58] sm:$0xff]
    %v69 = vld [vmem:[%s1 + $0x60] sm:$0xff]
    %v70 = vld [vmem:[%s1 + $0x68] sm:$0xff]
    %v71 = vld [vmem:[%s1 + $0x70] sm:$0xff]
    %v72 = vld [vmem:[%s1 + $0x78] sm:$0xff]
    %v73 = vld [vmem:[%s1 + $0x80] sm:$0xff]
    %v74 = vld [vmem:[%s1 + $0x88] sm:$0xff]
    %v75 = vld [vmem:[%s1 + $0x90] sm:$0xff]
    %v76 = vld [vmem:[%s1 + $0x98] sm:$0xff]
    %v77 = vld [vmem:[%s1 + $0xa0] sm:$0xff]
    %v78 = vld [vmem:[%s1 + $0xa8] sm:$0xff]
    %v79 = vld [vmem:[%s1 + $0xb0] sm:$0xff]
    %v80 = vld [vmem:[%s1 + $0xb8] sm:$0xff]
    %v81 = vld [vmem:[%s1 + $0xc0] sm:$0xff]
    %v82 = vld [vmem:[%s1 + $0xc8] sm:$0xff]
    %v83 = vld [vmem:[%s1 + $0xd0] sm:$0xff]
    %v84 = vld [vmem:[%s1 + $0xd8] sm:$0xff]
    %v85 = vld [vmem:[%s1 + $0xe0] sm:$0xff]
    %v86 = vld [vmem:[%s1 + $0xe8] sm:$0xff]
    %v87 = vld [vmem:[%s1 + $0xf0] sm:$0xff]
    %v88 = vld [vmem:[%s1 + $0xf8] sm:$0xff]
    %v89 = vld [vmem:[%s1 + $0x100] sm:$0xff]
    %v90 = vld [vmem:[%s1 + $0x108] sm:$0xff]
    %v91 = vld [vmem:[%s1 + $0x110] sm:$0xff]
    %v92 = vld [vmem:[%s1 + $0x118] sm:$0xff]
    %v93 = vld [vmem:[%s1 + $0x120] sm:$0xff]
    %v94 = vld [vmem:[%s1 + $0x128] sm:$0xff]
    %v95 = vld [vmem:[%s1 + $0x130] sm:$0xff]
    %v96 = vld [vmem:[%s1 + $0x138] sm:$0xff]
    %v97 = vld [vmem:[%s1 + $0x140] sm:$0xff]
    %v98 = vld [vmem:[%s1 + $0x148] sm:$0xff]
    %v99 = vld [vmem:[%s1 + $0x150] sm:$0xff]
    %v100 = vld [vmem:[%s1 + $0x158] sm:$0xff]
    %v101 = vld [vmem:[%s1 + $0x160] sm:$0xff]
    %v102 = vld [vmem:[%s1 + $0x168] sm:$0xff]
    %v103 = vld [vmem:[%s1 + $0x170] sm:$0xff]
    %v104 = vld [vmem:[%s1 + $0x178] sm:$0xff]
    %v113 = vunpack.c.l.b16 %v49
    %v114 = vunpack.c.l.b16 %v50
    %v115 = vunpack.c.l.b16 %v51
    %v116 = vunpack.c.l.b16 %v52
    %v117 = vunpack.c.l.b16 %v53
    %v118 = vunpack.c.l.b16 %v54
    %v119 = vunpack.c.l.b16 %v55
    %v120 = vunpack.c.l.b16 %v56
    %v121 = vpack.c.b16 %v114, %v113
    %v122 = vpack.c.b16 %v116, %v115
    %v123 = vpack.c.b16 %v118, %v117
    %v124 = vpack.c.b16 %v120, %v119
    %v177 = vunpack.c.l.b16 %v57
    %v178 = vunpack.c.h.b16 %v57
    %v179 = vunpack.c.l.b16 %v58
    %v180 = vunpack.c.h.b16 %v58
    %v181 = vunpack.c.l.b16 %v59
    %v182 = vunpack.c.h.b16 %v59
    %v183 = vunpack.c.l.b16 %v60
    %v184 = vunpack.c.h.b16 %v60
    %v185 = vunpack.c.l.b16 %v61
    %v186 = vunpack.c.h.b16 %v61
    %v187 = vunpack.c.l.b16 %v62
    %v188 = vunpack.c.h.b16 %v62
    %v189 = vunpack.c.l.b16 %v63
    %v190 = vunpack.c.h.b16 %v63
    %v191 = vunpack.c.l.b16 %v64
    %v192 = vunpack.c.h.b16 %v64
    %v193 = vunpack.c.l.b16 %v65
    %v194 = vunpack.c.h.b16 %v65
    %v195 = vunpack.c.l.b16 %v66
    %v196 = vunpack.c.h.b16 %v66
    %v197 = vunpack.c.l.b16 %v67
    %v198 = vunpack.c.h.b16 %v67
    %v199 = vunpack.c.l.b16 %v68
    %v200 = vunpack.c.h.b16 %v68
    %v201 = vunpack.c.l.b16 %v69
    %v202 = vunpack.c.h.b16 %v69
    %v203 = vunpack.c.l.b16 %v70
    %v204 = vunpack.c.h.b16 %v70
    %v205 = vunpack.c.l.b16 %v71
    %v206 = vunpack.c.h.b16 %v71
    %v207 = vunpack.c.l.b16 %v72
    %v208 = vunpack.c.h.b16 %v72
    %v209 = vunpack.c.l.b16 %v73
    %v210 = vunpack.c.h.b16 %v73
    %v211 = vunpack.c.l.b16 %v74
    %v212 = vunpack.c.h.b16 %v74
    %v213 = vunpack.c.l.b16 %v75
    %v214 = vunpack.c.h.b16 %v75
    %v215 = vunpack.c.l.b16 %v76
    %v216 = vunpack.c.h.b16 %v76
    %v217 = vunpack.c.l.b16 %v77
    %v218 = vunpack.c.h.b16 %v77
    %v219 = vunpack.c.l.b16 %v78
    %v220 = vunpack.c.h.b16 %v78
    %v221 = vunpack.c.l.b16 %v79
    %v222 = vunpack.c.h.b16 %v79
    %v223 = vunpack.c.l.b16 %v80
    %v224 = vunpack.c.h.b16 %v80
    %v225 = vunpack.c.l.b16 %v81
    %v226 = vunpack.c.h.b16 %v81
    %v227 = vunpack.c.l.b16 %v82
    %v228 = vunpack.c.h.b16 %v82
    %v229 = vunpack.c.l.b16 %v83
    %v230 = vunpack.c.h.b16 %v83
    %v231 = vunpack.c.l.b16 %v84
    %v232 = vunpack.c.h.b16 %v84
    %v233 = vunpack.c.l.b16 %v85
    %v234 = vunpack.c.h.b16 %v85
    %v235 = vunpack.c.l.b16 %v86
    %v236 = vunpack.c.h.b16 %v86
    %v237 = vunpack.c.l.b16 %v87
    %v238 = vunpack.c.h.b16 %v87
    %v239 = vunpack.c.l.b16 %v88
    %v240 = vunpack.c.h.b16 %v88
    %v241 = vunpack.c.l.b16 %v89
    %v242 = vunpack.c.h.b16 %v89
    %v243 = vunpack.c.l.b16 %v90
    %v244 = vunpack.c.h.b16 %v90
    %v245 = vunpack.c.l.b16 %v91
    %v246 = vunpack.c.h.b16 %v91
    %v247 = vunpack.c.l.b16 %v92
    %v248 = vunpack.c.h.b16 %v92
    %v249 = vunpack.c.l.b16 %v93
    %v250 = vunpack.c.h.b16 %v93
    %v251 = vunpack.c.l.b16 %v94
    %v252 = vunpack.c.h.b16 %v94
    %v253 = vunpack.c.l.b16 %v95
    %v254 = vunpack.c.h.b16 %v95
    %v255 = vunpack.c.l.b16 %v96
    %v256 = vunpack.c.h.b16 %v96
    %v257 = vunpack.c.l.b16 %v97
    %v258 = vunpack.c.h.b16 %v97
    %v259 = vunpack.c.l.b16 %v98
    %v260 = vunpack.c.h.b16 %v98
    %v261 = vunpack.c.l.b16 %v99
    %v262 = vunpack.c.h.b16 %v99
    %v263 = vunpack.c.l.b16 %v100
    %v264 = vunpack.c.h.b16 %v100
    %v265 = vunpack.c.l.b16 %v101
    %v266 = vunpack.c.h.b16 %v101
    %v267 = vunpack.c.l.b16 %v102
    %v268 = vunpack.c.h.b16 %v102
    %v269 = vunpack.c.l.b16 %v103
    %v270 = vunpack.c.h.b16 %v103
    %v271 = vunpack.c.l.b16 %v104
    %v272 = vunpack.c.h.b16 %v104
    %v273 = vpack.c.b16 %v183, %v177
    %v274 = vpack.c.b16 %v184, %v178
    %v275 = vpack.c.b16 %v185, %v179
    %v276 = vpack.c.b16 %v186, %v180
    %v277 = vpack.c.b16 %v187, %v181
    %v278 = vpack.c.b16 %v188, %v182
    %v279 = vpack.c.b16 %v195, %v189
    %v280 = vpack.c.b16 %v196, %v190
    %v281 = vpack.c.b16 %v197, %v191
    %v282 = vpack.c.b16 %v198, %v192
    %v283 = vpack.c.b16 %v199, %v193
    %v284 = vpack.c.b16 %v200, %v194
    %v285 = vpack.c.b16 %v207, %v201
    %v286 = vpack.c.b16 %v208, %v202
    %v287 = vpack.c.b16 %v209, %v203
    %v288 = vpack.c.b16 %v210, %v204
    %v289 = vpack.c.b16 %v211, %v205
    %v290 = vpack.c.b16 %v212, %v206
    %v291 = vpack.c.b16 %v219, %v213
    %v292 = vpack.c.b16 %v220, %v214
    %v293 = vpack.c.b16 %v221, %v215
    %v294 = vpack.c.b16 %v222, %v216
    %v295 = vpack.c.b16 %v223, %v217
    %v296 = vpack.c.b16 %v224, %v218
    %v297 = vpack.c.b16 %v231, %v225
    %v298 = vpack.c.b16 %v232, %v226
    %v299 = vpack.c.b16 %v233, %v227
    %v300 = vpack.c.b16 %v234, %v228
    %v301 = vpack.c.b16 %v235, %v229
    %v302 = vpack.c.b16 %v236, %v230
    %v303 = vpack.c.b16 %v243, %v237
    %v304 = vpack.c.b16 %v244, %v238
    %v305 = vpack.c.b16 %v245, %v239
    %v306 = vpack.c.b16 %v246, %v240
    %v307 = vpack.c.b16 %v247, %v241
    %v308 = vpack.c.b16 %v248, %v242
    %v309 = vpack.c.b16 %v255, %v249
    %v310 = vpack.c.b16 %v256, %v250
    %v311 = vpack.c.b16 %v257, %v251
    %v312 = vpack.c.b16 %v258, %v252
    %v313 = vpack.c.b16 %v259, %v253
    %v314 = vpack.c.b16 %v260, %v254
    %v315 = vpack.c.b16 %v267, %v261
    %v316 = vpack.c.b16 %v268, %v262
    %v317 = vpack.c.b16 %v269, %v263
    %v318 = vpack.c.b16 %v270, %v264
    %v319 = vpack.c.b16 %v271, %v265
    %v320 = vpack.c.b16 %v272, %v266
    %369 = vmatprep.subr.bf16.mxu0 %v274
    %370 = vmatpush1.bf16.msra.mxu0 %v273
    %371 = vmatprep.subr.bf16.mxu0 %v280
    %372 = vmatpush1.bf16.msra.mxu0 %v279
    %373 = vmatprep.subr.bf16.mxu0 %v286
    %374 = vmatpush1.bf16.msra.mxu0 %v285
    %375 = vmatprep.subr.bf16.mxu0 %v292
    %376 = vmatpush1.bf16.msra.mxu0 %v291
    %377 = vmatprep.subr.bf16.mxu0 %v298
    %378 = vmatpush1.bf16.msra.mxu0 %v297
    %379 = vmatprep.subr.bf16.mxu0 %v304
    %380 = vmatpush1.bf16.msra.mxu0 %v303
    %381 = vmatprep.subr.bf16.mxu0 %v310
    %382 = vmatpush1.bf16.msra.mxu0 %v309
    %383 = vmatprep.subr.bf16.mxu0 %v316
    %384 = vmatpush1.bf16.msra.mxu0 %v315
    %385 = vmatprep.subr.bf16.mxu0 0
    %386 = vmatpush1.bf16.msra.mxu0 0
    %387 = vmatprep.subr.bf16.mxu0 0
    %388 = vmatpush1.bf16.msra.mxu0 0
    %389 = vmatprep.subr.bf16.mxu0 0
    %390 = vmatpush1.bf16.msra.mxu0 0
    %391 = vmatprep.subr.bf16.mxu0 0
    %392 = vmatpush1.bf16.msra.mxu0 0
    %393 = vmatprep.subr.bf16.mxu0 0
    %394 = vmatpush1.bf16.msra.mxu0 0
    %395 = vmatprep.subr.bf16.mxu0 0
    %396 = vmatpush1.bf16.msra.mxu0 0
    %397 = vmatprep.subr.bf16.mxu0 0
    %398 = vmatpush1.bf16.msra.mxu0 0
    %399 = vmatprep.subr.bf16.mxu0 0
    %400 = vmatpush1.bf16.msra.mxu0 0
    %401 = vmatprep.mubr.bf16.mxu0 0
    %402 = vmatmul.mubr.bf16.gmra.mrb[0].mxu0 %v121
    %v403 = vpop.f32.mrb[0].mxu0
    %v404 = vadd.f32 0.0, %v403
    %v405 = vpop.f32.mrb[0].mxu0
    %v406 = vadd.f32 0.0, %v405
    %v407 = vpop.f32.mrb[0].mxu0
    %v408 = vadd.f32 0.0, %v407
    %v409 = vpop.f32.mrb[0].mxu0
    %v410 = vadd.f32 0.0, %v409
    %411 = vmatprep.mubr.bf16.mxu0 0
    %412 = vmatmul.mubr.bf16.gmra.mrb[0].mxu0 %v122
    %v413 = vpop.f32.mrb[0].mxu0
    %v414 = vadd.f32 0.0, %v413
    %v415 = vpop.f32.mrb[0].mxu0
    %v416 = vadd.f32 0.0, %v415
    %v417 = vpop.f32.mrb[0].mxu0
    %v418 = vadd.f32 0.0, %v417
    %v419 = vpop.f32.mrb[0].mxu0
    %v420 = vadd.f32 0.0, %v419
    %421 = vmatprep.mubr.bf16.mxu0 0
    %422 = vmatmul.mubr.bf16.gmra.mrb[0].mxu0 %v123
    %v423 = vpop.f32.mrb[0].mxu0
    %v424 = vadd.f32 0.0, %v423
    %v425 = vpop.f32.mrb[0].mxu0
    %v426 = vadd.f32 0.0, %v425
    %v427 = vpop.f32.mrb[0].mxu0
    %v428 = vadd.f32 0.0, %v427
    %v429 = vpop.f32.mrb[0].mxu0
    %v430 = vadd.f32 0.0, %v429
    %431 = vmatprep.mubr.bf16.mxu0 0
    %432 = vmatmul.mubr.bf16.gmra.mrb[0].mxu0 %v124
    %v433 = vpop.f32.mrb[0].mxu0
    %v434 = vadd.f32 0.0, %v433
    %v435 = vpop.f32.mrb[0].mxu0
    %v436 = vadd.f32 0.0, %v435
    %v437 = vpop.f32.mrb[0].mxu0
    %v438 = vadd.f32 0.0, %v437
    %v439 = vpop.f32.mrb[0].mxu0
    %v440 = vadd.f32 0.0, %v439
    %441 = vdwg.mxu0
    %442 = vmatprep.subr.bf16.mxu0 %v276
    %443 = vmatpush1.bf16.msra.mxu0 %v275
    %444 = vmatprep.subr.bf16.mxu0 %v282
    %445 = vmatpush1.bf16.msra.mxu0 %v281
    %446 = vmatprep.subr.bf16.mxu0 %v288
    %447 = vmatpush1.bf16.msra.mxu0 %v287
    %448 = vmatprep.subr.bf16.mxu0 %v294
    %449 = vmatpush1.bf16.msra.mxu0 %v293
    %450 = vmatprep.subr.bf16.mxu0 %v300
    %451 = vmatpush1.bf16.msra.mxu0 %v299
    %452 = vmatprep.subr.bf16.mxu0 %v306
    %453 = vmatpush1.bf16.msra.mxu0 %v305
    %454 = vmatprep.subr.bf16.mxu0 %v312
    %455 = vmatpush1.bf16.msra.mxu0 %v311
    %456 = vmatprep.subr.bf16.mxu0 %v318
    %457 = vmatpush1.bf16.msra.mxu0 %v317
    %458 = vmatprep.subr.bf16.mxu0 0
    %459 = vmatpush1.bf16.msra.mxu0 0
    %460 = vmatprep.subr.bf16.mxu0 0
    %461 = vmatpush1.bf16.msra.mxu0 0
    %462 = vmatprep.subr.bf16.mxu0 0
    %463 = vmatpush1.bf16.msra.mxu0 0
    %464 = vmatprep.subr.bf16.mxu0 0
    %465 = vmatpush1.bf16.msra.mxu0 0
    %466 = vmatprep.subr.bf16.mxu0 0
    %467 = vmatpush1.bf16.msra.mxu0 0
    %468 = vmatprep.subr.bf16.mxu0 0
    %469 = vmatpush1.bf16.msra.mxu0 0
    %470 = vmatprep.subr.bf16.mxu0 0
    %471 = vmatpush1.bf16.msra.mxu0 0
    %472 = vmatprep.subr.bf16.mxu0 0
    %473 = vmatpush1.bf16.msra.mxu0 0
    %474 = vmatprep.mubr.bf16.mxu0 0
    %475 = vmatmul.mubr.bf16.gmra.mrb[0].mxu0 %v121
    %v476 = vpop.f32.mrb[0].mxu0
    %v477 = vadd.f32 0.0, %v476
    %v478 = vpop.f32.mrb[0].mxu0
    %v479 = vadd.f32 0.0, %v478
    %v480 = vpop.f32.mrb[0].mxu0
    %v481 = vadd.f32 0.0, %v480
    %v482 = vpop.f32.mrb[0].mxu0
    %v483 = vadd.f32 0.0, %v482
    %484 = vmatprep.mubr.bf16.mxu0 0
    %485 = vmatmul.mubr.bf16.gmra.mrb[0].mxu0 %v122
    %v486 = vpop.f32.mrb[0].mxu0
    %v487 = vadd.f32 0.0, %v486
    %v488 = vpop.f32.mrb[0].mxu0
    %v489 = vadd.f32 0.0, %v488
    %v490 = vpop.f32.mrb[0].mxu0
    %v491 = vadd.f32 0.0, %v490
    %v492 = vpop.f32.mrb[0].mxu0
    %v493 = vadd.f32 0.0, %v492
    %494 = vmatprep.mubr.bf16.mxu0 0
    %495 = vmatmul.mubr.bf16.gmra.mrb[0].mxu0 %v123
    %v496 = vpop.f32.mrb[0].mxu0
    %v497 = vadd.f32 0.0, %v496
    %v498 = vpop.f32.mrb[0].mxu0
    %v499 = vadd.f32 0.0, %v498
    %v500 = vpop.f32.mrb[0].mxu0
    %v501 = vadd.f32 0.0, %v500
    %v502 = vpop.f32.mrb[0].mxu0
    %v503 = vadd.f32 0.0, %v502
    %504 = vmatprep.mubr.bf16.mxu0 0
    %505 = vmatmul.mubr.bf16.gmra.mrb[0].mxu0 %v124
    %v506 = vpop.f32.mrb[0].mxu0
    %v507 = vadd.f32 0.0, %v506
    %v508 = vpop.f32.mrb[0].mxu0
    %v509 = vadd.f32 0.0, %v508
    %v510 = vpop.f32.mrb[0].mxu0
    %v511 = vadd.f32 0.0, %v510
    %v512 = vpop.f32.mrb[0].mxu0
    %v513 = vadd.f32 0.0, %v512
    %514 = vdwg.mxu0
    %515 = vmatprep.subr.bf16.mxu0 %v278
    %516 = vmatpush1.bf16.msra.mxu0 %v277
    %517 = vmatprep.subr.bf16.mxu0 %v284
    %518 = vmatpush1.bf16.msra.mxu0 %v283
    %519 = vmatprep.subr.bf16.mxu0 %v290
    %520 = vmatpush1.bf16.msra.mxu0 %v289
    %521 = vmatprep.subr.bf16.mxu0 %v296
    %522 = vmatpush1.bf16.msra.mxu0 %v295
    %523 = vmatprep.subr.bf16.mxu0 %v302
    %524 = vmatpush1.bf16.msra.mxu0 %v301
    %525 = vmatprep.subr.bf16.mxu0 %v308
    %526 = vmatpush1.bf16.msra.mxu0 %v307
    %527 = vmatprep.subr.bf16.mxu0 %v314
    %528 = vmatpush1.bf16.msra.mxu0 %v313
    %529 = vmatprep.subr.bf16.mxu0 %v320
    %530 = vmatpush1.bf16.msra.mxu0 %v319
    %531 = vmatprep.subr.bf16.mxu0 0
    %532 = vmatpush1.bf16.msra.mxu0 0
    %533 = vmatprep.subr.bf16.mxu0 0
    %534 = vmatpush1.bf16.msra.mxu0 0
    %535 = vmatprep.subr.bf16.mxu0 0
    %536 = vmatpush1.bf16.msra.mxu0 0
    %537 = vmatprep.subr.bf16.mxu0 0
    %538 = vmatpush1.bf16.msra.mxu0 0
    %539 = vmatprep.subr.bf16.mxu0 0
    %540 = vmatpush1.bf16.msra.mxu0 0
    %541 = vmatprep.subr.bf16.mxu0 0
    %542 = vmatpush1.bf16.msra.mxu0 0
    %543 = vmatprep.subr.bf16.mxu0 0
    %544 = vmatpush1.bf16.msra.mxu0 0
    %545 = vmatprep.subr.bf16.mxu0 0
    %546 = vmatpush1.bf16.msra.mxu0 0
    %547 = vmatprep.mubr.bf16.mxu0 0
    %548 = vmatmul.mubr.bf16.gmra.mrb[0].mxu0 %v121
    %v549 = vpop.f32.mrb[0].mxu0
    %v550 = vadd.f32 0.0, %v549
    %v551 = vpop.f32.mrb[0].mxu0
    %v552 = vadd.f32 0.0, %v551
    %v553 = vpop.f32.mrb[0].mxu0
    %v554 = vadd.f32 0.0, %v553
    %v555 = vpop.f32.mrb[0].mxu0
    %v556 = vadd.f32 0.0, %v555
    %557 = vmatprep.mubr.bf16.mxu0 0
    %558 = vmatmul.mubr.bf16.gmra.mrb[0].mxu0 %v122
    %v559 = vpop.f32.mrb[0].mxu0
    %v560 = vadd.f32 0.0, %v559
    %v561 = vpop.f32.mrb[0].mxu0
    %v562 = vadd.f32 0.0, %v561
    %v563 = vpop.f32.mrb[0].mxu0
    %v564 = vadd.f32 0.0, %v563
    %v565 = vpop.f32.mrb[0].mxu0
    %v566 = vadd.f32 0.0, %v565
    %567 = vmatprep.mubr.bf16.mxu0 0
    %568 = vmatmul.mubr.bf16.gmra.mrb[0].mxu0 %v123
    %v569 = vpop.f32.mrb[0].mxu0
    %v570 = vadd.f32 0.0, %v569
    %v571 = vpop.f32.mrb[0].mxu0
    %v572 = vadd.f32 0.0, %v571
    %v573 = vpop.f32.mrb[0].mxu0
    %v574 = vadd.f32 0.0, %v573
    %v575 = vpop.f32.mrb[0].mxu0
    %v576 = vadd.f32 0.0, %v575
    %577 = vmatprep.mubr.bf16.mxu0 0
    %578 = vmatmul.mubr.bf16.gmra.mrb[0].mxu0 %v124
    %v579 = vpop.f32.mrb[0].mxu0
    %v580 = vadd.f32 0.0, %v579
    %v581 = vpop.f32.mrb[0].mxu0
    %v582 = vadd.f32 0.0, %v581
    %v583 = vpop.f32.mrb[0].mxu0
    %v584 = vadd.f32 0.0, %v583
    %v585 = vpop.f32.mrb[0].mxu0
    %v586 = vadd.f32 0.0, %v585
    %587 = vdwg.mxu0
    %v588 = vld [vmem:[%s3] sm:$0x7]
    %v590 = vlaneseq
    %v591 = vshrl.u32 %v590, 7
    %v592 = vsub.s32 0, %v591
    %v593 = vrot.slane %v588, %v592
    %v594 = vlaneseq
    %v595 = vshrl.u32 %v594, 7
    %v596 = vsub.s32 1, %v595
    %v597 = vrot.slane %v588, %v596
    %v598 = vlaneseq
    %v599 = vshrl.u32 %v598, 7
    %v600 = vsub.s32 2, %v599
    %v601 = vrot.slane %v588, %v600
    %v605 = vadd.f32 %v404, %v593
    %v606 = vadd.f32 %v406, %v597
    %v607 = vadd.f32 %v477, %v601
    %v608 = vadd.f32 %v408, %v593
    %v609 = vadd.f32 %v410, %v597
    %v610 = vadd.f32 %v481, %v601
    %v611 = vadd.f32 %v414, %v593
    %v612 = vadd.f32 %v416, %v597
    %v613 = vadd.f32 %v487, %v601
    %v614 = vadd.f32 %v418, %v593
    %v615 = vadd.f32 %v420, %v597
    %v616 = vadd.f32 %v491, %v601
    %v617 = vadd.f32 %v424, %v593
    %v618 = vadd.f32 %v426, %v597
    %v619 = vadd.f32 %v497, %v601
    %v620 = vadd.f32 %v428, %v593
    %v621 = vadd.f32 %v430, %v597
    %v622 = vadd.f32 %v501, %v601
    %v623 = vadd.f32 %v434, %v593
    %v624 = vadd.f32 %v436, %v597
    %v625 = vadd.f32 %v507, %v601
    %v626 = vadd.f32 %v438, %v593
    %v627 = vadd.f32 %v440, %v597
    %v628 = vadd.f32 %v511, %v601
    %629 = vst [vmem:[#allocation2] sm:$0xff] %v605
    %630 = vst [vmem:[#allocation2 + $0x8] sm:$0xff] %v606
    %631 = vst [vmem:[#allocation2 + $0x10] sm:$0xff] %v607
    %632 = vst [vmem:[#allocation2 + $0x18] sm:$0xff] %v608
    %633 = vst [vmem:[#allocation2 + $0x20] sm:$0xff] %v609
    %634 = vst [vmem:[#allocation2 + $0x28] sm:$0xff] %v610
    %635 = vst [vmem:[#allocation2 + $0x30] sm:$0xff] %v611
    %636 = vst [vmem:[#allocation2 + $0x38] sm:$0xff] %v612
    %637 = vst [vmem:[#allocation2 + $0x40] sm:$0xff] %v613
    %638 = vst [vmem:[#allocation2 + $0x48] sm:$0xff] %v614
    %639 = vst [vmem:[#allocation2 + $0x50] sm:$0xff] %v615
    %640 = vst [vmem:[#allocation2 + $0x58] sm:$0xff] %v616
    %641 = vst [vmem:[#allocation2 + $0x60] sm:$0xff] %v617
    %642 = vst [vmem:[#allocation2 + $0x68] sm:$0xff] %v618
    %643 = vst [vmem:[#allocation2 + $0x70] sm:$0xff] %v619
    %644 = vst [vmem:[#allocation2 + $0x78] sm:$0xff] %v620
    %645 = vst [vmem:[#allocation2 + $0x80] sm:$0xff] %v621
    %646 = vst [vmem:[#allocation2 + $0x88] sm:$0xff] %v622
    %647 = vst [vmem:[#allocation2 + $0x90] sm:$0xff] %v623
    %648 = vst [vmem:[#allocation2 + $0x98] sm:$0xff] %v624
    %649 = vst [vmem:[#allocation2 + $0xa0] sm:$0xff] %v625
    %650 = vst [vmem:[#allocation2 + $0xa8] sm:$0xff] %v626
    %651 = vst [vmem:[#allocation2 + $0xb0] sm:$0xff] %v627
    %652 = vst [vmem:[#allocation2 + $0xb8] sm:$0xff] %v628
    %s653 = scalar_lea.vmem %s3, 3
    %v654 = vld [vmem:[%s653] sm:$0x7]
    %v656 = vlaneseq
    %v657 = vshrl.u32 %v656, 7
    %v658 = vsub.s32 0, %v657
    %v659 = vrot.slane %v654, %v658
    %v660 = vlaneseq
    %v661 = vshrl.u32 %v660, 7
    %v662 = vsub.s32 1, %v661
    %v663 = vrot.slane %v654, %v662
    %v664 = vlaneseq
    %v665 = vshrl.u32 %v664, 7
    %v666 = vsub.s32 2, %v665
    %v667 = vrot.slane %v654, %v666
    %v671 = vadd.f32 %v479, %v659
    %v672 = vadd.f32 %v550, %v663
    %v673 = vadd.f32 %v552, %v667
    %v674 = vadd.f32 %v483, %v659
    %v675 = vadd.f32 %v554, %v663
    %v676 = vadd.f32 %v556, %v667
    %v677 = vadd.f32 %v489, %v659
    %v678 = vadd.f32 %v560, %v663
    %v679 = vadd.f32 %v562, %v667
    %v680 = vadd.f32 %v493, %v659
    %v681 = vadd.f32 %v564, %v663
    %v682 = vadd.f32 %v566, %v667
    %v683 = vadd.f32 %v499, %v659
    %v684 = vadd.f32 %v570, %v663
    %v685 = vadd.f32 %v572, %v667
    %v686 = vadd.f32 %v503, %v659
    %v687 = vadd.f32 %v574, %v663
    %v688 = vadd.f32 %v576, %v667
    %v689 = vadd.f32 %v509, %v659
    %v690 = vadd.f32 %v580, %v663
    %v691 = vadd.f32 %v582, %v667
    %v692 = vadd.f32 %v513, %v659
    %v693 = vadd.f32 %v584, %v663
    %v694 = vadd.f32 %v586, %v667
    %695 = vst [vmem:[#allocation3] sm:$0xff] %v671
    %696 = vst [vmem:[#allocation3 + $0x8] sm:$0xff] %v672
    %697 = vst [vmem:[#allocation3 + $0x10] sm:$0xff] %v673
    %698 = vst [vmem:[#allocation3 + $0x18] sm:$0xff] %v674
    %699 = vst [vmem:[#allocation3 + $0x20] sm:$0xff] %v675
    %700 = vst [vmem:[#allocation3 + $0x28] sm:$0xff] %v676
    %701 = vst [vmem:[#allocation3 + $0x30] sm:$0xff] %v677
    %702 = vst [vmem:[#allocation3 + $0x38] sm:$0xff] %v678
    %703 = vst [vmem:[#allocation3 + $0x40] sm:$0xff] %v679
    %704 = vst [vmem:[#allocation3 + $0x48] sm:$0xff] %v680
    %705 = vst [vmem:[#allocation3 + $0x50] sm:$0xff] %v681
    %706 = vst [vmem:[#allocation3 + $0x58] sm:$0xff] %v682
    %707 = vst [vmem:[#allocation3 + $0x60] sm:$0xff] %v683
    %708 = vst [vmem:[#allocation3 + $0x68] sm:$0xff] %v684
    %709 = vst [vmem:[#allocation3 + $0x70] sm:$0xff] %v685
    %710 = vst [vmem:[#allocation3 + $0x78] sm:$0xff] %v686
    %711 = vst [vmem:[#allocation3 + $0x80] sm:$0xff] %v687
    %712 = vst [vmem:[#allocation3 + $0x88] sm:$0xff] %v688
    %713 = vst [vmem:[#allocation3 + $0x90] sm:$0xff] %v689
    %714 = vst [vmem:[#allocation3 + $0x98] sm:$0xff] %v690
    %715 = vst [vmem:[#allocation3 + $0xa0] sm:$0xff] %v691
    %716 = vst [vmem:[#allocation3 + $0xa8] sm:$0xff] %v692
    %717 = vst [vmem:[#allocation3 + $0xb0] sm:$0xff] %v693
    %718 = vst [vmem:[#allocation3 + $0xb8] sm:$0xff] %v694
    %v719 = vld [vmem:[%s2] sm:$0xff]
    %v720 = vld [vmem:[%s2 + $0x8] sm:$0xf]
    %v721 = vld [vmem:[%s2 + $0xc] sm:$0xff]
    %v722 = vld [vmem:[%s2 + $0x14] sm:$0xf]
    %v723 = vld [vmem:[%s2 + $0x18] sm:$0xff]
    %v724 = vld [vmem:[%s2 + $0x20] sm:$0xf]
    %v725 = vld [vmem:[%s2 + $0x24] sm:$0xff]
    %v726 = vld [vmem:[%s2 + $0x2c] sm:$0xf]
    %v727 = vld [vmem:[%s2 + $0x30] sm:$0xff]
    %v728 = vld [vmem:[%s2 + $0x38] sm:$0xf]
    %v729 = vld [vmem:[%s2 + $0x3c] sm:$0xff]
    %v730 = vld [vmem:[%s2 + $0x44] sm:$0xf]
    %v731 = vld [vmem:[%s2 + $0x48] sm:$0xff]
    %v732 = vld [vmem:[%s2 + $0x50] sm:$0xf]
    %v733 = vld [vmem:[%s2 + $0x54] sm:$0xff]
    %v734 = vld [vmem:[%s2 + $0x5c] sm:$0xf]
    %v735 = vld [vmem:[%s2 + $0x60] sm:$0xff]
    %v736 = vld [vmem:[%s2 + $0x68] sm:$0xf]
    %v737 = vld [vmem:[%s2 + $0x6c] sm:$0xff]
    %v738 = vld [vmem:[%s2 + $0x74] sm:$0xf]
    %v739 = vld [vmem:[%s2 + $0x78] sm:$0xff]
    %v740 = vld [vmem:[%s2 + $0x80] sm:$0xf]
    %v741 = vld [vmem:[%s2 + $0x84] sm:$0xff]
    %v742 = vld [vmem:[%s2 + $0x8c] sm:$0xf]
    %v743 = vld [vmem:[%s2 + $0x90] sm:$0xff]
    %v744 = vld [vmem:[%s2 + $0x98] sm:$0xf]
    %v745 = vld [vmem:[%s2 + $0x9c] sm:$0xff]
    %v746 = vld [vmem:[%s2 + $0xa4] sm:$0xf]
    %v747 = vld [vmem:[%s2 + $0xa8] sm:$0xff]
    %v748 = vld [vmem:[%s2 + $0xb0] sm:$0xf]
    %v749 = vld [vmem:[%s2 + $0xb4] sm:$0xff]
    %v750 = vld [vmem:[%s2 + $0xbc] sm:$0xf]
    %v751 = vld [vmem:[%s4] sm:$0x1]
    %v753 = vlaneseq
    %v754 = vshrl.u32 %v753, 7
    %v755 = vsub.s32 0, %v754
    %v756 = vrot.slane %v751, %v755
    %s758 = scalar_lea.vmem %s2, 192
    %v759 = vld [vmem:[%s758] sm:$0xff]
    %v760 = vld [vmem:[%s758 + $0x8] sm:$0xf]
    %v761 = vld [vmem:[%s758 + $0xc] sm:$0xff]
    %v762 = vld [vmem:[%s758 + $0x14] sm:$0xf]
    %v763 = vld [vmem:[%s758 + $0x18] sm:$0xff]
    %v764 = vld [vmem:[%s758 + $0x20] sm:$0xf]
    %v765 = vld [vmem:[%s758 + $0x24] sm:$0xff]
    %v766 = vld [vmem:[%s758 + $0x2c] sm:$0xf]
    %v767 = vld [vmem:[%s758 + $0x30] sm:$0xff]
    %v768 = vld [vmem:[%s758 + $0x38] sm:$0xf]
    %v769 = vld [vmem:[%s758 + $0x3c] sm:$0xff]
    %v770 = vld [vmem:[%s758 + $0x44] sm:$0xf]
    %v771 = vld [vmem:[%s758 + $0x48] sm:$0xff]
    %v772 = vld [vmem:[%s758 + $0x50] sm:$0xf]
    %v773 = vld [vmem:[%s758 + $0x54] sm:$0xff]
    %v774 = vld [vmem:[%s758 + $0x5c] sm:$0xf]
    %v775 = vld [vmem:[%s758 + $0x60] sm:$0xff]
    %v776 = vld [vmem:[%s758 + $0x68] sm:$0xf]
    %v777 = vld [vmem:[%s758 + $0x6c] sm:$0xff]
    %v778 = vld [vmem:[%s758 + $0x74] sm:$0xf]
    %v779 = vld [vmem:[%s758 + $0x78] sm:$0xff]
    %v780 = vld [vmem:[%s758 + $0x80] sm:$0xf]
    %v781 = vld [vmem:[%s758 + $0x84] sm:$0xff]
    %v782 = vld [vmem:[%s758 + $0x8c] sm:$0xf]
    %v783 = vld [vmem:[%s758 + $0x90] sm:$0xff]
    %v784 = vld [vmem:[%s758 + $0x98] sm:$0xf]
    %v785 = vld [vmem:[%s758 + $0x9c] sm:$0xff]
    %v786 = vld [vmem:[%s758 + $0xa4] sm:$0xf]
    %v787 = vld [vmem:[%s758 + $0xa8] sm:$0xff]
    %v788 = vld [vmem:[%s758 + $0xb0] sm:$0xf]
    %v789 = vld [vmem:[%s758 + $0xb4] sm:$0xff]
    %v790 = vld [vmem:[%s758 + $0xbc] sm:$0xf]
    %s791 = scalar_lea.vmem %s4, 1
    %v792 = vld [vmem:[%s791] sm:$0x1]
    %v794 = vlaneseq
    %v795 = vshrl.u32 %v794, 7
    %v796 = vsub.s32 0, %v795
    %v797 = vrot.slane %v792, %v796
    %v799 = vld [vmem:[#allocation2] sm:$0xff]
    %v800 = vld [vmem:[#allocation2 + $0x8] sm:$0xff]
    %v801 = vld [vmem:[#allocation2 + $0x10] sm:$0xff]
    %v834 = vunpack.c.l.b16 %v719
    %v835 = vunpack.c.h.b16 %v719
    %v836 = vunpack.c.l.b16 %v720
    %v837 = vunpack.c.l.b16 %v721
    %v838 = vunpack.c.h.b16 %v721
    %v839 = vunpack.c.l.b16 %v722
    %v840 = vunpack.c.l.b16 %v723
    %v841 = vunpack.c.h.b16 %v723
    %v842 = vunpack.c.l.b16 %v724
    %v843 = vunpack.c.l.b16 %v725
    %v844 = vunpack.c.h.b16 %v725
    %v845 = vunpack.c.l.b16 %v726
    %v846 = vunpack.c.l.b16 %v727
    %v847 = vunpack.c.h.b16 %v727
    %v848 = vunpack.c.l.b16 %v728
    %v849 = vunpack.c.l.b16 %v729
    %v850 = vunpack.c.h.b16 %v729
    %v851 = vunpack.c.l.b16 %v730
    %v852 = vunpack.c.l.b16 %v731
    %v853 = vunpack.c.h.b16 %v731
    %v854 = vunpack.c.l.b16 %v732
    %v855 = vunpack.c.l.b16 %v733
    %v856 = vunpack.c.h.b16 %v733
    %v857 = vunpack.c.l.b16 %v734
    %v858 = vunpack.c.l.b16 %v735
    %v859 = vunpack.c.h.b16 %v735
    %v860 = vunpack.c.l.b16 %v736
    %v861 = vunpack.c.l.b16 %v737
    %v862 = vunpack.c.h.b16 %v737
    %v863 = vunpack.c.l.b16 %v738
    %v864 = vunpack.c.l.b16 %v739
    %v865 = vunpack.c.h.b16 %v739
    %v866 = vunpack.c.l.b16 %v740
    %v867 = vunpack.c.l.b16 %v741
    %v868 = vunpack.c.h.b16 %v741
    %v869 = vunpack.c.l.b16 %v742
    %v870 = vunpack.c.l.b16 %v743
    %v871 = vunpack.c.h.b16 %v743
    %v872 = vunpack.c.l.b16 %v744
    %v873 = vunpack.c.l.b16 %v745
    %v874 = vunpack.c.h.b16 %v745
    %v875 = vunpack.c.l.b16 %v746
    %v876 = vunpack.c.l.b16 %v747
    %v877 = vunpack.c.h.b16 %v747
    %v878 = vunpack.c.l.b16 %v748
    %v879 = vunpack.c.l.b16 %v749
    %v880 = vunpack.c.h.b16 %v749
    %v881 = vunpack.c.l.b16 %v750
    %v882 = vpack.c.b16 %v837, %v834
    %v883 = vpack.c.b16 %v838, %v835
    %v884 = vpack.c.b16 %v839, %v836
    %v885 = vpack.c.b16 %v843, %v840
    %v886 = vpack.c.b16 %v844, %v841
    %v887 = vpack.c.b16 %v845, %v842
    %v888 = vpack.c.b16 %v849, %v846
    %v889 = vpack.c.b16 %v850, %v847
    %v890 = vpack.c.b16 %v851, %v848
    %v891 = vpack.c.b16 %v855, %v852
    %v892 = vpack.c.b16 %v856, %v853
    %v893 = vpack.c.b16 %v857, %v854
    %v894 = vpack.c.b16 %v861, %v858
    %v895 = vpack.c.b16 %v862, %v859
    %v896 = vpack.c.b16 %v863, %v860
    %v897 = vpack.c.b16 %v867, %v864
    %v898 = vpack.c.b16 %v868, %v865
    %v899 = vpack.c.b16 %v869, %v866
    %v900 = vpack.c.b16 %v873, %v870
    %v901 = vpack.c.b16 %v874, %v871
    %v902 = vpack.c.b16 %v875, %v872
    %v903 = vpack.c.b16 %v879, %v876
    %v904 = vpack.c.b16 %v880, %v877
    %v905 = vpack.c.b16 %v881, %v878
    %930 = vmatprep.subr.bf16.mxu0 %v883
    %931 = vmatpush1.bf16.msra.mxu0 %v882
    %932 = vmatprep.subr.bf16.mxu0 %v886
    %933 = vmatpush1.bf16.msra.mxu0 %v885
    %934 = vmatprep.subr.bf16.mxu0 %v889
    %935 = vmatpush1.bf16.msra.mxu0 %v888
    %936 = vmatprep.subr.bf16.mxu0 %v892
    %937 = vmatpush1.bf16.msra.mxu0 %v891
    %938 = vmatprep.subr.bf16.mxu0 %v895
    %939 = vmatpush1.bf16.msra.mxu0 %v894
    %940 = vmatprep.subr.bf16.mxu0 %v898
    %941 = vmatpush1.bf16.msra.mxu0 %v897
    %942 = vmatprep.subr.bf16.mxu0 %v901
    %943 = vmatpush1.bf16.msra.mxu0 %v900
    %944 = vmatprep.subr.bf16.mxu0 %v904
    %945 = vmatpush1.bf16.msra.mxu0 %v903
    %946 = vmatprep.subr.bf16.mxu0 0
    %947 = vmatpush1.bf16.msra.mxu0 0
    %948 = vmatprep.subr.bf16.mxu0 0
    %949 = vmatpush1.bf16.msra.mxu0 0
    %950 = vmatprep.subr.bf16.mxu0 0
    %951 = vmatpush1.bf16.msra.mxu0 0
    %952 = vmatprep.subr.bf16.mxu0 0
    %953 = vmatpush1.bf16.msra.mxu0 0
    %954 = vmatprep.subr.bf16.mxu0 0
    %955 = vmatpush1.bf16.msra.mxu0 0
    %956 = vmatprep.subr.bf16.mxu0 0
    %957 = vmatpush1.bf16.msra.mxu0 0
    %958 = vmatprep.subr.bf16.mxu0 0
    %959 = vmatpush1.bf16.msra.mxu0 0
    %960 = vmatprep.subr.bf16.mxu0 0
    %961 = vmatpush1.bf16.msra.mxu0 0
    %962 = vmatprep.mubr.bf16.mxu0 0
    %963 = vmatmul.mubr.bf16.gmra.mrb[0].mxu0 0
    %v964 = vpop.f32.mrb[0].mxu0
    %v965 = vadd.f32 0.0, %v964
    %v966 = vpop.f32.mrb[0].mxu0
    %v967 = vadd.f32 0.0, %v966
    %v968 = vpop.f32.mrb[0].mxu0
    %v969 = vpop.f32.mrb[0].mxu0
    %970 = vdwg.mxu0
    %971 = vmatprep.subr.bf16.mxu0 0
    %972 = vmatpush1.bf16.msra.mxu0 %v884
    %973 = vmatprep.subr.bf16.mxu0 0
    %974 = vmatpush1.bf16.msra.mxu0 %v887
    %975 = vmatprep.subr.bf16.mxu0 0
    %976 = vmatpush1.bf16.msra.mxu0 %v890
    %977 = vmatprep.subr.bf16.mxu0 0
    %978 = vmatpush1.bf16.msra.mxu0 %v893
    %979 = vmatprep.subr.bf16.mxu0 0
    %980 = vmatpush1.bf16.msra.mxu0 %v896
    %981 = vmatprep.subr.bf16.mxu0 0
    %982 = vmatpush1.bf16.msra.mxu0 %v899
    %983 = vmatprep.subr.bf16.mxu0 0
    %984 = vmatpush1.bf16.msra.mxu0 %v902
    %985 = vmatprep.subr.bf16.mxu0 0
    %986 = vmatpush1.bf16.msra.mxu0 %v905
    %987 = vmatprep.subr.bf16.mxu0 0
    %988 = vmatpush1.bf16.msra.mxu0 0
    %989 = vmatprep.subr.bf16.mxu0 0
    %990 = vmatpush1.bf16.msra.mxu0 0
    %991 = vmatprep.subr.bf16.mxu0 0
    %992 = vmatpush1.bf16.msra.mxu0 0
    %993 = vmatprep.subr.bf16.mxu0 0
    %994 = vmatpush1.bf16.msra.mxu0 0
    %995 = vmatprep.subr.bf16.mxu0 0
    %996 = vmatpush1.bf16.msra.mxu0 0
    %997 = vmatprep.subr.bf16.mxu0 0
    %998 = vmatpush1.bf16.msra.mxu0 0
    %999 = vmatprep.subr.bf16.mxu0 0
    %1000 = vmatpush1.bf16.msra.mxu0 0
    %1001 = vmatprep.subr.bf16.mxu0 0
    %1002 = vmatpush1.bf16.msra.mxu0 0
    %1003 = vmatprep.mubr.bf16.mxu0 0
    %1004 = vmatmul.mubr.bf16.gmra.mrb[0].mxu0 0
    %v1005 = vpop.f32.mrb[0].mxu0
    %v1006 = vadd.f32 0.0, %v1005
    %v1007 = vpop.f32.mrb[0].mxu0
    %v1008 = vpop.f32.mrb[0].mxu0
    %v1009 = vpop.f32.mrb[0].mxu0
    %1010 = vdwg.mxu0
    %v1011 = vadd.f32 %v799, %v965
    %v1012 = vxor.u32 %v1011, 2147483648
    %v1013 = vmul.f32 %v1012, 1.442695
    %v1014 = vpow.pop %v1013
    %v1015 = vadd.f32 %v1014, 1.0
    %v1016 = vrcp.pop %v1015
    %v1017 = vmul.f32 1.0, %v1016
    %v1018 = vadd.f32 %v800, %v967
    %v1019 = vxor.u32 %v1018, 2147483648
    %v1020 = vmul.f32 %v1019, 1.442695
    %v1021 = vpow.pop %v1020
    %v1022 = vadd.f32 %v1021, 1.0
    %v1023 = vrcp.pop %v1022
    %v1024 = vmul.f32 1.0, %v1023
    %v1025 = vadd.f32 %v1006, %v756
    %v1026 = vmul.f32 %v1017, %v1025
    %v1027 = vadd.f32 %v801, %v1026
    %v1028 = vtanh.pop %v1027
    %v1029 = vsub.f32 1.0, %v1024
    %v1030 = vmul.f32 %v1029, %v1028
    %v1031 = vmul.f32 %v1024, 0.0
    %v1032 = vadd.f32 %v1030, %v1031
    %s1033 = scalar_lea.vmem [#allocation3], 168
    %v1034 = vld [vmem:[%s1033] sm:$0xff]
    %v1035 = vld [vmem:[%s1033 + $0x8] sm:$0xff]
    %v1036 = vld [vmem:[%s1033 + $0x10] sm:$0xff]
    %v1069 = vunpack.c.l.b16 %v759
    %v1070 = vunpack.c.h.b16 %v759
    %v1071 = vunpack.c.l.b16 %v760
    %v1072 = vunpack.c.l.b16 %v761
    %v1073 = vunpack.c.h.b16 %v761
    %v1074 = vunpack.c.l.b16 %v762
    %v1075 = vunpack.c.l.b16 %v763
    %v1076 = vunpack.c.h.b16 %v763
    %v1077 = vunpack.c.l.b16 %v764
    %v1078 = vunpack.c.l.b16 %v765
    %v1079 = vunpack.c.h.b16 %v765
    %v1080 = vunpack.c.l.b16 %v766
    %v1081 = vunpack.c.l.b16 %v767
    %v1082 = vunpack.c.h.b16 %v767
    %v1083 = vunpack.c.l.b16 %v768
    %v1084 = vunpack.c.l.b16 %v769
    %v1085 = vunpack.c.h.b16 %v769
    %v1086 = vunpack.c.l.b16 %v770
    %v1087 = vunpack.c.l.b16 %v771
    %v1088 = vunpack.c.h.b16 %v771
    %v1089 = vunpack.c.l.b16 %v772
    %v1090 = vunpack.c.l.b16 %v773
    %v1091 = vunpack.c.h.b16 %v773
    %v1092 = vunpack.c.l.b16 %v774
    %v1093 = vunpack.c.l.b16 %v775
    %v1094 = vunpack.c.h.b16 %v775
    %v1095 = vunpack.c.l.b16 %v776
    %v1096 = vunpack.c.l.b16 %v777
    %v1097 = vunpack.c.h.b16 %v777
    %v1098 = vunpack.c.l.b16 %v778
    %v1099 = vunpack.c.l.b16 %v779
    %v1100 = vunpack.c.h.b16 %v779
    %v1101 = vunpack.c.l.b16 %v780
    %v1102 = vunpack.c.l.b16 %v781
    %v1103 = vunpack.c.h.b16 %v781
    %v1104 = vunpack.c.l.b16 %v782
    %v1105 = vunpack.c.l.b16 %v783
    %v1106 = vunpack.c.h.b16 %v783
    %v1107 = vunpack.c.l.b16 %v784
    %v1108 = vunpack.c.l.b16 %v785
    %v1109 = vunpack.c.h.b16 %v785
    %v1110 = vunpack.c.l.b16 %v786
    %v1111 = vunpack.c.l.b16 %v787
    %v1112 = vunpack.c.h.b16 %v787
    %v1113 = vunpack.c.l.b16 %v788
    %v1114 = vunpack.c.l.b16 %v789
    %v1115 = vunpack.c.h.b16 %v789
    %v1116 = vunpack.c.l.b16 %v790
    %v1117 = vpack.c.b16 %v1072, %v1069
    %v1118 = vpack.c.b16 %v1073, %v1070
    %v1119 = vpack.c.b16 %v1074, %v1071
    %v1120 = vpack.c.b16 %v1078, %v1075
    %v1121 = vpack.c.b16 %v1079, %v1076
    %v1122 = vpack.c.b16 %v1080, %v1077
    %v1123 = vpack.c.b16 %v1084, %v1081
    %v1124 = vpack.c.b16 %v1085, %v1082
    %v1125 = vpack.c.b16 %v1086, %v1083
    %v1126 = vpack.c.b16 %v1090, %v1087
    %v1127 = vpack.c.b16 %v1091, %v1088
    %v1128 = vpack.c.b16 %v1092, %v1089
    %v1129 = vpack.c.b16 %v1096, %v1093
    %v1130 = vpack.c.b16 %v1097, %v1094
    %v1131 = vpack.c.b16 %v1098, %v1095
    %v1132 = vpack.c.b16 %v1102, %v1099
    %v1133 = vpack.c.b16 %v1103, %v1100
    %v1134 = vpack.c.b16 %v1104, %v1101
    %v1135 = vpack.c.b16 %v1108, %v1105
    %v1136 = vpack.c.b16 %v1109, %v1106
    %v1137 = vpack.c.b16 %v1110, %v1107
    %v1138 = vpack.c.b16 %v1114, %v1111
    %v1139 = vpack.c.b16 %v1115, %v1112
    %v1140 = vpack.c.b16 %v1116, %v1113
    %1165 = vmatprep.subr.bf16.mxu0 %v1118
    %1166 = vmatpush1.bf16.msra.mxu0 %v1117
    %1167 = vmatprep.subr.bf16.mxu0 %v1121
    %1168 = vmatpush1.bf16.msra.mxu0 %v1120
    %1169 = vmatprep.subr.bf16.mxu0 %v1124
    %1170 = vmatpush1.bf16.msra.mxu0 %v1123
    %1171 = vmatprep.subr.bf16.mxu0 %v1127
    %1172 = vmatpush1.bf16.msra.mxu0 %v1126
    %1173 = vmatprep.subr.bf16.mxu0 %v1130
    %1174 = vmatpush1.bf16.msra.mxu0 %v1129
    %1175 = vmatprep.subr.bf16.mxu0 %v1133
    %1176 = vmatpush1.bf16.msra.mxu0 %v1132
    %1177 = vmatprep.subr.bf16.mxu0 %v1136
    %1178 = vmatpush1.bf16.msra.mxu0 %v1135
    %1179 = vmatprep.subr.bf16.mxu0 %v1139
    %1180 = vmatpush1.bf16.msra.mxu0 %v1138
    %1181 = vmatprep.subr.bf16.mxu0 0
    %1182 = vmatpush1.bf16.msra.mxu0 0
    %1183 = vmatprep.subr.bf16.mxu0 0
    %1184 = vmatpush1.bf16.msra.mxu0 0
    %1185 = vmatprep.subr.bf16.mxu0 0
    %1186 = vmatpush1.bf16.msra.mxu0 0
    %1187 = vmatprep.subr.bf16.mxu0 0
    %1188 = vmatpush1.bf16.msra.mxu0 0
    %1189 = vmatprep.subr.bf16.mxu0 0
    %1190 = vmatpush1.bf16.msra.mxu0 0
    %1191 = vmatprep.subr.bf16.mxu0 0
    %1192 = vmatpush1.bf16.msra.mxu0 0
    %1193 = vmatprep.subr.bf16.mxu0 0
    %1194 = vmatpush1.bf16.msra.mxu0 0
    %1195 = vmatprep.subr.bf16.mxu0 0
    %1196 = vmatpush1.bf16.msra.mxu0 0
    %1197 = vmatprep.mubr.bf16.mxu0 0
    %1198 = vmatmul.mubr.bf16.gmra.mrb[0].mxu0 0
    %v1199 = vpop.f32.mrb[0].mxu0
    %v1200 = vadd.f32 0.0, %v1199
    %v1201 = vpop.f32.mrb[0].mxu0
    %v1202 = vadd.f32 0.0, %v1201
    %v1203 = vpop.f32.mrb[0].mxu0
    %v1204 = vpop.f32.mrb[0].mxu0
    %1205 = vdwg.mxu0
    %1206 = vmatprep.subr.bf16.mxu0 0
    %1207 = vmatpush1.bf16.msra.mxu0 %v1119
    %1208 = vmatprep.subr.bf16.mxu0 0
    %1209 = vmatpush1.bf16.msra.mxu0 %v1122
    %1210 = vmatprep.subr.bf16.mxu0 0
    %1211 = vmatpush1.bf16.msra.mxu0 %v1125
    %1212 = vmatprep.subr.bf16.mxu0 0
    %1213 = vmatpush1.bf16.msra.mxu0 %v1128
    %1214 = vmatprep.subr.bf16.mxu0 0
    %1215 = vmatpush1.bf16.msra.mxu0 %v1131
    %1216 = vmatprep.subr.bf16.mxu0 0
    %1217 = vmatpush1.bf16.msra.mxu0 %v1134
    %1218 = vmatprep.subr.bf16.mxu0 0
    %1219 = vmatpush1.bf16.msra.mxu0 %v1137
    %1220 = vmatprep.subr.bf16.mxu0 0
    %1221 = vmatpush1.bf16.msra.mxu0 %v1140
    %1222 = vmatprep.subr.bf16.mxu0 0
    %1223 = vmatpush1.bf16.msra.mxu0 0
    %1224 = vmatprep.subr.bf16.mxu0 0
    %1225 = vmatpush1.bf16.msra.mxu0 0
    %1226 = vmatprep.subr.bf16.mxu0 0
    %1227 = vmatpush1.bf16.msra.mxu0 0
    %1228 = vmatprep.subr.bf16.mxu0 0
    %1229 = vmatpush1.bf16.msra.mxu0 0
    %1230 = vmatprep.subr.bf16.mxu0 0
    %1231 = vmatpush1.bf16.msra.mxu0 0
    %1232 = vmatprep.subr.bf16.mxu0 0
    %1233 = vmatpush1.bf16.msra.mxu0 0
    %1234 = vmatprep.subr.bf16.mxu0 0
    %1235 = vmatpush1.bf16.msra.mxu0 0
    %1236 = vmatprep.subr.bf16.mxu0 0
    %1237 = vmatpush1.bf16.msra.mxu0 0
    %1238 = vmatprep.mubr.bf16.mxu0 0
    %1239 = vmatmul.mubr.bf16.gmra.mrb[0].mxu0 0
    %v1240 = vpop.f32.mrb[0].mxu0
    %v1241 = vadd.f32 0.0, %v1240
    %v1242 = vpop.f32.mrb[0].mxu0
    %v1243 = vpop.f32.mrb[0].mxu0
    %v1244 = vpop.f32.mrb[0].mxu0
    %1245 = vdwg.mxu0
    %v1246 = vadd.f32 %v1034, %v1200
    %v1247 = vxor.u32 %v1246, 2147483648
    %v1248 = vmul.f32 %v1247, 1.442695
    %v1249 = vpow.pop %v1248
    %v1250 = vadd.f32 %v1249, 1.0
    %v1251 = vrcp.pop %v1250
    %v1252 = vmul.f32 1.0, %v1251
    %v1253 = vadd.f32 %v1035, %v1202
    %v1254 = vxor.u32 %v1253, 2147483648
    %v1255 = vmul.f32 %v1254, 1.442695
    %v1256 = vpow.pop %v1255
    %v1257 = vadd.f32 %v1256, 1.0
    %v1258 = vrcp.pop %v1257
    %v1259 = vmul.f32 1.0, %v1258
    %v1260 = vadd.f32 %v1241, %v797
    %v1261 = vmul.f32 %v1252, %v1260
    %v1262 = vadd.f32 %v1036, %v1261
    %v1263 = vtanh.pop %v1262
    %v1264 = vsub.f32 1.0, %v1259
    %v1265 = vmul.f32 %v1264, %v1263
    %v1266 = vmul.f32 %v1259, 0.0
    %v1267 = vadd.f32 %v1265, %v1266
    %1268 = vst [vmem:[#allocation5] sm:$0xff] %v1032
    %s1269 = scalar_lea.vmem [#allocation6], 56
    %1270 = vst [vmem:[%s1269] sm:$0xff] %v1267
    %s1271 = scalar_lea.vmem [#allocation2], 24
    %v1272 = vld [vmem:[%s1271] sm:$0xff]
    %v1273 = vld [vmem:[%s1271 + $0x8] sm:$0xff]
    %v1274 = vld [vmem:[%s1271 + $0x10] sm:$0xff]
    %v1275 = vpack.c.bf16 %v1032, %v1032
    %1276 = vmatprep.subr.bf16.mxu0 %v883
    %1277 = vmatpush1.bf16.msra.mxu0 %v882
    %1278 = vmatprep.subr.bf16.mxu0 %v886
    %1279 = vmatpush1.bf16.msra.mxu0 %v885
    %1280 = vmatprep.subr.bf16.mxu0 %v889
    %1281 = vmatpush1.bf16.msra.mxu0 %v888
    %1282 = vmatprep.subr.bf16.mxu0 %v892
    %1283 = vmatpush1.bf16.msra.mxu0 %v891
    %1284 = vmatprep.subr.bf16.mxu0 %v895
    %1285 = vmatpush1.bf16.msra.mxu0 %v894
    %1286 = vmatprep.subr.bf16.mxu0 %v898
    %1287 = vmatpush1.bf16.msra.mxu0 %v897
    %1288 = vmatprep.subr.bf16.mxu0 %v901
    %1289 = vmatpush1.bf16.msra.mxu0 %v900
    %1290 = vmatprep.subr.bf16.mxu0 %v904
    %1291 = vmatpush1.bf16.msra.mxu0 %v903
    %1292 = vmatprep.subr.bf16.mxu0 0
    %1293 = vmatpush1.bf16.msra.mxu0 0
    %1294 = vmatprep.subr.bf16.mxu0 0
    %1295 = vmatpush1.bf16.msra.mxu0 0
    %1296 = vmatprep.subr.bf16.mxu0 0
    %1297 = vmatpush1.bf16.msra.mxu0 0
    %1298 = vmatprep.subr.bf16.mxu0 0
    %1299 = vmatpush1.bf16.msra.mxu0 0
    %1300 = vmatprep.subr.bf16.mxu0 0
    %1301 = vmatpush1.bf16.msra.mxu0 0
    %1302 = vmatprep.subr.bf16.mxu0 0
    %1303 = vmatpush1.bf16.msra.mxu0 0
    %1304 = vmatprep.subr.bf16.mxu0 0
    %1305 = vmatpush1.bf16.msra.mxu0 0
    %1306 = vmatprep.subr.bf16.mxu0 0
    %1307 = vmatpush1.bf16.msra.mxu0 0
    %1308 = vmatprep.mubr.bf16.mxu0 0
    %1309 = vmatmul.mubr.bf16.gmra.mrb[0].mxu0 %v1275
    %v1310 = vpop.f32.mrb[0].mxu0
    %v1311 = vadd.f32 0.0, %v1310
    %v1312 = vpop.f32.mrb[0].mxu0
    %v1313 = vadd.f32 0.0, %v1312
    %v1314 = vpop.f32.mrb[0].mxu0
    %v1315 = vpop.f32.mrb[0].mxu0
    %1316 = vdwg.mxu0
    %1317 = vmatprep.subr.bf16.mxu0 0
    %1318 = vmatpush1.bf16.msra.mxu0 %v884
    %1319 = vmatprep.subr.bf16.mxu0 0
    %1320 = vmatpush1.bf16.msra.mxu0 %v887
    %1321 = vmatprep.subr.bf16.mxu0 0
    %1322 = vmatpush1.bf16.msra.mxu0 %v890
    %1323 = vmatprep.subr.bf16.mxu0 0
    %1324 = vmatpush1.bf16.msra.mxu0 %v893
    %1325 = vmatprep.subr.bf16.mxu0 0
    %1326 = vmatpush1.bf16.msra.mxu0 %v896
    %1327 = vmatprep.subr.bf16.mxu0 0
    %1328 = vmatpush1.bf16.msra.mxu0 %v899
    %1329 = vmatprep.subr.bf16.mxu0 0
    %1330 = vmatpush1.bf16.msra.mxu0 %v902
    %1331 = vmatprep.subr.bf16.mxu0 0
    %1332 = vmatpush1.bf16.msra.mxu0 %v905
    %1333 = vmatprep.subr.bf16.mxu0 0
    %1334 = vmatpush1.bf16.msra.mxu0 0
    %1335 = vmatprep.subr.bf16.mxu0 0
    %1336 = vmatpush1.bf16.msra.mxu0 0
    %1337 = vmatprep.subr.bf16.mxu0 0
    %1338 = vmatpush1.bf16.msra.mxu0 0
    %1339 = vmatprep.subr.bf16.mxu0 0
    %1340 = vmatpush1.bf16.msra.mxu0 0
    %1341 = vmatprep.subr.bf16.mxu0 0
    %1342 = vmatpush1.bf16.msra.mxu0 0
    %1343 = vmatprep.subr.bf16.mxu0 0
    %1344 = vmatpush1.bf16.msra.mxu0 0
    %1345 = vmatprep.subr.bf16.mxu0 0
    %1346 = vmatpush1.bf16.msra.mxu0 0
    %1347 = vmatprep.subr.bf16.mxu0 0
    %1348 = vmatpush1.bf16.msra.mxu0 0
    %1349 = vmatprep.mubr.bf16.mxu0 0
    %1350 = vmatmul.mubr.bf16.gmra.mrb[0].mxu0 %v1275
    %v1351 = vpop.f32.mrb[0].mxu0
    %v1352 = vadd.f32 0.0, %v1351
    %v1353 = vpop.f32.mrb[0].mxu0
    %v1354 = vpop.f32.mrb[0].mxu0
    %v1355 = vpop.f32.mrb[0].mxu0
    %1356 = vdwg.mxu0
    %v1357 = vadd.f32 %v1272, %v1311
    %v1358 = vxor.u32 %v1357, 2147483648
    %v1359 = vmul.f32 %v1358, 1.442695
    %v1360 = vpow.pop %v1359
    %v1361 = vadd.f32 %v1360, 1.0
    %v1362 = vrcp.pop %v1361
    %v1363 = vmul.f32 1.0, %v1362
    %v1364 = vadd.f32 %v1273, %v1313
    %v1365 = vxor.u32 %v1364, 2147483648
    %v1366 = vmul.f32 %v1365, 1.442695
    %v1367 = vpow.pop %v1366
    %v1368 = vadd.f32 %v1367, 1.0
    %v1369 = vrcp.pop %v1368
    %v1370 = vmul.f32 1.0, %v1369
    %v1371 = vadd.f32 %v1352, %v756
    %v1372 = vmul.f32 %v1363, %v1371
    %v1373 = vadd.f32 %v1274, %v1372
    %v1374 = vtanh.pop %v1373
    %v1375 = vsub.f32 1.0, %v1370
    %v1376 = vmul.f32 %v1375, %v1374
    %v1377 = vmul.f32 %v1370, %v1032
    %v1378 = vadd.f32 %v1376, %v1377
    %s1379 = scalar_lea.vmem [#allocation3], 144
    %v1380 = vld [vmem:[%s1379] sm:$0xff]
    %v1381 = vld [vmem:[%s1379 + $0x8] sm:$0xff]
    %v1382 = vld [vmem:[%s1379 + $0x10] sm:$0xff]
    %v1383 = vpack.c.bf16 %v1267, %v1267
    %1384 = vmatprep.subr.bf16.mxu0 %v1118
    %1385 = vmatpush1.bf16.msra.mxu0 %v1117
    %1386 = vmatprep.subr.bf16.mxu0 %v1121
    %1387 = vmatpush1.bf16.msra.mxu0 %v1120
    %1388 = vmatprep.subr.bf16.mxu0 %v1124
    %1389 = vmatpush1.bf16.msra.mxu0 %v1123
    %1390 = vmatprep.subr.bf16.mxu0 %v1127
    %1391 = vmatpush1.bf16.msra.mxu0 %v1126
    %1392 = vmatprep.subr.bf16.mxu0 %v1130
    %1393 = vmatpush1.bf16.msra.mxu0 %v1129
    %1394 = vmatprep.subr.bf16.mxu0 %v1133
    %1395 = vmatpush1.bf16.msra.mxu0 %v1132
    %1396 = vmatprep.subr.bf16.mxu0 %v1136
    %1397 = vmatpush1.bf16.msra.mxu0 %v1135
    %1398 = vmatprep.subr.bf16.mxu0 %v1139
    %1399 = vmatpush1.bf16.msra.mxu0 %v1138
    %1400 = vmatprep.subr.bf16.mxu0 0
    %1401 = vmatpush1.bf16.msra.mxu0 0
    %1402 = vmatprep.subr.bf16.mxu0 0
    %1403 = vmatpush1.bf16.msra.mxu0 0
    %1404 = vmatprep.subr.bf16.mxu0 0
    %1405 = vmatpush1.bf16.msra.mxu0 0
    %1406 = vmatprep.subr.bf16.mxu0 0
    %1407 = vmatpush1.bf16.msra.mxu0 0
    %1408 = vmatprep.subr.bf16.mxu0 0
    %1409 = vmatpush1.bf16.msra.mxu0 0
    %1410 = vmatprep.subr.bf16.mxu0 0
    %1411 = vmatpush1.bf16.msra.mxu0 0
    %1412 = vmatprep.subr.bf16.mxu0 0
    %1413 = vmatpush1.bf16.msra.mxu0 0
    %1414 = vmatprep.subr.bf16.mxu0 0
    %1415 = vmatpush1.bf16.msra.mxu0 0
    %1416 = vmatprep.mubr.bf16.mxu0 0
    %1417 = vmatmul.mubr.bf16.gmra.mrb[0].mxu0 %v1383
    %v1418 = vpop.f32.mrb[0].mxu0
    %v1419 = vadd.f32 0.0, %v1418
    %v1420 = vpop.f32.mrb[0].mxu0
    %v1421 = vadd.f32 0.0, %v1420
    %v1422 = vpop.f32.mrb[0].mxu0
    %v1423 = vpop.f32.mrb[0].mxu0
    %1424 = vdwg.mxu0
    %1425 = vmatprep.subr.bf16.mxu0 0
    %1426 = vmatpush1.bf16.msra.mxu0 %v1119
    %1427 = vmatprep.subr.bf16.mxu0 0
    %1428 = vmatpush1.bf16.msra.mxu0 %v1122
    %1429 = vmatprep.subr.bf16.mxu0 0
    %1430 = vmatpush1.bf16.msra.mxu0 %v1125
    %1431 = vmatprep.subr.bf16.mxu0 0
    %1432 = vmatpush1.bf16.msra.mxu0 %v1128
    %1433 = vmatprep.subr.bf16.mxu0 0
    %1434 = vmatpush1.bf16.msra.mxu0 %v1131
    %1435 = vmatprep.subr.bf16.mxu0 0
    %1436 = vmatpush1.bf16.msra.mxu0 %v1134
    %1437 = vmatprep.subr.bf16.mxu0 0
    %1438 = vmatpush1.bf16.msra.mxu0 %v1137
    %1439 = vmatprep.subr.bf16.mxu0 0
    %1440 = vmatpush1.bf16.msra.mxu0 %v1140
    %1441 = vmatprep.subr.bf16.mxu0 0
    %1442 = vmatpush1.bf16.msra.mxu0 0
    %1443 = vmatprep.subr.bf16.mxu0 0
    %1444 = vmatpush1.bf16.msra.mxu0 0
    %1445 = vmatprep.subr.bf16.mxu0 0
    %1446 = vmatpush1.bf16.msra.mxu0 0
    %1447 = vmatprep.subr.bf16.mxu0 0
    %1448 = vmatpush1.bf16.msra.mxu0 0
    %1449 = vmatprep.subr.bf16.mxu0 0
    %1450 = vmatpush1.bf16.msra.mxu0 0
    %1451 = vmatprep.subr.bf16.mxu0 0
    %1452 = vmatpush1.bf16.msra.mxu0 0
    %1453 = vmatprep.subr.bf16.mxu0 0
    %1454 = vmatpush1.bf16.msra.mxu0 0
    %1455 = vmatprep.subr.bf16.mxu0 0
    %1456 = vmatpush1.bf16.msra.mxu0 0
    %1457 = vmatprep.mubr.bf16.mxu0 0
    %1458 = vmatmul.mubr.bf16.gmra.mrb[0].mxu0 %v1383
    %v1459 = vpop.f32.mrb[0].mxu0
    %v1460 = vadd.f32 0.0, %v1459
    %v1461 = vpop.f32.mrb[0].mxu0
    %v1462 = vpop.f32.mrb[0].mxu0
    %v1463 = vpop.f32.mrb[0].mxu0
    %1464 = vdwg.mxu0
    %v1465 = vadd.f32 %v1380, %v1419
    %v1466 = vxor.u32 %v1465, 2147483648
    %v1467 = vmul.f32 %v1466, 1.442695
    %v1468 = vpow.pop %v1467
    %v1469 = vadd.f32 %v1468, 1.0
    %v1470 = vrcp.pop %v1469
    %v1471 = vmul.f32 1.0, %v1470
    %v1472 = vadd.f32 %v1381, %v1421
    %v1473 = vxor.u32 %v1472, 2147483648
    %v1474 = vmul.f32 %v1473, 1.442695
    %v1475 = vpow.pop %v1474
    %v1476 = vadd.f32 %v1475, 1.0
    %v1477 = vrcp.pop %v1476
    %v1478 = vmul.f32 1.0, %v1477
    %v1479 = vadd.f32 %v1460, %v797
    %v1480 = vmul.f32 %v1471, %v1479
    %v1481 = vadd.f32 %v1382, %v1480
    %v1482 = vtanh.pop %v1481
    %v1483 = vsub.f32 1.0, %v1478
    %v1484 = vmul.f32 %v1483, %v1482
    %v1485 = vmul.f32 %v1478, %v1267
    %v1486 = vadd.f32 %v1484, %v1485
    %s1487 = scalar_lea.vmem [#allocation5], 8
    %1488 = vst [vmem:[%s1487] sm:$0xff] %v1378
    %s1489 = scalar_lea.vmem [#allocation6], 48
    %1490 = vst [vmem:[%s1489] sm:$0xff] %v1486
    %s1491 = scalar_lea.vmem [#allocation2], 48
    %v1492 = vld [vmem:[%s1491] sm:$0xff]
    %v1493 = vld [vmem:[%s1491 + $0x8] sm:$0xff]
    %v1494 = vld [vmem:[%s1491 + $0x10] sm:$0xff]
    %v1495 = vpack.c.bf16 %v1378, %v1378
    %1496 = vmatprep.subr.bf16.mxu0 %v883
    %1497 = vmatpush1.bf16.msra.mxu0 %v882
    %1498 = vmatprep.subr.bf16.mxu0 %v886
    %1499 = vmatpush1.bf16.msra.mxu0 %v885
    %1500 = vmatprep.subr.bf16.mxu0 %v889
    %1501 = vmatpush1.bf16.msra.mxu0 %v888
    %1502 = vmatprep.subr.bf16.mxu0 %v892
    %1503 = vmatpush1.bf16.msra.mxu0 %v891
    %1504 = vmatprep.subr.bf16.mxu0 %v895
    %1505 = vmatpush1.bf16.msra.mxu0 %v894
    %1506 = vmatprep.subr.bf16.mxu0 %v898
    %1507 = vmatpush1.bf16.msra.mxu0 %v897
    %1508 = vmatprep.subr.bf16.mxu0 %v901
    %1509 = vmatpush1.bf16.msra.mxu0 %v900
    %1510 = vmatprep.subr.bf16.mxu0 %v904
    %1511 = vmatpush1.bf16.msra.mxu0 %v903
    %1512 = vmatprep.subr.bf16.mxu0 0
    %1513 = vmatpush1.bf16.msra.mxu0 0
    %1514 = vmatprep.subr.bf16.mxu0 0
    %1515 = vmatpush1.bf16.msra.mxu0 0
    %1516 = vmatprep.subr.bf16.mxu0 0
    %1517 = vmatpush1.bf16.msra.mxu0 0
    %1518 = vmatprep.subr.bf16.mxu0 0
    %1519 = vmatpush1.bf16.msra.mxu0 0
    %1520 = vmatprep.subr.bf16.mxu0 0
    %1521 = vmatpush1.bf16.msra.mxu0 0
    %1522 = vmatprep.subr.bf16.mxu0 0
    %1523 = vmatpush1.bf16.msra.mxu0 0
    %1524 = vmatprep.subr.bf16.mxu0 0
    %1525 = vmatpush1.bf16.msra.mxu0 0
    %1526 = vmatprep.subr.bf16.mxu0 0
    %1527 = vmatpush1.bf16.msra.mxu0 0
    %1528 = vmatprep.mubr.bf16.mxu0 0
    %1529 = vmatmul.mubr.bf16.gmra.mrb[0].mxu0 %v1495
    %v1530 = vpop.f32.mrb[0].mxu0
    %v1531 = vadd.f32 0.0, %v1530
    %v1532 = vpop.f32.mrb[0].mxu0
    %v1533 = vadd.f32 0.0, %v1532
    %v1534 = vpop.f32.mrb[0].mxu0
    %v1535 = vpop.f32.mrb[0].mxu0
    %1536 = vdwg.mxu0
    %1537 = vmatprep.subr.bf16.mxu0 0
    %1538 = vmatpush1.bf16.msra.mxu0 %v884
    %1539 = vmatprep.subr.bf16.mxu0 0
    %1540 = vmatpush1.bf16.msra.mxu0 %v887
    %1541 = vmatprep.subr.bf16.mxu0 0
    %1542 = vmatpush1.bf16.msra.mxu0 %v890
    %1543 = vmatprep.subr.bf16.mxu0 0
    %1544 = vmatpush1.bf16.msra.mxu0 %v893
    %1545 = vmatprep.subr.bf16.mxu0 0
    %1546 = vmatpush1.bf16.msra.mxu0 %v896
    %1547 = vmatprep.subr.bf16.mxu0 0
    %1548 = vmatpush1.bf16.msra.mxu0 %v899
    %1549 = vmatprep.subr.bf16.mxu0 0
    %1550 = vmatpush1.bf16.msra.mxu0 %v902
    %1551 = vmatprep.subr.bf16.mxu0 0
    %1552 = vmatpush1.bf16.msra.mxu0 %v905
    %1553 = vmatprep.subr.bf16.mxu0 0
    %1554 = vmatpush1.bf16.msra.mxu0 0
    %1555 = vmatprep.subr.bf16.mxu0 0
    %1556 = vmatpush1.bf16.msra.mxu0 0
    %1557 = vmatprep.subr.bf16.mxu0 0
    %1558 = vmatpush1.bf16.msra.mxu0 0
    %1559 = vmatprep.subr.bf16.mxu0 0
    %1560 = vmatpush1.bf16.msra.mxu0 0
    %1561 = vmatprep.subr.bf16.mxu0 0
    %1562 = vmatpush1.bf16.msra.mxu0 0
    %1563 = vmatprep.subr.bf16.mxu0 0
    %1564 = vmatpush1.bf16.msra.mxu0 0
    %1565 = vmatprep.subr.bf16.mxu0 0
    %1566 = vmatpush1.bf16.msra.mxu0 0
    %1567 = vmatprep.subr.bf16.mxu0 0
    %1568 = vmatpush1.bf16.msra.mxu0 0
    %1569 = vmatprep.mubr.bf16.mxu0 0
    %1570 = vmatmul.mubr.bf16.gmra.mrb[0].mxu0 %v1495
    %v1571 = vpop.f32.mrb[0].mxu0
    %v1572 = vadd.f32 0.0, %v1571
    %v1573 = vpop.f32.mrb[0].mxu0
    %v1574 = vpop.f32.mrb[0].mxu0
    %v1575 = vpop.f32.mrb[0].mxu0
    %1576 = vdwg.mxu0
    %v1577 = vadd.f32 %v1492, %v1531
    %v1578 = vxor.u32 %v1577, 2147483648
    %v1579 = vmul.f32 %v1578, 1.442695
    %v1580 = vpow.pop %v1579
    %v1581 = vadd.f32 %v1580, 1.0
    %v1582 = vrcp.pop %v1581
    %v1583 = vmul.f32 1.0, %v1582
    %v1584 = vadd.f32 %v1493, %v1533
    %v1585 = vxor.u32 %v1584, 2147483648
    %v1586 = vmul.f32 %v1585, 1.442695
    %v1587 = vpow.pop %v1586
    %v1588 = vadd.f32 %v1587, 1.0
    %v1589 = vrcp.pop %v1588
    %v1590 = vmul.f32 1.0, %v1589
    %v1591 = vadd.f32 %v1572, %v756
    %v1592 = vmul.f32 %v1583, %v1591
    %v1593 = vadd.f32 %v1494, %v1592
    %v1594 = vtanh.pop %v1593
    %v1595 = vsub.f32 1.0, %v1590
    %v1596 = vmul.f32 %v1595, %v1594
    %v1597 = vmul.f32 %v1590, %v1378
    %v1598 = vadd.f32 %v1596, %v1597
    %s1599 = scalar_lea.vmem [#allocation3], 120
    %v1600 = vld [vmem:[%s1599] sm:$0xff]
    %v1601 = vld [vmem:[%s1599 + $0x8] sm:$0xff]
    %v1602 = vld [vmem:[%s1599 + $0x10] sm:$0xff]
    %v1603 = vpack.c.bf16 %v1486, %v1486
    %1604 = vmatprep.subr.bf16.mxu0 %v1118
    %1605 = vmatpush1.bf16.msra.mxu0 %v1117
    %1606 = vmatprep.subr.bf16.mxu0 %v1121
    %1607 = vmatpush1.bf16.msra.mxu0 %v1120
    %1608 = vmatprep.subr.bf16.mxu0 %v1124
    %1609 = vmatpush1.bf16.msra.mxu0 %v1123
    %1610 = vmatprep.subr.bf16.mxu0 %v1127
    %1611 = vmatpush1.bf16.msra.mxu0 %v1126
    %1612 = vmatprep.subr.bf16.mxu0 %v1130
    %1613 = vmatpush1.bf16.msra.mxu0 %v1129
    %1614 = vmatprep.subr.bf16.mxu0 %v1133
    %1615 = vmatpush1.bf16.msra.mxu0 %v1132
    %1616 = vmatprep.subr.bf16.mxu0 %v1136
    %1617 = vmatpush1.bf16.msra.mxu0 %v1135
    %1618 = vmatprep.subr.bf16.mxu0 %v1139
    %1619 = vmatpush1.bf16.msra.mxu0 %v1138
    %1620 = vmatprep.subr.bf16.mxu0 0
    %1621 = vmatpush1.bf16.msra.mxu0 0
    %1622 = vmatprep.subr.bf16.mxu0 0
    %1623 = vmatpush1.bf16.msra.mxu0 0
    %1624 = vmatprep.subr.bf16.mxu0 0
    %1625 = vmatpush1.bf16.msra.mxu0 0
    %1626 = vmatprep.subr.bf16.mxu0 0
    %1627 = vmatpush1.bf16.msra.mxu0 0
    %1628 = vmatprep.subr.bf16.mxu0 0
    %1629 = vmatpush1.bf16.msra.mxu0 0
    %1630 = vmatprep.subr.bf16.mxu0 0
    %1631 = vmatpush1.bf16.msra.mxu0 0
    %1632 = vmatprep.subr.bf16.mxu0 0
    %1633 = vmatpush1.bf16.msra.mxu0 0
    %1634 = vmatprep.subr.bf16.mxu0 0
    %1635 = vmatpush1.bf16.msra.mxu0 0
    %1636 = vmatprep.mubr.bf16.mxu0 0
    %1637 = vmatmul.mubr.bf16.gmra.mrb[0].mxu0 %v1603
    %v1638 = vpop.f32.mrb[0].mxu0
    %v1639 = vadd.f32 0.0, %v1638
    %v1640 = vpop.f32.mrb[0].mxu0
    %v1641 = vadd.f32 0.0, %v1640
    %v1642 = vpop.f32.mrb[0].mxu0
    %v1643 = vpop.f32.mrb[0].mxu0
    %1644 = vdwg.mxu0
    %1645 = vmatprep.subr.bf16.mxu0 0
    %1646 = vmatpush1.bf16.msra.mxu0 %v1119
    %1647 = vmatprep.subr.bf16.mxu0 0
    %1648 = vmatpush1.bf16.msra.mxu0 %v1122
    %1649 = vmatprep.subr.bf16.mxu0 0
    %1650 = vmatpush1.bf16.msra.mxu0 %v1125
    %1651 = vmatprep.subr.bf16.mxu0 0
    %1652 = vmatpush1.bf16.msra.mxu0 %v1128
    %1653 = vmatprep.subr.bf16.mxu0 0
    %1654 = vmatpush1.bf16.msra.mxu0 %v1131
    %1655 = vmatprep.subr.bf16.mxu0 0
    %1656 = vmatpush1.bf16.msra.mxu0 %v1134
    %1657 = vmatprep.subr.bf16.mxu0 0
    %1658 = vmatpush1.bf16.msra.mxu0 %v1137
    %1659 = vmatprep.subr.bf16.mxu0 0
    %1660 = vmatpush1.bf16.msra.mxu0 %v1140
    %1661 = vmatprep.subr.bf16.mxu0 0
    %1662 = vmatpush1.bf16.msra.mxu0 0
    %1663 = vmatprep.subr.bf16.mxu0 0
    %1664 = vmatpush1.bf16.msra.mxu0 0
    %1665 = vmatprep.subr.bf16.mxu0 0
    %1666 = vmatpush1.bf16.msra.mxu0 0
    %1667 = vmatprep.subr.bf16.mxu0 0
    %1668 = vmatpush1.bf16.msra.mxu0 0
    %1669 = vmatprep.subr.bf16.mxu0 0
    %1670 = vmatpush1.bf16.msra.mxu0 0
    %1671 = vmatprep.subr.bf16.mxu0 0
    %1672 = vmatpush1.bf16.msra.mxu0 0
    %1673 = vmatprep.subr.bf16.mxu0 0
    %1674 = vmatpush1.bf16.msra.mxu0 0
    %1675 = vmatprep.subr.bf16.mxu0 0
    %1676 = vmatpush1.bf16.msra.mxu0 0
    %1677 = vmatprep.mubr.bf16.mxu0 0
    %1678 = vmatmul.mubr.bf16.gmra.mrb[0].mxu0 %v1603
    %v1679 = vpop.f32.mrb[0].mxu0
    %v1680 = vadd.f32 0.0, %v1679
    %v1681 = vpop.f32.mrb[0].mxu0
    %v1682 = vpop.f32.mrb[0].mxu0
    %v1683 = vpop.f32.mrb[0].mxu0
    %1684 = vdwg.mxu0
    %v1685 = vadd.f32 %v1600, %v1639
    %v1686 = vxor.u32 %v1685, 2147483648
    %v1687 = vmul.f32 %v1686, 1.442695
    %v1688 = vpow.pop %v1687
    %v1689 = vadd.f32 %v1688, 1.0
    %v1690 = vrcp.pop %v1689
    %v1691 = vmul.f32 1.0, %v1690
    %v1692 = vadd.f32 %v1601, %v1641
    %v1693 = vxor.u32 %v1692, 2147483648
    %v1694 = vmul.f32 %v1693, 1.442695
    %v1695 = vpow.pop %v1694
    %v1696 = vadd.f32 %v1695, 1.0
    %v1697 = vrcp.pop %v1696
    %v1698 = vmul.f32 1.0, %v1697
    %v1699 = vadd.f32 %v1680, %v797
    %v1700 = vmul.f32 %v1691, %v1699
    %v1701 = vadd.f32 %v1602, %v1700
    %v1702 = vtanh.pop %v1701
    %v1703 = vsub.f32 1.0, %v1698
    %v1704 = vmul.f32 %v1703, %v1702
    %v1705 = vmul.f32 %v1698, %v1486
    %v1706 = vadd.f32 %v1704, %v1705
    %s1707 = scalar_lea.vmem [#allocation5], 16
    %1708 = vst [vmem:[%s1707] sm:$0xff] %v1598
    %s1709 = scalar_lea.vmem [#allocation6], 40
    %1710 = vst [vmem:[%s1709] sm:$0xff] %v1706
    %s1711 = scalar_lea.vmem [#allocation2], 72
    %v1712 = vld [vmem:[%s1711] sm:$0xff]
    %v1713 = vld [vmem:[%s1711 + $0x8] sm:$0xff]
    %v1714 = vld [vmem:[%s1711 + $0x10] sm:$0xff]
    %v1715 = vpack.c.bf16 %v1598, %v1598
    %1716 = vmatprep.subr.bf16.mxu0 %v883
    %1717 = vmatpush1.bf16.msra.mxu0 %v882
    %1718 = vmatprep.subr.bf16.mxu0 %v886
    %1719 = vmatpush1.bf16.msra.mxu0 %v885
    %1720 = vmatprep.subr.bf16.mxu0 %v889
    %1721 = vmatpush1.bf16.msra.mxu0 %v888
    %1722 = vmatprep.subr.bf16.mxu0 %v892
    %1723 = vmatpush1.bf16.msra.mxu0 %v891
    %1724 = vmatprep.subr.bf16.mxu0 %v895
    %1725 = vmatpush1.bf16.msra.mxu0 %v894
    %1726 = vmatprep.subr.bf16.mxu0 %v898
    %1727 = vmatpush1.bf16.msra.mxu0 %v897
    %1728 = vmatprep.subr.bf16.mxu0 %v901
    %1729 = vmatpush1.bf16.msra.mxu0 %v900
    %1730 = vmatprep.subr.bf16.mxu0 %v904
    %1731 = vmatpush1.bf16.msra.mxu0 %v903
    %1732 = vmatprep.subr.bf16.mxu0 0
    %1733 = vmatpush1.bf16.msra.mxu0 0
    %1734 = vmatprep.subr.bf16.mxu0 0
    %1735 = vmatpush1.bf16.msra.mxu0 0
    %1736 = vmatprep.subr.bf16.mxu0 0
    %1737 = vmatpush1.bf16.msra.mxu0 0
    %1738 = vmatprep.subr.bf16.mxu0 0
    %1739 = vmatpush1.bf16.msra.mxu0 0
    %1740 = vmatprep.subr.bf16.mxu0 0
    %1741 = vmatpush1.bf16.msra.mxu0 0
    %1742 = vmatprep.subr.bf16.mxu0 0
    %1743 = vmatpush1.bf16.msra.mxu0 0
    %1744 = vmatprep.subr.bf16.mxu0 0
    %1745 = vmatpush1.bf16.msra.mxu0 0
    %1746 = vmatprep.subr.bf16.mxu0 0
    %1747 = vmatpush1.bf16.msra.mxu0 0
    %1748 = vmatprep.mubr.bf16.mxu0 0
    %1749 = vmatmul.mubr.bf16.gmra.mrb[0].mxu0 %v1715
    %v1750 = vpop.f32.mrb[0].mxu0
    %v1751 = vadd.f32 0.0, %v1750
    %v1752 = vpop.f32.mrb[0].mxu0
    %v1753 = vadd.f32 0.0, %v1752
    %v1754 = vpop.f32.mrb[0].mxu0
    %v1755 = vpop.f32.mrb[0].mxu0
    %1756 = vdwg.mxu0
    %1757 = vmatprep.subr.bf16.mxu0 0
    %1758 = vmatpush1.bf16.msra.mxu0 %v884
    %1759 = vmatprep.subr.bf16.mxu0 0
    %1760 = vmatpush1.bf16.msra.mxu0 %v887
    %1761 = vmatprep.subr.bf16.mxu0 0
    %1762 = vmatpush1.bf16.msra.mxu0 %v890
    %1763 = vmatprep.subr.bf16.mxu0 0
    %1764 = vmatpush1.bf16.msra.mxu0 %v893
    %1765 = vmatprep.subr.bf16.mxu0 0
    %1766 = vmatpush1.bf16.msra.mxu0 %v896
    %1767 = vmatprep.subr.bf16.mxu0 0
    %1768 = vmatpush1.bf16.msra.mxu0 %v899
    %1769 = vmatprep.subr.bf16.mxu0 0
    %1770 = vmatpush1.bf16.msra.mxu0 %v902
    %1771 = vmatprep.subr.bf16.mxu0 0
    %1772 = vmatpush1.bf16.msra.mxu0 %v905
    %1773 = vmatprep.subr.bf16.mxu0 0
    %1774 = vmatpush1.bf16.msra.mxu0 0
    %1775 = vmatprep.subr.bf16.mxu0 0
    %1776 = vmatpush1.bf16.msra.mxu0 0
    %1777 = vmatprep.subr.bf16.mxu0 0
    %1778 = vmatpush1.bf16.msra.mxu0 0
    %1779 = vmatprep.subr.bf16.mxu0 0
    %1780 = vmatpush1.bf16.msra.mxu0 0
    %1781 = vmatprep.subr.bf16.mxu0 0
    %1782 = vmatpush1.bf16.msra.mxu0 0
    %1783 = vmatprep.subr.bf16.mxu0 0
    %1784 = vmatpush1.bf16.msra.mxu0 0
    %1785 = vmatprep.subr.bf16.mxu0 0
    %1786 = vmatpush1.bf16.msra.mxu0 0
    %1787 = vmatprep.subr.bf16.mxu0 0
    %1788 = vmatpush1.bf16.msra.mxu0 0
    %1789 = vmatprep.mubr.bf16.mxu0 0
    %1790 = vmatmul.mubr.bf16.gmra.mrb[0].mxu0 %v1715
    %v1791 = vpop.f32.mrb[0].mxu0
    %v1792 = vadd.f32 0.0, %v1791
    %v1793 = vpop.f32.mrb[0].mxu0
    %v1794 = vpop.f32.mrb[0].mxu0
    %v1795 = vpop.f32.mrb[0].mxu0
    %1796 = vdwg.mxu0
    %v1797 = vadd.f32 %v1712, %v1751
    %v1798 = vxor.u32 %v1797, 2147483648
    %v1799 = vmul.f32 %v1798, 1.442695
    %v1800 = vpow.pop %v1799
    %v1801 = vadd.f32 %v1800, 1.0
    %v1802 = vrcp.pop %v1801
    %v1803 = vmul.f32 1.0, %v1802
    %v1804 = vadd.f32 %v1713, %v1753
    %v1805 = vxor.u32 %v1804, 2147483648
    %v1806 = vmul.f32 %v1805, 1.442695
    %v1807 = vpow.pop %v1806
    %v1808 = vadd.f32 %v1807, 1.0
    %v1809 = vrcp.pop %v1808
    %v1810 = vmul.f32 1.0, %v1809
    %v1811 = vadd.f32 %v1792, %v756
    %v1812 = vmul.f32 %v1803, %v1811
    %v1813 = vadd.f32 %v1714, %v1812
    %v1814 = vtanh.pop %v1813
    %v1815 = vsub.f32 1.0, %v1810
    %v1816 = vmul.f32 %v1815, %v1814
    %v1817 = vmul.f32 %v1810, %v1598
    %v1818 = vadd.f32 %v1816, %v1817
    %s1819 = scalar_lea.vmem [#allocation3], 96
    %v1820 = vld [vmem:[%s1819] sm:$0xff]
    %v1821 = vld [vmem:[%s1819 + $0x8] sm:$0xff]
    %v1822 = vld [vmem:[%s1819 + $0x10] sm:$0xff]
    %v1823 = vpack.c.bf16 %v1706, %v1706
    %1824 = vmatprep.subr.bf16.mxu0 %v1118
    %1825 = vmatpush1.bf16.msra.mxu0 %v1117
    %1826 = vmatprep.subr.bf16.mxu0 %v1121
    %1827 = vmatpush1.bf16.msra.mxu0 %v1120
    %1828 = vmatprep.subr.bf16.mxu0 %v1124
    %1829 = vmatpush1.bf16.msra.mxu0 %v1123
    %1830 = vmatprep.subr.bf16.mxu0 %v1127
    %1831 = vmatpush1.bf16.msra.mxu0 %v1126
    %1832 = vmatprep.subr.bf16.mxu0 %v1130
    %1833 = vmatpush1.bf16.msra.mxu0 %v1129
    %1834 = vmatprep.subr.bf16.mxu0 %v1133
    %1835 = vmatpush1.bf16.msra.mxu0 %v1132
    %1836 = vmatprep.subr.bf16.mxu0 %v1136
    %1837 = vmatpush1.bf16.msra.mxu0 %v1135
    %1838 = vmatprep.subr.bf16.mxu0 %v1139
    %1839 = vmatpush1.bf16.msra.mxu0 %v1138
    %1840 = vmatprep.subr.bf16.mxu0 0
    %1841 = vmatpush1.bf16.msra.mxu0 0
    %1842 = vmatprep.subr.bf16.mxu0 0
    %1843 = vmatpush1.bf16.msra.mxu0 0
    %1844 = vmatprep.subr.bf16.mxu0 0
    %1845 = vmatpush1.bf16.msra.mxu0 0
    %1846 = vmatprep.subr.bf16.mxu0 0
    %1847 = vmatpush1.bf16.msra.mxu0 0
    %1848 = vmatprep.subr.bf16.mxu0 0
    %1849 = vmatpush1.bf16.msra.mxu0 0
    %1850 = vmatprep.subr.bf16.mxu0 0
    %1851 = vmatpush1.bf16.msra.mxu0 0
    %1852 = vmatprep.subr.bf16.mxu0 0
    %1853 = vmatpush1.bf16.msra.mxu0 0
    %1854 = vmatprep.subr.bf16.mxu0 0
    %1855 = vmatpush1.bf16.msra.mxu0 0
    %1856 = vmatprep.mubr.bf16.mxu0 0
    %1857 = vmatmul.mubr.bf16.gmra.mrb[0].mxu0 %v1823
    %v1858 = vpop.f32.mrb[0].mxu0
    %v1859 = vadd.f32 0.0, %v1858
    %v1860 = vpop.f32.mrb[0].mxu0
    %v1861 = vadd.f32 0.0, %v1860
    %v1862 = vpop.f32.mrb[0].mxu0
    %v1863 = vpop.f32.mrb[0].mxu0
    %1864 = vdwg.mxu0
    %1865 = vmatprep.subr.bf16.mxu0 0
    %1866 = vmatpush1.bf16.msra.mxu0 %v1119
    %1867 = vmatprep.subr.bf16.mxu0 0
    %1868 = vmatpush1.bf16.msra.mxu0 %v1122
    %1869 = vmatprep.subr.bf16.mxu0 0
    %1870 = vmatpush1.bf16.msra.mxu0 %v1125
    %1871 = vmatprep.subr.bf16.mxu0 0
    %1872 = vmatpush1.bf16.msra.mxu0 %v1128
    %1873 = vmatprep.subr.bf16.mxu0 0
    %1874 = vmatpush1.bf16.msra.mxu0 %v1131
    %1875 = vmatprep.subr.bf16.mxu0 0
    %1876 = vmatpush1.bf16.msra.mxu0 %v1134
    %1877 = vmatprep.subr.bf16.mxu0 0
    %1878 = vmatpush1.bf16.msra.mxu0 %v1137
    %1879 = vmatprep.subr.bf16.mxu0 0
    %1880 = vmatpush1.bf16.msra.mxu0 %v1140
    %1881 = vmatprep.subr.bf16.mxu0 0
    %1882 = vmatpush1.bf16.msra.mxu0 0
    %1883 = vmatprep.subr.bf16.mxu0 0
    %1884 = vmatpush1.bf16.msra.mxu0 0
    %1885 = vmatprep.subr.bf16.mxu0 0
    %1886 = vmatpush1.bf16.msra.mxu0 0
    %1887 = vmatprep.subr.bf16.mxu0 0
    %1888 = vmatpush1.bf16.msra.mxu0 0
    %1889 = vmatprep.subr.bf16.mxu0 0
    %1890 = vmatpush1.bf16.msra.mxu0 0
    %1891 = vmatprep.subr.bf16.mxu0 0
    %1892 = vmatpush1.bf16.msra.mxu0 0
    %1893 = vmatprep.subr.bf16.mxu0 0
    %1894 = vmatpush1.bf16.msra.mxu0 0
    %1895 = vmatprep.subr.bf16.mxu0 0
    %1896 = vmatpush1.bf16.msra.mxu0 0
    %1897 = vmatprep.mubr.bf16.mxu0 0
    %1898 = vmatmul.mubr.bf16.gmra.mrb[0].mxu0 %v1823
    %v1899 = vpop.f32.mrb[0].mxu0
    %v1900 = vadd.f32 0.0, %v1899
    %v1901 = vpop.f32.mrb[0].mxu0
    %v1902 = vpop.f32.mrb[0].mxu0
    %v1903 = vpop.f32.mrb[0].mxu0
    %1904 = vdwg.mxu0
    %v1905 = vadd.f32 %v1820, %v1859
    %v1906 = vxor.u32 %v1905, 2147483648
    %v1907 = vmul.f32 %v1906, 1.442695
    %v1908 = vpow.pop %v1907
    %v1909 = vadd.f32 %v1908, 1.0
    %v1910 = vrcp.pop %v1909
    %v1911 = vmul.f32 1.0, %v1910
    %v1912 = vadd.f32 %v1821, %v1861
    %v1913 = vxor.u32 %v1912, 2147483648
    %v1914 = vmul.f32 %v1913, 1.442695
    %v1915 = vpow.pop %v1914
    %v1916 = vadd.f32 %v1915, 1.0
    %v1917 = vrcp.pop %v1916
    %v1918 = vmul.f32 1.0, %v1917
    %v1919 = vadd.f32 %v1900, %v797
    %v1920 = vmul.f32 %v1911, %v1919
    %v1921 = vadd.f32 %v1822, %v1920
    %v1922 = vtanh.pop %v1921
    %v1923 = vsub.f32 1.0, %v1918
    %v1924 = vmul.f32 %v1923, %v1922
    %v1925 = vmul.f32 %v1918, %v1706
    %v1926 = vadd.f32 %v1924, %v1925
    %s1927 = scalar_lea.vmem [#allocation5], 24
    %1928 = vst [vmem:[%s1927] sm:$0xff] %v1818
    %s1929 = scalar_lea.vmem [#allocation6], 32
    %1930 = vst [vmem:[%s1929] sm:$0xff] %v1926
    %s1931 = scalar_lea.vmem [#allocation2], 96
    %v1932 = vld [vmem:[%s1931] sm:$0xff]
    %v1933 = vld [vmem:[%s1931 + $0x8] sm:$0xff]
    %v1934 = vld [vmem:[%s1931 + $0x10] sm:$0xff]
    %v1935 = vpack.c.bf16 %v1818, %v1818
    %1936 = vmatprep.subr.bf16.mxu0 %v883
    %1937 = vmatpush1.bf16.msra.mxu0 %v882
    %1938 = vmatprep.subr.bf16.mxu0 %v886
    %1939 = vmatpush1.bf16.msra.mxu0 %v885
    %1940 = vmatprep.subr.bf16.mxu0 %v889
    %1941 = vmatpush1.bf16.msra.mxu0 %v888
    %1942 = vmatprep.subr.bf16.mxu0 %v892
    %1943 = vmatpush1.bf16.msra.mxu0 %v891
    %1944 = vmatprep.subr.bf16.mxu0 %v895
    %1945 = vmatpush1.bf16.msra.mxu0 %v894
    %1946 = vmatprep.subr.bf16.mxu0 %v898
    %1947 = vmatpush1.bf16.msra.mxu0 %v897
    %1948 = vmatprep.subr.bf16.mxu0 %v901
    %1949 = vmatpush1.bf16.msra.mxu0 %v900
    %1950 = vmatprep.subr.bf16.mxu0 %v904
    %1951 = vmatpush1.bf16.msra.mxu0 %v903
    %1952 = vmatprep.subr.bf16.mxu0 0
    %1953 = vmatpush1.bf16.msra.mxu0 0
    %1954 = vmatprep.subr.bf16.mxu0 0
    %1955 = vmatpush1.bf16.msra.mxu0 0
    %1956 = vmatprep.subr.bf16.mxu0 0
    %1957 = vmatpush1.bf16.msra.mxu0 0
    %1958 = vmatprep.subr.bf16.mxu0 0
    %1959 = vmatpush1.bf16.msra.mxu0 0
    %1960 = vmatprep.subr.bf16.mxu0 0
    %1961 = vmatpush1.bf16.msra.mxu0 0
    %1962 = vmatprep.subr.bf16.mxu0 0
    %1963 = vmatpush1.bf16.msra.mxu0 0
    %1964 = vmatprep.subr.bf16.mxu0 0
    %1965 = vmatpush1.bf16.msra.mxu0 0
    %1966 = vmatprep.subr.bf16.mxu0 0
    %1967 = vmatpush1.bf16.msra.mxu0 0
    %1968 = vmatprep.mubr.bf16.mxu0 0
    %1969 = vmatmul.mubr.bf16.gmra.mrb[0].mxu0 %v1935
    %v1970 = vpop.f32.mrb[0].mxu0
    %v1971 = vadd.f32 0.0, %v1970
    %v1972 = vpop.f32.mrb[0].mxu0
    %v1973 = vadd.f32 0.0, %v1972
    %v1974 = vpop.f32.mrb[0].mxu0
    %v1975 = vpop.f32.mrb[0].mxu0
    %1976 = vdwg.mxu0
    %1977 = vmatprep.subr.bf16.mxu0 0
    %1978 = vmatpush1.bf16.msra.mxu0 %v884
    %1979 = vmatprep.subr.bf16.mxu0 0
    %1980 = vmatpush1.bf16.msra.mxu0 %v887
    %1981 = vmatprep.subr.bf16.mxu0 0
    %1982 = vmatpush1.bf16.msra.mxu0 %v890
    %1983 = vmatprep.subr.bf16.mxu0 0
    %1984 = vmatpush1.bf16.msra.mxu0 %v893
    %1985 = vmatprep.subr.bf16.mxu0 0
    %1986 = vmatpush1.bf16.msra.mxu0 %v896
    %1987 = vmatprep.subr.bf16.mxu0 0
    %1988 = vmatpush1.bf16.msra.mxu0 %v899
    %1989 = vmatprep.subr.bf16.mxu0 0
    %1990 = vmatpush1.bf16.msra.mxu0 %v902
    %1991 = vmatprep.subr.bf16.mxu0 0
    %1992 = vmatpush1.bf16.msra.mxu0 %v905
    %1993 = vmatprep.subr.bf16.mxu0 0
    %1994 = vmatpush1.bf16.msra.mxu0 0
    %1995 = vmatprep.subr.bf16.mxu0 0
    %1996 = vmatpush1.bf16.msra.mxu0 0
    %1997 = vmatprep.subr.bf16.mxu0 0
    %1998 = vmatpush1.bf16.msra.mxu0 0
    %1999 = vmatprep.subr.bf16.mxu0 0
    %2000 = vmatpush1.bf16.msra.mxu0 0
    %2001 = vmatprep.subr.bf16.mxu0 0
    %2002 = vmatpush1.bf16.msra.mxu0 0
    %2003 = vmatprep.subr.bf16.mxu0 0
    %2004 = vmatpush1.bf16.msra.mxu0 0
    %2005 = vmatprep.subr.bf16.mxu0 0
    %2006 = vmatpush1.bf16.msra.mxu0 0
    %2007 = vmatprep.subr.bf16.mxu0 0
    %2008 = vmatpush1.bf16.msra.mxu0 0
    %2009 = vmatprep.mubr.bf16.mxu0 0
    %2010 = vmatmul.mubr.bf16.gmra.mrb[0].mxu0 %v1935
    %v2011 = vpop.f32.mrb[0].mxu0
    %v2012 = vadd.f32 0.0, %v2011
    %v2013 = vpop.f32.mrb[0].mxu0
    %v2014 = vpop.f32.mrb[0].mxu0
    %v2015 = vpop.f32.mrb[0].mxu0
    %2016 = vdwg.mxu0
    %v2017 = vadd.f32 %v1932, %v1971
    %v2018 = vxor.u32 %v2017, 2147483648
    %v2019 = vmul.f32 %v2018, 1.442695
    %v2020 = vpow.pop %v2019
    %v2021 = vadd.f32 %v2020, 1.0
    %v2022 = vrcp.pop %v2021
    %v2023 = vmul.f32 1.0, %v2022
    %v2024 = vadd.f32 %v1933, %v1973
    %v2025 = vxor.u32 %v2024, 2147483648
    %v2026 = vmul.f32 %v2025, 1.442695
    %v2027 = vpow.pop %v2026
    %v2028 = vadd.f32 %v2027, 1.0
    %v2029 = vrcp.pop %v2028
    %v2030 = vmul.f32 1.0, %v2029
    %v2031 = vadd.f32 %v2012, %v756
    %v2032 = vmul.f32 %v2023, %v2031
    %v2033 = vadd.f32 %v1934, %v2032
    %v2034 = vtanh.pop %v2033
    %v2035 = vsub.f32 1.0, %v2030
    %v2036 = vmul.f32 %v2035, %v2034
    %v2037 = vmul.f32 %v2030, %v1818
    %v2038 = vadd.f32 %v2036, %v2037
    %s2039 = scalar_lea.vmem [#allocation3], 72
    %v2040 = vld [vmem:[%s2039] sm:$0xff]
    %v2041 = vld [vmem:[%s2039 + $0x8] sm:$0xff]
    %v2042 = vld [vmem:[%s2039 + $0x10] sm:$0xff]
    %v2043 = vpack.c.bf16 %v1926, %v1926
    %2044 = vmatprep.subr.bf16.mxu0 %v1118
    %2045 = vmatpush1.bf16.msra.mxu0 %v1117
    %2046 = vmatprep.subr.bf16.mxu0 %v1121
    %2047 = vmatpush1.bf16.msra.mxu0 %v1120
    %2048 = vmatprep.subr.bf16.mxu0 %v1124
    %2049 = vmatpush1.bf16.msra.mxu0 %v1123
    %2050 = vmatprep.subr.bf16.mxu0 %v1127
    %2051 = vmatpush1.bf16.msra.mxu0 %v1126
    %2052 = vmatprep.subr.bf16.mxu0 %v1130
    %2053 = vmatpush1.bf16.msra.mxu0 %v1129
    %2054 = vmatprep.subr.bf16.mxu0 %v1133
    %2055 = vmatpush1.bf16.msra.mxu0 %v1132
    %2056 = vmatprep.subr.bf16.mxu0 %v1136
    %2057 = vmatpush1.bf16.msra.mxu0 %v1135
    %2058 = vmatprep.subr.bf16.mxu0 %v1139
    %2059 = vmatpush1.bf16.msra.mxu0 %v1138
    %2060 = vmatprep.subr.bf16.mxu0 0
    %2061 = vmatpush1.bf16.msra.mxu0 0
    %2062 = vmatprep.subr.bf16.mxu0 0
    %2063 = vmatpush1.bf16.msra.mxu0 0
    %2064 = vmatprep.subr.bf16.mxu0 0
    %2065 = vmatpush1.bf16.msra.mxu0 0
    %2066 = vmatprep.subr.bf16.mxu0 0
    %2067 = vmatpush1.bf16.msra.mxu0 0
    %2068 = vmatprep.subr.bf16.mxu0 0
    %2069 = vmatpush1.bf16.msra.mxu0 0
    %2070 = vmatprep.subr.bf16.mxu0 0
    %2071 = vmatpush1.bf16.msra.mxu0 0
    %2072 = vmatprep.subr.bf16.mxu0 0
    %2073 = vmatpush1.bf16.msra.mxu0 0
    %2074 = vmatprep.subr.bf16.mxu0 0
    %2075 = vmatpush1.bf16.msra.mxu0 0
    %2076 = vmatprep.mubr.bf16.mxu0 0
    %2077 = vmatmul.mubr.bf16.gmra.mrb[0].mxu0 %v2043
    %v2078 = vpop.f32.mrb[0].mxu0
    %v2079 = vadd.f32 0.0, %v2078
    %v2080 = vpop.f32.mrb[0].mxu0
    %v2081 = vadd.f32 0.0, %v2080
    %v2082 = vpop.f32.mrb[0].mxu0
    %v2083 = vpop.f32.mrb[0].mxu0
    %2084 = vdwg.mxu0
    %2085 = vmatprep.subr.bf16.mxu0 0
    %2086 = vmatpush1.bf16.msra.mxu0 %v1119
    %2087 = vmatprep.subr.bf16.mxu0 0
    %2088 = vmatpush1.bf16.msra.mxu0 %v1122
    %2089 = vmatprep.subr.bf16.mxu0 0
    %2090 = vmatpush1.bf16.msra.mxu0 %v1125
    %2091 = vmatprep.subr.bf16.mxu0 0
    %2092 = vmatpush1.bf16.msra.mxu0 %v1128
    %2093 = vmatprep.subr.bf16.mxu0 0
    %2094 = vmatpush1.bf16.msra.mxu0 %v1131
    %2095 = vmatprep.subr.bf16.mxu0 0
    %2096 = vmatpush1.bf16.msra.mxu0 %v1134
    %2097 = vmatprep.subr.bf16.mxu0 0
    %2098 = vmatpush1.bf16.msra.mxu0 %v1137
    %2099 = vmatprep.subr.bf16.mxu0 0
    %2100 = vmatpush1.bf16.msra.mxu0 %v1140
    %2101 = vmatprep.subr.bf16.mxu0 0
    %2102 = vmatpush1.bf16.msra.mxu0 0
    %2103 = vmatprep.subr.bf16.mxu0 0
    %2104 = vmatpush1.bf16.msra.mxu0 0
    %2105 = vmatprep.subr.bf16.mxu0 0
    %2106 = vmatpush1.bf16.msra.mxu0 0
    %2107 = vmatprep.subr.bf16.mxu0 0
    %2108 = vmatpush1.bf16.msra.mxu0 0
    %2109 = vmatprep.subr.bf16.mxu0 0
    %2110 = vmatpush1.bf16.msra.mxu0 0
    %2111 = vmatprep.subr.bf16.mxu0 0
    %2112 = vmatpush1.bf16.msra.mxu0 0
    %2113 = vmatprep.subr.bf16.mxu0 0
    %2114 = vmatpush1.bf16.msra.mxu0 0
    %2115 = vmatprep.subr.bf16.mxu0 0
    %2116 = vmatpush1.bf16.msra.mxu0 0
    %2117 = vmatprep.mubr.bf16.mxu0 0
    %2118 = vmatmul.mubr.bf16.gmra.mrb[0].mxu0 %v2043
    %v2119 = vpop.f32.mrb[0].mxu0
    %v2120 = vadd.f32 0.0, %v2119
    %v2121 = vpop.f32.mrb[0].mxu0
    %v2122 = vpop.f32.mrb[0].mxu0
    %v2123 = vpop.f32.mrb[0].mxu0
    %2124 = vdwg.mxu0
    %v2125 = vadd.f32 %v2040, %v2079
    %v2126 = vxor.u32 %v2125, 2147483648
    %v2127 = vmul.f32 %v2126, 1.442695
    %v2128 = vpow.pop %v2127
    %v2129 = vadd.f32 %v2128, 1.0
    %v2130 = vrcp.pop %v2129
    %v2131 = vmul.f32 1.0, %v2130
    %v2132 = vadd.f32 %v2041, %v2081
    %v2133 = vxor.u32 %v2132, 2147483648
    %v2134 = vmul.f32 %v2133, 1.442695
    %v2135 = vpow.pop %v2134
    %v2136 = vadd.f32 %v2135, 1.0
    %v2137 = vrcp.pop %v2136
    %v2138 = vmul.f32 1.0, %v2137
    %v2139 = vadd.f32 %v2120, %v797
    %v2140 = vmul.f32 %v2131, %v2139
    %v2141 = vadd.f32 %v2042, %v2140
    %v2142 = vtanh.pop %v2141
    %v2143 = vsub.f32 1.0, %v2138
    %v2144 = vmul.f32 %v2143, %v2142
    %v2145 = vmul.f32 %v2138, %v1926
    %v2146 = vadd.f32 %v2144, %v2145
    %s2147 = scalar_lea.vmem [#allocation5], 32
    %2148 = vst [vmem:[%s2147] sm:$0xff] %v2038
    %s2149 = scalar_lea.vmem [#allocation6], 24
    %2150 = vst [vmem:[%s2149] sm:$0xff] %v2146
    %s2151 = scalar_lea.vmem [#allocation2], 120
    %v2152 = vld [vmem:[%s2151] sm:$0xff]
    %v2153 = vld [vmem:[%s2151 + $0x8] sm:$0xff]
    %v2154 = vld [vmem:[%s2151 + $0x10] sm:$0xff]
    %v2155 = vpack.c.bf16 %v2038, %v2038
    %2156 = vmatprep.subr.bf16.mxu0 %v883
    %2157 = vmatpush1.bf16.msra.mxu0 %v882
    %2158 = vmatprep.subr.bf16.mxu0 %v886
    %2159 = vmatpush1.bf16.msra.mxu0 %v885
    %2160 = vmatprep.subr.bf16.mxu0 %v889
    %2161 = vmatpush1.bf16.msra.mxu0 %v888
    %2162 = vmatprep.subr.bf16.mxu0 %v892
    %2163 = vmatpush1.bf16.msra.mxu0 %v891
    %2164 = vmatprep.subr.bf16.mxu0 %v895
    %2165 = vmatpush1.bf16.msra.mxu0 %v894
    %2166 = vmatprep.subr.bf16.mxu0 %v898
    %2167 = vmatpush1.bf16.msra.mxu0 %v897
    %2168 = vmatprep.subr.bf16.mxu0 %v901
    %2169 = vmatpush1.bf16.msra.mxu0 %v900
    %2170 = vmatprep.subr.bf16.mxu0 %v904
    %2171 = vmatpush1.bf16.msra.mxu0 %v903
    %2172 = vmatprep.subr.bf16.mxu0 0
    %2173 = vmatpush1.bf16.msra.mxu0 0
    %2174 = vmatprep.subr.bf16.mxu0 0
    %2175 = vmatpush1.bf16.msra.mxu0 0
    %2176 = vmatprep.subr.bf16.mxu0 0
    %2177 = vmatpush1.bf16.msra.mxu0 0
    %2178 = vmatprep.subr.bf16.mxu0 0
    %2179 = vmatpush1.bf16.msra.mxu0 0
    %2180 = vmatprep.subr.bf16.mxu0 0
    %2181 = vmatpush1.bf16.msra.mxu0 0
    %2182 = vmatprep.subr.bf16.mxu0 0
    %2183 = vmatpush1.bf16.msra.mxu0 0
    %2184 = vmatprep.subr.bf16.mxu0 0
    %2185 = vmatpush1.bf16.msra.mxu0 0
    %2186 = vmatprep.subr.bf16.mxu0 0
    %2187 = vmatpush1.bf16.msra.mxu0 0
    %2188 = vmatprep.mubr.bf16.mxu0 0
    %2189 = vmatmul.mubr.bf16.gmra.mrb[0].mxu0 %v2155
    %v2190 = vpop.f32.mrb[0].mxu0
    %v2191 = vadd.f32 0.0, %v2190
    %v2192 = vpop.f32.mrb[0].mxu0
    %v2193 = vadd.f32 0.0, %v2192
    %v2194 = vpop.f32.mrb[0].mxu0
    %v2195 = vpop.f32.mrb[0].mxu0
    %2196 = vdwg.mxu0
    %2197 = vmatprep.subr.bf16.mxu0 0
    %2198 = vmatpush1.bf16.msra.mxu0 %v884
    %2199 = vmatprep.subr.bf16.mxu0 0
    %2200 = vmatpush1.bf16.msra.mxu0 %v887
    %2201 = vmatprep.subr.bf16.mxu0 0
    %2202 = vmatpush1.bf16.msra.mxu0 %v890
    %2203 = vmatprep.subr.bf16.mxu0 0
    %2204 = vmatpush1.bf16.msra.mxu0 %v893
    %2205 = vmatprep.subr.bf16.mxu0 0
    %2206 = vmatpush1.bf16.msra.mxu0 %v896
    %2207 = vmatprep.subr.bf16.mxu0 0
    %2208 = vmatpush1.bf16.msra.mxu0 %v899
    %2209 = vmatprep.subr.bf16.mxu0 0
    %2210 = vmatpush1.bf16.msra.mxu0 %v902
    %2211 = vmatprep.subr.bf16.mxu0 0
    %2212 = vmatpush1.bf16.msra.mxu0 %v905
    %2213 = vmatprep.subr.bf16.mxu0 0
    %2214 = vmatpush1.bf16.msra.mxu0 0
    %2215 = vmatprep.subr.bf16.mxu0 0
    %2216 = vmatpush1.bf16.msra.mxu0 0
    %2217 = vmatprep.subr.bf16.mxu0 0
    %2218 = vmatpush1.bf16.msra.mxu0 0
    %2219 = vmatprep.subr.bf16.mxu0 0
    %2220 = vmatpush1.bf16.msra.mxu0 0
    %2221 = vmatprep.subr.bf16.mxu0 0
    %2222 = vmatpush1.bf16.msra.mxu0 0
    %2223 = vmatprep.subr.bf16.mxu0 0
    %2224 = vmatpush1.bf16.msra.mxu0 0
    %2225 = vmatprep.subr.bf16.mxu0 0
    %2226 = vmatpush1.bf16.msra.mxu0 0
    %2227 = vmatprep.subr.bf16.mxu0 0
    %2228 = vmatpush1.bf16.msra.mxu0 0
    %2229 = vmatprep.mubr.bf16.mxu0 0
    %2230 = vmatmul.mubr.bf16.gmra.mrb[0].mxu0 %v2155
    %v2231 = vpop.f32.mrb[0].mxu0
    %v2232 = vadd.f32 0.0, %v2231
    %v2233 = vpop.f32.mrb[0].mxu0
    %v2234 = vpop.f32.mrb[0].mxu0
    %v2235 = vpop.f32.mrb[0].mxu0
    %2236 = vdwg.mxu0
    %v2237 = vadd.f32 %v2152, %v2191
    %v2238 = vxor.u32 %v2237, 2147483648
    %v2239 = vmul.f32 %v2238, 1.442695
    %v2240 = vpow.pop %v2239
    %v2241 = vadd.f32 %v2240, 1.0
    %v2242 = vrcp.pop %v2241
    %v2243 = vmul.f32 1.0, %v2242
    %v2244 = vadd.f32 %v2153, %v2193
    %v2245 = vxor.u32 %v2244, 2147483648
    %v2246 = vmul.f32 %v2245, 1.442695
    %v2247 = vpow.pop %v2246
    %v2248 = vadd.f32 %v2247, 1.0
    %v2249 = vrcp.pop %v2248
    %v2250 = vmul.f32 1.0, %v2249
    %v2251 = vadd.f32 %v2232, %v756
    %v2252 = vmul.f32 %v2243, %v2251
    %v2253 = vadd.f32 %v2154, %v2252
    %v2254 = vtanh.pop %v2253
    %v2255 = vsub.f32 1.0, %v2250
    %v2256 = vmul.f32 %v2255, %v2254
    %v2257 = vmul.f32 %v2250, %v2038
    %v2258 = vadd.f32 %v2256, %v2257
    %s2259 = scalar_lea.vmem [#allocation3], 48
    %v2260 = vld [vmem:[%s2259] sm:$0xff]
    %v2261 = vld [vmem:[%s2259 + $0x8] sm:$0xff]
    %v2262 = vld [vmem:[%s2259 + $0x10] sm:$0xff]
    %v2263 = vpack.c.bf16 %v2146, %v2146
    %2264 = vmatprep.subr.bf16.mxu0 %v1118
    %2265 = vmatpush1.bf16.msra.mxu0 %v1117
    %2266 = vmatprep.subr.bf16.mxu0 %v1121
    %2267 = vmatpush1.bf16.msra.mxu0 %v1120
    %2268 = vmatprep.subr.bf16.mxu0 %v1124
    %2269 = vmatpush1.bf16.msra.mxu0 %v1123
    %2270 = vmatprep.subr.bf16.mxu0 %v1127
    %2271 = vmatpush1.bf16.msra.mxu0 %v1126
    %2272 = vmatprep.subr.bf16.mxu0 %v1130
    %2273 = vmatpush1.bf16.msra.mxu0 %v1129
    %2274 = vmatprep.subr.bf16.mxu0 %v1133
    %2275 = vmatpush1.bf16.msra.mxu0 %v1132
    %2276 = vmatprep.subr.bf16.mxu0 %v1136
    %2277 = vmatpush1.bf16.msra.mxu0 %v1135
    %2278 = vmatprep.subr.bf16.mxu0 %v1139
    %2279 = vmatpush1.bf16.msra.mxu0 %v1138
    %2280 = vmatprep.subr.bf16.mxu0 0
    %2281 = vmatpush1.bf16.msra.mxu0 0
    %2282 = vmatprep.subr.bf16.mxu0 0
    %2283 = vmatpush1.bf16.msra.mxu0 0
    %2284 = vmatprep.subr.bf16.mxu0 0
    %2285 = vmatpush1.bf16.msra.mxu0 0
    %2286 = vmatprep.subr.bf16.mxu0 0
    %2287 = vmatpush1.bf16.msra.mxu0 0
    %2288 = vmatprep.subr.bf16.mxu0 0
    %2289 = vmatpush1.bf16.msra.mxu0 0
    %2290 = vmatprep.subr.bf16.mxu0 0
    %2291 = vmatpush1.bf16.msra.mxu0 0
    %2292 = vmatprep.subr.bf16.mxu0 0
    %2293 = vmatpush1.bf16.msra.mxu0 0
    %2294 = vmatprep.subr.bf16.mxu0 0
    %2295 = vmatpush1.bf16.msra.mxu0 0
    %2296 = vmatprep.mubr.bf16.mxu0 0
    %2297 = vmatmul.mubr.bf16.gmra.mrb[0].mxu0 %v2263
    %v2298 = vpop.f32.mrb[0].mxu0
    %v2299 = vadd.f32 0.0, %v2298
    %v2300 = vpop.f32.mrb[0].mxu0
    %v2301 = vadd.f32 0.0, %v2300
    %v2302 = vpop.f32.mrb[0].mxu0
    %v2303 = vpop.f32.mrb[0].mxu0
    %2304 = vdwg.mxu0
    %2305 = vmatprep.subr.bf16.mxu0 0
    %2306 = vmatpush1.bf16.msra.mxu0 %v1119
    %2307 = vmatprep.subr.bf16.mxu0 0
    %2308 = vmatpush1.bf16.msra.mxu0 %v1122
    %2309 = vmatprep.subr.bf16.mxu0 0
    %2310 = vmatpush1.bf16.msra.mxu0 %v1125
    %2311 = vmatprep.subr.bf16.mxu0 0
    %2312 = vmatpush1.bf16.msra.mxu0 %v1128
    %2313 = vmatprep.subr.bf16.mxu0 0
    %2314 = vmatpush1.bf16.msra.mxu0 %v1131
    %2315 = vmatprep.subr.bf16.mxu0 0
    %2316 = vmatpush1.bf16.msra.mxu0 %v1134
    %2317 = vmatprep.subr.bf16.mxu0 0
    %2318 = vmatpush1.bf16.msra.mxu0 %v1137
    %2319 = vmatprep.subr.bf16.mxu0 0
    %2320 = vmatpush1.bf16.msra.mxu0 %v1140
    %2321 = vmatprep.subr.bf16.mxu0 0
    %2322 = vmatpush1.bf16.msra.mxu0 0
    %2323 = vmatprep.subr.bf16.mxu0 0
    %2324 = vmatpush1.bf16.msra.mxu0 0
    %2325 = vmatprep.subr.bf16.mxu0 0
    %2326 = vmatpush1.bf16.msra.mxu0 0
    %2327 = vmatprep.subr.bf16.mxu0 0
    %2328 = vmatpush1.bf16.msra.mxu0 0
    %2329 = vmatprep.subr.bf16.mxu0 0
    %2330 = vmatpush1.bf16.msra.mxu0 0
    %2331 = vmatprep.subr.bf16.mxu0 0
    %2332 = vmatpush1.bf16.msra.mxu0 0
    %2333 = vmatprep.subr.bf16.mxu0 0
    %2334 = vmatpush1.bf16.msra.mxu0 0
    %2335 = vmatprep.subr.bf16.mxu0 0
    %2336 = vmatpush1.bf16.msra.mxu0 0
    %2337 = vmatprep.mubr.bf16.mxu0 0
    %2338 = vmatmul.mubr.bf16.gmra.mrb[0].mxu0 %v2263
    %v2339 = vpop.f32.mrb[0].mxu0
    %v2340 = vadd.f32 0.0, %v2339
    %v2341 = vpop.f32.mrb[0].mxu0
    %v2342 = vpop.f32.mrb[0].mxu0
    %v2343 = vpop.f32.mrb[0].mxu0
    %2344 = vdwg.mxu0
    %v2345 = vadd.f32 %v2260, %v2299
    %v2346 = vxor.u32 %v2345, 2147483648
    %v2347 = vmul.f32 %v2346, 1.442695
    %v2348 = vpow.pop %v2347
    %v2349 = vadd.f32 %v2348, 1.0
    %v2350 = vrcp.pop %v2349
    %v2351 = vmul.f32 1.0, %v2350
    %v2352 = vadd.f32 %v2261, %v2301
    %v2353 = vxor.u32 %v2352, 2147483648
    %v2354 = vmul.f32 %v2353, 1.442695
    %v2355 = vpow.pop %v2354
    %v2356 = vadd.f32 %v2355, 1.0
    %v2357 = vrcp.pop %v2356
    %v2358 = vmul.f32 1.0, %v2357
    %v2359 = vadd.f32 %v2340, %v797
    %v2360 = vmul.f32 %v2351, %v2359
    %v2361 = vadd.f32 %v2262, %v2360
    %v2362 = vtanh.pop %v2361
    %v2363 = vsub.f32 1.0, %v2358
    %v2364 = vmul.f32 %v2363, %v2362
    %v2365 = vmul.f32 %v2358, %v2146
    %v2366 = vadd.f32 %v2364, %v2365
    %s2367 = scalar_lea.vmem [#allocation5], 40
    %2368 = vst [vmem:[%s2367] sm:$0xff] %v2258
    %s2369 = scalar_lea.vmem [#allocation6], 16
    %2370 = vst [vmem:[%s2369] sm:$0xff] %v2366
    %s2371 = scalar_lea.vmem [#allocation2], 144
    %v2372 = vld [vmem:[%s2371] sm:$0xff]
    %v2373 = vld [vmem:[%s2371 + $0x8] sm:$0xff]
    %v2374 = vld [vmem:[%s2371 + $0x10] sm:$0xff]
    %v2375 = vpack.c.bf16 %v2258, %v2258
    %2376 = vmatprep.subr.bf16.mxu0 %v883
    %2377 = vmatpush1.bf16.msra.mxu0 %v882
    %2378 = vmatprep.subr.bf16.mxu0 %v886
    %2379 = vmatpush1.bf16.msra.mxu0 %v885
    %2380 = vmatprep.subr.bf16.mxu0 %v889
    %2381 = vmatpush1.bf16.msra.mxu0 %v888
    %2382 = vmatprep.subr.bf16.mxu0 %v892
    %2383 = vmatpush1.bf16.msra.mxu0 %v891
    %2384 = vmatprep.subr.bf16.mxu0 %v895
    %2385 = vmatpush1.bf16.msra.mxu0 %v894
    %2386 = vmatprep.subr.bf16.mxu0 %v898
    %2387 = vmatpush1.bf16.msra.mxu0 %v897
    %2388 = vmatprep.subr.bf16.mxu0 %v901
    %2389 = vmatpush1.bf16.msra.mxu0 %v900
    %2390 = vmatprep.subr.bf16.mxu0 %v904
    %2391 = vmatpush1.bf16.msra.mxu0 %v903
    %2392 = vmatprep.subr.bf16.mxu0 0
    %2393 = vmatpush1.bf16.msra.mxu0 0
    %2394 = vmatprep.subr.bf16.mxu0 0
    %2395 = vmatpush1.bf16.msra.mxu0 0
    %2396 = vmatprep.subr.bf16.mxu0 0
    %2397 = vmatpush1.bf16.msra.mxu0 0
    %2398 = vmatprep.subr.bf16.mxu0 0
    %2399 = vmatpush1.bf16.msra.mxu0 0
    %2400 = vmatprep.subr.bf16.mxu0 0
    %2401 = vmatpush1.bf16.msra.mxu0 0
    %2402 = vmatprep.subr.bf16.mxu0 0
    %2403 = vmatpush1.bf16.msra.mxu0 0
    %2404 = vmatprep.subr.bf16.mxu0 0
    %2405 = vmatpush1.bf16.msra.mxu0 0
    %2406 = vmatprep.subr.bf16.mxu0 0
    %2407 = vmatpush1.bf16.msra.mxu0 0
    %2408 = vmatprep.mubr.bf16.mxu0 0
    %2409 = vmatmul.mubr.bf16.gmra.mrb[0].mxu0 %v2375
    %v2410 = vpop.f32.mrb[0].mxu0
    %v2411 = vadd.f32 0.0, %v2410
    %v2412 = vpop.f32.mrb[0].mxu0
    %v2413 = vadd.f32 0.0, %v2412
    %v2414 = vpop.f32.mrb[0].mxu0
    %v2415 = vpop.f32.mrb[0].mxu0
    %2416 = vdwg.mxu0
    %2417 = vmatprep.subr.bf16.mxu0 0
    %2418 = vmatpush1.bf16.msra.mxu0 %v884
    %2419 = vmatprep.subr.bf16.mxu0 0
    %2420 = vmatpush1.bf16.msra.mxu0 %v887
    %2421 = vmatprep.subr.bf16.mxu0 0
    %2422 = vmatpush1.bf16.msra.mxu0 %v890
    %2423 = vmatprep.subr.bf16.mxu0 0
    %2424 = vmatpush1.bf16.msra.mxu0 %v893
    %2425 = vmatprep.subr.bf16.mxu0 0
    %2426 = vmatpush1.bf16.msra.mxu0 %v896
    %2427 = vmatprep.subr.bf16.mxu0 0
    %2428 = vmatpush1.bf16.msra.mxu0 %v899
    %2429 = vmatprep.subr.bf16.mxu0 0
    %2430 = vmatpush1.bf16.msra.mxu0 %v902
    %2431 = vmatprep.subr.bf16.mxu0 0
    %2432 = vmatpush1.bf16.msra.mxu0 %v905
    %2433 = vmatprep.subr.bf16.mxu0 0
    %2434 = vmatpush1.bf16.msra.mxu0 0
    %2435 = vmatprep.subr.bf16.mxu0 0
    %2436 = vmatpush1.bf16.msra.mxu0 0
    %2437 = vmatprep.subr.bf16.mxu0 0
    %2438 = vmatpush1.bf16.msra.mxu0 0
    %2439 = vmatprep.subr.bf16.mxu0 0
    %2440 = vmatpush1.bf16.msra.mxu0 0
    %2441 = vmatprep.subr.bf16.mxu0 0
    %2442 = vmatpush1.bf16.msra.mxu0 0
    %2443 = vmatprep.subr.bf16.mxu0 0
    %2444 = vmatpush1.bf16.msra.mxu0 0
    %2445 = vmatprep.subr.bf16.mxu0 0
    %2446 = vmatpush1.bf16.msra.mxu0 0
    %2447 = vmatprep.subr.bf16.mxu0 0
    %2448 = vmatpush1.bf16.msra.mxu0 0
    %2449 = vmatprep.mubr.bf16.mxu0 0
    %2450 = vmatmul.mubr.bf16.gmra.mrb[0].mxu0 %v2375
    %v2451 = vpop.f32.mrb[0].mxu0
    %v2452 = vadd.f32 0.0, %v2451
    %v2453 = vpop.f32.mrb[0].mxu0
    %v2454 = vpop.f32.mrb[0].mxu0
    %v2455 = vpop.f32.mrb[0].mxu0
    %2456 = vdwg.mxu0
    %v2457 = vadd.f32 %v2372, %v2411
    %v2458 = vxor.u32 %v2457, 2147483648
    %v2459 = vmul.f32 %v2458, 1.442695
    %v2460 = vpow.pop %v2459
    %v2461 = vadd.f32 %v2460, 1.0
    %v2462 = vrcp.pop %v2461
    %v2463 = vmul.f32 1.0, %v2462
    %v2464 = vadd.f32 %v2373, %v2413
    %v2465 = vxor.u32 %v2464, 2147483648
    %v2466 = vmul.f32 %v2465, 1.442695
    %v2467 = vpow.pop %v2466
    %v2468 = vadd.f32 %v2467, 1.0
    %v2469 = vrcp.pop %v2468
    %v2470 = vmul.f32 1.0, %v2469
    %v2471 = vadd.f32 %v2452, %v756
    %v2472 = vmul.f32 %v2463, %v2471
    %v2473 = vadd.f32 %v2374, %v2472
    %v2474 = vtanh.pop %v2473
    %v2475 = vsub.f32 1.0, %v2470
    %v2476 = vmul.f32 %v2475, %v2474
    %v2477 = vmul.f32 %v2470, %v2258
    %v2478 = vadd.f32 %v2476, %v2477
    %s2479 = scalar_lea.vmem [#allocation3], 24
    %v2480 = vld [vmem:[%s2479] sm:$0xff]
    %v2481 = vld [vmem:[%s2479 + $0x8] sm:$0xff]
    %v2482 = vld [vmem:[%s2479 + $0x10] sm:$0xff]
    %v2483 = vpack.c.bf16 %v2366, %v2366
    %2484 = vmatprep.subr.bf16.mxu0 %v1118
    %2485 = vmatpush1.bf16.msra.mxu0 %v1117
    %2486 = vmatprep.subr.bf16.mxu0 %v1121
    %2487 = vmatpush1.bf16.msra.mxu0 %v1120
    %2488 = vmatprep.subr.bf16.mxu0 %v1124
    %2489 = vmatpush1.bf16.msra.mxu0 %v1123
    %2490 = vmatprep.subr.bf16.mxu0 %v1127
    %2491 = vmatpush1.bf16.msra.mxu0 %v1126
    %2492 = vmatprep.subr.bf16.mxu0 %v1130
    %2493 = vmatpush1.bf16.msra.mxu0 %v1129
    %2494 = vmatprep.subr.bf16.mxu0 %v1133
    %2495 = vmatpush1.bf16.msra.mxu0 %v1132
    %2496 = vmatprep.subr.bf16.mxu0 %v1136
    %2497 = vmatpush1.bf16.msra.mxu0 %v1135
    %2498 = vmatprep.subr.bf16.mxu0 %v1139
    %2499 = vmatpush1.bf16.msra.mxu0 %v1138
    %2500 = vmatprep.subr.bf16.mxu0 0
    %2501 = vmatpush1.bf16.msra.mxu0 0
    %2502 = vmatprep.subr.bf16.mxu0 0
    %2503 = vmatpush1.bf16.msra.mxu0 0
    %2504 = vmatprep.subr.bf16.mxu0 0
    %2505 = vmatpush1.bf16.msra.mxu0 0
    %2506 = vmatprep.subr.bf16.mxu0 0
    %2507 = vmatpush1.bf16.msra.mxu0 0
    %2508 = vmatprep.subr.bf16.mxu0 0
    %2509 = vmatpush1.bf16.msra.mxu0 0
    %2510 = vmatprep.subr.bf16.mxu0 0
    %2511 = vmatpush1.bf16.msra.mxu0 0
    %2512 = vmatprep.subr.bf16.mxu0 0
    %2513 = vmatpush1.bf16.msra.mxu0 0
    %2514 = vmatprep.subr.bf16.mxu0 0
    %2515 = vmatpush1.bf16.msra.mxu0 0
    %2516 = vmatprep.mubr.bf16.mxu0 0
    %2517 = vmatmul.mubr.bf16.gmra.mrb[0].mxu0 %v2483
    %v2518 = vpop.f32.mrb[0].mxu0
    %v2519 = vadd.f32 0.0, %v2518
    %v2520 = vpop.f32.mrb[0].mxu0
    %v2521 = vadd.f32 0.0, %v2520
    %v2522 = vpop.f32.mrb[0].mxu0
    %v2523 = vpop.f32.mrb[0].mxu0
    %2524 = vdwg.mxu0
    %2525 = vmatprep.subr.bf16.mxu0 0
    %2526 = vmatpush1.bf16.msra.mxu0 %v1119
    %2527 = vmatprep.subr.bf16.mxu0 0
    %2528 = vmatpush1.bf16.msra.mxu0 %v1122
    %2529 = vmatprep.subr.bf16.mxu0 0
    %2530 = vmatpush1.bf16.msra.mxu0 %v1125
    %2531 = vmatprep.subr.bf16.mxu0 0
    %2532 = vmatpush1.bf16.msra.mxu0 %v1128
    %2533 = vmatprep.subr.bf16.mxu0 0
    %2534 = vmatpush1.bf16.msra.mxu0 %v1131
    %2535 = vmatprep.subr.bf16.mxu0 0
    %2536 = vmatpush1.bf16.msra.mxu0 %v1134
    %2537 = vmatprep.subr.bf16.mxu0 0
    %2538 = vmatpush1.bf16.msra.mxu0 %v1137
    %2539 = vmatprep.subr.bf16.mxu0 0
    %2540 = vmatpush1.bf16.msra.mxu0 %v1140
    %2541 = vmatprep.subr.bf16.mxu0 0
    %2542 = vmatpush1.bf16.msra.mxu0 0
    %2543 = vmatprep.subr.bf16.mxu0 0
    %2544 = vmatpush1.bf16.msra.mxu0 0
    %2545 = vmatprep.subr.bf16.mxu0 0
    %2546 = vmatpush1.bf16.msra.mxu0 0
    %2547 = vmatprep.subr.bf16.mxu0 0
    %2548 = vmatpush1.bf16.msra.mxu0 0
    %2549 = vmatprep.subr.bf16.mxu0 0
    %2550 = vmatpush1.bf16.msra.mxu0 0
    %2551 = vmatprep.subr.bf16.mxu0 0
    %2552 = vmatpush1.bf16.msra.mxu0 0
    %2553 = vmatprep.subr.bf16.mxu0 0
    %2554 = vmatpush1.bf16.msra.mxu0 0
    %2555 = vmatprep.subr.bf16.mxu0 0
    %2556 = vmatpush1.bf16.msra.mxu0 0
    %2557 = vmatprep.mubr.bf16.mxu0 0
    %2558 = vmatmul.mubr.bf16.gmra.mrb[0].mxu0 %v2483
    %v2559 = vpop.f32.mrb[0].mxu0
    %v2560 = vadd.f32 0.0, %v2559
    %v2561 = vpop.f32.mrb[0].mxu0
    %v2562 = vpop.f32.mrb[0].mxu0
    %v2563 = vpop.f32.mrb[0].mxu0
    %2564 = vdwg.mxu0
    %v2565 = vadd.f32 %v2480, %v2519
    %v2566 = vxor.u32 %v2565, 2147483648
    %v2567 = vmul.f32 %v2566, 1.442695
    %v2568 = vpow.pop %v2567
    %v2569 = vadd.f32 %v2568, 1.0
    %v2570 = vrcp.pop %v2569
    %v2571 = vmul.f32 1.0, %v2570
    %v2572 = vadd.f32 %v2481, %v2521
    %v2573 = vxor.u32 %v2572, 2147483648
    %v2574 = vmul.f32 %v2573, 1.442695
    %v2575 = vpow.pop %v2574
    %v2576 = vadd.f32 %v2575, 1.0
    %v2577 = vrcp.pop %v2576
    %v2578 = vmul.f32 1.0, %v2577
    %v2579 = vadd.f32 %v2560, %v797
    %v2580 = vmul.f32 %v2571, %v2579
    %v2581 = vadd.f32 %v2482, %v2580
    %v2582 = vtanh.pop %v2581
    %v2583 = vsub.f32 1.0, %v2578
    %v2584 = vmul.f32 %v2583, %v2582
    %v2585 = vmul.f32 %v2578, %v2366
    %v2586 = vadd.f32 %v2584, %v2585
    %s2587 = scalar_lea.vmem [#allocation5], 48
    %2588 = vst [vmem:[%s2587] sm:$0xff] %v2478
    %s2589 = scalar_lea.vmem [#allocation6], 8
    %2590 = vst [vmem:[%s2589] sm:$0xff] %v2586
    %s2591 = scalar_lea.vmem [#allocation2], 168
    %v2592 = vld [vmem:[%s2591] sm:$0xff]
    %v2593 = vld [vmem:[%s2591 + $0x8] sm:$0xff]
    %v2594 = vld [vmem:[%s2591 + $0x10] sm:$0xff]
    %v2595 = vpack.c.bf16 %v2478, %v2478
    %2596 = vmatprep.subr.bf16.mxu0 %v883
    %2597 = vmatpush1.bf16.msra.mxu0 %v882
    %2598 = vmatprep.subr.bf16.mxu0 %v886
    %2599 = vmatpush1.bf16.msra.mxu0 %v885
    %2600 = vmatprep.subr.bf16.mxu0 %v889
    %2601 = vmatpush1.bf16.msra.mxu0 %v888
    %2602 = vmatprep.subr.bf16.mxu0 %v892
    %2603 = vmatpush1.bf16.msra.mxu0 %v891
    %2604 = vmatprep.subr.bf16.mxu0 %v895
    %2605 = vmatpush1.bf16.msra.mxu0 %v894
    %2606 = vmatprep.subr.bf16.mxu0 %v898
    %2607 = vmatpush1.bf16.msra.mxu0 %v897
    %2608 = vmatprep.subr.bf16.mxu0 %v901
    %2609 = vmatpush1.bf16.msra.mxu0 %v900
    %2610 = vmatprep.subr.bf16.mxu0 %v904
    %2611 = vmatpush1.bf16.msra.mxu0 %v903
    %2612 = vmatprep.subr.bf16.mxu0 0
    %2613 = vmatpush1.bf16.msra.mxu0 0
    %2614 = vmatprep.subr.bf16.mxu0 0
    %2615 = vmatpush1.bf16.msra.mxu0 0
    %2616 = vmatprep.subr.bf16.mxu0 0
    %2617 = vmatpush1.bf16.msra.mxu0 0
    %2618 = vmatprep.subr.bf16.mxu0 0
    %2619 = vmatpush1.bf16.msra.mxu0 0
    %2620 = vmatprep.subr.bf16.mxu0 0
    %2621 = vmatpush1.bf16.msra.mxu0 0
    %2622 = vmatprep.subr.bf16.mxu0 0
    %2623 = vmatpush1.bf16.msra.mxu0 0
    %2624 = vmatprep.subr.bf16.mxu0 0
    %2625 = vmatpush1.bf16.msra.mxu0 0
    %2626 = vmatprep.subr.bf16.mxu0 0
    %2627 = vmatpush1.bf16.msra.mxu0 0
    %2628 = vmatprep.mubr.bf16.mxu0 0
    %2629 = vmatmul.mubr.bf16.gmra.mrb[0].mxu0 %v2595
    %v2630 = vpop.f32.mrb[0].mxu0
    %v2631 = vadd.f32 0.0, %v2630
    %v2632 = vpop.f32.mrb[0].mxu0
    %v2633 = vadd.f32 0.0, %v2632
    %v2634 = vpop.f32.mrb[0].mxu0
    %v2635 = vpop.f32.mrb[0].mxu0
    %2636 = vdwg.mxu0
    %2637 = vmatprep.subr.bf16.mxu0 0
    %2638 = vmatpush1.bf16.msra.mxu0 %v884
    %2639 = vmatprep.subr.bf16.mxu0 0
    %2640 = vmatpush1.bf16.msra.mxu0 %v887
    %2641 = vmatprep.subr.bf16.mxu0 0
    %2642 = vmatpush1.bf16.msra.mxu0 %v890
    %2643 = vmatprep.subr.bf16.mxu0 0
    %2644 = vmatpush1.bf16.msra.mxu0 %v893
    %2645 = vmatprep.subr.bf16.mxu0 0
    %2646 = vmatpush1.bf16.msra.mxu0 %v896
    %2647 = vmatprep.subr.bf16.mxu0 0
    %2648 = vmatpush1.bf16.msra.mxu0 %v899
    %2649 = vmatprep.subr.bf16.mxu0 0
    %2650 = vmatpush1.bf16.msra.mxu0 %v902
    %2651 = vmatprep.subr.bf16.mxu0 0
    %2652 = vmatpush1.bf16.msra.mxu0 %v905
    %2653 = vmatprep.subr.bf16.mxu0 0
    %2654 = vmatpush1.bf16.msra.mxu0 0
    %2655 = vmatprep.subr.bf16.mxu0 0
    %2656 = vmatpush1.bf16.msra.mxu0 0
    %2657 = vmatprep.subr.bf16.mxu0 0
    %2658 = vmatpush1.bf16.msra.mxu0 0
    %2659 = vmatprep.subr.bf16.mxu0 0
    %2660 = vmatpush1.bf16.msra.mxu0 0
    %2661 = vmatprep.subr.bf16.mxu0 0
    %2662 = vmatpush1.bf16.msra.mxu0 0
    %2663 = vmatprep.subr.bf16.mxu0 0
    %2664 = vmatpush1.bf16.msra.mxu0 0
    %2665 = vmatprep.subr.bf16.mxu0 0
    %2666 = vmatpush1.bf16.msra.mxu0 0
    %2667 = vmatprep.subr.bf16.mxu0 0
    %2668 = vmatpush1.bf16.msra.mxu0 0
    %2669 = vmatprep.mubr.bf16.mxu0 0
    %2670 = vmatmul.mubr.bf16.gmra.mrb[0].mxu0 %v2595
    %v2671 = vpop.f32.mrb[0].mxu0
    %v2672 = vadd.f32 0.0, %v2671
    %v2673 = vpop.f32.mrb[0].mxu0
    %v2674 = vpop.f32.mrb[0].mxu0
    %v2675 = vpop.f32.mrb[0].mxu0
    %2676 = vdwg.mxu0
    %v2677 = vadd.f32 %v2592, %v2631
    %v2678 = vxor.u32 %v2677, 2147483648
    %v2679 = vmul.f32 %v2678, 1.442695
    %v2680 = vpow.pop %v2679
    %v2681 = vadd.f32 %v2680, 1.0
    %v2682 = vrcp.pop %v2681
    %v2683 = vmul.f32 1.0, %v2682
    %v2684 = vadd.f32 %v2593, %v2633
    %v2685 = vxor.u32 %v2684, 2147483648
    %v2686 = vmul.f32 %v2685, 1.442695
    %v2687 = vpow.pop %v2686
    %v2688 = vadd.f32 %v2687, 1.0
    %v2689 = vrcp.pop %v2688
    %v2690 = vmul.f32 1.0, %v2689
    %v2691 = vadd.f32 %v2672, %v756
    %v2692 = vmul.f32 %v2683, %v2691
    %v2693 = vadd.f32 %v2594, %v2692
    %v2694 = vtanh.pop %v2693
    %v2695 = vsub.f32 1.0, %v2690
    %v2696 = vmul.f32 %v2695, %v2694
    %v2697 = vmul.f32 %v2690, %v2478
    %v2698 = vadd.f32 %v2696, %v2697
    %v2699 = vld [vmem:[#allocation3] sm:$0xff]
    %v2700 = vld [vmem:[#allocation3 + $0x8] sm:$0xff]
    %v2701 = vld [vmem:[#allocation3 + $0x10] sm:$0xff]
    %v2702 = vpack.c.bf16 %v2586, %v2586
    %2703 = vmatprep.subr.bf16.mxu0 %v1118
    %2704 = vmatpush1.bf16.msra.mxu0 %v1117
    %2705 = vmatprep.subr.bf16.mxu0 %v1121
    %2706 = vmatpush1.bf16.msra.mxu0 %v1120
    %2707 = vmatprep.subr.bf16.mxu0 %v1124
    %2708 = vmatpush1.bf16.msra.mxu0 %v1123
    %2709 = vmatprep.subr.bf16.mxu0 %v1127
    %2710 = vmatpush1.bf16.msra.mxu0 %v1126
    %2711 = vmatprep.subr.bf16.mxu0 %v1130
    %2712 = vmatpush1.bf16.msra.mxu0 %v1129
    %2713 = vmatprep.subr.bf16.mxu0 %v1133
    %2714 = vmatpush1.bf16.msra.mxu0 %v1132
    %2715 = vmatprep.subr.bf16.mxu0 %v1136
    %2716 = vmatpush1.bf16.msra.mxu0 %v1135
    %2717 = vmatprep.subr.bf16.mxu0 %v1139
    %2718 = vmatpush1.bf16.msra.mxu0 %v1138
    %2719 = vmatprep.subr.bf16.mxu0 0
    %2720 = vmatpush1.bf16.msra.mxu0 0
    %2721 = vmatprep.subr.bf16.mxu0 0
    %2722 = vmatpush1.bf16.msra.mxu0 0
    %2723 = vmatprep.subr.bf16.mxu0 0
    %2724 = vmatpush1.bf16.msra.mxu0 0
    %2725 = vmatprep.subr.bf16.mxu0 0
    %2726 = vmatpush1.bf16.msra.mxu0 0
    %2727 = vmatprep.subr.bf16.mxu0 0
    %2728 = vmatpush1.bf16.msra.mxu0 0
    %2729 = vmatprep.subr.bf16.mxu0 0
    %2730 = vmatpush1.bf16.msra.mxu0 0
    %2731 = vmatprep.subr.bf16.mxu0 0
    %2732 = vmatpush1.bf16.msra.mxu0 0
    %2733 = vmatprep.subr.bf16.mxu0 0
    %2734 = vmatpush1.bf16.msra.mxu0 0
    %2735 = vmatprep.mubr.bf16.mxu0 0
    %2736 = vmatmul.mubr.bf16.gmra.mrb[0].mxu0 %v2702
    %v2737 = vpop.f32.mrb[0].mxu0
    %v2738 = vadd.f32 0.0, %v2737
    %v2739 = vpop.f32.mrb[0].mxu0
    %v2740 = vadd.f32 0.0, %v2739
    %v2741 = vpop.f32.mrb[0].mxu0
    %v2742 = vpop.f32.mrb[0].mxu0
    %2743 = vdwg.mxu0
    %2744 = vmatprep.subr.bf16.mxu0 0
    %2745 = vmatpush1.bf16.msra.mxu0 %v1119
    %2746 = vmatprep.subr.bf16.mxu0 0
    %2747 = vmatpush1.bf16.msra.mxu0 %v1122
    %2748 = vmatprep.subr.bf16.mxu0 0
    %2749 = vmatpush1.bf16.msra.mxu0 %v1125
    %2750 = vmatprep.subr.bf16.mxu0 0
    %2751 = vmatpush1.bf16.msra.mxu0 %v1128
    %2752 = vmatprep.subr.bf16.mxu0 0
    %2753 = vmatpush1.bf16.msra.mxu0 %v1131
    %2754 = vmatprep.subr.bf16.mxu0 0
    %2755 = vmatpush1.bf16.msra.mxu0 %v1134
    %2756 = vmatprep.subr.bf16.mxu0 0
    %2757 = vmatpush1.bf16.msra.mxu0 %v1137
    %2758 = vmatprep.subr.bf16.mxu0 0
    %2759 = vmatpush1.bf16.msra.mxu0 %v1140
    %2760 = vmatprep.subr.bf16.mxu0 0
    %2761 = vmatpush1.bf16.msra.mxu0 0
    %2762 = vmatprep.subr.bf16.mxu0 0
    %2763 = vmatpush1.bf16.msra.mxu0 0
    %2764 = vmatprep.subr.bf16.mxu0 0
    %2765 = vmatpush1.bf16.msra.mxu0 0
    %2766 = vmatprep.subr.bf16.mxu0 0
    %2767 = vmatpush1.bf16.msra.mxu0 0
    %2768 = vmatprep.subr.bf16.mxu0 0
    %2769 = vmatpush1.bf16.msra.mxu0 0
    %2770 = vmatprep.subr.bf16.mxu0 0
    %2771 = vmatpush1.bf16.msra.mxu0 0
    %2772 = vmatprep.subr.bf16.mxu0 0
    %2773 = vmatpush1.bf16.msra.mxu0 0
    %2774 = vmatprep.subr.bf16.mxu0 0
    %2775 = vmatpush1.bf16.msra.mxu0 0
    %2776 = vmatprep.mubr.bf16.mxu0 0
    %2777 = vmatmul.mubr.bf16.gmra.mrb[0].mxu0 %v2702
    %v2778 = vpop.f32.mrb[0].mxu0
    %v2779 = vadd.f32 0.0, %v2778
    %v2780 = vpop.f32.mrb[0].mxu0
    %v2781 = vpop.f32.mrb[0].mxu0
    %v2782 = vpop.f32.mrb[0].mxu0
    %2783 = vdwg.mxu0
    %v2784 = vadd.f32 %v2699, %v2738
    %v2785 = vxor.u32 %v2784, 2147483648
    %v2786 = vmul.f32 %v2785, 1.442695
    %v2787 = vpow.pop %v2786
    %v2788 = vadd.f32 %v2787, 1.0
    %v2789 = vrcp.pop %v2788
    %v2790 = vmul.f32 1.0, %v2789
    %v2791 = vadd.f32 %v2700, %v2740
    %v2792 = vxor.u32 %v2791, 2147483648
    %v2793 = vmul.f32 %v2792, 1.442695
    %v2794 = vpow.pop %v2793
    %v2795 = vadd.f32 %v2794, 1.0
    %v2796 = vrcp.pop %v2795
    %v2797 = vmul.f32 1.0, %v2796
    %v2798 = vadd.f32 %v2779, %v797
    %v2799 = vmul.f32 %v2790, %v2798
    %v2800 = vadd.f32 %v2701, %v2799
    %v2801 = vtanh.pop %v2800
    %v2802 = vsub.f32 1.0, %v2797
    %v2803 = vmul.f32 %v2802, %v2801
    %v2804 = vmul.f32 %v2797, %v2586
    %v2805 = vadd.f32 %v2803, %v2804
    %s2806 = scalar_lea.vmem [#allocation5], 56
    %2807 = vst [vmem:[%s2806] sm:$0xff] %v2698
    %2808 = vst [vmem:[#allocation6] sm:$0xff] %v2805
    %v2809 = vld [vmem:[#allocation5] sm:$0xff]
    %v2810 = vld [vmem:[#allocation5 + $0x8] sm:$0xff]
    %v2811 = vld [vmem:[#allocation5 + $0x10] sm:$0xff]
    %v2812 = vld [vmem:[#allocation5 + $0x18] sm:$0xff]
    %v2813 = vld [vmem:[#allocation5 + $0x20] sm:$0xff]
    %v2814 = vld [vmem:[#allocation5 + $0x28] sm:$0xff]
    %v2815 = vld [vmem:[#allocation5 + $0x30] sm:$0xff]
    %v2816 = vld [vmem:[#allocation5 + $0x38] sm:$0xff]
    %v2817 = vld [vmem:[#allocation6] sm:$0xff]
    %v2818 = vld [vmem:[#allocation6 + $0x8] sm:$0xff]
    %v2819 = vld [vmem:[#allocation6 + $0x10] sm:$0xff]
    %v2820 = vld [vmem:[#allocation6 + $0x18] sm:$0xff]
    %v2821 = vld [vmem:[#allocation6 + $0x20] sm:$0xff]
    %v2822 = vld [vmem:[#allocation6 + $0x28] sm:$0xff]
    %v2823 = vld [vmem:[#allocation6 + $0x30] sm:$0xff]
    %v2824 = vld [vmem:[#allocation6 + $0x38] sm:$0xff]
    %v2825 = vpack.c.bf16 %v2810, %v2809
    %v2826 = vpack.c.bf16 %v2818, %v2817
    %v2827 = vpack.c.bf16 %v2812, %v2811
    %v2828 = vpack.c.bf16 %v2820, %v2819
    %v2829 = vpack.c.bf16 %v2814, %v2813
    %v2830 = vpack.c.bf16 %v2822, %v2821
    %v2831 = vpack.c.bf16 %v2816, %v2815
    %v2832 = vpack.c.bf16 %v2824, %v2823
    %v2833 = vld [vmem:[%s5] sm:$0xff]
    %v2834 = vld [vmem:[%s5 + $0x8] sm:$0xf]
    %v2835 = vld [vmem:[%s5 + $0xc] sm:$0xff]
    %v2836 = vld [vmem:[%s5 + $0x14] sm:$0xf]
    %v2837 = vld [vmem:[%s5 + $0x18] sm:$0xff]
    %v2838 = vld [vmem:[%s5 + $0x20] sm:$0xf]
    %v2839 = vld [vmem:[%s5 + $0x24] sm:$0xff]
    %v2840 = vld [vmem:[%s5 + $0x2c] sm:$0xf]
    %v2841 = vld [vmem:[%s5 + $0x30] sm:$0xff]
    %v2842 = vld [vmem:[%s5 + $0x38] sm:$0xf]
    %v2843 = vld [vmem:[%s5 + $0x3c] sm:$0xff]
    %v2844 = vld [vmem:[%s5 + $0x44] sm:$0xf]
    %v2845 = vld [vmem:[%s5 + $0x48] sm:$0xff]
    %v2846 = vld [vmem:[%s5 + $0x50] sm:$0xf]
    %v2847 = vld [vmem:[%s5 + $0x54] sm:$0xff]
    %v2848 = vld [vmem:[%s5 + $0x5c] sm:$0xf]
    %v2849 = vld [vmem:[%s5 + $0x60] sm:$0xff]
    %v2850 = vld [vmem:[%s5 + $0x68] sm:$0xf]
    %v2851 = vld [vmem:[%s5 + $0x6c] sm:$0xff]
    %v2852 = vld [vmem:[%s5 + $0x74] sm:$0xf]
    %v2853 = vld [vmem:[%s5 + $0x78] sm:$0xff]
    %v2854 = vld [vmem:[%s5 + $0x80] sm:$0xf]
    %v2855 = vld [vmem:[%s5 + $0x84] sm:$0xff]
    %v2856 = vld [vmem:[%s5 + $0x8c] sm:$0xf]
    %v2857 = vld [vmem:[%s5 + $0x90] sm:$0xff]
    %v2858 = vld [vmem:[%s5 + $0x98] sm:$0xf]
    %v2859 = vld [vmem:[%s5 + $0x9c] sm:$0xff]
    %v2860 = vld [vmem:[%s5 + $0xa4] sm:$0xf]
    %v2861 = vld [vmem:[%s5 + $0xa8] sm:$0xff]
    %v2862 = vld [vmem:[%s5 + $0xb0] sm:$0xf]
    %v2863 = vld [vmem:[%s5 + $0xb4] sm:$0xff]
    %v2864 = vld [vmem:[%s5 + $0xbc] sm:$0xf]
    %v2865 = vld [vmem:[%s5 + $0xc0] sm:$0xff]
    %v2866 = vld [vmem:[%s5 + $0xc8] sm:$0xf]
    %v2867 = vld [vmem:[%s5 + $0xcc] sm:$0xff]
    %v2868 = vld [vmem:[%s5 + $0xd4] sm:$0xf]
    %v2869 = vld [vmem:[%s5 + $0xd8] sm:$0xff]
    %v2870 = vld [vmem:[%s5 + $0xe0] sm:$0xf]
    %v2871 = vld [vmem:[%s5 + $0xe4] sm:$0xff]
    %v2872 = vld [vmem:[%s5 + $0xec] sm:$0xf]
    %v2873 = vld [vmem:[%s5 + $0xf0] sm:$0xff]
    %v2874 = vld [vmem:[%s5 + $0xf8] sm:$0xf]
    %v2875 = vld [vmem:[%s5 + $0xfc] sm:$0xff]
    %v2876 = vld [vmem:[%s5 + $0x104] sm:$0xf]
    %v2877 = vld [vmem:[%s5 + $0x108] sm:$0xff]
    %v2878 = vld [vmem:[%s5 + $0x110] sm:$0xf]
    %v2879 = vld [vmem:[%s5 + $0x114] sm:$0xff]
    %v2880 = vld [vmem:[%s5 + $0x11c] sm:$0xf]
    %v2881 = vld [vmem:[%s5 + $0x120] sm:$0xff]
    %v2882 = vld [vmem:[%s5 + $0x128] sm:$0xf]
    %v2883 = vld [vmem:[%s5 + $0x12c] sm:$0xff]
    %v2884 = vld [vmem:[%s5 + $0x134] sm:$0xf]
    %v2885 = vld [vmem:[%s5 + $0x138] sm:$0xff]
    %v2886 = vld [vmem:[%s5 + $0x140] sm:$0xf]
    %v2887 = vld [vmem:[%s5 + $0x144] sm:$0xff]
    %v2888 = vld [vmem:[%s5 + $0x14c] sm:$0xf]
    %v2889 = vld [vmem:[%s5 + $0x150] sm:$0xff]
    %v2890 = vld [vmem:[%s5 + $0x158] sm:$0xf]
    %v2891 = vld [vmem:[%s5 + $0x15c] sm:$0xff]
    %v2892 = vld [vmem:[%s5 + $0x164] sm:$0xf]
    %v2893 = vld [vmem:[%s5 + $0x168] sm:$0xff]
    %v2894 = vld [vmem:[%s5 + $0x170] sm:$0xf]
    %v2895 = vld [vmem:[%s5 + $0x174] sm:$0xff]
    %v2896 = vld [vmem:[%s5 + $0x17c] sm:$0xf]
    %v2897 = vld [vmem:[%s8] sm:$0x7]
    %v2899 = vlaneseq
    %v2900 = vshrl.u32 %v2899, 7
    %v2901 = vsub.s32 0, %v2900
    %v2902 = vrot.slane %v2897, %v2901
    %v2903 = vlaneseq
    %v2904 = vshrl.u32 %v2903, 7
    %v2905 = vsub.s32 1, %v2904
    %v2906 = vrot.slane %v2897, %v2905
    %v2907 = vlaneseq
    %v2908 = vshrl.u32 %v2907, 7
    %v2909 = vsub.s32 2, %v2908
    %v2910 = vrot.slane %v2897, %v2909
    %v2978 = vunpack.c.l.b16 %v2833
    %v2979 = vunpack.c.h.b16 %v2833
    %v2980 = vunpack.c.l.b16 %v2834
    %v2981 = vunpack.c.l.b16 %v2835
    %v2982 = vunpack.c.h.b16 %v2835
    %v2983 = vunpack.c.l.b16 %v2836
    %v2984 = vunpack.c.l.b16 %v2837
    %v2985 = vunpack.c.h.b16 %v2837
    %v2986 = vunpack.c.l.b16 %v2838
    %v2987 = vunpack.c.l.b16 %v2839
    %v2988 = vunpack.c.h.b16 %v2839
    %v2989 = vunpack.c.l.b16 %v2840
    %v2990 = vunpack.c.l.b16 %v2841
    %v2991 = vunpack.c.h.b16 %v2841
    %v2992 = vunpack.c.l.b16 %v2842
    %v2993 = vunpack.c.l.b16 %v2843
    %v2994 = vunpack.c.h.b16 %v2843
    %v2995 = vunpack.c.l.b16 %v2844
    %v2996 = vunpack.c.l.b16 %v2845
    %v2997 = vunpack.c.h.b16 %v2845
    %v2998 = vunpack.c.l.b16 %v2846
    %v2999 = vunpack.c.l.b16 %v2847
    %v3000 = vunpack.c.h.b16 %v2847
    %v3001 = vunpack.c.l.b16 %v2848
    %v3002 = vunpack.c.l.b16 %v2849
    %v3003 = vunpack.c.h.b16 %v2849
    %v3004 = vunpack.c.l.b16 %v2850
    %v3005 = vunpack.c.l.b16 %v2851
    %v3006 = vunpack.c.h.b16 %v2851
    %v3007 = vunpack.c.l.b16 %v2852
    %v3008 = vunpack.c.l.b16 %v2853
    %v3009 = vunpack.c.h.b16 %v2853
    %v3010 = vunpack.c.l.b16 %v2854
    %v3011 = vunpack.c.l.b16 %v2855
    %v3012 = vunpack.c.h.b16 %v2855
    %v3013 = vunpack.c.l.b16 %v2856
    %v3014 = vunpack.c.l.b16 %v2857
    %v3015 = vunpack.c.h.b16 %v2857
    %v3016 = vunpack.c.l.b16 %v2858
    %v3017 = vunpack.c.l.b16 %v2859
    %v3018 = vunpack.c.h.b16 %v2859
    %v3019 = vunpack.c.l.b16 %v2860
    %v3020 = vunpack.c.l.b16 %v2861
    %v3021 = vunpack.c.h.b16 %v2861
    %v3022 = vunpack.c.l.b16 %v2862
    %v3023 = vunpack.c.l.b16 %v2863
    %v3024 = vunpack.c.h.b16 %v2863
    %v3025 = vunpack.c.l.b16 %v2864
    %v3026 = vunpack.c.l.b16 %v2865
    %v3027 = vunpack.c.h.b16 %v2865
    %v3028 = vunpack.c.l.b16 %v2866
    %v3029 = vunpack.c.l.b16 %v2867
    %v3030 = vunpack.c.h.b16 %v2867
    %v3031 = vunpack.c.l.b16 %v2868
    %v3032 = vunpack.c.l.b16 %v2869
    %v3033 = vunpack.c.h.b16 %v2869
    %v3034 = vunpack.c.l.b16 %v2870
    %v3035 = vunpack.c.l.b16 %v2871
    %v3036 = vunpack.c.h.b16 %v2871
    %v3037 = vunpack.c.l.b16 %v2872
    %v3038 = vunpack.c.l.b16 %v2873
    %v3039 = vunpack.c.h.b16 %v2873
    %v3040 = vunpack.c.l.b16 %v2874
    %v3041 = vunpack.c.l.b16 %v2875
    %v3042 = vunpack.c.h.b16 %v2875
    %v3043 = vunpack.c.l.b16 %v2876
    %v3044 = vunpack.c.l.b16 %v2877
    %v3045 = vunpack.c.h.b16 %v2877
    %v3046 = vunpack.c.l.b16 %v2878
    %v3047 = vunpack.c.l.b16 %v2879
    %v3048 = vunpack.c.h.b16 %v2879
    %v3049 = vunpack.c.l.b16 %v2880
    %v3050 = vunpack.c.l.b16 %v2881
    %v3051 = vunpack.c.h.b16 %v2881
    %v3052 = vunpack.c.l.b16 %v2882
    %v3053 = vunpack.c.l.b16 %v2883
    %v3054 = vunpack.c.h.b16 %v2883
    %v3055 = vunpack.c.l.b16 %v2884
    %v3056 = vunpack.c.l.b16 %v2885
    %v3057 = vunpack.c.h.b16 %v2885
    %v3058 = vunpack.c.l.b16 %v2886
    %v3059 = vunpack.c.l.b16 %v2887
    %v3060 = vunpack.c.h.b16 %v2887
    %v3061 = vunpack.c.l.b16 %v2888
    %v3062 = vunpack.c.l.b16 %v2889
    %v3063 = vunpack.c.h.b16 %v2889
    %v3064 = vunpack.c.l.b16 %v2890
    %v3065 = vunpack.c.l.b16 %v2891
    %v3066 = vunpack.c.h.b16 %v2891
    %v3067 = vunpack.c.l.b16 %v2892
    %v3068 = vunpack.c.l.b16 %v2893
    %v3069 = vunpack.c.h.b16 %v2893
    %v3070 = vunpack.c.l.b16 %v2894
    %v3071 = vunpack.c.l.b16 %v2895
    %v3072 = vunpack.c.h.b16 %v2895
    %v3073 = vunpack.c.l.b16 %v2896
    %v3074 = vpack.c.b16 %v2981, %v2978
    %v3075 = vpack.c.b16 %v2982, %v2979
    %v3076 = vpack.c.b16 %v2983, %v2980
    %v3077 = vpack.c.b16 %v2987, %v2984
    %v3078 = vpack.c.b16 %v2988, %v2985
    %v3079 = vpack.c.b16 %v2989, %v2986
    %v3080 = vpack.c.b16 %v2993, %v2990
    %v3081 = vpack.c.b16 %v2994, %v2991
    %v3082 = vpack.c.b16 %v2995, %v2992
    %v3083 = vpack.c.b16 %v2999, %v2996
    %v3084 = vpack.c.b16 %v3000, %v2997
    %v3085 = vpack.c.b16 %v3001, %v2998
    %v3086 = vpack.c.b16 %v3005, %v3002
    %v3087 = vpack.c.b16 %v3006, %v3003
    %v3088 = vpack.c.b16 %v3007, %v3004
    %v3089 = vpack.c.b16 %v3011, %v3008
    %v3090 = vpack.c.b16 %v3012, %v3009
    %v3091 = vpack.c.b16 %v3013, %v3010
    %v3092 = vpack.c.b16 %v3017, %v3014
    %v3093 = vpack.c.b16 %v3018, %v3015
    %v3094 = vpack.c.b16 %v3019, %v3016
    %v3095 = vpack.c.b16 %v3023, %v3020
    %v3096 = vpack.c.b16 %v3024, %v3021
    %v3097 = vpack.c.b16 %v3025, %v3022
    %v3098 = vpack.c.b16 %v3029, %v3026
    %v3099 = vpack.c.b16 %v3030, %v3027
    %v3100 = vpack.c.b16 %v3031, %v3028
    %v3101 = vpack.c.b16 %v3035, %v3032
    %v3102 = vpack.c.b16 %v3036, %v3033
    %v3103 = vpack.c.b16 %v3037, %v3034
    %v3104 = vpack.c.b16 %v3041, %v3038
    %v3105 = vpack.c.b16 %v3042, %v3039
    %v3106 = vpack.c.b16 %v3043, %v3040
    %v3107 = vpack.c.b16 %v3047, %v3044
    %v3108 = vpack.c.b16 %v3048, %v3045
    %v3109 = vpack.c.b16 %v3049, %v3046
    %v3110 = vpack.c.b16 %v3053, %v3050
    %v3111 = vpack.c.b16 %v3054, %v3051
    %v3112 = vpack.c.b16 %v3055, %v3052
    %v3113 = vpack.c.b16 %v3059, %v3056
    %v3114 = vpack.c.b16 %v3060, %v3057
    %v3115 = vpack.c.b16 %v3061, %v3058
    %v3116 = vpack.c.b16 %v3065, %v3062
    %v3117 = vpack.c.b16 %v3066, %v3063
    %v3118 = vpack.c.b16 %v3067, %v3064
    %v3119 = vpack.c.b16 %v3071, %v3068
    %v3120 = vpack.c.b16 %v3072, %v3069
    %v3121 = vpack.c.b16 %v3073, %v3070
    %3170 = vmatprep.subr.bf16.mxu0 %v3075
    %3171 = vmatpush1.bf16.msra.mxu0 %v3074
    %3172 = vmatprep.subr.bf16.mxu0 %v3078
    %3173 = vmatpush1.bf16.msra.mxu0 %v3077
    %3174 = vmatprep.subr.bf16.mxu0 %v3081
    %3175 = vmatpush1.bf16.msra.mxu0 %v3080
    %3176 = vmatprep.subr.bf16.mxu0 %v3084
    %3177 = vmatpush1.bf16.msra.mxu0 %v3083
    %3178 = vmatprep.subr.bf16.mxu0 %v3087
    %3179 = vmatpush1.bf16.msra.mxu0 %v3086
    %3180 = vmatprep.subr.bf16.mxu0 %v3090
    %3181 = vmatpush1.bf16.msra.mxu0 %v3089
    %3182 = vmatprep.subr.bf16.mxu0 %v3093
    %3183 = vmatpush1.bf16.msra.mxu0 %v3092
    %3184 = vmatprep.subr.bf16.mxu0 %v3096
    %3185 = vmatpush1.bf16.msra.mxu0 %v3095
    %3186 = vmatprep.subr.bf16.mxu0 %v3099
    %3187 = vmatpush1.bf16.msra.mxu0 %v3098
    %3188 = vmatprep.subr.bf16.mxu0 %v3102
    %3189 = vmatpush1.bf16.msra.mxu0 %v3101
    %3190 = vmatprep.subr.bf16.mxu0 %v3105
    %3191 = vmatpush1.bf16.msra.mxu0 %v3104
    %3192 = vmatprep.subr.bf16.mxu0 %v3108
    %3193 = vmatpush1.bf16.msra.mxu0 %v3107
    %3194 = vmatprep.subr.bf16.mxu0 %v3111
    %3195 = vmatpush1.bf16.msra.mxu0 %v3110
    %3196 = vmatprep.subr.bf16.mxu0 %v3114
    %3197 = vmatpush1.bf16.msra.mxu0 %v3113
    %3198 = vmatprep.subr.bf16.mxu0 %v3117
    %3199 = vmatpush1.bf16.msra.mxu0 %v3116
    %3200 = vmatprep.subr.bf16.mxu0 %v3120
    %3201 = vmatpush1.bf16.msra.mxu0 %v3119
    %3202 = vmatprep.mubr.bf16.mxu0 %v2826
    %3203 = vmatmul.mubr.bf16.gmra.mrb[0].mxu0 %v2825
    %v3204 = vpop.f32.mrb[0].mxu0
    %v3205 = vadd.f32 %v2902, %v3204
    %v3206 = vpop.f32.mrb[0].mxu0
    %v3207 = vadd.f32 %v2906, %v3206
    %v3208 = vpop.f32.mrb[0].mxu0
    %v3209 = vadd.f32 %v2902, %v3208
    %v3210 = vpop.f32.mrb[0].mxu0
    %v3211 = vadd.f32 %v2906, %v3210
    %3212 = vmatprep.mubr.bf16.mxu0 %v2828
    %3213 = vmatmul.mubr.bf16.gmra.mrb[0].mxu0 %v2827
    %v3214 = vpop.f32.mrb[0].mxu0
    %v3215 = vadd.f32 %v2902, %v3214
    %v3216 = vpop.f32.mrb[0].mxu0
    %v3217 = vadd.f32 %v2906, %v3216
    %v3218 = vpop.f32.mrb[0].mxu0
    %v3219 = vadd.f32 %v2902, %v3218
    %v3220 = vpop.f32.mrb[0].mxu0
    %v3221 = vadd.f32 %v2906, %v3220
    %3222 = vmatprep.mubr.bf16.mxu0 %v2830
    %3223 = vmatmul.mubr.bf16.gmra.mrb[0].mxu0 %v2829
    %v3224 = vpop.f32.mrb[0].mxu0
    %v3225 = vadd.f32 %v2902, %v3224
    %v3226 = vpop.f32.mrb[0].mxu0
    %v3227 = vadd.f32 %v2906, %v3226
    %v3228 = vpop.f32.mrb[0].mxu0
    %v3229 = vadd.f32 %v2902, %v3228
    %v3230 = vpop.f32.mrb[0].mxu0
    %v3231 = vadd.f32 %v2906, %v3230
    %3232 = vmatprep.mubr.bf16.mxu0 %v2832
    %3233 = vmatmul.mubr.bf16.gmra.mrb[0].mxu0 %v2831
    %v3234 = vpop.f32.mrb[0].mxu0
    %v3235 = vadd.f32 %v2902, %v3234
    %v3236 = vpop.f32.mrb[0].mxu0
    %v3237 = vadd.f32 %v2906, %v3236
    %v3238 = vpop.f32.mrb[0].mxu0
    %v3239 = vadd.f32 %v2902, %v3238
    %v3240 = vpop.f32.mrb[0].mxu0
    %v3241 = vadd.f32 %v2906, %v3240
    %3242 = vdwg.mxu0
    %3243 = vmatprep.subr.bf16.mxu0 0
    %3244 = vmatpush1.bf16.msra.mxu0 %v3076
    %3245 = vmatprep.subr.bf16.mxu0 0
    %3246 = vmatpush1.bf16.msra.mxu0 %v3079
    %3247 = vmatprep.subr.bf16.mxu0 0
    %3248 = vmatpush1.bf16.msra.mxu0 %v3082
    %3249 = vmatprep.subr.bf16.mxu0 0
    %3250 = vmatpush1.bf16.msra.mxu0 %v3085
    %3251 = vmatprep.subr.bf16.mxu0 0
    %3252 = vmatpush1.bf16.msra.mxu0 %v3088
    %3253 = vmatprep.subr.bf16.mxu0 0
    %3254 = vmatpush1.bf16.msra.mxu0 %v3091
    %3255 = vmatprep.subr.bf16.mxu0 0
    %3256 = vmatpush1.bf16.msra.mxu0 %v3094
    %3257 = vmatprep.subr.bf16.mxu0 0
    %3258 = vmatpush1.bf16.msra.mxu0 %v3097
    %3259 = vmatprep.subr.bf16.mxu0 0
    %3260 = vmatpush1.bf16.msra.mxu0 %v3100
    %3261 = vmatprep.subr.bf16.mxu0 0
    %3262 = vmatpush1.bf16.msra.mxu0 %v3103
    %3263 = vmatprep.subr.bf16.mxu0 0
    %3264 = vmatpush1.bf16.msra.mxu0 %v3106
    %3265 = vmatprep.subr.bf16.mxu0 0
    %3266 = vmatpush1.bf16.msra.mxu0 %v3109
    %3267 = vmatprep.subr.bf16.mxu0 0
    %3268 = vmatpush1.bf16.msra.mxu0 %v3112
    %3269 = vmatprep.subr.bf16.mxu0 0
    %3270 = vmatpush1.bf16.msra.mxu0 %v3115
    %3271 = vmatprep.subr.bf16.mxu0 0
    %3272 = vmatpush1.bf16.msra.mxu0 %v3118
    %3273 = vmatprep.subr.bf16.mxu0 0
    %3274 = vmatpush1.bf16.msra.mxu0 %v3121
    %3275 = vmatprep.mubr.bf16.mxu0 %v2826
    %3276 = vmatmul.mubr.bf16.gmra.mrb[0].mxu0 %v2825
    %v3277 = vpop.f32.mrb[0].mxu0
    %v3278 = vadd.f32 %v2910, %v3277
    %v3279 = vpop.f32.mrb[0].mxu0
    %v3280 = vpop.f32.mrb[0].mxu0
    %v3281 = vadd.f32 %v2910, %v3280
    %v3282 = vpop.f32.mrb[0].mxu0
    %3283 = vmatprep.mubr.bf16.mxu0 %v2828
    %3284 = vmatmul.mubr.bf16.gmra.mrb[0].mxu0 %v2827
    %v3285 = vpop.f32.mrb[0].mxu0
    %v3286 = vadd.f32 %v2910, %v3285
    %v3287 = vpop.f32.mrb[0].mxu0
    %v3288 = vpop.f32.mrb[0].mxu0
    %v3289 = vadd.f32 %v2910, %v3288
    %v3290 = vpop.f32.mrb[0].mxu0
    %3291 = vmatprep.mubr.bf16.mxu0 %v2830
    %3292 = vmatmul.mubr.bf16.gmra.mrb[0].mxu0 %v2829
    %v3293 = vpop.f32.mrb[0].mxu0
    %v3294 = vadd.f32 %v2910, %v3293
    %v3295 = vpop.f32.mrb[0].mxu0
    %v3296 = vpop.f32.mrb[0].mxu0
    %v3297 = vadd.f32 %v2910, %v3296
    %v3298 = vpop.f32.mrb[0].mxu0
    %3299 = vmatprep.mubr.bf16.mxu0 %v2832
    %3300 = vmatmul.mubr.bf16.gmra.mrb[0].mxu0 %v2831
    %v3301 = vpop.f32.mrb[0].mxu0
    %v3302 = vadd.f32 %v2910, %v3301
    %v3303 = vpop.f32.mrb[0].mxu0
    %v3304 = vpop.f32.mrb[0].mxu0
    %v3305 = vadd.f32 %v2910, %v3304
    %v3306 = vpop.f32.mrb[0].mxu0
    %3307 = vdwg.mxu0
    %3308 = vst [vmem:[#allocation4] sm:$0xff] %v3205
    %3309 = vst [vmem:[#allocation4 + $0x8] sm:$0xff] %v3207
    %3310 = vst [vmem:[#allocation4 + $0x10] sm:$0xff] %v3278
    %3311 = vst [vmem:[#allocation4 + $0x18] sm:$0xff] %v3209
    %3312 = vst [vmem:[#allocation4 + $0x20] sm:$0xff] %v3211
    %3313 = vst [vmem:[#allocation4 + $0x28] sm:$0xff] %v3281
    %3314 = vst [vmem:[#allocation4 + $0x30] sm:$0xff] %v3215
    %3315 = vst [vmem:[#allocation4 + $0x38] sm:$0xff] %v3217
    %3316 = vst [vmem:[#allocation4 + $0x40] sm:$0xff] %v3286
    %3317 = vst [vmem:[#allocation4 + $0x48] sm:$0xff] %v3219
    %3318 = vst [vmem:[#allocation4 + $0x50] sm:$0xff] %v3221
    %3319 = vst [vmem:[#allocation4 + $0x58] sm:$0xff] %v3289
    %3320 = vst [vmem:[#allocation4 + $0x60] sm:$0xff] %v3225
    %3321 = vst [vmem:[#allocation4 + $0x68] sm:$0xff] %v3227
    %3322 = vst [vmem:[#allocation4 + $0x70] sm:$0xff] %v3294
    %3323 = vst [vmem:[#allocation4 + $0x78] sm:$0xff] %v3229
    %3324 = vst [vmem:[#allocation4 + $0x80] sm:$0xff] %v3231
    %3325 = vst [vmem:[#allocation4 + $0x88] sm:$0xff] %v3297
    %3326 = vst [vmem:[#allocation4 + $0x90] sm:$0xff] %v3235
    %3327 = vst [vmem:[#allocation4 + $0x98] sm:$0xff] %v3237
    %3328 = vst [vmem:[#allocation4 + $0xa0] sm:$0xff] %v3302
    %3329 = vst [vmem:[#allocation4 + $0xa8] sm:$0xff] %v3239
    %3330 = vst [vmem:[#allocation4 + $0xb0] sm:$0xff] %v3241
    %3331 = vst [vmem:[#allocation4 + $0xb8] sm:$0xff] %v3305
    %v3332 = vld [vmem:[%s7] sm:$0xff]
    %v3333 = vld [vmem:[%s7 + $0x8] sm:$0xf]
    %v3334 = vld [vmem:[%s7 + $0xc] sm:$0xff]
    %v3335 = vld [vmem:[%s7 + $0x14] sm:$0xf]
    %v3336 = vld [vmem:[%s7 + $0x18] sm:$0xff]
    %v3337 = vld [vmem:[%s7 + $0x20] sm:$0xf]
    %v3338 = vld [vmem:[%s7 + $0x24] sm:$0xff]
    %v3339 = vld [vmem:[%s7 + $0x2c] sm:$0xf]
    %v3340 = vld [vmem:[%s7 + $0x30] sm:$0xff]
    %v3341 = vld [vmem:[%s7 + $0x38] sm:$0xf]
    %v3342 = vld [vmem:[%s7 + $0x3c] sm:$0xff]
    %v3343 = vld [vmem:[%s7 + $0x44] sm:$0xf]
    %v3344 = vld [vmem:[%s7 + $0x48] sm:$0xff]
    %v3345 = vld [vmem:[%s7 + $0x50] sm:$0xf]
    %v3346 = vld [vmem:[%s7 + $0x54] sm:$0xff]
    %v3347 = vld [vmem:[%s7 + $0x5c] sm:$0xf]
    %v3348 = vld [vmem:[%s7 + $0x60] sm:$0xff]
    %v3349 = vld [vmem:[%s7 + $0x68] sm:$0xf]
    %v3350 = vld [vmem:[%s7 + $0x6c] sm:$0xff]
    %v3351 = vld [vmem:[%s7 + $0x74] sm:$0xf]
    %v3352 = vld [vmem:[%s7 + $0x78] sm:$0xff]
    %v3353 = vld [vmem:[%s7 + $0x80] sm:$0xf]
    %v3354 = vld [vmem:[%s7 + $0x84] sm:$0xff]
    %v3355 = vld [vmem:[%s7 + $0x8c] sm:$0xf]
    %v3356 = vld [vmem:[%s7 + $0x90] sm:$0xff]
    %v3357 = vld [vmem:[%s7 + $0x98] sm:$0xf]
    %v3358 = vld [vmem:[%s7 + $0x9c] sm:$0xff]
    %v3359 = vld [vmem:[%s7 + $0xa4] sm:$0xf]
    %v3360 = vld [vmem:[%s7 + $0xa8] sm:$0xff]
    %v3361 = vld [vmem:[%s7 + $0xb0] sm:$0xf]
    %v3362 = vld [vmem:[%s7 + $0xb4] sm:$0xff]
    %v3363 = vld [vmem:[%s7 + $0xbc] sm:$0xf]
    %v3364 = vld [vmem:[%s9] sm:$0x1]
    %v3366 = vlaneseq
    %v3367 = vshrl.u32 %v3366, 7
    %v3368 = vsub.s32 0, %v3367
    %v3369 = vrot.slane %v3364, %v3368
    %v3371 = vld [vmem:[#allocation4] sm:$0xff]
    %v3372 = vld [vmem:[#allocation4 + $0x8] sm:$0xff]
    %v3373 = vld [vmem:[#allocation4 + $0x10] sm:$0xff]
    %v3406 = vunpack.c.l.b16 %v3332
    %v3407 = vunpack.c.h.b16 %v3332
    %v3408 = vunpack.c.l.b16 %v3333
    %v3409 = vunpack.c.l.b16 %v3334
    %v3410 = vunpack.c.h.b16 %v3334
    %v3411 = vunpack.c.l.b16 %v3335
    %v3412 = vunpack.c.l.b16 %v3336
    %v3413 = vunpack.c.h.b16 %v3336
    %v3414 = vunpack.c.l.b16 %v3337
    %v3415 = vunpack.c.l.b16 %v3338
    %v3416 = vunpack.c.h.b16 %v3338
    %v3417 = vunpack.c.l.b16 %v3339
    %v3418 = vunpack.c.l.b16 %v3340
    %v3419 = vunpack.c.h.b16 %v3340
    %v3420 = vunpack.c.l.b16 %v3341
    %v3421 = vunpack.c.l.b16 %v3342
    %v3422 = vunpack.c.h.b16 %v3342
    %v3423 = vunpack.c.l.b16 %v3343
    %v3424 = vunpack.c.l.b16 %v3344
    %v3425 = vunpack.c.h.b16 %v3344
    %v3426 = vunpack.c.l.b16 %v3345
    %v3427 = vunpack.c.l.b16 %v3346
    %v3428 = vunpack.c.h.b16 %v3346
    %v3429 = vunpack.c.l.b16 %v3347
    %v3430 = vunpack.c.l.b16 %v3348
    %v3431 = vunpack.c.h.b16 %v3348
    %v3432 = vunpack.c.l.b16 %v3349
    %v3433 = vunpack.c.l.b16 %v3350
    %v3434 = vunpack.c.h.b16 %v3350
    %v3435 = vunpack.c.l.b16 %v3351
    %v3436 = vunpack.c.l.b16 %v3352
    %v3437 = vunpack.c.h.b16 %v3352
    %v3438 = vunpack.c.l.b16 %v3353
    %v3439 = vunpack.c.l.b16 %v3354
    %v3440 = vunpack.c.h.b16 %v3354
    %v3441 = vunpack.c.l.b16 %v3355
    %v3442 = vunpack.c.l.b16 %v3356
    %v3443 = vunpack.c.h.b16 %v3356
    %v3444 = vunpack.c.l.b16 %v3357
    %v3445 = vunpack.c.l.b16 %v3358
    %v3446 = vunpack.c.h.b16 %v3358
    %v3447 = vunpack.c.l.b16 %v3359
    %v3448 = vunpack.c.l.b16 %v3360
    %v3449 = vunpack.c.h.b16 %v3360
    %v3450 = vunpack.c.l.b16 %v3361
    %v3451 = vunpack.c.l.b16 %v3362
    %v3452 = vunpack.c.h.b16 %v3362
    %v3453 = vunpack.c.l.b16 %v3363
    %v3454 = vpack.c.b16 %v3409, %v3406
    %v3455 = vpack.c.b16 %v3410, %v3407
    %v3456 = vpack.c.b16 %v3411, %v3408
    %v3457 = vpack.c.b16 %v3415, %v3412
    %v3458 = vpack.c.b16 %v3416, %v3413
    %v3459 = vpack.c.b16 %v3417, %v3414
    %v3460 = vpack.c.b16 %v3421, %v3418
    %v3461 = vpack.c.b16 %v3422, %v3419
    %v3462 = vpack.c.b16 %v3423, %v3420
    %v3463 = vpack.c.b16 %v3427, %v3424
    %v3464 = vpack.c.b16 %v3428, %v3425
    %v3465 = vpack.c.b16 %v3429, %v3426
    %v3466 = vpack.c.b16 %v3433, %v3430
    %v3467 = vpack.c.b16 %v3434, %v3431
    %v3468 = vpack.c.b16 %v3435, %v3432
    %v3469 = vpack.c.b16 %v3439, %v3436
    %v3470 = vpack.c.b16 %v3440, %v3437
    %v3471 = vpack.c.b16 %v3441, %v3438
    %v3472 = vpack.c.b16 %v3445, %v3442
    %v3473 = vpack.c.b16 %v3446, %v3443
    %v3474 = vpack.c.b16 %v3447, %v3444
    %v3475 = vpack.c.b16 %v3451, %v3448
    %v3476 = vpack.c.b16 %v3452, %v3449
    %v3477 = vpack.c.b16 %v3453, %v3450
    %3502 = vmatprep.subr.bf16.mxu0 %v3455
    %3503 = vmatpush1.bf16.msra.mxu0 %v3454
    %3504 = vmatprep.subr.bf16.mxu0 %v3458
    %3505 = vmatpush1.bf16.msra.mxu0 %v3457
    %3506 = vmatprep.subr.bf16.mxu0 %v3461
    %3507 = vmatpush1.bf16.msra.mxu0 %v3460
    %3508 = vmatprep.subr.bf16.mxu0 %v3464
    %3509 = vmatpush1.bf16.msra.mxu0 %v3463
    %3510 = vmatprep.subr.bf16.mxu0 %v3467
    %3511 = vmatpush1.bf16.msra.mxu0 %v3466
    %3512 = vmatprep.subr.bf16.mxu0 %v3470
    %3513 = vmatpush1.bf16.msra.mxu0 %v3469
    %3514 = vmatprep.subr.bf16.mxu0 %v3473
    %3515 = vmatpush1.bf16.msra.mxu0 %v3472
    %3516 = vmatprep.subr.bf16.mxu0 %v3476
    %3517 = vmatpush1.bf16.msra.mxu0 %v3475
    %3518 = vmatprep.subr.bf16.mxu0 0
    %3519 = vmatpush1.bf16.msra.mxu0 0
    %3520 = vmatprep.subr.bf16.mxu0 0
    %3521 = vmatpush1.bf16.msra.mxu0 0
    %3522 = vmatprep.subr.bf16.mxu0 0
    %3523 = vmatpush1.bf16.msra.mxu0 0
    %3524 = vmatprep.subr.bf16.mxu0 0
    %3525 = vmatpush1.bf16.msra.mxu0 0
    %3526 = vmatprep.subr.bf16.mxu0 0
    %3527 = vmatpush1.bf16.msra.mxu0 0
    %3528 = vmatprep.subr.bf16.mxu0 0
    %3529 = vmatpush1.bf16.msra.mxu0 0
    %3530 = vmatprep.subr.bf16.mxu0 0
    %3531 = vmatpush1.bf16.msra.mxu0 0
    %3532 = vmatprep.subr.bf16.mxu0 0
    %3533 = vmatpush1.bf16.msra.mxu0 0
    %3534 = vmatprep.mubr.bf16.mxu0 0
    %3535 = vmatmul.mubr.bf16.gmra.mrb[0].mxu0 0
    %v3536 = vpop.f32.mrb[0].mxu0
    %v3537 = vadd.f32 0.0, %v3536
    %v3538 = vpop.f32.mrb[0].mxu0
    %v3539 = vadd.f32 0.0, %v3538
    %v3540 = vpop.f32.mrb[0].mxu0
    %v3541 = vpop.f32.mrb[0].mxu0
    %3542 = vdwg.mxu0
    %3543 = vmatprep.subr.bf16.mxu0 0
    %3544 = vmatpush1.bf16.msra.mxu0 %v3456
    %3545 = vmatprep.subr.bf16.mxu0 0
    %3546 = vmatpush1.bf16.msra.mxu0 %v3459
    %3547 = vmatprep.subr.bf16.mxu0 0
    %3548 = vmatpush1.bf16.msra.mxu0 %v3462
    %3549 = vmatprep.subr.bf16.mxu0 0
    %3550 = vmatpush1.bf16.msra.mxu0 %v3465
    %3551 = vmatprep.subr.bf16.mxu0 0
    %3552 = vmatpush1.bf16.msra.mxu0 %v3468
    %3553 = vmatprep.subr.bf16.mxu0 0
    %3554 = vmatpush1.bf16.msra.mxu0 %v3471
    %3555 = vmatprep.subr.bf16.mxu0 0
    %3556 = vmatpush1.bf16.msra.mxu0 %v3474
    %3557 = vmatprep.subr.bf16.mxu0 0
    %3558 = vmatpush1.bf16.msra.mxu0 %v3477
    %3559 = vmatprep.subr.bf16.mxu0 0
    %3560 = vmatpush1.bf16.msra.mxu0 0
    %3561 = vmatprep.subr.bf16.mxu0 0
    %3562 = vmatpush1.bf16.msra.mxu0 0
    %3563 = vmatprep.subr.bf16.mxu0 0
    %3564 = vmatpush1.bf16.msra.mxu0 0
    %3565 = vmatprep.subr.bf16.mxu0 0
    %3566 = vmatpush1.bf16.msra.mxu0 0
    %3567 = vmatprep.subr.bf16.mxu0 0
    %3568 = vmatpush1.bf16.msra.mxu0 0
    %3569 = vmatprep.subr.bf16.mxu0 0
    %3570 = vmatpush1.bf16.msra.mxu0 0
    %3571 = vmatprep.subr.bf16.mxu0 0
    %3572 = vmatpush1.bf16.msra.mxu0 0
    %3573 = vmatprep.subr.bf16.mxu0 0
    %3574 = vmatpush1.bf16.msra.mxu0 0
    %3575 = vmatprep.mubr.bf16.mxu0 0
    %3576 = vmatmul.mubr.bf16.gmra.mrb[0].mxu0 0
    %v3577 = vpop.f32.mrb[0].mxu0
    %v3578 = vadd.f32 0.0, %v3577
    %v3579 = vpop.f32.mrb[0].mxu0
    %v3580 = vpop.f32.mrb[0].mxu0
    %v3581 = vpop.f32.mrb[0].mxu0
    %3582 = vdwg.mxu0
    %v3583 = vadd.f32 %v3371, %v3537
    %v3584 = vxor.u32 %v3583, 2147483648
    %v3585 = vmul.f32 %v3584, 1.442695
    %v3586 = vpow.pop %v3585
    %v3587 = vadd.f32 %v3586, 1.0
    %v3588 = vrcp.pop %v3587
    %v3589 = vmul.f32 1.0, %v3588
    %v3590 = vadd.f32 %v3372, %v3539
    %v3591 = vxor.u32 %v3590, 2147483648
    %v3592 = vmul.f32 %v3591, 1.442695
    %v3593 = vpow.pop %v3592
    %v3594 = vadd.f32 %v3593, 1.0
    %v3595 = vrcp.pop %v3594
    %v3596 = vmul.f32 1.0, %v3595
    %v3597 = vadd.f32 %v3578, %v3369
    %v3598 = vmul.f32 %v3589, %v3597
    %v3599 = vadd.f32 %v3373, %v3598
    %v3600 = vtanh.pop %v3599
    %v3601 = vsub.f32 1.0, %v3596
    %v3602 = vmul.f32 %v3601, %v3600
    %v3603 = vmul.f32 %v3596, 0.0
    %v3604 = vadd.f32 %v3602, %v3603
    %s3605 = scalar_lea.vmem [#allocation4], 24
    %v3606 = vld [vmem:[%s3605] sm:$0xff]
    %v3607 = vld [vmem:[%s3605 + $0x8] sm:$0xff]
    %v3608 = vld [vmem:[%s3605 + $0x10] sm:$0xff]
    %v3609 = vpack.c.bf16 %v3604, %v3604
    %3610 = vmatprep.subr.bf16.mxu0 %v3455
    %3611 = vmatpush1.bf16.msra.mxu0 %v3454
    %3612 = vmatprep.subr.bf16.mxu0 %v3458
    %3613 = vmatpush1.bf16.msra.mxu0 %v3457
    %3614 = vmatprep.subr.bf16.mxu0 %v3461
    %3615 = vmatpush1.bf16.msra.mxu0 %v3460
    %3616 = vmatprep.subr.bf16.mxu0 %v3464
    %3617 = vmatpush1.bf16.msra.mxu0 %v3463
    %3618 = vmatprep.subr.bf16.mxu0 %v3467
    %3619 = vmatpush1.bf16.msra.mxu0 %v3466
    %3620 = vmatprep.subr.bf16.mxu0 %v3470
    %3621 = vmatpush1.bf16.msra.mxu0 %v3469
    %3622 = vmatprep.subr.bf16.mxu0 %v3473
    %3623 = vmatpush1.bf16.msra.mxu0 %v3472
    %3624 = vmatprep.subr.bf16.mxu0 %v3476
    %3625 = vmatpush1.bf16.msra.mxu0 %v3475
    %3626 = vmatprep.subr.bf16.mxu0 0
    %3627 = vmatpush1.bf16.msra.mxu0 0
    %3628 = vmatprep.subr.bf16.mxu0 0
    %3629 = vmatpush1.bf16.msra.mxu0 0
    %3630 = vmatprep.subr.bf16.mxu0 0
    %3631 = vmatpush1.bf16.msra.mxu0 0
    %3632 = vmatprep.subr.bf16.mxu0 0
    %3633 = vmatpush1.bf16.msra.mxu0 0
    %3634 = vmatprep.subr.bf16.mxu0 0
    %3635 = vmatpush1.bf16.msra.mxu0 0
    %3636 = vmatprep.subr.bf16.mxu0 0
    %3637 = vmatpush1.bf16.msra.mxu0 0
    %3638 = vmatprep.subr.bf16.mxu0 0
    %3639 = vmatpush1.bf16.msra.mxu0 0
    %3640 = vmatprep.subr.bf16.mxu0 0
    %3641 = vmatpush1.bf16.msra.mxu0 0
    %3642 = vmatprep.mubr.bf16.mxu0 0
    %3643 = vmatmul.mubr.bf16.gmra.mrb[0].mxu0 %v3609
    %v3644 = vpop.f32.mrb[0].mxu0
    %v3645 = vadd.f32 0.0, %v3644
    %v3646 = vpop.f32.mrb[0].mxu0
    %v3647 = vadd.f32 0.0, %v3646
    %v3648 = vpop.f32.mrb[0].mxu0
    %v3649 = vpop.f32.mrb[0].mxu0
    %3650 = vdwg.mxu0
    %3651 = vmatprep.subr.bf16.mxu0 0
    %3652 = vmatpush1.bf16.msra.mxu0 %v3456
    %3653 = vmatprep.subr.bf16.mxu0 0
    %3654 = vmatpush1.bf16.msra.mxu0 %v3459
    %3655 = vmatprep.subr.bf16.mxu0 0
    %3656 = vmatpush1.bf16.msra.mxu0 %v3462
    %3657 = vmatprep.subr.bf16.mxu0 0
    %3658 = vmatpush1.bf16.msra.mxu0 %v3465
    %3659 = vmatprep.subr.bf16.mxu0 0
    %3660 = vmatpush1.bf16.msra.mxu0 %v3468
    %3661 = vmatprep.subr.bf16.mxu0 0
    %3662 = vmatpush1.bf16.msra.mxu0 %v3471
    %3663 = vmatprep.subr.bf16.mxu0 0
    %3664 = vmatpush1.bf16.msra.mxu0 %v3474
    %3665 = vmatprep.subr.bf16.mxu0 0
    %3666 = vmatpush1.bf16.msra.mxu0 %v3477
    %3667 = vmatprep.subr.bf16.mxu0 0
    %3668 = vmatpush1.bf16.msra.mxu0 0
    %3669 = vmatprep.subr.bf16.mxu0 0
    %3670 = vmatpush1.bf16.msra.mxu0 0
    %3671 = vmatprep.subr.bf16.mxu0 0
    %3672 = vmatpush1.bf16.msra.mxu0 0
    %3673 = vmatprep.subr.bf16.mxu0 0
    %3674 = vmatpush1.bf16.msra.mxu0 0
    %3675 = vmatprep.subr.bf16.mxu0 0
    %3676 = vmatpush1.bf16.msra.mxu0 0
    %3677 = vmatprep.subr.bf16.mxu0 0
    %3678 = vmatpush1.bf16.msra.mxu0 0
    %3679 = vmatprep.subr.bf16.mxu0 0
    %3680 = vmatpush1.bf16.msra.mxu0 0
    %3681 = vmatprep.subr.bf16.mxu0 0
    %3682 = vmatpush1.bf16.msra.mxu0 0
    %3683 = vmatprep.mubr.bf16.mxu0 0
    %3684 = vmatmul.mubr.bf16.gmra.mrb[0].mxu0 %v3609
    %v3685 = vpop.f32.mrb[0].mxu0
    %v3686 = vadd.f32 0.0, %v3685
    %v3687 = vpop.f32.mrb[0].mxu0
    %v3688 = vpop.f32.mrb[0].mxu0
    %v3689 = vpop.f32.mrb[0].mxu0
    %3690 = vdwg.mxu0
    %v3691 = vadd.f32 %v3606, %v3645
    %v3692 = vxor.u32 %v3691, 2147483648
    %v3693 = vmul.f32 %v3692, 1.442695
    %v3694 = vpow.pop %v3693
    %v3695 = vadd.f32 %v3694, 1.0
    %v3696 = vrcp.pop %v3695
    %v3697 = vmul.f32 1.0, %v3696
    %v3698 = vadd.f32 %v3607, %v3647
    %v3699 = vxor.u32 %v3698, 2147483648
    %v3700 = vmul.f32 %v3699, 1.442695
    %v3701 = vpow.pop %v3700
    %v3702 = vadd.f32 %v3701, 1.0
    %v3703 = vrcp.pop %v3702
    %v3704 = vmul.f32 1.0, %v3703
    %v3705 = vadd.f32 %v3686, %v3369
    %v3706 = vmul.f32 %v3697, %v3705
    %v3707 = vadd.f32 %v3608, %v3706
    %v3708 = vtanh.pop %v3707
    %v3709 = vsub.f32 1.0, %v3704
    %v3710 = vmul.f32 %v3709, %v3708
    %v3711 = vmul.f32 %v3704, %v3604
    %v3712 = vadd.f32 %v3710, %v3711
    %s3713 = scalar_lea.vmem [#allocation4], 48
    %v3714 = vld [vmem:[%s3713] sm:$0xff]
    %v3715 = vld [vmem:[%s3713 + $0x8] sm:$0xff]
    %v3716 = vld [vmem:[%s3713 + $0x10] sm:$0xff]
    %v3717 = vpack.c.bf16 %v3712, %v3712
    %3718 = vmatprep.subr.bf16.mxu0 %v3455
    %3719 = vmatpush1.bf16.msra.mxu0 %v3454
    %3720 = vmatprep.subr.bf16.mxu0 %v3458
    %3721 = vmatpush1.bf16.msra.mxu0 %v3457
    %3722 = vmatprep.subr.bf16.mxu0 %v3461
    %3723 = vmatpush1.bf16.msra.mxu0 %v3460
    %3724 = vmatprep.subr.bf16.mxu0 %v3464
    %3725 = vmatpush1.bf16.msra.mxu0 %v3463
    %3726 = vmatprep.subr.bf16.mxu0 %v3467
    %3727 = vmatpush1.bf16.msra.mxu0 %v3466
    %3728 = vmatprep.subr.bf16.mxu0 %v3470
    %3729 = vmatpush1.bf16.msra.mxu0 %v3469
    %3730 = vmatprep.subr.bf16.mxu0 %v3473
    %3731 = vmatpush1.bf16.msra.mxu0 %v3472
    %3732 = vmatprep.subr.bf16.mxu0 %v3476
    %3733 = vmatpush1.bf16.msra.mxu0 %v3475
    %3734 = vmatprep.subr.bf16.mxu0 0
    %3735 = vmatpush1.bf16.msra.mxu0 0
    %3736 = vmatprep.subr.bf16.mxu0 0
    %3737 = vmatpush1.bf16.msra.mxu0 0
    %3738 = vmatprep.subr.bf16.mxu0 0
    %3739 = vmatpush1.bf16.msra.mxu0 0
    %3740 = vmatprep.subr.bf16.mxu0 0
    %3741 = vmatpush1.bf16.msra.mxu0 0
    %3742 = vmatprep.subr.bf16.mxu0 0
    %3743 = vmatpush1.bf16.msra.mxu0 0
    %3744 = vmatprep.subr.bf16.mxu0 0
    %3745 = vmatpush1.bf16.msra.mxu0 0
    %3746 = vmatprep.subr.bf16.mxu0 0
    %3747 = vmatpush1.bf16.msra.mxu0 0
    %3748 = vmatprep.subr.bf16.mxu0 0
    %3749 = vmatpush1.bf16.msra.mxu0 0
    %3750 = vmatprep.mubr.bf16.mxu0 0
    %3751 = vmatmul.mubr.bf16.gmra.mrb[0].mxu0 %v3717
    %v3752 = vpop.f32.mrb[0].mxu0
    %v3753 = vadd.f32 0.0, %v3752
    %v3754 = vpop.f32.mrb[0].mxu0
    %v3755 = vadd.f32 0.0, %v3754
    %v3756 = vpop.f32.mrb[0].mxu0
    %v3757 = vpop.f32.mrb[0].mxu0
    %3758 = vdwg.mxu0
    %3759 = vmatprep.subr.bf16.mxu0 0
    %3760 = vmatpush1.bf16.msra.mxu0 %v3456
    %3761 = vmatprep.subr.bf16.mxu0 0
    %3762 = vmatpush1.bf16.msra.mxu0 %v3459
    %3763 = vmatprep.subr.bf16.mxu0 0
    %3764 = vmatpush1.bf16.msra.mxu0 %v3462
    %3765 = vmatprep.subr.bf16.mxu0 0
    %3766 = vmatpush1.bf16.msra.mxu0 %v3465
    %3767 = vmatprep.subr.bf16.mxu0 0
    %3768 = vmatpush1.bf16.msra.mxu0 %v3468
    %3769 = vmatprep.subr.bf16.mxu0 0
    %3770 = vmatpush1.bf16.msra.mxu0 %v3471
    %3771 = vmatprep.subr.bf16.mxu0 0
    %3772 = vmatpush1.bf16.msra.mxu0 %v3474
    %3773 = vmatprep.subr.bf16.mxu0 0
    %3774 = vmatpush1.bf16.msra.mxu0 %v3477
    %3775 = vmatprep.subr.bf16.mxu0 0
    %3776 = vmatpush1.bf16.msra.mxu0 0
    %3777 = vmatprep.subr.bf16.mxu0 0
    %3778 = vmatpush1.bf16.msra.mxu0 0
    %3779 = vmatprep.subr.bf16.mxu0 0
    %3780 = vmatpush1.bf16.msra.mxu0 0
    %3781 = vmatprep.subr.bf16.mxu0 0
    %3782 = vmatpush1.bf16.msra.mxu0 0
    %3783 = vmatprep.subr.bf16.mxu0 0
    %3784 = vmatpush1.bf16.msra.mxu0 0
    %3785 = vmatprep.subr.bf16.mxu0 0
    %3786 = vmatpush1.bf16.msra.mxu0 0
    %3787 = vmatprep.subr.bf16.mxu0 0
    %3788 = vmatpush1.bf16.msra.mxu0 0
    %3789 = vmatprep.subr.bf16.mxu0 0
    %3790 = vmatpush1.bf16.msra.mxu0 0
    %3791 = vmatprep.mubr.bf16.mxu0 0
    %3792 = vmatmul.mubr.bf16.gmra.mrb[0].mxu0 %v3717
    %v3793 = vpop.f32.mrb[0].mxu0
    %v3794 = vadd.f32 0.0, %v3793
    %v3795 = vpop.f32.mrb[0].mxu0
    %v3796 = vpop.f32.mrb[0].mxu0
    %v3797 = vpop.f32.mrb[0].mxu0
    %3798 = vdwg.mxu0
    %v3799 = vadd.f32 %v3714, %v3753
    %v3800 = vxor.u32 %v3799, 2147483648
    %v3801 = vmul.f32 %v3800, 1.442695
    %v3802 = vpow.pop %v3801
    %v3803 = vadd.f32 %v3802, 1.0
    %v3804 = vrcp.pop %v3803
    %v3805 = vmul.f32 1.0, %v3804
    %v3806 = vadd.f32 %v3715, %v3755
    %v3807 = vxor.u32 %v3806, 2147483648
    %v3808 = vmul.f32 %v3807, 1.442695
    %v3809 = vpow.pop %v3808
    %v3810 = vadd.f32 %v3809, 1.0
    %v3811 = vrcp.pop %v3810
    %v3812 = vmul.f32 1.0, %v3811
    %v3813 = vadd.f32 %v3794, %v3369
    %v3814 = vmul.f32 %v3805, %v3813
    %v3815 = vadd.f32 %v3716, %v3814
    %v3816 = vtanh.pop %v3815
    %v3817 = vsub.f32 1.0, %v3812
    %v3818 = vmul.f32 %v3817, %v3816
    %v3819 = vmul.f32 %v3812, %v3712
    %v3820 = vadd.f32 %v3818, %v3819
    %s3821 = scalar_lea.vmem [#allocation4], 72
    %v3822 = vld [vmem:[%s3821] sm:$0xff]
    %v3823 = vld [vmem:[%s3821 + $0x8] sm:$0xff]
    %v3824 = vld [vmem:[%s3821 + $0x10] sm:$0xff]
    %v3825 = vpack.c.bf16 %v3820, %v3820
    %3826 = vmatprep.subr.bf16.mxu0 %v3455
    %3827 = vmatpush1.bf16.msra.mxu0 %v3454
    %3828 = vmatprep.subr.bf16.mxu0 %v3458
    %3829 = vmatpush1.bf16.msra.mxu0 %v3457
    %3830 = vmatprep.subr.bf16.mxu0 %v3461
    %3831 = vmatpush1.bf16.msra.mxu0 %v3460
    %3832 = vmatprep.subr.bf16.mxu0 %v3464
    %3833 = vmatpush1.bf16.msra.mxu0 %v3463
    %3834 = vmatprep.subr.bf16.mxu0 %v3467
    %3835 = vmatpush1.bf16.msra.mxu0 %v3466
    %3836 = vmatprep.subr.bf16.mxu0 %v3470
    %3837 = vmatpush1.bf16.msra.mxu0 %v3469
    %3838 = vmatprep.subr.bf16.mxu0 %v3473
    %3839 = vmatpush1.bf16.msra.mxu0 %v3472
    %3840 = vmatprep.subr.bf16.mxu0 %v3476
    %3841 = vmatpush1.bf16.msra.mxu0 %v3475
    %3842 = vmatprep.subr.bf16.mxu0 0
    %3843 = vmatpush1.bf16.msra.mxu0 0
    %3844 = vmatprep.subr.bf16.mxu0 0
    %3845 = vmatpush1.bf16.msra.mxu0 0
    %3846 = vmatprep.subr.bf16.mxu0 0
    %3847 = vmatpush1.bf16.msra.mxu0 0
    %3848 = vmatprep.subr.bf16.mxu0 0
    %3849 = vmatpush1.bf16.msra.mxu0 0
    %3850 = vmatprep.subr.bf16.mxu0 0
    %3851 = vmatpush1.bf16.msra.mxu0 0
    %3852 = vmatprep.subr.bf16.mxu0 0
    %3853 = vmatpush1.bf16.msra.mxu0 0
    %3854 = vmatprep.subr.bf16.mxu0 0
    %3855 = vmatpush1.bf16.msra.mxu0 0
    %3856 = vmatprep.subr.bf16.mxu0 0
    %3857 = vmatpush1.bf16.msra.mxu0 0
    %3858 = vmatprep.mubr.bf16.mxu0 0
    %3859 = vmatmul.mubr.bf16.gmra.mrb[0].mxu0 %v3825
    %v3860 = vpop.f32.mrb[0].mxu0
    %v3861 = vadd.f32 0.0, %v3860
    %v3862 = vpop.f32.mrb[0].mxu0
    %v3863 = vadd.f32 0.0, %v3862
    %v3864 = vpop.f32.mrb[0].mxu0
    %v3865 = vpop.f32.mrb[0].mxu0
    %3866 = vdwg.mxu0
    %3867 = vmatprep.subr.bf16.mxu0 0
    %3868 = vmatpush1.bf16.msra.mxu0 %v3456
    %3869 = vmatprep.subr.bf16.mxu0 0
    %3870 = vmatpush1.bf16.msra.mxu0 %v3459
    %3871 = vmatprep.subr.bf16.mxu0 0
    %3872 = vmatpush1.bf16.msra.mxu0 %v3462
    %3873 = vmatprep.subr.bf16.mxu0 0
    %3874 = vmatpush1.bf16.msra.mxu0 %v3465
    %3875 = vmatprep.subr.bf16.mxu0 0
    %3876 = vmatpush1.bf16.msra.mxu0 %v3468
    %3877 = vmatprep.subr.bf16.mxu0 0
    %3878 = vmatpush1.bf16.msra.mxu0 %v3471
    %3879 = vmatprep.subr.bf16.mxu0 0
    %3880 = vmatpush1.bf16.msra.mxu0 %v3474
    %3881 = vmatprep.subr.bf16.mxu0 0
    %3882 = vmatpush1.bf16.msra.mxu0 %v3477
    %3883 = vmatprep.subr.bf16.mxu0 0
    %3884 = vmatpush1.bf16.msra.mxu0 0
    %3885 = vmatprep.subr.bf16.mxu0 0
    %3886 = vmatpush1.bf16.msra.mxu0 0
    %3887 = vmatprep.subr.bf16.mxu0 0
    %3888 = vmatpush1.bf16.msra.mxu0 0
    %3889 = vmatprep.subr.bf16.mxu0 0
    %3890 = vmatpush1.bf16.msra.mxu0 0
    %3891 = vmatprep.subr.bf16.mxu0 0
    %3892 = vmatpush1.bf16.msra.mxu0 0
    %3893 = vmatprep.subr.bf16.mxu0 0
    %3894 = vmatpush1.bf16.msra.mxu0 0
    %3895 = vmatprep.subr.bf16.mxu0 0
    %3896 = vmatpush1.bf16.msra.mxu0 0
    %3897 = vmatprep.subr.bf16.mxu0 0
    %3898 = vmatpush1.bf16.msra.mxu0 0
    %3899 = vmatprep.mubr.bf16.mxu0 0
    %3900 = vmatmul.mubr.bf16.gmra.mrb[0].mxu0 %v3825
    %v3901 = vpop.f32.mrb[0].mxu0
    %v3902 = vadd.f32 0.0, %v3901
    %v3903 = vpop.f32.mrb[0].mxu0
    %v3904 = vpop.f32.mrb[0].mxu0
    %v3905 = vpop.f32.mrb[0].mxu0
    %3906 = vdwg.mxu0
    %v3907 = vadd.f32 %v3822, %v3861
    %v3908 = vxor.u32 %v3907, 2147483648
    %v3909 = vmul.f32 %v3908, 1.442695
    %v3910 = vpow.pop %v3909
    %v3911 = vadd.f32 %v3910, 1.0
    %v3912 = vrcp.pop %v3911
    %v3913 = vmul.f32 1.0, %v3912
    %v3914 = vadd.f32 %v3823, %v3863
    %v3915 = vxor.u32 %v3914, 2147483648
    %v3916 = vmul.f32 %v3915, 1.442695
    %v3917 = vpow.pop %v3916
    %v3918 = vadd.f32 %v3917, 1.0
    %v3919 = vrcp.pop %v3918
    %v3920 = vmul.f32 1.0, %v3919
    %v3921 = vadd.f32 %v3902, %v3369
    %v3922 = vmul.f32 %v3913, %v3921
    %v3923 = vadd.f32 %v3824, %v3922
    %v3924 = vtanh.pop %v3923
    %v3925 = vsub.f32 1.0, %v3920
    %v3926 = vmul.f32 %v3925, %v3924
    %v3927 = vmul.f32 %v3920, %v3820
    %v3928 = vadd.f32 %v3926, %v3927
    %s3929 = scalar_lea.vmem [#allocation4], 96
    %v3930 = vld [vmem:[%s3929] sm:$0xff]
    %v3931 = vld [vmem:[%s3929 + $0x8] sm:$0xff]
    %v3932 = vld [vmem:[%s3929 + $0x10] sm:$0xff]
    %v3933 = vpack.c.bf16 %v3928, %v3928
    %3934 = vmatprep.subr.bf16.mxu0 %v3455
    %3935 = vmatpush1.bf16.msra.mxu0 %v3454
    %3936 = vmatprep.subr.bf16.mxu0 %v3458
    %3937 = vmatpush1.bf16.msra.mxu0 %v3457
    %3938 = vmatprep.subr.bf16.mxu0 %v3461
    %3939 = vmatpush1.bf16.msra.mxu0 %v3460
    %3940 = vmatprep.subr.bf16.mxu0 %v3464
    %3941 = vmatpush1.bf16.msra.mxu0 %v3463
    %3942 = vmatprep.subr.bf16.mxu0 %v3467
    %3943 = vmatpush1.bf16.msra.mxu0 %v3466
    %3944 = vmatprep.subr.bf16.mxu0 %v3470
    %3945 = vmatpush1.bf16.msra.mxu0 %v3469
    %3946 = vmatprep.subr.bf16.mxu0 %v3473
    %3947 = vmatpush1.bf16.msra.mxu0 %v3472
    %3948 = vmatprep.subr.bf16.mxu0 %v3476
    %3949 = vmatpush1.bf16.msra.mxu0 %v3475
    %3950 = vmatprep.subr.bf16.mxu0 0
    %3951 = vmatpush1.bf16.msra.mxu0 0
    %3952 = vmatprep.subr.bf16.mxu0 0
    %3953 = vmatpush1.bf16.msra.mxu0 0
    %3954 = vmatprep.subr.bf16.mxu0 0
    %3955 = vmatpush1.bf16.msra.mxu0 0
    %3956 = vmatprep.subr.bf16.mxu0 0
    %3957 = vmatpush1.bf16.msra.mxu0 0
    %3958 = vmatprep.subr.bf16.mxu0 0
    %3959 = vmatpush1.bf16.msra.mxu0 0
    %3960 = vmatprep.subr.bf16.mxu0 0
    %3961 = vmatpush1.bf16.msra.mxu0 0
    %3962 = vmatprep.subr.bf16.mxu0 0
    %3963 = vmatpush1.bf16.msra.mxu0 0
    %3964 = vmatprep.subr.bf16.mxu0 0
    %3965 = vmatpush1.bf16.msra.mxu0 0
    %3966 = vmatprep.mubr.bf16.mxu0 0
    %3967 = vmatmul.mubr.bf16.gmra.mrb[0].mxu0 %v3933
    %v3968 = vpop.f32.mrb[0].mxu0
    %v3969 = vadd.f32 0.0, %v3968
    %v3970 = vpop.f32.mrb[0].mxu0
    %v3971 = vadd.f32 0.0, %v3970
    %v3972 = vpop.f32.mrb[0].mxu0
    %v3973 = vpop.f32.mrb[0].mxu0
    %3974 = vdwg.mxu0
    %3975 = vmatprep.subr.bf16.mxu0 0
    %3976 = vmatpush1.bf16.msra.mxu0 %v3456
    %3977 = vmatprep.subr.bf16.mxu0 0
    %3978 = vmatpush1.bf16.msra.mxu0 %v3459
    %3979 = vmatprep.subr.bf16.mxu0 0
    %3980 = vmatpush1.bf16.msra.mxu0 %v3462
    %3981 = vmatprep.subr.bf16.mxu0 0
    %3982 = vmatpush1.bf16.msra.mxu0 %v3465
    %3983 = vmatprep.subr.bf16.mxu0 0
    %3984 = vmatpush1.bf16.msra.mxu0 %v3468
    %3985 = vmatprep.subr.bf16.mxu0 0
    %3986 = vmatpush1.bf16.msra.mxu0 %v3471
    %3987 = vmatprep.subr.bf16.mxu0 0
    %3988 = vmatpush1.bf16.msra.mxu0 %v3474
    %3989 = vmatprep.subr.bf16.mxu0 0
    %3990 = vmatpush1.bf16.msra.mxu0 %v3477
    %3991 = vmatprep.subr.bf16.mxu0 0
    %3992 = vmatpush1.bf16.msra.mxu0 0
    %3993 = vmatprep.subr.bf16.mxu0 0
    %3994 = vmatpush1.bf16.msra.mxu0 0
    %3995 = vmatprep.subr.bf16.mxu0 0
    %3996 = vmatpush1.bf16.msra.mxu0 0
    %3997 = vmatprep.subr.bf16.mxu0 0
    %3998 = vmatpush1.bf16.msra.mxu0 0
    %3999 = vmatprep.subr.bf16.mxu0 0
    %4000 = vmatpush1.bf16.msra.mxu0 0
    %4001 = vmatprep.subr.bf16.mxu0 0
    %4002 = vmatpush1.bf16.msra.mxu0 0
    %4003 = vmatprep.subr.bf16.mxu0 0
    %4004 = vmatpush1.bf16.msra.mxu0 0
    %4005 = vmatprep.subr.bf16.mxu0 0
    %4006 = vmatpush1.bf16.msra.mxu0 0
    %4007 = vmatprep.mubr.bf16.mxu0 0
    %4008 = vmatmul.mubr.bf16.gmra.mrb[0].mxu0 %v3933
    %v4009 = vpop.f32.mrb[0].mxu0
    %v4010 = vadd.f32 0.0, %v4009
    %v4011 = vpop.f32.mrb[0].mxu0
    %v4012 = vpop.f32.mrb[0].mxu0
    %v4013 = vpop.f32.mrb[0].mxu0
    %4014 = vdwg.mxu0
    %v4015 = vadd.f32 %v3930, %v3969
    %v4016 = vxor.u32 %v4015, 2147483648
    %v4017 = vmul.f32 %v4016, 1.442695
    %v4018 = vpow.pop %v4017
    %v4019 = vadd.f32 %v4018, 1.0
    %v4020 = vrcp.pop %v4019
    %v4021 = vmul.f32 1.0, %v4020
    %v4022 = vadd.f32 %v3931, %v3971
    %v4023 = vxor.u32 %v4022, 2147483648
    %v4024 = vmul.f32 %v4023, 1.442695
    %v4025 = vpow.pop %v4024
    %v4026 = vadd.f32 %v4025, 1.0
    %v4027 = vrcp.pop %v4026
    %v4028 = vmul.f32 1.0, %v4027
    %v4029 = vadd.f32 %v4010, %v3369
    %v4030 = vmul.f32 %v4021, %v4029
    %v4031 = vadd.f32 %v3932, %v4030
    %v4032 = vtanh.pop %v4031
    %v4033 = vsub.f32 1.0, %v4028
    %v4034 = vmul.f32 %v4033, %v4032
    %v4035 = vmul.f32 %v4028, %v3928
    %v4036 = vadd.f32 %v4034, %v4035
    %s4037 = scalar_lea.vmem [#allocation4], 120
    %v4038 = vld [vmem:[%s4037] sm:$0xff]
    %v4039 = vld [vmem:[%s4037 + $0x8] sm:$0xff]
    %v4040 = vld [vmem:[%s4037 + $0x10] sm:$0xff]
    %v4041 = vpack.c.bf16 %v4036, %v4036
    %4042 = vmatprep.subr.bf16.mxu0 %v3455
    %4043 = vmatpush1.bf16.msra.mxu0 %v3454
    %4044 = vmatprep.subr.bf16.mxu0 %v3458
    %4045 = vmatpush1.bf16.msra.mxu0 %v3457
    %4046 = vmatprep.subr.bf16.mxu0 %v3461
    %4047 = vmatpush1.bf16.msra.mxu0 %v3460
    %4048 = vmatprep.subr.bf16.mxu0 %v3464
    %4049 = vmatpush1.bf16.msra.mxu0 %v3463
    %4050 = vmatprep.subr.bf16.mxu0 %v3467
    %4051 = vmatpush1.bf16.msra.mxu0 %v3466
    %4052 = vmatprep.subr.bf16.mxu0 %v3470
    %4053 = vmatpush1.bf16.msra.mxu0 %v3469
    %4054 = vmatprep.subr.bf16.mxu0 %v3473
    %4055 = vmatpush1.bf16.msra.mxu0 %v3472
    %4056 = vmatprep.subr.bf16.mxu0 %v3476
    %4057 = vmatpush1.bf16.msra.mxu0 %v3475
    %4058 = vmatprep.subr.bf16.mxu0 0
    %4059 = vmatpush1.bf16.msra.mxu0 0
    %4060 = vmatprep.subr.bf16.mxu0 0
    %4061 = vmatpush1.bf16.msra.mxu0 0
    %4062 = vmatprep.subr.bf16.mxu0 0
    %4063 = vmatpush1.bf16.msra.mxu0 0
    %4064 = vmatprep.subr.bf16.mxu0 0
    %4065 = vmatpush1.bf16.msra.mxu0 0
    %4066 = vmatprep.subr.bf16.mxu0 0
    %4067 = vmatpush1.bf16.msra.mxu0 0
    %4068 = vmatprep.subr.bf16.mxu0 0
    %4069 = vmatpush1.bf16.msra.mxu0 0
    %4070 = vmatprep.subr.bf16.mxu0 0
    %4071 = vmatpush1.bf16.msra.mxu0 0
    %4072 = vmatprep.subr.bf16.mxu0 0
    %4073 = vmatpush1.bf16.msra.mxu0 0
    %4074 = vmatprep.mubr.bf16.mxu0 0
    %4075 = vmatmul.mubr.bf16.gmra.mrb[0].mxu0 %v4041
    %v4076 = vpop.f32.mrb[0].mxu0
    %v4077 = vadd.f32 0.0, %v4076
    %v4078 = vpop.f32.mrb[0].mxu0
    %v4079 = vadd.f32 0.0, %v4078
    %v4080 = vpop.f32.mrb[0].mxu0
    %v4081 = vpop.f32.mrb[0].mxu0
    %4082 = vdwg.mxu0
    %4083 = vmatprep.subr.bf16.mxu0 0
    %4084 = vmatpush1.bf16.msra.mxu0 %v3456
    %4085 = vmatprep.subr.bf16.mxu0 0
    %4086 = vmatpush1.bf16.msra.mxu0 %v3459
    %4087 = vmatprep.subr.bf16.mxu0 0
    %4088 = vmatpush1.bf16.msra.mxu0 %v3462
    %4089 = vmatprep.subr.bf16.mxu0 0
    %4090 = vmatpush1.bf16.msra.mxu0 %v3465
    %4091 = vmatprep.subr.bf16.mxu0 0
    %4092 = vmatpush1.bf16.msra.mxu0 %v3468
    %4093 = vmatprep.subr.bf16.mxu0 0
    %4094 = vmatpush1.bf16.msra.mxu0 %v3471
    %4095 = vmatprep.subr.bf16.mxu0 0
    %4096 = vmatpush1.bf16.msra.mxu0 %v3474
    %4097 = vmatprep.subr.bf16.mxu0 0
    %4098 = vmatpush1.bf16.msra.mxu0 %v3477
    %4099 = vmatprep.subr.bf16.mxu0 0
    %4100 = vmatpush1.bf16.msra.mxu0 0
    %4101 = vmatprep.subr.bf16.mxu0 0
    %4102 = vmatpush1.bf16.msra.mxu0 0
    %4103 = vmatprep.subr.bf16.mxu0 0
    %4104 = vmatpush1.bf16.msra.mxu0 0
    %4105 = vmatprep.subr.bf16.mxu0 0
    %4106 = vmatpush1.bf16.msra.mxu0 0
    %4107 = vmatprep.subr.bf16.mxu0 0
    %4108 = vmatpush1.bf16.msra.mxu0 0
    %4109 = vmatprep.subr.bf16.mxu0 0
    %4110 = vmatpush1.bf16.msra.mxu0 0
    %4111 = vmatprep.subr.bf16.mxu0 0
    %4112 = vmatpush1.bf16.msra.mxu0 0
    %4113 = vmatprep.subr.bf16.mxu0 0
    %4114 = vmatpush1.bf16.msra.mxu0 0
    %4115 = vmatprep.mubr.bf16.mxu0 0
    %4116 = vmatmul.mubr.bf16.gmra.mrb[0].mxu0 %v4041
    %v4117 = vpop.f32.mrb[0].mxu0
    %v4118 = vadd.f32 0.0, %v4117
    %v4119 = vpop.f32.mrb[0].mxu0
    %v4120 = vpop.f32.mrb[0].mxu0
    %v4121 = vpop.f32.mrb[0].mxu0
    %4122 = vdwg.mxu0
    %v4123 = vadd.f32 %v4038, %v4077
    %v4124 = vxor.u32 %v4123, 2147483648
    %v4125 = vmul.f32 %v4124, 1.442695
    %v4126 = vpow.pop %v4125
    %v4127 = vadd.f32 %v4126, 1.0
    %v4128 = vrcp.pop %v4127
    %v4129 = vmul.f32 1.0, %v4128
    %v4130 = vadd.f32 %v4039, %v4079
    %v4131 = vxor.u32 %v4130, 2147483648
    %v4132 = vmul.f32 %v4131, 1.442695
    %v4133 = vpow.pop %v4132
    %v4134 = vadd.f32 %v4133, 1.0
    %v4135 = vrcp.pop %v4134
    %v4136 = vmul.f32 1.0, %v4135
    %v4137 = vadd.f32 %v4118, %v3369
    %v4138 = vmul.f32 %v4129, %v4137
    %v4139 = vadd.f32 %v4040, %v4138
    %v4140 = vtanh.pop %v4139
    %v4141 = vsub.f32 1.0, %v4136
    %v4142 = vmul.f32 %v4141, %v4140
    %v4143 = vmul.f32 %v4136, %v4036
    %v4144 = vadd.f32 %v4142, %v4143
    %s4145 = scalar_lea.vmem [#allocation4], 144
    %v4146 = vld [vmem:[%s4145] sm:$0xff]
    %v4147 = vld [vmem:[%s4145 + $0x8] sm:$0xff]
    %v4148 = vld [vmem:[%s4145 + $0x10] sm:$0xff]
    %v4149 = vpack.c.bf16 %v4144, %v4144
    %4150 = vmatprep.subr.bf16.mxu0 %v3455
    %4151 = vmatpush1.bf16.msra.mxu0 %v3454
    %4152 = vmatprep.subr.bf16.mxu0 %v3458
    %4153 = vmatpush1.bf16.msra.mxu0 %v3457
    %4154 = vmatprep.subr.bf16.mxu0 %v3461
    %4155 = vmatpush1.bf16.msra.mxu0 %v3460
    %4156 = vmatprep.subr.bf16.mxu0 %v3464
    %4157 = vmatpush1.bf16.msra.mxu0 %v3463
    %4158 = vmatprep.subr.bf16.mxu0 %v3467
    %4159 = vmatpush1.bf16.msra.mxu0 %v3466
    %4160 = vmatprep.subr.bf16.mxu0 %v3470
    %4161 = vmatpush1.bf16.msra.mxu0 %v3469
    %4162 = vmatprep.subr.bf16.mxu0 %v3473
    %4163 = vmatpush1.bf16.msra.mxu0 %v3472
    %4164 = vmatprep.subr.bf16.mxu0 %v3476
    %4165 = vmatpush1.bf16.msra.mxu0 %v3475
    %4166 = vmatprep.subr.bf16.mxu0 0
    %4167 = vmatpush1.bf16.msra.mxu0 0
    %4168 = vmatprep.subr.bf16.mxu0 0
    %4169 = vmatpush1.bf16.msra.mxu0 0
    %4170 = vmatprep.subr.bf16.mxu0 0
    %4171 = vmatpush1.bf16.msra.mxu0 0
    %4172 = vmatprep.subr.bf16.mxu0 0
    %4173 = vmatpush1.bf16.msra.mxu0 0
    %4174 = vmatprep.subr.bf16.mxu0 0
    %4175 = vmatpush1.bf16.msra.mxu0 0
    %4176 = vmatprep.subr.bf16.mxu0 0
    %4177 = vmatpush1.bf16.msra.mxu0 0
    %4178 = vmatprep.subr.bf16.mxu0 0
    %4179 = vmatpush1.bf16.msra.mxu0 0
    %4180 = vmatprep.subr.bf16.mxu0 0
    %4181 = vmatpush1.bf16.msra.mxu0 0
    %4182 = vmatprep.mubr.bf16.mxu0 0
    %4183 = vmatmul.mubr.bf16.gmra.mrb[0].mxu0 %v4149
    %v4184 = vpop.f32.mrb[0].mxu0
    %v4185 = vadd.f32 0.0, %v4184
    %v4186 = vpop.f32.mrb[0].mxu0
    %v4187 = vadd.f32 0.0, %v4186
    %v4188 = vpop.f32.mrb[0].mxu0
    %v4189 = vpop.f32.mrb[0].mxu0
    %4190 = vdwg.mxu0
    %4191 = vmatprep.subr.bf16.mxu0 0
    %4192 = vmatpush1.bf16.msra.mxu0 %v3456
    %4193 = vmatprep.subr.bf16.mxu0 0
    %4194 = vmatpush1.bf16.msra.mxu0 %v3459
    %4195 = vmatprep.subr.bf16.mxu0 0
    %4196 = vmatpush1.bf16.msra.mxu0 %v3462
    %4197 = vmatprep.subr.bf16.mxu0 0
    %4198 = vmatpush1.bf16.msra.mxu0 %v3465
    %4199 = vmatprep.subr.bf16.mxu0 0
    %4200 = vmatpush1.bf16.msra.mxu0 %v3468
    %4201 = vmatprep.subr.bf16.mxu0 0
    %4202 = vmatpush1.bf16.msra.mxu0 %v3471
    %4203 = vmatprep.subr.bf16.mxu0 0
    %4204 = vmatpush1.bf16.msra.mxu0 %v3474
    %4205 = vmatprep.subr.bf16.mxu0 0
    %4206 = vmatpush1.bf16.msra.mxu0 %v3477
    %4207 = vmatprep.subr.bf16.mxu0 0
    %4208 = vmatpush1.bf16.msra.mxu0 0
    %4209 = vmatprep.subr.bf16.mxu0 0
    %4210 = vmatpush1.bf16.msra.mxu0 0
    %4211 = vmatprep.subr.bf16.mxu0 0
    %4212 = vmatpush1.bf16.msra.mxu0 0
    %4213 = vmatprep.subr.bf16.mxu0 0
    %4214 = vmatpush1.bf16.msra.mxu0 0
    %4215 = vmatprep.subr.bf16.mxu0 0
    %4216 = vmatpush1.bf16.msra.mxu0 0
    %4217 = vmatprep.subr.bf16.mxu0 0
    %4218 = vmatpush1.bf16.msra.mxu0 0
    %4219 = vmatprep.subr.bf16.mxu0 0
    %4220 = vmatpush1.bf16.msra.mxu0 0
    %4221 = vmatprep.subr.bf16.mxu0 0
    %4222 = vmatpush1.bf16.msra.mxu0 0
    %4223 = vmatprep.mubr.bf16.mxu0 0
    %4224 = vmatmul.mubr.bf16.gmra.mrb[0].mxu0 %v4149
    %v4225 = vpop.f32.mrb[0].mxu0
    %v4226 = vadd.f32 0.0, %v4225
    %v4227 = vpop.f32.mrb[0].mxu0
    %v4228 = vpop.f32.mrb[0].mxu0
    %v4229 = vpop.f32.mrb[0].mxu0
    %4230 = vdwg.mxu0
    %v4231 = vadd.f32 %v4146, %v4185
    %v4232 = vxor.u32 %v4231, 2147483648
    %v4233 = vmul.f32 %v4232, 1.442695
    %v4234 = vpow.pop %v4233
    %v4235 = vadd.f32 %v4234, 1.0
    %v4236 = vrcp.pop %v4235
    %v4237 = vmul.f32 1.0, %v4236
    %v4238 = vadd.f32 %v4147, %v4187
    %v4239 = vxor.u32 %v4238, 2147483648
    %v4240 = vmul.f32 %v4239, 1.442695
    %v4241 = vpow.pop %v4240
    %v4242 = vadd.f32 %v4241, 1.0
    %v4243 = vrcp.pop %v4242
    %v4244 = vmul.f32 1.0, %v4243
    %v4245 = vadd.f32 %v4226, %v3369
    %v4246 = vmul.f32 %v4237, %v4245
    %v4247 = vadd.f32 %v4148, %v4246
    %v4248 = vtanh.pop %v4247
    %v4249 = vsub.f32 1.0, %v4244
    %v4250 = vmul.f32 %v4249, %v4248
    %v4251 = vmul.f32 %v4244, %v4144
    %v4252 = vadd.f32 %v4250, %v4251
    %s4253 = scalar_lea.vmem [#allocation4], 168
    %v4254 = vld [vmem:[%s4253] sm:$0xff]
    %v4255 = vld [vmem:[%s4253 + $0x8] sm:$0xff]
    %v4256 = vld [vmem:[%s4253 + $0x10] sm:$0xff]
    %v4257 = vpack.c.bf16 %v4252, %v4252
    %4258 = vmatprep.subr.bf16.mxu0 %v3455
    %4259 = vmatpush1.bf16.msra.mxu0 %v3454
    %4260 = vmatprep.subr.bf16.mxu0 %v3458
    %4261 = vmatpush1.bf16.msra.mxu0 %v3457
    %4262 = vmatprep.subr.bf16.mxu0 %v3461
    %4263 = vmatpush1.bf16.msra.mxu0 %v3460
    %4264 = vmatprep.subr.bf16.mxu0 %v3464
    %4265 = vmatpush1.bf16.msra.mxu0 %v3463
    %4266 = vmatprep.subr.bf16.mxu0 %v3467
    %4267 = vmatpush1.bf16.msra.mxu0 %v3466
    %4268 = vmatprep.subr.bf16.mxu0 %v3470
    %4269 = vmatpush1.bf16.msra.mxu0 %v3469
    %4270 = vmatprep.subr.bf16.mxu0 %v3473
    %4271 = vmatpush1.bf16.msra.mxu0 %v3472
    %4272 = vmatprep.subr.bf16.mxu0 %v3476
    %4273 = vmatpush1.bf16.msra.mxu0 %v3475
    %4274 = vmatprep.subr.bf16.mxu0 0
    %4275 = vmatpush1.bf16.msra.mxu0 0
    %4276 = vmatprep.subr.bf16.mxu0 0
    %4277 = vmatpush1.bf16.msra.mxu0 0
    %4278 = vmatprep.subr.bf16.mxu0 0
    %4279 = vmatpush1.bf16.msra.mxu0 0
    %4280 = vmatprep.subr.bf16.mxu0 0
    %4281 = vmatpush1.bf16.msra.mxu0 0
    %4282 = vmatprep.subr.bf16.mxu0 0
    %4283 = vmatpush1.bf16.msra.mxu0 0
    %4284 = vmatprep.subr.bf16.mxu0 0
    %4285 = vmatpush1.bf16.msra.mxu0 0
    %4286 = vmatprep.subr.bf16.mxu0 0
    %4287 = vmatpush1.bf16.msra.mxu0 0
    %4288 = vmatprep.subr.bf16.mxu0 0
    %4289 = vmatpush1.bf16.msra.mxu0 0
    %4290 = vmatprep.mubr.bf16.mxu0 0
    %4291 = vmatmul.mubr.bf16.gmra.mrb[0].mxu0 %v4257
    %v4292 = vpop.f32.mrb[0].mxu0
    %v4293 = vadd.f32 0.0, %v4292
    %v4294 = vpop.f32.mrb[0].mxu0
    %v4295 = vadd.f32 0.0, %v4294
    %v4296 = vpop.f32.mrb[0].mxu0
    %v4297 = vpop.f32.mrb[0].mxu0
    %4298 = vdwg.mxu0
    %4299 = vmatprep.subr.bf16.mxu0 0
    %4300 = vmatpush1.bf16.msra.mxu0 %v3456
    %4301 = vmatprep.subr.bf16.mxu0 0
    %4302 = vmatpush1.bf16.msra.mxu0 %v3459
    %4303 = vmatprep.subr.bf16.mxu0 0
    %4304 = vmatpush1.bf16.msra.mxu0 %v3462
    %4305 = vmatprep.subr.bf16.mxu0 0
    %4306 = vmatpush1.bf16.msra.mxu0 %v3465
    %4307 = vmatprep.subr.bf16.mxu0 0
    %4308 = vmatpush1.bf16.msra.mxu0 %v3468
    %4309 = vmatprep.subr.bf16.mxu0 0
    %4310 = vmatpush1.bf16.msra.mxu0 %v3471
    %4311 = vmatprep.subr.bf16.mxu0 0
    %4312 = vmatpush1.bf16.msra.mxu0 %v3474
    %4313 = vmatprep.subr.bf16.mxu0 0
    %4314 = vmatpush1.bf16.msra.mxu0 %v3477
    %4315 = vmatprep.subr.bf16.mxu0 0
    %4316 = vmatpush1.bf16.msra.mxu0 0
    %4317 = vmatprep.subr.bf16.mxu0 0
    %4318 = vmatpush1.bf16.msra.mxu0 0
    %4319 = vmatprep.subr.bf16.mxu0 0
    %4320 = vmatpush1.bf16.msra.mxu0 0
    %4321 = vmatprep.subr.bf16.mxu0 0
    %4322 = vmatpush1.bf16.msra.mxu0 0
    %4323 = vmatprep.subr.bf16.mxu0 0
    %4324 = vmatpush1.bf16.msra.mxu0 0
    %4325 = vmatprep.subr.bf16.mxu0 0
    %4326 = vmatpush1.bf16.msra.mxu0 0
    %4327 = vmatprep.subr.bf16.mxu0 0
    %4328 = vmatpush1.bf16.msra.mxu0 0
    %4329 = vmatprep.subr.bf16.mxu0 0
    %4330 = vmatpush1.bf16.msra.mxu0 0
    %4331 = vmatprep.mubr.bf16.mxu0 0
    %4332 = vmatmul.mubr.bf16.gmra.mrb[0].mxu0 %v4257
    %v4333 = vpop.f32.mrb[0].mxu0
    %v4334 = vadd.f32 0.0, %v4333
    %v4335 = vpop.f32.mrb[0].mxu0
    %v4336 = vpop.f32.mrb[0].mxu0
    %v4337 = vpop.f32.mrb[0].mxu0
    %4338 = vdwg.mxu0
    %v4339 = vadd.f32 %v4254, %v4293
    %v4340 = vxor.u32 %v4339, 2147483648
    %v4341 = vmul.f32 %v4340, 1.442695
    %v4342 = vpow.pop %v4341
    %v4343 = vadd.f32 %v4342, 1.0
    %v4344 = vrcp.pop %v4343
    %v4345 = vmul.f32 1.0, %v4344
    %v4346 = vadd.f32 %v4255, %v4295
    %v4347 = vxor.u32 %v4346, 2147483648
    %v4348 = vmul.f32 %v4347, 1.442695
    %v4349 = vpow.pop %v4348
    %v4350 = vadd.f32 %v4349, 1.0
    %v4351 = vrcp.pop %v4350
    %v4352 = vmul.f32 1.0, %v4351
    %v4353 = vadd.f32 %v4334, %v3369
    %v4354 = vmul.f32 %v4345, %v4353
    %v4355 = vadd.f32 %v4256, %v4354
    %v4356 = vtanh.pop %v4355
    %v4357 = vsub.f32 1.0, %v4352
    %v4358 = vmul.f32 %v4357, %v4356
    %v4359 = vmul.f32 %v4352, %v4252
    %v4360 = vadd.f32 %v4358, %v4359
    %v4361 = vld [vmem:[%s2806] sm:$0xff]
    %v4362 = vld [vmem:[%s1269] sm:$0xff]
    %v4363 = vpack.c.bf16 %v4361, %v4361
    %v4364 = vpack.c.bf16 %v4362, %v4362
    %v4365 = vld [vmem:[%s6] sm:$0xff]
    %v4366 = vld [vmem:[%s6 + $0x8] sm:$0xf]
    %v4367 = vld [vmem:[%s6 + $0xc] sm:$0xff]
    %v4368 = vld [vmem:[%s6 + $0x14] sm:$0xf]
    %v4369 = vld [vmem:[%s6 + $0x18] sm:$0xff]
    %v4370 = vld [vmem:[%s6 + $0x20] sm:$0xf]
    %v4371 = vld [vmem:[%s6 + $0x24] sm:$0xff]
    %v4372 = vld [vmem:[%s6 + $0x2c] sm:$0xf]
    %v4373 = vld [vmem:[%s6 + $0x30] sm:$0xff]
    %v4374 = vld [vmem:[%s6 + $0x38] sm:$0xf]
    %v4375 = vld [vmem:[%s6 + $0x3c] sm:$0xff]
    %v4376 = vld [vmem:[%s6 + $0x44] sm:$0xf]
    %v4377 = vld [vmem:[%s6 + $0x48] sm:$0xff]
    %v4378 = vld [vmem:[%s6 + $0x50] sm:$0xf]
    %v4379 = vld [vmem:[%s6 + $0x54] sm:$0xff]
    %v4380 = vld [vmem:[%s6 + $0x5c] sm:$0xf]
    %v4381 = vld [vmem:[%s6 + $0x60] sm:$0xff]
    %v4382 = vld [vmem:[%s6 + $0x68] sm:$0xf]
    %v4383 = vld [vmem:[%s6 + $0x6c] sm:$0xff]
    %v4384 = vld [vmem:[%s6 + $0x74] sm:$0xf]
    %v4385 = vld [vmem:[%s6 + $0x78] sm:$0xff]
    %v4386 = vld [vmem:[%s6 + $0x80] sm:$0xf]
    %v4387 = vld [vmem:[%s6 + $0x84] sm:$0xff]
    %v4388 = vld [vmem:[%s6 + $0x8c] sm:$0xf]
    %v4389 = vld [vmem:[%s6 + $0x90] sm:$0xff]
    %v4390 = vld [vmem:[%s6 + $0x98] sm:$0xf]
    %v4391 = vld [vmem:[%s6 + $0x9c] sm:$0xff]
    %v4392 = vld [vmem:[%s6 + $0xa4] sm:$0xf]
    %v4393 = vld [vmem:[%s6 + $0xa8] sm:$0xff]
    %v4394 = vld [vmem:[%s6 + $0xb0] sm:$0xf]
    %v4395 = vld [vmem:[%s6 + $0xb4] sm:$0xff]
    %v4396 = vld [vmem:[%s6 + $0xbc] sm:$0xf]
    %v4397 = vld [vmem:[%s6 + $0xc0] sm:$0xff]
    %v4398 = vld [vmem:[%s6 + $0xc8] sm:$0xf]
    %v4399 = vld [vmem:[%s6 + $0xcc] sm:$0xff]
    %v4400 = vld [vmem:[%s6 + $0xd4] sm:$0xf]
    %v4401 = vld [vmem:[%s6 + $0xd8] sm:$0xff]
    %v4402 = vld [vmem:[%s6 + $0xe0] sm:$0xf]
    %v4403 = vld [vmem:[%s6 + $0xe4] sm:$0xff]
    %v4404 = vld [vmem:[%s6 + $0xec] sm:$0xf]
    %v4405 = vld [vmem:[%s6 + $0xf0] sm:$0xff]
    %v4406 = vld [vmem:[%s6 + $0xf8] sm:$0xf]
    %v4407 = vld [vmem:[%s6 + $0xfc] sm:$0xff]
    %v4408 = vld [vmem:[%s6 + $0x104] sm:$0xf]
    %v4409 = vld [vmem:[%s6 + $0x108] sm:$0xff]
    %v4410 = vld [vmem:[%s6 + $0x110] sm:$0xf]
    %v4411 = vld [vmem:[%s6 + $0x114] sm:$0xff]
    %v4412 = vld [vmem:[%s6 + $0x11c] sm:$0xf]
    %v4413 = vld [vmem:[%s6 + $0x120] sm:$0xff]
    %v4414 = vld [vmem:[%s6 + $0x128] sm:$0xf]
    %v4415 = vld [vmem:[%s6 + $0x12c] sm:$0xff]
    %v4416 = vld [vmem:[%s6 + $0x134] sm:$0xf]
    %v4417 = vld [vmem:[%s6 + $0x138] sm:$0xff]
    %v4418 = vld [vmem:[%s6 + $0x140] sm:$0xf]
    %v4419 = vld [vmem:[%s6 + $0x144] sm:$0xff]
    %v4420 = vld [vmem:[%s6 + $0x14c] sm:$0xf]
    %v4421 = vld [vmem:[%s6 + $0x150] sm:$0xff]
    %v4422 = vld [vmem:[%s6 + $0x158] sm:$0xf]
    %v4423 = vld [vmem:[%s6 + $0x15c] sm:$0xff]
    %v4424 = vld [vmem:[%s6 + $0x164] sm:$0xf]
    %v4425 = vld [vmem:[%s6 + $0x168] sm:$0xff]
    %v4426 = vld [vmem:[%s6 + $0x170] sm:$0xf]
    %v4427 = vld [vmem:[%s6 + $0x174] sm:$0xff]
    %v4428 = vld [vmem:[%s6 + $0x17c] sm:$0xf]
    %s4429 = scalar_lea.vmem %s8, 3
    %v4430 = vld [vmem:[%s4429] sm:$0x7]
    %v4432 = vlaneseq
    %v4433 = vshrl.u32 %v4432, 7
    %v4434 = vsub.s32 0, %v4433
    %v4435 = vrot.slane %v4430, %v4434
    %v4436 = vlaneseq
    %v4437 = vshrl.u32 %v4436, 7
    %v4438 = vsub.s32 1, %v4437
    %v4439 = vrot.slane %v4430, %v4438
    %v4440 = vlaneseq
    %v4441 = vshrl.u32 %v4440, 7
    %v4442 = vsub.s32 2, %v4441
    %v4443 = vrot.slane %v4430, %v4442
    %v4511 = vunpack.c.l.b16 %v4365
    %v4512 = vunpack.c.h.b16 %v4365
    %v4513 = vunpack.c.l.b16 %v4366
    %v4514 = vunpack.c.l.b16 %v4367
    %v4515 = vunpack.c.h.b16 %v4367
    %v4516 = vunpack.c.l.b16 %v4368
    %v4517 = vunpack.c.l.b16 %v4369
    %v4518 = vunpack.c.h.b16 %v4369
    %v4519 = vunpack.c.l.b16 %v4370
    %v4520 = vunpack.c.l.b16 %v4371
    %v4521 = vunpack.c.h.b16 %v4371
    %v4522 = vunpack.c.l.b16 %v4372
    %v4523 = vunpack.c.l.b16 %v4373
    %v4524 = vunpack.c.h.b16 %v4373
    %v4525 = vunpack.c.l.b16 %v4374
    %v4526 = vunpack.c.l.b16 %v4375
    %v4527 = vunpack.c.h.b16 %v4375
    %v4528 = vunpack.c.l.b16 %v4376
    %v4529 = vunpack.c.l.b16 %v4377
    %v4530 = vunpack.c.h.b16 %v4377
    %v4531 = vunpack.c.l.b16 %v4378
    %v4532 = vunpack.c.l.b16 %v4379
    %v4533 = vunpack.c.h.b16 %v4379
    %v4534 = vunpack.c.l.b16 %v4380
    %v4535 = vunpack.c.l.b16 %v4381
    %v4536 = vunpack.c.h.b16 %v4381
    %v4537 = vunpack.c.l.b16 %v4382
    %v4538 = vunpack.c.l.b16 %v4383
    %v4539 = vunpack.c.h.b16 %v4383
    %v4540 = vunpack.c.l.b16 %v4384
    %v4541 = vunpack.c.l.b16 %v4385
    %v4542 = vunpack.c.h.b16 %v4385
    %v4543 = vunpack.c.l.b16 %v4386
    %v4544 = vunpack.c.l.b16 %v4387
    %v4545 = vunpack.c.h.b16 %v4387
    %v4546 = vunpack.c.l.b16 %v4388
    %v4547 = vunpack.c.l.b16 %v4389
    %v4548 = vunpack.c.h.b16 %v4389
    %v4549 = vunpack.c.l.b16 %v4390
    %v4550 = vunpack.c.l.b16 %v4391
    %v4551 = vunpack.c.h.b16 %v4391
    %v4552 = vunpack.c.l.b16 %v4392
    %v4553 = vunpack.c.l.b16 %v4393
    %v4554 = vunpack.c.h.b16 %v4393
    %v4555 = vunpack.c.l.b16 %v4394
    %v4556 = vunpack.c.l.b16 %v4395
    %v4557 = vunpack.c.h.b16 %v4395
    %v4558 = vunpack.c.l.b16 %v4396
    %v4559 = vunpack.c.l.b16 %v4397
    %v4560 = vunpack.c.h.b16 %v4397
    %v4561 = vunpack.c.l.b16 %v4398
    %v4562 = vunpack.c.l.b16 %v4399
    %v4563 = vunpack.c.h.b16 %v4399
    %v4564 = vunpack.c.l.b16 %v4400
    %v4565 = vunpack.c.l.b16 %v4401
    %v4566 = vunpack.c.h.b16 %v4401
    %v4567 = vunpack.c.l.b16 %v4402
    %v4568 = vunpack.c.l.b16 %v4403
    %v4569 = vunpack.c.h.b16 %v4403
    %v4570 = vunpack.c.l.b16 %v4404
    %v4571 = vunpack.c.l.b16 %v4405
    %v4572 = vunpack.c.h.b16 %v4405
    %v4573 = vunpack.c.l.b16 %v4406
    %v4574 = vunpack.c.l.b16 %v4407
    %v4575 = vunpack.c.h.b16 %v4407
    %v4576 = vunpack.c.l.b16 %v4408
    %v4577 = vunpack.c.l.b16 %v4409
    %v4578 = vunpack.c.h.b16 %v4409
    %v4579 = vunpack.c.l.b16 %v4410
    %v4580 = vunpack.c.l.b16 %v4411
    %v4581 = vunpack.c.h.b16 %v4411
    %v4582 = vunpack.c.l.b16 %v4412
    %v4583 = vunpack.c.l.b16 %v4413
    %v4584 = vunpack.c.h.b16 %v4413
    %v4585 = vunpack.c.l.b16 %v4414
    %v4586 = vunpack.c.l.b16 %v4415
    %v4587 = vunpack.c.h.b16 %v4415
    %v4588 = vunpack.c.l.b16 %v4416
    %v4589 = vunpack.c.l.b16 %v4417
    %v4590 = vunpack.c.h.b16 %v4417
    %v4591 = vunpack.c.l.b16 %v4418
    %v4592 = vunpack.c.l.b16 %v4419
    %v4593 = vunpack.c.h.b16 %v4419
    %v4594 = vunpack.c.l.b16 %v4420
    %v4595 = vunpack.c.l.b16 %v4421
    %v4596 = vunpack.c.h.b16 %v4421
    %v4597 = vunpack.c.l.b16 %v4422
    %v4598 = vunpack.c.l.b16 %v4423
    %v4599 = vunpack.c.h.b16 %v4423
    %v4600 = vunpack.c.l.b16 %v4424
    %v4601 = vunpack.c.l.b16 %v4425
    %v4602 = vunpack.c.h.b16 %v4425
    %v4603 = vunpack.c.l.b16 %v4426
    %v4604 = vunpack.c.l.b16 %v4427
    %v4605 = vunpack.c.h.b16 %v4427
    %v4606 = vunpack.c.l.b16 %v4428
    %v4607 = vpack.c.b16 %v4514, %v4511
    %v4608 = vpack.c.b16 %v4515, %v4512
    %v4609 = vpack.c.b16 %v4516, %v4513
    %v4610 = vpack.c.b16 %v4520, %v4517
    %v4611 = vpack.c.b16 %v4521, %v4518
    %v4612 = vpack.c.b16 %v4522, %v4519
    %v4613 = vpack.c.b16 %v4526, %v4523
    %v4614 = vpack.c.b16 %v4527, %v4524
    %v4615 = vpack.c.b16 %v4528, %v4525
    %v4616 = vpack.c.b16 %v4532, %v4529
    %v4617 = vpack.c.b16 %v4533, %v4530
    %v4618 = vpack.c.b16 %v4534, %v4531
    %v4619 = vpack.c.b16 %v4538, %v4535
    %v4620 = vpack.c.b16 %v4539, %v4536
    %v4621 = vpack.c.b16 %v4540, %v4537
    %v4622 = vpack.c.b16 %v4544, %v4541
    %v4623 = vpack.c.b16 %v4545, %v4542
    %v4624 = vpack.c.b16 %v4546, %v4543
    %v4625 = vpack.c.b16 %v4550, %v4547
    %v4626 = vpack.c.b16 %v4551, %v4548
    %v4627 = vpack.c.b16 %v4552, %v4549
    %v4628 = vpack.c.b16 %v4556, %v4553
    %v4629 = vpack.c.b16 %v4557, %v4554
    %v4630 = vpack.c.b16 %v4558, %v4555
    %v4631 = vpack.c.b16 %v4562, %v4559
    %v4632 = vpack.c.b16 %v4563, %v4560
    %v4633 = vpack.c.b16 %v4564, %v4561
    %v4634 = vpack.c.b16 %v4568, %v4565
    %v4635 = vpack.c.b16 %v4569, %v4566
    %v4636 = vpack.c.b16 %v4570, %v4567
    %v4637 = vpack.c.b16 %v4574, %v4571
    %v4638 = vpack.c.b16 %v4575, %v4572
    %v4639 = vpack.c.b16 %v4576, %v4573
    %v4640 = vpack.c.b16 %v4580, %v4577
    %v4641 = vpack.c.b16 %v4581, %v4578
    %v4642 = vpack.c.b16 %v4582, %v4579
    %v4643 = vpack.c.b16 %v4586, %v4583
    %v4644 = vpack.c.b16 %v4587, %v4584
    %v4645 = vpack.c.b16 %v4588, %v4585
    %v4646 = vpack.c.b16 %v4592, %v4589
    %v4647 = vpack.c.b16 %v4593, %v4590
    %v4648 = vpack.c.b16 %v4594, %v4591
    %v4649 = vpack.c.b16 %v4598, %v4595
    %v4650 = vpack.c.b16 %v4599, %v4596
    %v4651 = vpack.c.b16 %v4600, %v4597
    %v4652 = vpack.c.b16 %v4604, %v4601
    %v4653 = vpack.c.b16 %v4605, %v4602
    %v4654 = vpack.c.b16 %v4606, %v4603
    %4703 = vmatprep.subr.bf16.mxu0 %v4608
    %4704 = vmatpush1.bf16.msra.mxu0 %v4607
    %4705 = vmatprep.subr.bf16.mxu0 %v4611
    %4706 = vmatpush1.bf16.msra.mxu0 %v4610
    %4707 = vmatprep.subr.bf16.mxu0 %v4614
    %4708 = vmatpush1.bf16.msra.mxu0 %v4613
    %4709 = vmatprep.subr.bf16.mxu0 %v4617
    %4710 = vmatpush1.bf16.msra.mxu0 %v4616
    %4711 = vmatprep.subr.bf16.mxu0 %v4620
    %4712 = vmatpush1.bf16.msra.mxu0 %v4619
    %4713 = vmatprep.subr.bf16.mxu0 %v4623
    %4714 = vmatpush1.bf16.msra.mxu0 %v4622
    %4715 = vmatprep.subr.bf16.mxu0 %v4626
    %4716 = vmatpush1.bf16.msra.mxu0 %v4625
    %4717 = vmatprep.subr.bf16.mxu0 %v4629
    %4718 = vmatpush1.bf16.msra.mxu0 %v4628
    %4719 = vmatprep.subr.bf16.mxu0 %v4632
    %4720 = vmatpush1.bf16.msra.mxu0 %v4631
    %4721 = vmatprep.subr.bf16.mxu0 %v4635
    %4722 = vmatpush1.bf16.msra.mxu0 %v4634
    %4723 = vmatprep.subr.bf16.mxu0 %v4638
    %4724 = vmatpush1.bf16.msra.mxu0 %v4637
    %4725 = vmatprep.subr.bf16.mxu0 %v4641
    %4726 = vmatpush1.bf16.msra.mxu0 %v4640
    %4727 = vmatprep.subr.bf16.mxu0 %v4644
    %4728 = vmatpush1.bf16.msra.mxu0 %v4643
    %4729 = vmatprep.subr.bf16.mxu0 %v4647
    %4730 = vmatpush1.bf16.msra.mxu0 %v4646
    %4731 = vmatprep.subr.bf16.mxu0 %v4650
    %4732 = vmatpush1.bf16.msra.mxu0 %v4649
    %4733 = vmatprep.subr.bf16.mxu0 %v4653
    %4734 = vmatpush1.bf16.msra.mxu0 %v4652
    %4735 = vmatprep.mubr.bf16.mxu0 %v4364
    %4736 = vmatmul.mubr.bf16.gmra.mrb[0].mxu0 %v4363
    %v4737 = vpop.f32.mrb[0].mxu0
    %v4738 = vadd.f32 %v4435, %v4737
    %v4739 = vpop.f32.mrb[0].mxu0
    %v4740 = vadd.f32 %v4439, %v4739
    %v4741 = vpop.f32.mrb[0].mxu0
    %v4742 = vpop.f32.mrb[0].mxu0
    %4743 = vdwg.mxu0
    %4744 = vmatprep.subr.bf16.mxu0 0
    %4745 = vmatpush1.bf16.msra.mxu0 %v4609
    %4746 = vmatprep.subr.bf16.mxu0 0
    %4747 = vmatpush1.bf16.msra.mxu0 %v4612
    %4748 = vmatprep.subr.bf16.mxu0 0
    %4749 = vmatpush1.bf16.msra.mxu0 %v4615
    %4750 = vmatprep.subr.bf16.mxu0 0
    %4751 = vmatpush1.bf16.msra.mxu0 %v4618
    %4752 = vmatprep.subr.bf16.mxu0 0
    %4753 = vmatpush1.bf16.msra.mxu0 %v4621
    %4754 = vmatprep.subr.bf16.mxu0 0
    %4755 = vmatpush1.bf16.msra.mxu0 %v4624
    %4756 = vmatprep.subr.bf16.mxu0 0
    %4757 = vmatpush1.bf16.msra.mxu0 %v4627
    %4758 = vmatprep.subr.bf16.mxu0 0
    %4759 = vmatpush1.bf16.msra.mxu0 %v4630
    %4760 = vmatprep.subr.bf16.mxu0 0
    %4761 = vmatpush1.bf16.msra.mxu0 %v4633
    %4762 = vmatprep.subr.bf16.mxu0 0
    %4763 = vmatpush1.bf16.msra.mxu0 %v4636
    %4764 = vmatprep.subr.bf16.mxu0 0
    %4765 = vmatpush1.bf16.msra.mxu0 %v4639
    %4766 = vmatprep.subr.bf16.mxu0 0
    %4767 = vmatpush1.bf16.msra.mxu0 %v4642
    %4768 = vmatprep.subr.bf16.mxu0 0
    %4769 = vmatpush1.bf16.msra.mxu0 %v4645
    %4770 = vmatprep.subr.bf16.mxu0 0
    %4771 = vmatpush1.bf16.msra.mxu0 %v4648
    %4772 = vmatprep.subr.bf16.mxu0 0
    %4773 = vmatpush1.bf16.msra.mxu0 %v4651
    %4774 = vmatprep.subr.bf16.mxu0 0
    %4775 = vmatpush1.bf16.msra.mxu0 %v4654
    %4776 = vmatprep.mubr.bf16.mxu0 %v4364
    %4777 = vmatmul.mubr.bf16.gmra.mrb[0].mxu0 %v4363
    %v4778 = vpop.f32.mrb[0].mxu0
    %v4779 = vadd.f32 %v4443, %v4778
    %v4780 = vpop.f32.mrb[0].mxu0
    %v4781 = vpop.f32.mrb[0].mxu0
    %v4782 = vpop.f32.mrb[0].mxu0
    %4783 = vdwg.mxu0
    %s4784 = scalar_lea.vmem %s7, 192
    %v4785 = vld [vmem:[%s4784] sm:$0xff]
    %v4786 = vld [vmem:[%s4784 + $0x8] sm:$0xf]
    %v4787 = vld [vmem:[%s4784 + $0xc] sm:$0xff]
    %v4788 = vld [vmem:[%s4784 + $0x14] sm:$0xf]
    %v4789 = vld [vmem:[%s4784 + $0x18] sm:$0xff]
    %v4790 = vld [vmem:[%s4784 + $0x20] sm:$0xf]
    %v4791 = vld [vmem:[%s4784 + $0x24] sm:$0xff]
    %v4792 = vld [vmem:[%s4784 + $0x2c] sm:$0xf]
    %v4793 = vld [vmem:[%s4784 + $0x30] sm:$0xff]
    %v4794 = vld [vmem:[%s4784 + $0x38] sm:$0xf]
    %v4795 = vld [vmem:[%s4784 + $0x3c] sm:$0xff]
    %v4796 = vld [vmem:[%s4784 + $0x44] sm:$0xf]
    %v4797 = vld [vmem:[%s4784 + $0x48] sm:$0xff]
    %v4798 = vld [vmem:[%s4784 + $0x50] sm:$0xf]
    %v4799 = vld [vmem:[%s4784 + $0x54] sm:$0xff]
    %v4800 = vld [vmem:[%s4784 + $0x5c] sm:$0xf]
    %v4801 = vld [vmem:[%s4784 + $0x60] sm:$0xff]
    %v4802 = vld [vmem:[%s4784 + $0x68] sm:$0xf]
    %v4803 = vld [vmem:[%s4784 + $0x6c] sm:$0xff]
    %v4804 = vld [vmem:[%s4784 + $0x74] sm:$0xf]
    %v4805 = vld [vmem:[%s4784 + $0x78] sm:$0xff]
    %v4806 = vld [vmem:[%s4784 + $0x80] sm:$0xf]
    %v4807 = vld [vmem:[%s4784 + $0x84] sm:$0xff]
    %v4808 = vld [vmem:[%s4784 + $0x8c] sm:$0xf]
    %v4809 = vld [vmem:[%s4784 + $0x90] sm:$0xff]
    %v4810 = vld [vmem:[%s4784 + $0x98] sm:$0xf]
    %v4811 = vld [vmem:[%s4784 + $0x9c] sm:$0xff]
    %v4812 = vld [vmem:[%s4784 + $0xa4] sm:$0xf]
    %v4813 = vld [vmem:[%s4784 + $0xa8] sm:$0xff]
    %v4814 = vld [vmem:[%s4784 + $0xb0] sm:$0xf]
    %v4815 = vld [vmem:[%s4784 + $0xb4] sm:$0xff]
    %v4816 = vld [vmem:[%s4784 + $0xbc] sm:$0xf]
    %s4817 = scalar_lea.vmem %s9, 1
    %v4818 = vld [vmem:[%s4817] sm:$0x1]
    %v4820 = vlaneseq
    %v4821 = vshrl.u32 %v4820, 7
    %v4822 = vsub.s32 0, %v4821
    %v4823 = vrot.slane %v4818, %v4822
    %v4857 = vunpack.c.l.b16 %v4785
    %v4858 = vunpack.c.h.b16 %v4785
    %v4859 = vunpack.c.l.b16 %v4786
    %v4860 = vunpack.c.l.b16 %v4787
    %v4861 = vunpack.c.h.b16 %v4787
    %v4862 = vunpack.c.l.b16 %v4788
    %v4863 = vunpack.c.l.b16 %v4789
    %v4864 = vunpack.c.h.b16 %v4789
    %v4865 = vunpack.c.l.b16 %v4790
    %v4866 = vunpack.c.l.b16 %v4791
    %v4867 = vunpack.c.h.b16 %v4791
    %v4868 = vunpack.c.l.b16 %v4792
    %v4869 = vunpack.c.l.b16 %v4793
    %v4870 = vunpack.c.h.b16 %v4793
    %v4871 = vunpack.c.l.b16 %v4794
    %v4872 = vunpack.c.l.b16 %v4795
    %v4873 = vunpack.c.h.b16 %v4795
    %v4874 = vunpack.c.l.b16 %v4796
    %v4875 = vunpack.c.l.b16 %v4797
    %v4876 = vunpack.c.h.b16 %v4797
    %v4877 = vunpack.c.l.b16 %v4798
    %v4878 = vunpack.c.l.b16 %v4799
    %v4879 = vunpack.c.h.b16 %v4799
    %v4880 = vunpack.c.l.b16 %v4800
    %v4881 = vunpack.c.l.b16 %v4801
    %v4882 = vunpack.c.h.b16 %v4801
    %v4883 = vunpack.c.l.b16 %v4802
    %v4884 = vunpack.c.l.b16 %v4803
    %v4885 = vunpack.c.h.b16 %v4803
    %v4886 = vunpack.c.l.b16 %v4804
    %v4887 = vunpack.c.l.b16 %v4805
    %v4888 = vunpack.c.h.b16 %v4805
    %v4889 = vunpack.c.l.b16 %v4806
    %v4890 = vunpack.c.l.b16 %v4807
    %v4891 = vunpack.c.h.b16 %v4807
    %v4892 = vunpack.c.l.b16 %v4808
    %v4893 = vunpack.c.l.b16 %v4809
    %v4894 = vunpack.c.h.b16 %v4809
    %v4895 = vunpack.c.l.b16 %v4810
    %v4896 = vunpack.c.l.b16 %v4811
    %v4897 = vunpack.c.h.b16 %v4811
    %v4898 = vunpack.c.l.b16 %v4812
    %v4899 = vunpack.c.l.b16 %v4813
    %v4900 = vunpack.c.h.b16 %v4813
    %v4901 = vunpack.c.l.b16 %v4814
    %v4902 = vunpack.c.l.b16 %v4815
    %v4903 = vunpack.c.h.b16 %v4815
    %v4904 = vunpack.c.l.b16 %v4816
    %v4905 = vpack.c.b16 %v4860, %v4857
    %v4906 = vpack.c.b16 %v4861, %v4858
    %v4907 = vpack.c.b16 %v4862, %v4859
    %v4908 = vpack.c.b16 %v4866, %v4863
    %v4909 = vpack.c.b16 %v4867, %v4864
    %v4910 = vpack.c.b16 %v4868, %v4865
    %v4911 = vpack.c.b16 %v4872, %v4869
    %v4912 = vpack.c.b16 %v4873, %v4870
    %v4913 = vpack.c.b16 %v4874, %v4871
    %v4914 = vpack.c.b16 %v4878, %v4875
    %v4915 = vpack.c.b16 %v4879, %v4876
    %v4916 = vpack.c.b16 %v4880, %v4877
    %v4917 = vpack.c.b16 %v4884, %v4881
    %v4918 = vpack.c.b16 %v4885, %v4882
    %v4919 = vpack.c.b16 %v4886, %v4883
    %v4920 = vpack.c.b16 %v4890, %v4887
    %v4921 = vpack.c.b16 %v4891, %v4888
    %v4922 = vpack.c.b16 %v4892, %v4889
    %v4923 = vpack.c.b16 %v4896, %v4893
    %v4924 = vpack.c.b16 %v4897, %v4894
    %v4925 = vpack.c.b16 %v4898, %v4895
    %v4926 = vpack.c.b16 %v4902, %v4899
    %v4927 = vpack.c.b16 %v4903, %v4900
    %v4928 = vpack.c.b16 %v4904, %v4901
    %4953 = vmatprep.subr.bf16.mxu0 %v4906
    %4954 = vmatpush1.bf16.msra.mxu0 %v4905
    %4955 = vmatprep.subr.bf16.mxu0 %v4909
    %4956 = vmatpush1.bf16.msra.mxu0 %v4908
    %4957 = vmatprep.subr.bf16.mxu0 %v4912
    %4958 = vmatpush1.bf16.msra.mxu0 %v4911
    %4959 = vmatprep.subr.bf16.mxu0 %v4915
    %4960 = vmatpush1.bf16.msra.mxu0 %v4914
    %4961 = vmatprep.subr.bf16.mxu0 %v4918
    %4962 = vmatpush1.bf16.msra.mxu0 %v4917
    %4963 = vmatprep.subr.bf16.mxu0 %v4921
    %4964 = vmatpush1.bf16.msra.mxu0 %v4920
    %4965 = vmatprep.subr.bf16.mxu0 %v4924
    %4966 = vmatpush1.bf16.msra.mxu0 %v4923
    %4967 = vmatprep.subr.bf16.mxu0 %v4927
    %4968 = vmatpush1.bf16.msra.mxu0 %v4926
    %4969 = vmatprep.subr.bf16.mxu0 0
    %4970 = vmatpush1.bf16.msra.mxu0 0
    %4971 = vmatprep.subr.bf16.mxu0 0
    %4972 = vmatpush1.bf16.msra.mxu0 0
    %4973 = vmatprep.subr.bf16.mxu0 0
    %4974 = vmatpush1.bf16.msra.mxu0 0
    %4975 = vmatprep.subr.bf16.mxu0 0
    %4976 = vmatpush1.bf16.msra.mxu0 0
    %4977 = vmatprep.subr.bf16.mxu0 0
    %4978 = vmatpush1.bf16.msra.mxu0 0
    %4979 = vmatprep.subr.bf16.mxu0 0
    %4980 = vmatpush1.bf16.msra.mxu0 0
    %4981 = vmatprep.subr.bf16.mxu0 0
    %4982 = vmatpush1.bf16.msra.mxu0 0
    %4983 = vmatprep.subr.bf16.mxu0 0
    %4984 = vmatpush1.bf16.msra.mxu0 0
    %4985 = vmatprep.mubr.bf16.mxu0 0
    %4986 = vmatmul.mubr.bf16.gmra.mrb[0].mxu0 0
    %v4987 = vpop.f32.mrb[0].mxu0
    %v4988 = vadd.f32 0.0, %v4987
    %v4989 = vpop.f32.mrb[0].mxu0
    %v4990 = vadd.f32 0.0, %v4989
    %v4991 = vpop.f32.mrb[0].mxu0
    %v4992 = vpop.f32.mrb[0].mxu0
    %4993 = vdwg.mxu0
    %4994 = vmatprep.subr.bf16.mxu0 0
    %4995 = vmatpush1.bf16.msra.mxu0 %v4907
    %4996 = vmatprep.subr.bf16.mxu0 0
    %4997 = vmatpush1.bf16.msra.mxu0 %v4910
    %4998 = vmatprep.subr.bf16.mxu0 0
    %4999 = vmatpush1.bf16.msra.mxu0 %v4913
    %5000 = vmatprep.subr.bf16.mxu0 0
    %5001 = vmatpush1.bf16.msra.mxu0 %v4916
    %5002 = vmatprep.subr.bf16.mxu0 0
    %5003 = vmatpush1.bf16.msra.mxu0 %v4919
    %5004 = vmatprep.subr.bf16.mxu0 0
    %5005 = vmatpush1.bf16.msra.mxu0 %v4922
    %5006 = vmatprep.subr.bf16.mxu0 0
    %5007 = vmatpush1.bf16.msra.mxu0 %v4925
    %5008 = vmatprep.subr.bf16.mxu0 0
    %5009 = vmatpush1.bf16.msra.mxu0 %v4928
    %5010 = vmatprep.subr.bf16.mxu0 0
    %5011 = vmatpush1.bf16.msra.mxu0 0
    %5012 = vmatprep.subr.bf16.mxu0 0
    %5013 = vmatpush1.bf16.msra.mxu0 0
    %5014 = vmatprep.subr.bf16.mxu0 0
    %5015 = vmatpush1.bf16.msra.mxu0 0
    %5016 = vmatprep.subr.bf16.mxu0 0
    %5017 = vmatpush1.bf16.msra.mxu0 0
    %5018 = vmatprep.subr.bf16.mxu0 0
    %5019 = vmatpush1.bf16.msra.mxu0 0
    %5020 = vmatprep.subr.bf16.mxu0 0
    %5021 = vmatpush1.bf16.msra.mxu0 0
    %5022 = vmatprep.subr.bf16.mxu0 0
    %5023 = vmatpush1.bf16.msra.mxu0 0
    %5024 = vmatprep.subr.bf16.mxu0 0
    %5025 = vmatpush1.bf16.msra.mxu0 0
    %5026 = vmatprep.mubr.bf16.mxu0 0
    %5027 = vmatmul.mubr.bf16.gmra.mrb[0].mxu0 0
    %v5028 = vpop.f32.mrb[0].mxu0
    %v5029 = vadd.f32 0.0, %v5028
    %v5030 = vpop.f32.mrb[0].mxu0
    %v5031 = vpop.f32.mrb[0].mxu0
    %v5032 = vpop.f32.mrb[0].mxu0
    %5033 = vdwg.mxu0
    %v5034 = vadd.f32 %v4738, %v4988
    %v5035 = vxor.u32 %v5034, 2147483648
    %v5036 = vmul.f32 %v5035, 1.442695
    %v5037 = vpow.pop %v5036
    %v5038 = vadd.f32 %v5037, 1.0
    %v5039 = vrcp.pop %v5038
    %v5040 = vmul.f32 1.0, %v5039
    %v5041 = vadd.f32 %v4740, %v4990
    %v5042 = vxor.u32 %v5041, 2147483648
    %v5043 = vmul.f32 %v5042, 1.442695
    %v5044 = vpow.pop %v5043
    %v5045 = vadd.f32 %v5044, 1.0
    %v5046 = vrcp.pop %v5045
    %v5047 = vmul.f32 1.0, %v5046
    %v5048 = vadd.f32 %v5029, %v4823
    %v5049 = vmul.f32 %v5040, %v5048
    %v5050 = vadd.f32 %v4779, %v5049
    %v5051 = vtanh.pop %v5050
    %v5052 = vsub.f32 1.0, %v5047
    %v5053 = vmul.f32 %v5052, %v5051
    %v5054 = vmul.f32 %v5047, 0.0
    %v5055 = vadd.f32 %v5053, %v5054
    %v5056 = vld [vmem:[%s10] sm:$0xff]
    %v5057 = vld [vmem:[%s10 + $0x8] sm:$0xff]
    %v5058 = vld [vmem:[%s10 + $0x10] sm:$0xff]
    %v5059 = vld [vmem:[%s10 + $0x18] sm:$0xff]
    %v5060 = vld [vmem:[%s10 + $0x20] sm:$0xff]
    %v5061 = vld [vmem:[%s10 + $0x28] sm:$0xff]
    %v5062 = vld [vmem:[%s10 + $0x30] sm:$0xff]
    %v5063 = vld [vmem:[%s10 + $0x38] sm:$0xff]
    %v5064 = vld [vmem:[%s10 + $0x40] sm:$0xff]
    %v5065 = vld [vmem:[%s10 + $0x48] sm:$0xff]
    %v5066 = vld [vmem:[%s10 + $0x50] sm:$0xff]
    %v5067 = vld [vmem:[%s10 + $0x58] sm:$0xff]
    %v5068 = vld [vmem:[%s10 + $0x60] sm:$0xff]
    %v5069 = vld [vmem:[%s10 + $0x68] sm:$0xff]
    %v5070 = vld [vmem:[%s10 + $0x70] sm:$0xff]
    %v5071 = vld [vmem:[%s10 + $0x78] sm:$0xff]
    %v5072 = vld [vmem:[%s10 + $0x80] sm:$0xff]
    %v5073 = vld [vmem:[%s10 + $0x88] sm:$0xff]
    %v5074 = vld [vmem:[%s10 + $0x90] sm:$0xff]
    %v5075 = vld [vmem:[%s10 + $0x98] sm:$0xff]
    %v5076 = vld [vmem:[%s10 + $0xa0] sm:$0xff]
    %v5077 = vld [vmem:[%s10 + $0xa8] sm:$0xff]
    %v5078 = vld [vmem:[%s10 + $0xb0] sm:$0xff]
    %v5079 = vld [vmem:[%s10 + $0xb8] sm:$0xff]
    %v5080 = vld [vmem:[%s10 + $0xc0] sm:$0xff]
    %v5081 = vld [vmem:[%s10 + $0xc8] sm:$0xff]
    %v5082 = vld [vmem:[%s10 + $0xd0] sm:$0xff]
    %v5083 = vld [vmem:[%s10 + $0xd8] sm:$0xff]
    %v5084 = vld [vmem:[%s10 + $0xe0] sm:$0xff]
    %v5085 = vld [vmem:[%s10 + $0xe8] sm:$0xff]
    %v5086 = vld [vmem:[%s10 + $0xf0] sm:$0xff]
    %v5087 = vld [vmem:[%s10 + $0xf8] sm:$0xff]
    %v5088 = vld [vmem:[%s11] sm:$0x1]
    %v5090 = vlaneseq
    %v5091 = vshrl.u32 %v5090, 7
    %v5092 = vsub.s32 0, %v5091
    %v5093 = vrot.slane %v5088, %v5092
    %5095 = vmatprep.subr.mxu0 0.0
    %5096 = vmatpush1.msra.mxu0 %v5056
    %5097 = vmatprep.subr.mxu0 0.0
    %5098 = vmatpush1.msra.mxu0 %v5057
    %5099 = vmatprep.subr.mxu0 0.0
    %5100 = vmatpush1.msra.mxu0 %v5058
    %5101 = vmatprep.subr.mxu0 0.0
    %5102 = vmatpush1.msra.mxu0 %v5059
    %5103 = vmatprep.subr.mxu0 0.0
    %5104 = vmatpush1.msra.mxu0 %v5060
    %5105 = vmatprep.subr.mxu0 0.0
    %5106 = vmatpush1.msra.mxu0 %v5061
    %5107 = vmatprep.subr.mxu0 0.0
    %5108 = vmatpush1.msra.mxu0 %v5062
    %5109 = vmatprep.subr.mxu0 0.0
    %5110 = vmatpush1.msra.mxu0 %v5063
    %5111 = vmatprep.subr.mxu0 0.0
    %5112 = vmatpush1.msra.mxu0 %v5064
    %5113 = vmatprep.subr.mxu0 0.0
    %5114 = vmatpush1.msra.mxu0 %v5065
    %5115 = vmatprep.subr.mxu0 0.0
    %5116 = vmatpush1.msra.mxu0 %v5066
    %5117 = vmatprep.subr.mxu0 0.0
    %5118 = vmatpush1.msra.mxu0 %v5067
    %5119 = vmatprep.subr.mxu0 0.0
    %5120 = vmatpush1.msra.mxu0 %v5068
    %5121 = vmatprep.subr.mxu0 0.0
    %5122 = vmatpush1.msra.mxu0 %v5069
    %5123 = vmatprep.subr.mxu0 0.0
    %5124 = vmatpush1.msra.mxu0 %v5070
    %5125 = vmatprep.subr.mxu0 0.0
    %5126 = vmatpush1.msra.mxu0 %v5071
    %5127 = vmatprep.subr.mxu0 0.0
    %5128 = vmatpush1.msra.mxu0 %v5072
    %5129 = vmatprep.subr.mxu0 0.0
    %5130 = vmatpush1.msra.mxu0 %v5073
    %5131 = vmatprep.subr.mxu0 0.0
    %5132 = vmatpush1.msra.mxu0 %v5074
    %5133 = vmatprep.subr.mxu0 0.0
    %5134 = vmatpush1.msra.mxu0 %v5075
    %5135 = vmatprep.subr.mxu0 0.0
    %5136 = vmatpush1.msra.mxu0 %v5076
    %5137 = vmatprep.subr.mxu0 0.0
    %5138 = vmatpush1.msra.mxu0 %v5077
    %5139 = vmatprep.subr.mxu0 0.0
    %5140 = vmatpush1.msra.mxu0 %v5078
    %5141 = vmatprep.subr.mxu0 0.0
    %5142 = vmatpush1.msra.mxu0 %v5079
    %5143 = vmatprep.subr.mxu0 0.0
    %5144 = vmatpush1.msra.mxu0 %v5080
    %5145 = vmatprep.subr.mxu0 0.0
    %5146 = vmatpush1.msra.mxu0 %v5081
    %5147 = vmatprep.subr.mxu0 0.0
    %5148 = vmatpush1.msra.mxu0 %v5082
    %5149 = vmatprep.subr.mxu0 0.0
    %5150 = vmatpush1.msra.mxu0 %v5083
    %5151 = vmatprep.subr.mxu0 0.0
    %5152 = vmatpush1.msra.mxu0 %v5084
    %5153 = vmatprep.subr.mxu0 0.0
    %5154 = vmatpush1.msra.mxu0 %v5085
    %5155 = vmatprep.subr.mxu0 0.0
    %5156 = vmatpush1.msra.mxu0 %v5086
    %5157 = vmatprep.subr.mxu0 0.0
    %5158 = vmatpush1.msra.mxu0 %v5087
    %5159 = vmatprep.mubr.f32.mxu0 %v5055
    %5160 = vmatmul.mubr.f32.gmra.mrb[0].mxu0 %v4360
    %v5161 = vpop.f32.mrb[0].mxu0
    %v5162 = vadd.f32 %v5093, %v5161
    %v5163 = vpop.f32.mrb[0].mxu0
    %5164 = vdwg.mxu0
    %v5165 = vmax.f32 %v5162, 0.0
    %v5166 = vld [vmem:[%s12] sm:$0xff]
    %v5167 = vld [vmem:[%s12 + $0x8] sm:$0xff]
    %v5168 = vld [vmem:[%s12 + $0x10] sm:$0xff]
    %v5169 = vld [vmem:[%s12 + $0x18] sm:$0xff]
    %v5170 = vld [vmem:[%s12 + $0x20] sm:$0xff]
    %v5171 = vld [vmem:[%s12 + $0x28] sm:$0xff]
    %v5172 = vld [vmem:[%s12 + $0x30] sm:$0xff]
    %v5173 = vld [vmem:[%s12 + $0x38] sm:$0xff]
    %v5174 = vld [vmem:[%s12 + $0x40] sm:$0xff]
    %v5175 = vld [vmem:[%s12 + $0x48] sm:$0xff]
    %v5176 = vld [vmem:[%s12 + $0x50] sm:$0xff]
    %v5177 = vld [vmem:[%s12 + $0x58] sm:$0xff]
    %v5178 = vld [vmem:[%s12 + $0x60] sm:$0xff]
    %v5179 = vld [vmem:[%s12 + $0x68] sm:$0xff]
    %v5180 = vld [vmem:[%s12 + $0x70] sm:$0xff]
    %v5181 = vld [vmem:[%s12 + $0x78] sm:$0xff]
    %v5182 = vld [vmem:[%s13] sm:$0x1]
    %v5184 = vlaneseq
    %v5185 = vshrl.u32 %v5184, 7
    %v5186 = vsub.s32 0, %v5185
    %v5187 = vrot.slane %v5182, %v5186
    %5189 = vmatprep.subr.mxu0 0.0
    %5190 = vmatpush1.msra.mxu0 %v5166
    %5191 = vmatprep.subr.mxu0 0.0
    %5192 = vmatpush1.msra.mxu0 %v5167
    %5193 = vmatprep.subr.mxu0 0.0
    %5194 = vmatpush1.msra.mxu0 %v5168
    %5195 = vmatprep.subr.mxu0 0.0
    %5196 = vmatpush1.msra.mxu0 %v5169
    %5197 = vmatprep.subr.mxu0 0.0
    %5198 = vmatpush1.msra.mxu0 %v5170
    %5199 = vmatprep.subr.mxu0 0.0
    %5200 = vmatpush1.msra.mxu0 %v5171
    %5201 = vmatprep.subr.mxu0 0.0
    %5202 = vmatpush1.msra.mxu0 %v5172
    %5203 = vmatprep.subr.mxu0 0.0
    %5204 = vmatpush1.msra.mxu0 %v5173
    %5205 = vmatprep.subr.mxu0 0.0
    %5206 = vmatpush1.msra.mxu0 %v5174
    %5207 = vmatprep.subr.mxu0 0.0
    %5208 = vmatpush1.msra.mxu0 %v5175
    %5209 = vmatprep.subr.mxu0 0.0
    %5210 = vmatpush1.msra.mxu0 %v5176
    %5211 = vmatprep.subr.mxu0 0.0
    %5212 = vmatpush1.msra.mxu0 %v5177
    %5213 = vmatprep.subr.mxu0 0.0
    %5214 = vmatpush1.msra.mxu0 %v5178
    %5215 = vmatprep.subr.mxu0 0.0
    %5216 = vmatpush1.msra.mxu0 %v5179
    %5217 = vmatprep.subr.mxu0 0.0
    %5218 = vmatpush1.msra.mxu0 %v5180
    %5219 = vmatprep.subr.mxu0 0.0
    %5220 = vmatpush1.msra.mxu0 %v5181
    %5221 = vmatprep.subr.mxu0 0.0
    %5222 = vmatpush1.msra.mxu0 0.0
    %5223 = vmatprep.subr.mxu0 0.0
    %5224 = vmatpush1.msra.mxu0 0.0
    %5225 = vmatprep.subr.mxu0 0.0
    %5226 = vmatpush1.msra.mxu0 0.0
    %5227 = vmatprep.subr.mxu0 0.0
    %5228 = vmatpush1.msra.mxu0 0.0
    %5229 = vmatprep.subr.mxu0 0.0
    %5230 = vmatpush1.msra.mxu0 0.0
    %5231 = vmatprep.subr.mxu0 0.0
    %5232 = vmatpush1.msra.mxu0 0.0
    %5233 = vmatprep.subr.mxu0 0.0
    %5234 = vmatpush1.msra.mxu0 0.0
    %5235 = vmatprep.subr.mxu0 0.0
    %5236 = vmatpush1.msra.mxu0 0.0
    %5237 = vmatprep.subr.mxu0 0.0
    %5238 = vmatpush1.msra.mxu0 0.0
    %5239 = vmatprep.subr.mxu0 0.0
    %5240 = vmatpush1.msra.mxu0 0.0
    %5241 = vmatprep.subr.mxu0 0.0
    %5242 = vmatpush1.msra.mxu0 0.0
    %5243 = vmatprep.subr.mxu0 0.0
    %5244 = vmatpush1.msra.mxu0 0.0
    %5245 = vmatprep.subr.mxu0 0.0
    %5246 = vmatpush1.msra.mxu0 0.0
    %5247 = vmatprep.subr.mxu0 0.0
    %5248 = vmatpush1.msra.mxu0 0.0
    %5249 = vmatprep.subr.mxu0 0.0
    %5250 = vmatpush1.msra.mxu0 0.0
    %5251 = vmatprep.subr.mxu0 0.0
    %5252 = vmatpush1.msra.mxu0 0.0
    %5253 = vmatprep.mubr.f32.mxu0 0.0
    %5254 = vmatmul.mubr.f32.gmra.mrb[0].mxu0 %v5165
    %v5255 = vpop.f32.mrb[0].mxu0
    %v5256 = vadd.f32 %v5187, %v5255
    %v5257 = vpop.f32.mrb[0].mxu0
    %5258 = vdwg.mxu0
    %vm5259 = vcmask 9216
    %5260 = vst.msk [vmem:[#allocation7] sm:$0x3] %vm5259, %v5256
    // Predicated region
    $region58: #{efficient_gru_forward.3} parent=1 // pred_check
      _
    $region59: #{efficient_gru_forward.3} parent=1 // pred_check_branch
      %5262 = sbr.rel (0) target = $region61
    $region60: #{efficient_gru_forward.3} parent=1 // pred_region
      %s5264 = ssub.s32 32, 32
      %5265 = vsyncadd [#allocation8], %s5264
      %s5267 = sshll.u32 [#allocation7], 4
      %s5268 = int_to_ptr.vmem [resolvable:$true] %s5267
      %5270 = dma.vmem_to_hbm [thread:$0]  %s5268, 32, %s14, [#allocation8]
    $region61: #{efficient_gru_forward.3} parent=1 // pred_fallthru
      _
    // Predicated region
    $region62: #{efficient_gru_forward.3} parent=1 // pred_check
      _
    $region63: #{efficient_gru_forward.3} parent=1 // pred_check_branch
      %5272 = sbr.rel (0) target = $region65
    $region64: #{efficient_gru_forward.3} parent=1 // pred_region
      %5273 = dma.done [#allocation8], 32
    $region65: #{efficient_gru_forward.3} parent=1 // pred_fallthru
      _
    %5274 = vsyncpa [#allocation8], 1

</llo_original>
